<compile_context>
chip_gen: v5e
topology: v5e:2x2
jax: 0.10.0
libtpu: 0.0.40
codegen_flags: <defaults>
</compile_context>

<pallas_src>
import functools

import jax
import jax.numpy as jnp
from jax.experimental import pallas as pl
from jax.experimental.pallas import tpu as pltpu

LANE = 128


def _round_up(x, m):
    return ((x + m - 1) // m) * m


def _pick_tile_h(H, W, cin_p, itemsize, target_m=512, p_scr_budget=8 << 20):
    """Pick an H-tile: the smallest divisor of H with TH*W >= target_m whose
    im2col scratch fits the VMEM budget; else the largest fitting divisor."""
    divs = [d for d in range(1, H + 1) if H % d == 0]
    fits = [d for d in divs if d * W * 9 * cin_p * itemsize <= p_scr_budget]
    if not fits:
        return 1
    for d in fits:
        if d * W >= target_m:
            return d
    return fits[-1]


# ---------------------------------------------------------------------------
# Fused kernel: BN(scale/shift) + ReLU + pad(1) + Conv3x3 (+bias)
# ---------------------------------------------------------------------------
def _make_kernel(seg_channels, H, W, TH, cin_p, cout, cout_p):
    nseg = len(seg_channels)

    def kernel(*args):
        seg_refs = args[:nseg]
        scale_ref, shift_ref, w_ref, b_ref, o_ref, a_scr, p_scr = args[nseg:]

        h = pl.program_id(1)

        # --- fused BatchNorm (pre-folded scale/shift) + ReLU into a zero-
        #     initialized, 1-pixel-padded VMEM scratch.  Built ONCE per image
        #     (h == 0); later H-tiles of the same image reuse it (h axis is
        #     "arbitrary", so ordering is guaranteed per core).
        @pl.when(h == 0)
        def _build_activation():
            # Zero fill provides both the conv border and the channel padding.
            a_scr[...] = jnp.zeros_like(a_scr)
            off = 0
            for sref, c in zip(seg_refs, seg_channels):
                v = sref[0, :, :, :].astype(jnp.float32)        # (H, W, c)
                sc = scale_ref[:, off:off + c]                  # (1, c)
                sh = shift_ref[:, off:off + c]
                a_scr[1:H + 1, 1:W + 1, off:off + c] = jnp.maximum(
                    v * sc + sh, 0.0).astype(a_scr.dtype)
                off += c

        # --- im2col for this row tile; each 3x3 tap lands at a 128-aligned
        #     lane offset (tap width = cin_p), so copies are full-lane.
        r0 = pl.multiple_of(h * TH, TH)       # first output row of this tile
        for dy in range(3):
            for dx in range(3):
                kk = (dy * 3 + dx) * cin_p
                p_scr[:, :, kk:kk + cin_p] = a_scr[pl.ds(r0 + dy, TH),
                                                   dx:dx + W, :]

        # --- single MXU matmul (f32 accumulation) + bias; compact store.
        acc = jnp.dot(p_scr[...].reshape(TH * W, 9 * cin_p), w_ref[...],
                      preferred_element_type=jnp.float32)
        acc = acc + b_ref[...]                                  # (1, cout_p)
        out = acc.reshape(1, TH, W, cout_p)[:, :, :, :cout]
        o_ref[...] = out.astype(o_ref.dtype)

    return kernel


def fused_bn_relu_conv3x3(segments, scale, shift, w, b,
                          *, compute_dtype=jnp.bfloat16, tile_h=None):
    """segments: list of NHWC arrays (dense-connectivity inputs, unpadded).
    scale/shift: (1, cin) folded BN parameters over the concatenated channels.
    w: (3, 3, cin, cout) HWIO conv weight; b: (1, cout) bias.
    Returns the new feature segment (N, H, W, cout) in compute_dtype."""
    N, H, W, _ = segments[0].shape
    seg_channels = tuple(int(s.shape[-1]) for s in segments)
    cin = sum(seg_channels)
    cout = int(w.shape[-1])
    cin_p = _round_up(cin, LANE)          # per-tap lane-aligned width
    cout_p = _round_up(cout, LANE)
    itemsize = jnp.dtype(compute_dtype).itemsize

    if tile_h is not None and H % tile_h == 0:
        TH = tile_h
    else:
        TH = _pick_tile_h(H, W, cin_p, itemsize)
    HT = H // TH

    # (3,3,cin,cout) -> 9 taps, each zero-padded to (cin_p, cout_p); zero rows
    # pair with the zero channel padding of a_scr so they contribute exactly 0.
    wk = jnp.pad(w.reshape(9, cin, cout),
                 ((0, 0), (0, cin_p - cin), (0, cout_p - cout)))
    wk = wk.reshape(9 * cin_p, cout_p).astype(compute_dtype)
    bk = jnp.pad(b, ((0, 0), (0, cout_p - cout))).astype(jnp.float32)

    seg_specs = [
        pl.BlockSpec((1, H, W, c), lambda n, h: (n, 0, 0, 0))
        for c in seg_channels
    ]

    kernel = _make_kernel(seg_channels, H, W, TH, cin_p, cout, cout_p)

    out_dtype = compute_dtype
    seg_bytes = sum(int(s.size) * s.dtype.itemsize for s in segments)
    cost = pl.CostEstimate(
        flops=2 * N * H * W * 9 * cin_p * cout_p,
        transcendentals=0,
        bytes_accessed=int(seg_bytes + wk.size * itemsize + 4 * cout_p
                           + N * H * W * cout * jnp.dtype(out_dtype).itemsize))

    return pl.pallas_call(
        kernel,
        out_shape=jax.ShapeDtypeStruct((N, H, W, cout), out_dtype),
        grid=(N, HT),
        in_specs=seg_specs + [
            pl.BlockSpec((1, cin), lambda n, h: (0, 0)),            # BN scale
            pl.BlockSpec((1, cin), lambda n, h: (0, 0)),            # BN shift
            pl.BlockSpec((9 * cin_p, cout_p), lambda n, h: (0, 0)),  # weights
            pl.BlockSpec((1, cout_p), lambda n, h: (0, 0)),         # bias
        ],
        out_specs=pl.BlockSpec((1, TH, W, cout), lambda n, h: (n, h, 0, 0)),
        scratch_shapes=[
            pltpu.VMEM((H + 2, W + 2, cin_p), compute_dtype),   # padded act
            pltpu.VMEM((TH, W, 9 * cin_p), compute_dtype),      # im2col patches
        ],
        compiler_params=pltpu.CompilerParams(
            # h must be "arbitrary": a_scr built at h==0 is reused at h>0.
            dimension_semantics=("parallel", "arbitrary"),
            vmem_limit_bytes=64 * 1024 * 1024),
        cost_estimate=cost,
    )(*segments, scale, shift, wk, bk)


# ---------------------------------------------------------------------------
# DenseBlock forward (matches nn.Module default: BatchNorm2d in training mode
# => per-channel batch statistics with biased variance).
# ---------------------------------------------------------------------------
def dense_block_forward(x_nchw, params, *, eps=1e-5,
                        compute_dtype=jnp.bfloat16, tile_h=None):
    x0 = jnp.transpose(x_nchw, (0, 2, 3, 1)).astype(jnp.float32)  # NCHW->NHWC
    N, H, W, c0 = x0.shape
    cnt = N * H * W

    segments = [x0]
    # Per-segment channel sums / sums-of-squares cached once per segment; BN
    # stats of the concatenated input are assembled from the cache (O(L)).
    seg_sum = [jnp.sum(x0, axis=(0, 1, 2))]
    seg_sq = [jnp.sum(x0 * x0, axis=(0, 1, 2))]

    for gamma, beta, w, b in params:
        mean = jnp.concatenate(seg_sum) / cnt
        var = jnp.concatenate(seg_sq) / cnt - mean * mean   # biased variance
        inv = gamma * jax.lax.rsqrt(var + eps)
        scale = inv[None, :]
        shift = (beta - mean * inv)[None, :]

        y = fused_bn_relu_conv3x3(segments, scale, shift, w, b,
                                  compute_dtype=compute_dtype, tile_h=tile_h)
        segments.append(y)
        yf = y.astype(jnp.float32)
        seg_sum.append(jnp.sum(yf, axis=(0, 1, 2)))
        seg_sq.append(jnp.sum(yf * yf, axis=(0, 1, 2)))

    # Single final assembly pass (torch.cat(..., dim=1) in NHWC).
    out = jnp.concatenate([s.astype(jnp.float32) for s in segments], axis=-1)
    return jnp.transpose(out, (0, 3, 1, 2))                  # NHWC -> NCHW


def init_params(key, num_convs, input_channels, num_channels):
    params = []
    for i in range(num_convs):
        cin = input_channels + i * num_channels
        key, k1, k2, k3, k4 = jax.random.split(key, 5)
        gamma = 1.0 + 0.1 * jax.random.normal(k1, (cin,), jnp.float32)
        beta = 0.1 * jax.random.normal(k2, (cin,), jnp.float32)
        w = jax.random.normal(k3, (3, 3, cin, num_channels), jnp.float32)
        w = w * (1.0 / jnp.sqrt(9.0 * cin))
        b = 0.1 * jax.random.normal(k4, (1, num_channels), jnp.float32)
        params.append((gamma, beta, w, b))
    return params


# Pure-JAX reference for validation.
def ref_forward(x_nchw, params, eps=1e-5):
    x = jnp.transpose(x_nchw, (0, 2, 3, 1))
    for gamma, beta, w, b in params:
        mean = jnp.mean(x, axis=(0, 1, 2))
        var = jnp.mean((x - mean) ** 2, axis=(0, 1, 2))
        a = jnp.maximum((x - mean) / jnp.sqrt(var + eps) * gamma + beta, 0.0)
        y = jax.lax.conv_general_dilated(
            a, w, (1, 1), "SAME",
            dimension_numbers=("NHWC", "HWIO", "NHWC")) + b[0]
        x = jnp.concatenate([x, y], axis=-1)
    return jnp.transpose(x, (0, 3, 1, 2))


if __name__ == "__main__":
    num_convs = 2
    input_channels = 4
    num_channels = 8
    N, H, W = 2, 16, 16

    key = jax.random.PRNGKey(0)
    key, kx = jax.random.split(key)
    x = jax.random.normal(kx, (N, input_channels, H, W), jnp.float32)
    params = init_params(key, num_convs, input_channels, num_channels)

    expected_channels = input_channels + num_convs * num_channels
    ref = jax.block_until_ready(ref_forward(x, params))

    fwd_f32 = jax.jit(functools.partial(dense_block_forward,
                                        compute_dtype=jnp.float32))
    fwd_bf16 = jax.jit(functools.partial(dense_block_forward,
                                         compute_dtype=jnp.bfloat16))

    # f32 MXU / f32 inter-layer path: tight check against the f32 reference.
    out_f32 = jax.block_until_ready(fwd_f32(x, params))
    assert out_f32.shape == (N, expected_channels, H, W), out_f32.shape
    assert jnp.allclose(out_f32, ref, atol=1e-4, rtol=1e-4), float(
        jnp.max(jnp.abs(out_f32 - ref)))

    # bf16 MXU operands + bf16 inter-layer storage: loose sanity tolerance.
    out_bf16 = jax.block_until_ready(fwd_bf16(x, params))
    assert out_bf16.shape == (N, expected_channels, H, W), out_bf16.shape
    assert jnp.allclose(out_bf16, ref, atol=1e-1, rtol=1e-1), float(
        jnp.max(jnp.abs(out_bf16 - ref)))

    print("KERNEL_OK")
</pallas_src>

<mosaic_0001>
module attributes {stable_mosaic.version = 11 : i64} {
  func.func @kernel(%arg0: i32, %arg1: i32, %arg2: memref<1x16x16x4xf32, #tpu.memory_space<vmem>>, %arg3: memref<1x4xf32, #tpu.memory_space<vmem>>, %arg4: memref<1x4xf32, #tpu.memory_space<vmem>>, %arg5: memref<1152x128xf32, #tpu.memory_space<vmem>>, %arg6: memref<1x128xf32, #tpu.memory_space<vmem>>, %arg7: memref<1x16x16x8xf32, #tpu.memory_space<vmem>>, %arg8: memref<18x18x128xf32, #tpu.memory_space<vmem>>, %arg9: memref<16x16x1152xf32, #tpu.memory_space<vmem>>) attributes {dimension_semantics = [#tpu.dimension_semantics<parallel>, #tpu.dimension_semantics<arbitrary>], iteration_bounds = array<i64: 2, 1>, scalar_prefetch = 0 : i64, scratch_operands = 2 : i64, tpu.core_type = #tpu.core_type<tc>, window_params = [{transform_indices = @transform_0, window_bounds = array<i64: 1, 16, 16, 4>}, {pipeline_mode = #tpu.pipeline_mode<synchronous>, transform_indices = @transform_1, window_bounds = array<i64: 1, 4>}, {pipeline_mode = #tpu.pipeline_mode<synchronous>, transform_indices = @transform_2, window_bounds = array<i64: 1, 4>}, {pipeline_mode = #tpu.pipeline_mode<synchronous>, transform_indices = @transform_3, window_bounds = array<i64: 1152, 128>}, {pipeline_mode = #tpu.pipeline_mode<synchronous>, transform_indices = @transform_4, window_bounds = array<i64: 1, 128>}, {transform_indices = @transform_5, window_bounds = array<i64: 1, 16, 16, 8>}]} {
    %c0_i32 = arith.constant 0 : i32
    %0 = arith.cmpi eq, %arg1, %c0_i32 : i32
    %1 = arith.extui %0 : i1 to i32
    %c0_i32_0 = arith.constant 0 : i32
    %2 = arith.cmpi ne, %1, %c0_i32_0 : i32
    scf.if %2 {
      %cst_53 = arith.constant 0.000000e+00 : f32
      %51 = vector.broadcast %cst_53 : f32 to vector<18x18x128xf32>
      %c0_54 = arith.constant 0 : index
      %c0_55 = arith.constant 0 : index
      %c0_56 = arith.constant 0 : index
      %52 = vector.load %arg8[%c0_54, %c0_55, %c0_56] : memref<18x18x128xf32, #tpu.memory_space<vmem>>, vector<18x18x128xf32>
      tpu.vector_store %arg8[%c0_54, %c0_55, %c0_56], %51 {strides = array<i32>} : memref<18x18x128xf32, #tpu.memory_space<vmem>>, vector<18x18x128xf32>,
      %c0_57 = arith.constant 0 : index
      %c0_58 = arith.constant 0 : index
      %c0_59 = arith.constant 0 : index
      %c0_60 = arith.constant 0 : index
      %53 = vector.load %arg2[%c0_57, %c0_58, %c0_59, %c0_60] : memref<1x16x16x4xf32, #tpu.memory_space<vmem>>, vector<1x16x16x4xf32>
      %54 = vector.shape_cast %53 : vector<1x16x16x4xf32> to vector<16x16x4xf32>
      %c0_61 = arith.constant 0 : index
      %c0_62 = arith.constant 0 : index
      %55 = vector.load %arg3[%c0_61, %c0_62] : memref<1x4xf32, #tpu.memory_space<vmem>>, vector<1x4xf32>
      %c0_63 = arith.constant 0 : index
      %c0_64 = arith.constant 0 : index
      %56 = vector.load %arg4[%c0_63, %c0_64] : memref<1x4xf32, #tpu.memory_space<vmem>>, vector<1x4xf32>
      %57 = vector.shape_cast %55 : vector<1x4xf32> to vector<1x1x4xf32>
      %58 = vector.broadcast %57 : vector<1x1x4xf32> to vector<16x16x4xf32>
      %59 = arith.mulf %54, %58 : vector<16x16x4xf32>
      %60 = vector.shape_cast %56 : vector<1x4xf32> to vector<1x1x4xf32>
      %61 = vector.broadcast %60 : vector<1x1x4xf32> to vector<16x16x4xf32>
      %62 = arith.addf %59, %61 : vector<16x16x4xf32>
      %cst_65 = arith.constant 0.000000e+00 : f32
      %63 = vector.broadcast %cst_65 : f32 to vector<16x16x4xf32>
      %64 = arith.maximumf %62, %63 : vector<16x16x4xf32>
      %c1_66 = arith.constant 1 : index
      %c1_67 = arith.constant 1 : index
      %c0_68 = arith.constant 0 : index
      %65 = vector.load %arg8[%c1_66, %c1_67, %c0_68] : memref<18x18x128xf32, #tpu.memory_space<vmem>>, vector<16x16x4xf32>
      tpu.vector_store %arg8[%c1_66, %c1_67, %c0_68], %64 {strides = array<i32>} : memref<18x18x128xf32, #tpu.memory_space<vmem>>, vector<16x16x4xf32>,
    } else {
    }
    %c16_i32 = arith.constant 16 : i32
    %3 = arith.muli %arg1, %c16_i32 : i32
    %4 = tpu.assume_multiple %3, 16 : i32
    %c0_i32_1 = arith.constant 0 : i32
    %5 = arith.addi %4, %c0_i32_1 : i32
    %6 = arith.index_cast %5 : i32 to index
    %c0 = arith.constant 0 : index
    %c0_2 = arith.constant 0 : index
    %7 = vector.load %arg8[%6, %c0, %c0_2] : memref<18x18x128xf32, #tpu.memory_space<vmem>>, vector<16x16x128xf32>
    %c0_3 = arith.constant 0 : index
    %c0_4 = arith.constant 0 : index
    %c0_5 = arith.constant 0 : index
    %8 = vector.load %arg9[%c0_3, %c0_4, %c0_5] : memref<16x16x1152xf32, #tpu.memory_space<vmem>>, vector<16x16x128xf32>
    tpu.vector_store %arg9[%c0_3, %c0_4, %c0_5], %7 {strides = array<i32>} : memref<16x16x1152xf32, #tpu.memory_space<vmem>>, vector<16x16x128xf32>,
    %c0_i32_6 = arith.constant 0 : i32
    %9 = arith.addi %4, %c0_i32_6 : i32
    %10 = arith.index_cast %9 : i32 to index
    %c1 = arith.constant 1 : index
    %c0_7 = arith.constant 0 : index
    %11 = vector.load %arg8[%10, %c1, %c0_7] : memref<18x18x128xf32, #tpu.memory_space<vmem>>, vector<16x16x128xf32>
    %c0_8 = arith.constant 0 : index
    %c0_9 = arith.constant 0 : index
    %c128 = arith.constant 128 : index
    %12 = vector.load %arg9[%c0_8, %c0_9, %c128] : memref<16x16x1152xf32, #tpu.memory_space<vmem>>, vector<16x16x128xf32>
    tpu.vector_store %arg9[%c0_8, %c0_9, %c128], %11 {strides = array<i32>} : memref<16x16x1152xf32, #tpu.memory_space<vmem>>, vector<16x16x128xf32>,
    %c0_i32_10 = arith.constant 0 : i32
    %13 = arith.addi %4, %c0_i32_10 : i32
    %14 = arith.index_cast %13 : i32 to index
    %c2 = arith.constant 2 : index
    %c0_11 = arith.constant 0 : index
    %15 = vector.load %arg8[%14, %c2, %c0_11] : memref<18x18x128xf32, #tpu.memory_space<vmem>>, vector<16x16x128xf32>
    %c0_12 = arith.constant 0 : index
    %c0_13 = arith.constant 0 : index
    %c256 = arith.constant 256 : index
    %16 = vector.load %arg9[%c0_12, %c0_13, %c256] : memref<16x16x1152xf32, #tpu.memory_space<vmem>>, vector<16x16x128xf32>
    tpu.vector_store %arg9[%c0_12, %c0_13, %c256], %15 {strides = array<i32>} : memref<16x16x1152xf32, #tpu.memory_space<vmem>>, vector<16x16x128xf32>,
    %c1_i32 = arith.constant 1 : i32
    %17 = arith.addi %4, %c1_i32 : i32
    %18 = arith.index_cast %17 : i32 to index
    %c0_14 = arith.constant 0 : index
    %c0_15 = arith.constant 0 : index
    %19 = vector.load %arg8[%18, %c0_14, %c0_15] : memref<18x18x128xf32, #tpu.memory_space<vmem>>, vector<16x16x128xf32>
    %c0_16 = arith.constant 0 : index
    %c0_17 = arith.constant 0 : index
    %c384 = arith.constant 384 : index
    %20 = vector.load %arg9[%c0_16, %c0_17, %c384] : memref<16x16x1152xf32, #tpu.memory_space<vmem>>, vector<16x16x128xf32>
    tpu.vector_store %arg9[%c0_16, %c0_17, %c384], %19 {strides = array<i32>} : memref<16x16x1152xf32, #tpu.memory_space<vmem>>, vector<16x16x128xf32>,
    %c1_i32_18 = arith.constant 1 : i32
    %21 = arith.addi %4, %c1_i32_18 : i32
    %22 = arith.index_cast %21 : i32 to index
    %c1_19 = arith.constant 1 : index
    %c0_20 = arith.constant 0 : index
    %23 = vector.load %arg8[%22, %c1_19, %c0_20] : memref<18x18x128xf32, #tpu.memory_space<vmem>>, vector<16x16x128xf32>
    %c0_21 = arith.constant 0 : index
    %c0_22 = arith.constant 0 : index
    %c512 = arith.constant 512 : index
    %24 = vector.load %arg9[%c0_21, %c0_22, %c512] : memref<16x16x1152xf32, #tpu.memory_space<vmem>>, vector<16x16x128xf32>
    tpu.vector_store %arg9[%c0_21, %c0_22, %c512], %23 {strides = array<i32>} : memref<16x16x1152xf32, #tpu.memory_space<vmem>>, vector<16x16x128xf32>,
    %c1_i32_23 = arith.constant 1 : i32
    %25 = arith.addi %4, %c1_i32_23 : i32
    %26 = arith.index_cast %25 : i32 to index
    %c2_24 = arith.constant 2 : index
    %c0_25 = arith.constant 0 : index
    %27 = vector.load %arg8[%26, %c2_24, %c0_25] : memref<18x18x128xf32, #tpu.memory_space<vmem>>, vector<16x16x128xf32>
    %c0_26 = arith.constant 0 : index
    %c0_27 = arith.constant 0 : index
    %c640 = arith.constant 640 : index
    %28 = vector.load %arg9[%c0_26, %c0_27, %c640] : memref<16x16x1152xf32, #tpu.memory_space<vmem>>, vector<16x16x128xf32>
    tpu.vector_store %arg9[%c0_26, %c0_27, %c640], %27 {strides = array<i32>} : memref<16x16x1152xf32, #tpu.memory_space<vmem>>, vector<16x16x128xf32>,
    %c2_i32 = arith.constant 2 : i32
    %29 = arith.addi %4, %c2_i32 : i32
    %30 = arith.index_cast %29 : i32 to index
    %c0_28 = arith.constant 0 : index
    %c0_29 = arith.constant 0 : index
    %31 = vector.load %arg8[%30, %c0_28, %c0_29] : memref<18x18x128xf32, #tpu.memory_space<vmem>>, vector<16x16x128xf32>
    %c0_30 = arith.constant 0 : index
    %c0_31 = arith.constant 0 : index
    %c768 = arith.constant 768 : index
    %32 = vector.load %arg9[%c0_30, %c0_31, %c768] : memref<16x16x1152xf32, #tpu.memory_space<vmem>>, vector<16x16x128xf32>
    tpu.vector_store %arg9[%c0_30, %c0_31, %c768], %31 {strides = array<i32>} : memref<16x16x1152xf32, #tpu.memory_space<vmem>>, vector<16x16x128xf32>,
    %c2_i32_32 = arith.constant 2 : i32
    %33 = arith.addi %4, %c2_i32_32 : i32
    %34 = arith.index_cast %33 : i32 to index
    %c1_33 = arith.constant 1 : index
    %c0_34 = arith.constant 0 : index
    %35 = vector.load %arg8[%34, %c1_33, %c0_34] : memref<18x18x128xf32, #tpu.memory_space<vmem>>, vector<16x16x128xf32>
    %c0_35 = arith.constant 0 : index
    %c0_36 = arith.constant 0 : index
    %c896 = arith.constant 896 : index
    %36 = vector.load %arg9[%c0_35, %c0_36, %c896] : memref<16x16x1152xf32, #tpu.memory_space<vmem>>, vector<16x16x128xf32>
    tpu.vector_store %arg9[%c0_35, %c0_36, %c896], %35 {strides = array<i32>} : memref<16x16x1152xf32, #tpu.memory_space<vmem>>, vector<16x16x128xf32>,
    %c2_i32_37 = arith.constant 2 : i32
    %37 = arith.addi %4, %c2_i32_37 : i32
    %38 = arith.index_cast %37 : i32 to index
    %c2_38 = arith.constant 2 : index
    %c0_39 = arith.constant 0 : index
    %39 = vector.load %arg8[%38, %c2_38, %c0_39] : memref<18x18x128xf32, #tpu.memory_space<vmem>>, vector<16x16x128xf32>
    %c0_40 = arith.constant 0 : index
    %c0_41 = arith.constant 0 : index
    %c1024 = arith.constant 1024 : index
    %40 = vector.load %arg9[%c0_40, %c0_41, %c1024] : memref<16x16x1152xf32, #tpu.memory_space<vmem>>, vector<16x16x128xf32>
    tpu.vector_store %arg9[%c0_40, %c0_41, %c1024], %39 {strides = array<i32>} : memref<16x16x1152xf32, #tpu.memory_space<vmem>>, vector<16x16x128xf32>,
    %c0_42 = arith.constant 0 : index
    %c0_43 = arith.constant 0 : index
    %c0_44 = arith.constant 0 : index
    %41 = vector.load %arg9[%c0_42, %c0_43, %c0_44] : memref<16x16x1152xf32, #tpu.memory_space<vmem>>, vector<16x16x1152xf32>
    %42 = vector.shape_cast %41 : vector<16x16x1152xf32> to vector<256x1152xf32>
    %c0_45 = arith.constant 0 : index
    %c0_46 = arith.constant 0 : index
    %43 = vector.load %arg5[%c0_45, %c0_46] : memref<1152x128xf32, #tpu.memory_space<vmem>>, vector<1152x128xf32>
    %cst = arith.constant dense<0.000000e+00> : vector<256x128xf32>
    %44 = tpu.matmul %42, %43, %cst {dimension_numbers = #tpu.dot_dimension_numbers<[1], [0], [0], [1], [0, 0, 1, 1], [], []>} : vector<256x1152xf32>, vector<1152x128xf32>, vector<256x128xf32> -> vector<256x128xf32>
    %c0_47 = arith.constant 0 : index
    %c0_48 = arith.constant 0 : index
    %45 = vector.load %arg6[%c0_47, %c0_48] : memref<1x128xf32, #tpu.memory_space<vmem>>, vector<1x128xf32>
    %46 = vector.broadcast %45 : vector<1x128xf32> to vector<256x128xf32>
    %47 = arith.addf %44, %46 : vector<256x128xf32>
    %48 = vector.shape_cast %47 : vector<256x128xf32> to vector<1x16x16x128xf32>
    %49 = vector.extract_strided_slice %48 {offsets = [0, 0, 0, 0], sizes = [1, 16, 16, 8], strides = [1, 1, 1, 1]} : vector<1x16x16x128xf32> to vector<1x16x16x8xf32>
    %c0_49 = arith.constant 0 : index
    %c0_50 = arith.constant 0 : index
    %c0_51 = arith.constant 0 : index
    %c0_52 = arith.constant 0 : index
    %50 = vector.load %arg7[%c0_49, %c0_50, %c0_51, %c0_52] : memref<1x16x16x8xf32, #tpu.memory_space<vmem>>, vector<1x16x16x8xf32>
    tpu.vector_store %arg7[%c0_49, %c0_50, %c0_51, %c0_52], %49 {strides = array<i32>} : memref<1x16x16x8xf32, #tpu.memory_space<vmem>>, vector<1x16x16x8xf32>,
    return
  }
  func.func @transform_0(%arg0: i32, %arg1: i32) -> (i32, i32, i32, i32) {
    %c0_i32 = arith.constant 0 : i32
    %c0_i32_0 = arith.constant 0 : i32
    %c0_i32_1 = arith.constant 0 : i32
    %c0_i32_2 = arith.constant 0 : i32
    return %arg0, %c0_i32, %c0_i32_0, %c0_i32_1 : i32, i32, i32, i32
  }
  func.func @transform_1(%arg0: i32, %arg1: i32) -> (i32, i32) {
    %c0_i32 = arith.constant 0 : i32
    %c0_i32_0 = arith.constant 0 : i32
    %c0_i32_1 = arith.constant 0 : i32
    return %c0_i32, %c0_i32_0 : i32, i32
  }
  func.func @transform_2(%arg0: i32, %arg1: i32) -> (i32, i32) {
    %c0_i32 = arith.constant 0 : i32
    %c0_i32_0 = arith.constant 0 : i32
    %c0_i32_1 = arith.constant 0 : i32
    return %c0_i32, %c0_i32_0 : i32, i32
  }
  func.func @transform_3(%arg0: i32, %arg1: i32) -> (i32, i32) {
    %c0_i32 = arith.constant 0 : i32
    %c0_i32_0 = arith.constant 0 : i32
    %c0_i32_1 = arith.constant 0 : i32
    return %c0_i32, %c0_i32_0 : i32, i32
  }
  func.func @transform_4(%arg0: i32, %arg1: i32) -> (i32, i32) {
    %c0_i32 = arith.constant 0 : i32
    %c0_i32_0 = arith.constant 0 : i32
    %c0_i32_1 = arith.constant 0 : i32
    return %c0_i32, %c0_i32_0 : i32, i32
  }
  func.func @transform_5(%arg0: i32, %arg1: i32) -> (i32, i32, i32, i32) {
    %c0_i32 = arith.constant 0 : i32
    %c0_i32_0 = arith.constant 0 : i32
    %c0_i32_1 = arith.constant 0 : i32
    return %arg0, %arg1, %c0_i32, %c0_i32_0 : i32, i32, i32, i32
  }
}

module attributes {stable_mosaic.version = 11 : i64} {
  func.func @kernel(%arg0: i32, %arg1: i32, %arg2: memref<1x16x16x4xf32, #tpu.memory_space<vmem>>, %arg3: memref<1x16x16x8xf32, #tpu.memory_space<vmem>>, %arg4: memref<1x12xf32, #tpu.memory_space<vmem>>, %arg5: memref<1x12xf32, #tpu.memory_space<vmem>>, %arg6: memref<1152x128xf32, #tpu.memory_space<vmem>>, %arg7: memref<1x128xf32, #tpu.memory_space<vmem>>, %arg8: memref<1x16x16x8xf32, #tpu.memory_space<vmem>>, %arg9: memref<18x18x128xf32, #tpu.memory_space<vmem>>, %arg10: memref<16x16x1152xf32, #tpu.memory_space<vmem>>) attributes {dimension_semantics = [#tpu.dimension_semantics<parallel>, #tpu.dimension_semantics<arbitrary>], iteration_bounds = array<i64: 2, 1>, scalar_prefetch = 0 : i64, scratch_operands = 2 : i64, tpu.core_type = #tpu.core_type<tc>, window_params = [{transform_indices = @transform_0, window_bounds = array<i64: 1, 16, 16, 4>}, {transform_indices = @transform_1, window_bounds = array<i64: 1, 16, 16, 8>}, {pipeline_mode = #tpu.pipeline_mode<synchronous>, transform_indices = @transform_2, window_bounds = array<i64: 1, 12>}, {pipeline_mode = #tpu.pipeline_mode<synchronous>, transform_indices = @transform_3, window_bounds = array<i64: 1, 12>}, {pipeline_mode = #tpu.pipeline_mode<synchronous>, transform_indices = @transform_4, window_bounds = array<i64: 1152, 128>}, {pipeline_mode = #tpu.pipeline_mode<synchronous>, transform_indices = @transform_5, window_bounds = array<i64: 1, 128>}, {transform_indices = @transform_6, window_bounds = array<i64: 1, 16, 16, 8>}]} {
    %c0_i32 = arith.constant 0 : i32
    %0 = arith.cmpi eq, %arg1, %c0_i32 : i32
    %1 = arith.extui %0 : i1 to i32
    %c0_i32_0 = arith.constant 0 : i32
    %2 = arith.cmpi ne, %1, %c0_i32_0 : i32
    scf.if %2 {
      %cst_53 = arith.constant 0.000000e+00 : f32
      %51 = vector.broadcast %cst_53 : f32 to vector<18x18x128xf32>
      %c0_54 = arith.constant 0 : index
      %c0_55 = arith.constant 0 : index
      %c0_56 = arith.constant 0 : index
      %52 = vector.load %arg9[%c0_54, %c0_55, %c0_56] : memref<18x18x128xf32, #tpu.memory_space<vmem>>, vector<18x18x128xf32>
      tpu.vector_store %arg9[%c0_54, %c0_55, %c0_56], %51 {strides = array<i32>} : memref<18x18x128xf32, #tpu.memory_space<vmem>>, vector<18x18x128xf32>,
      %c0_57 = arith.constant 0 : index
      %c0_58 = arith.constant 0 : index
      %c0_59 = arith.constant 0 : index
      %c0_60 = arith.constant 0 : index
      %53 = vector.load %arg2[%c0_57, %c0_58, %c0_59, %c0_60] : memref<1x16x16x4xf32, #tpu.memory_space<vmem>>, vector<1x16x16x4xf32>
      %54 = vector.shape_cast %53 : vector<1x16x16x4xf32> to vector<16x16x4xf32>
      %c0_61 = arith.constant 0 : index
      %c0_62 = arith.constant 0 : index
      %55 = vector.load %arg4[%c0_61, %c0_62] : memref<1x12xf32, #tpu.memory_space<vmem>>, vector<1x4xf32>
      %c0_63 = arith.constant 0 : index
      %c0_64 = arith.constant 0 : index
      %56 = vector.load %arg5[%c0_63, %c0_64] : memref<1x12xf32, #tpu.memory_space<vmem>>, vector<1x4xf32>
      %57 = vector.shape_cast %55 : vector<1x4xf32> to vector<1x1x4xf32>
      %58 = vector.broadcast %57 : vector<1x1x4xf32> to vector<16x16x4xf32>
      %59 = arith.mulf %54, %58 : vector<16x16x4xf32>
      %60 = vector.shape_cast %56 : vector<1x4xf32> to vector<1x1x4xf32>
      %61 = vector.broadcast %60 : vector<1x1x4xf32> to vector<16x16x4xf32>
      %62 = arith.addf %59, %61 : vector<16x16x4xf32>
      %cst_65 = arith.constant 0.000000e+00 : f32
      %63 = vector.broadcast %cst_65 : f32 to vector<16x16x4xf32>
      %64 = arith.maximumf %62, %63 : vector<16x16x4xf32>
      %c1_66 = arith.constant 1 : index
      %c1_67 = arith.constant 1 : index
      %c0_68 = arith.constant 0 : index
      %65 = vector.load %arg9[%c1_66, %c1_67, %c0_68] : memref<18x18x128xf32, #tpu.memory_space<vmem>>, vector<16x16x4xf32>
      tpu.vector_store %arg9[%c1_66, %c1_67, %c0_68], %64 {strides = array<i32>} : memref<18x18x128xf32, #tpu.memory_space<vmem>>, vector<16x16x4xf32>,
      %c0_69 = arith.constant 0 : index
      %c0_70 = arith.constant 0 : index
      %c0_71 = arith.constant 0 : index
      %c0_72 = arith.constant 0 : index
      %66 = vector.load %arg3[%c0_69, %c0_70, %c0_71, %c0_72] : memref<1x16x16x8xf32, #tpu.memory_space<vmem>>, vector<1x16x16x8xf32>
      %67 = vector.shape_cast %66 : vector<1x16x16x8xf32> to vector<16x16x8xf32>
      %c0_73 = arith.constant 0 : index
      %c4 = arith.constant 4 : index
      %68 = vector.load %arg4[%c0_73, %c4] : memref<1x12xf32, #tpu.memory_space<vmem>>, vector<1x8xf32>
      %c0_74 = arith.constant 0 : index
      %c4_75 = arith.constant 4 : index
      %69 = vector.load %arg5[%c0_74, %c4_75] : memref<1x12xf32, #tpu.memory_space<vmem>>, vector<1x8xf32>
      %70 = vector.shape_cast %68 : vector<1x8xf32> to vector<1x1x8xf32>
      %71 = vector.broadcast %70 : vector<1x1x8xf32> to vector<16x16x8xf32>
      %72 = arith.mulf %67, %71 : vector<16x16x8xf32>
      %73 = vector.shape_cast %69 : vector<1x8xf32> to vector<1x1x8xf32>
      %74 = vector.broadcast %73 : vector<1x1x8xf32> to vector<16x16x8xf32>
      %75 = arith.addf %72, %74 : vector<16x16x8xf32>
      %cst_76 = arith.constant 0.000000e+00 : f32
      %76 = vector.broadcast %cst_76 : f32 to vector<16x16x8xf32>
      %77 = arith.maximumf %75, %76 : vector<16x16x8xf32>
      %c1_77 = arith.constant 1 : index
      %c1_78 = arith.constant 1 : index
      %c4_79 = arith.constant 4 : index
      %78 = vector.load %arg9[%c1_77, %c1_78, %c4_79] : memref<18x18x128xf32, #tpu.memory_space<vmem>>, vector<16x16x8xf32>
      tpu.vector_store %arg9[%c1_77, %c1_78, %c4_79], %77 {strides = array<i32>} : memref<18x18x128xf32, #tpu.memory_space<vmem>>, vector<16x16x8xf32>,
    } else {
    }
    %c16_i32 = arith.constant 16 : i32
    %3 = arith.muli %arg1, %c16_i32 : i32
    %4 = tpu.assume_multiple %3, 16 : i32
    %c0_i32_1 = arith.constant 0 : i32
    %5 = arith.addi %4, %c0_i32_1 : i32
    %6 = arith.index_cast %5 : i32 to index
    %c0 = arith.constant 0 : index
    %c0_2 = arith.constant 0 : index
    %7 = vector.load %arg9[%6, %c0, %c0_2] : memref<18x18x128xf32, #tpu.memory_space<vmem>>, vector<16x16x128xf32>
    %c0_3 = arith.constant 0 : index
    %c0_4 = arith.constant 0 : index
    %c0_5 = arith.constant 0 : index
    %8 = vector.load %arg10[%c0_3, %c0_4, %c0_5] : memref<16x16x1152xf32, #tpu.memory_space<vmem>>, vector<16x16x128xf32>
    tpu.vector_store %arg10[%c0_3, %c0_4, %c0_5], %7 {strides = array<i32>} : memref<16x16x1152xf32, #tpu.memory_space<vmem>>, vector<16x16x128xf32>,
    %c0_i32_6 = arith.constant 0 : i32
    %9 = arith.addi %4, %c0_i32_6 : i32
    %10 = arith.index_cast %9 : i32 to index
    %c1 = arith.constant 1 : index
    %c0_7 = arith.constant 0 : index
    %11 = vector.load %arg9[%10, %c1, %c0_7] : memref<18x18x128xf32, #tpu.memory_space<vmem>>, vector<16x16x128xf32>
    %c0_8 = arith.constant 0 : index
    %c0_9 = arith.constant 0 : index
    %c128 = arith.constant 128 : index
    %12 = vector.load %arg10[%c0_8, %c0_9, %c128] : memref<16x16x1152xf32, #tpu.memory_space<vmem>>, vector<16x16x128xf32>
    tpu.vector_store %arg10[%c0_8, %c0_9, %c128], %11 {strides = array<i32>} : memref<16x16x1152xf32, #tpu.memory_space<vmem>>, vector<16x16x128xf32>,
    %c0_i32_10 = arith.constant 0 : i32
    %13 = arith.addi %4, %c0_i32_10 : i32
    %14 = arith.index_cast %13 : i32 to index
    %c2 = arith.constant 2 : index
    %c0_11 = arith.constant 0 : index
    %15 = vector.load %arg9[%14, %c2, %c0_11] : memref<18x18x128xf32, #tpu.memory_space<vmem>>, vector<16x16x128xf32>
    %c0_12 = arith.constant 0 : index
    %c0_13 = arith.constant 0 : index
    %c256 = arith.constant 256 : index
    %16 = vector.load %arg10[%c0_12, %c0_13, %c256] : memref<16x16x1152xf32, #tpu.memory_space<vmem>>, vector<16x16x128xf32>
    tpu.vector_store %arg10[%c0_12, %c0_13, %c256], %15 {strides = array<i32>} : memref<16x16x1152xf32, #tpu.memory_space<vmem>>, vector<16x16x128xf32>,
    %c1_i32 = arith.constant 1 : i32
    %17 = arith.addi %4, %c1_i32 : i32
    %18 = arith.index_cast %17 : i32 to index
    %c0_14 = arith.constant 0 : index
    %c0_15 = arith.constant 0 : index
    %19 = vector.load %arg9[%18, %c0_14, %c0_15] : memref<18x18x128xf32, #tpu.memory_space<vmem>>, vector<16x16x128xf32>
    %c0_16 = arith.constant 0 : index
    %c0_17 = arith.constant 0 : index
    %c384 = arith.constant 384 : index
    %20 = vector.load %arg10[%c0_16, %c0_17, %c384] : memref<16x16x1152xf32, #tpu.memory_space<vmem>>, vector<16x16x128xf32>
    tpu.vector_store %arg10[%c0_16, %c0_17, %c384], %19 {strides = array<i32>} : memref<16x16x1152xf32, #tpu.memory_space<vmem>>, vector<16x16x128xf32>,
    %c1_i32_18 = arith.constant 1 : i32
    %21 = arith.addi %4, %c1_i32_18 : i32
    %22 = arith.index_cast %21 : i32 to index
    %c1_19 = arith.constant 1 : index
    %c0_20 = arith.constant 0 : index
    %23 = vector.load %arg9[%22, %c1_19, %c0_20] : memref<18x18x128xf32, #tpu.memory_space<vmem>>, vector<16x16x128xf32>
    %c0_21 = arith.constant 0 : index
    %c0_22 = arith.constant 0 : index
    %c512 = arith.constant 512 : index
    %24 = vector.load %arg10[%c0_21, %c0_22, %c512] : memref<16x16x1152xf32, #tpu.memory_space<vmem>>, vector<16x16x128xf32>
    tpu.vector_store %arg10[%c0_21, %c0_22, %c512], %23 {strides = array<i32>} : memref<16x16x1152xf32, #tpu.memory_space<vmem>>, vector<16x16x128xf32>,
    %c1_i32_23 = arith.constant 1 : i32
    %25 = arith.addi %4, %c1_i32_23 : i32
    %26 = arith.index_cast %25 : i32 to index
    %c2_24 = arith.constant 2 : index
    %c0_25 = arith.constant 0 : index
    %27 = vector.load %arg9[%26, %c2_24, %c0_25] : memref<18x18x128xf32, #tpu.memory_space<vmem>>, vector<16x16x128xf32>
    %c0_26 = arith.constant 0 : index
    %c0_27 = arith.constant 0 : index
    %c640 = arith.constant 640 : index
    %28 = vector.load %arg10[%c0_26, %c0_27, %c640] : memref<16x16x1152xf32, #tpu.memory_space<vmem>>, vector<16x16x128xf32>
    tpu.vector_store %arg10[%c0_26, %c0_27, %c640], %27 {strides = array<i32>} : memref<16x16x1152xf32, #tpu.memory_space<vmem>>, vector<16x16x128xf32>,
    %c2_i32 = arith.constant 2 : i32
    %29 = arith.addi %4, %c2_i32 : i32
    %30 = arith.index_cast %29 : i32 to index
    %c0_28 = arith.constant 0 : index
    %c0_29 = arith.constant 0 : index
    %31 = vector.load %arg9[%30, %c0_28, %c0_29] : memref<18x18x128xf32, #tpu.memory_space<vmem>>, vector<16x16x128xf32>
    %c0_30 = arith.constant 0 : index
    %c0_31 = arith.constant 0 : index
    %c768 = arith.constant 768 : index
    %32 = vector.load %arg10[%c0_30, %c0_31, %c768] : memref<16x16x1152xf32, #tpu.memory_space<vmem>>, vector<16x16x128xf32>
    tpu.vector_store %arg10[%c0_30, %c0_31, %c768], %31 {strides = array<i32>} : memref<16x16x1152xf32, #tpu.memory_space<vmem>>, vector<16x16x128xf32>,
    %c2_i32_32 = arith.constant 2 : i32
    %33 = arith.addi %4, %c2_i32_32 : i32
    %34 = arith.index_cast %33 : i32 to index
    %c1_33 = arith.constant 1 : index
    %c0_34 = arith.constant 0 : index
    %35 = vector.load %arg9[%34, %c1_33, %c0_34] : memref<18x18x128xf32, #tpu.memory_space<vmem>>, vector<16x16x128xf32>
    %c0_35 = arith.constant 0 : index
    %c0_36 = arith.constant 0 : index
    %c896 = arith.constant 896 : index
    %36 = vector.load %arg10[%c0_35, %c0_36, %c896] : memref<16x16x1152xf32, #tpu.memory_space<vmem>>, vector<16x16x128xf32>
    tpu.vector_store %arg10[%c0_35, %c0_36, %c896], %35 {strides = array<i32>} : memref<16x16x1152xf32, #tpu.memory_space<vmem>>, vector<16x16x128xf32>,
    %c2_i32_37 = arith.constant 2 : i32
    %37 = arith.addi %4, %c2_i32_37 : i32
    %38 = arith.index_cast %37 : i32 to index
    %c2_38 = arith.constant 2 : index
    %c0_39 = arith.constant 0 : index
    %39 = vector.load %arg9[%38, %c2_38, %c0_39] : memref<18x18x128xf32, #tpu.memory_space<vmem>>, vector<16x16x128xf32>
    %c0_40 = arith.constant 0 : index
    %c0_41 = arith.constant 0 : index
    %c1024 = arith.constant 1024 : index
    %40 = vector.load %arg10[%c0_40, %c0_41, %c1024] : memref<16x16x1152xf32, #tpu.memory_space<vmem>>, vector<16x16x128xf32>
    tpu.vector_store %arg10[%c0_40, %c0_41, %c1024], %39 {strides = array<i32>} : memref<16x16x1152xf32, #tpu.memory_space<vmem>>, vector<16x16x128xf32>,
    %c0_42 = arith.constant 0 : index
    %c0_43 = arith.constant 0 : index
    %c0_44 = arith.constant 0 : index
    %41 = vector.load %arg10[%c0_42, %c0_43, %c0_44] : memref<16x16x1152xf32, #tpu.memory_space<vmem>>, vector<16x16x1152xf32>
    %42 = vector.shape_cast %41 : vector<16x16x1152xf32> to vector<256x1152xf32>
    %c0_45 = arith.constant 0 : index
    %c0_46 = arith.constant 0 : index
    %43 = vector.load %arg6[%c0_45, %c0_46] : memref<1152x128xf32, #tpu.memory_space<vmem>>, vector<1152x128xf32>
    %cst = arith.constant dense<0.000000e+00> : vector<256x128xf32>
    %44 = tpu.matmul %42, %43, %cst {dimension_numbers = #tpu.dot_dimension_numbers<[1], [0], [0], [1], [0, 0, 1, 1], [], []>} : vector<256x1152xf32>, vector<1152x128xf32>, vector<256x128xf32> -> vector<256x128xf32>
    %c0_47 = arith.constant 0 : index
    %c0_48 = arith.constant 0 : index
    %45 = vector.load %arg7[%c0_47, %c0_48] : memref<1x128xf32, #tpu.memory_space<vmem>>, vector<1x128xf32>
    %46 = vector.broadcast %45 : vector<1x128xf32> to vector<256x128xf32>
    %47 = arith.addf %44, %46 : vector<256x128xf32>
    %48 = vector.shape_cast %47 : vector<256x128xf32> to vector<1x16x16x128xf32>
    %49 = vector.extract_strided_slice %48 {offsets = [0, 0, 0, 0], sizes = [1, 16, 16, 8], strides = [1, 1, 1, 1]} : vector<1x16x16x128xf32> to vector<1x16x16x8xf32>
    %c0_49 = arith.constant 0 : index
    %c0_50 = arith.constant 0 : index
    %c0_51 = arith.constant 0 : index
    %c0_52 = arith.constant 0 : index
    %50 = vector.load %arg8[%c0_49, %c0_50, %c0_51, %c0_52] : memref<1x16x16x8xf32, #tpu.memory_space<vmem>>, vector<1x16x16x8xf32>
    tpu.vector_store %arg8[%c0_49, %c0_50, %c0_51, %c0_52], %49 {strides = array<i32>} : memref<1x16x16x8xf32, #tpu.memory_space<vmem>>, vector<1x16x16x8xf32>,
    return
  }
  func.func @transform_0(%arg0: i32, %arg1: i32) -> (i32, i32, i32, i32) {
    %c0_i32 = arith.constant 0 : i32
    %c0_i32_0 = arith.constant 0 : i32
    %c0_i32_1 = arith.constant 0 : i32
    %c0_i32_2 = arith.constant 0 : i32
    return %arg0, %c0_i32, %c0_i32_0, %c0_i32_1 : i32, i32, i32, i32
  }
  func.func @transform_1(%arg0: i32, %arg1: i32) -> (i32, i32, i32, i32) {
    %c0_i32 = arith.constant 0 : i32
    %c0_i32_0 = arith.constant 0 : i32
    %c0_i32_1 = arith.constant 0 : i32
    %c0_i32_2 = arith.constant 0 : i32
    return %arg0, %c0_i32, %c0_i32_0, %c0_i32_1 : i32, i32, i32, i32
  }
  func.func @transform_2(%arg0: i32, %arg1: i32) -> (i32, i32) {
    %c0_i32 = arith.constant 0 : i32
    %c0_i32_0 = arith.constant 0 : i32
    %c0_i32_1 = arith.constant 0 : i32
    return %c0_i32, %c0_i32_0 : i32, i32
  }
  func.func @transform_3(%arg0: i32, %arg1: i32) -> (i32, i32) {
    %c0_i32 = arith.constant 0 : i32
    %c0_i32_0 = arith.constant 0 : i32
    %c0_i32_1 = arith.constant 0 : i32
    return %c0_i32, %c0_i32_0 : i32, i32
  }
  func.func @transform_4(%arg0: i32, %arg1: i32) -> (i32, i32) {
    %c0_i32 = arith.constant 0 : i32
    %c0_i32_0 = arith.constant 0 : i32
    %c0_i32_1 = arith.constant 0 : i32
    return %c0_i32, %c0_i32_0 : i32, i32
  }
  func.func @transform_5(%arg0: i32, %arg1: i32) -> (i32, i32) {
    %c0_i32 = arith.constant 0 : i32
    %c0_i32_0 = arith.constant 0 : i32
    %c0_i32_1 = arith.constant 0 : i32
    return %c0_i32, %c0_i32_0 : i32, i32
  }
  func.func @transform_6(%arg0: i32, %arg1: i32) -> (i32, i32, i32, i32) {
    %c0_i32 = arith.constant 0 : i32
    %c0_i32_0 = arith.constant 0 : i32
    %c0_i32_1 = arith.constant 0 : i32
    return %arg0, %arg1, %c0_i32, %c0_i32_0 : i32, i32, i32, i32
  }
}

</mosaic_0001>

<llo_original>
// kernel: dense_block_forward.2
$region0: #{dense_block_forward.2}
  #allocation0 [shape = 'u32[]', space=smem, size = 0x4, offset = 0x4, fixed_abs, tag = 'smem constant byte address 0x4 - core index']
  #allocation1 [shape = 'u32[72,128]{1,0:T(1,128)}', space=vmem, size = 0x9000, scoped, tag = 'internal scratch']
  #allocation2 [shape = 'f32[18,18,128]{2,1,0:T(8,128)}', space=vmem, size = 0x36000, scoped, tag = 'scratch operand']
  #allocation3 [shape = 'f32[16,16,1152]{2,1,0:T(8,128)}', space=vmem, size = 0x120000, scoped, tag = 'scratch operand']
  %s0 = inlined_call_operand.vmem [shape: f32[2,16,16,4], index: 0, kind: input, shape index: {}]
  %s1 = inlined_call_operand.vmem [shape: f32[1,4], index: 1, kind: input, shape index: {}]
  %s2 = inlined_call_operand.vmem [shape: f32[1,4], index: 2, kind: input, shape index: {}]
  %s3 = inlined_call_operand.vmem [shape: f32[1152,128], index: 3, kind: input, shape index: {}]
  %s4 = inlined_call_operand.vmem [shape: f32[1,128], index: 4, kind: input, shape index: {}]
  %s5 = inlined_call_operand.vmem [shape: f32[2,16,16,8], index: 5, kind: output, shape index: {}]
  %s6 = sld [smem:[#allocation0]]
  $region57: #{dense_block_forward.2} parent=0
    _
  %s8 = ssub.s32 1, %s6
  %s9 = scalar_select 0, %s8, %s6
  loop: start=0, step=1, limit=4
  $region2: #{dense_block_forward.2} parent=0 // loop_pre_header
    _
  $region3: #{dense_block_forward.2} parent=0 // loop_header
    %s11 = sphi 0, %s15
    %p12 = scmp.ge.s32.totalorder %s11, 4
    %s18 = sphi 0, %s30
    %s19 = sphi 0, %s26
    %s20 = sphi 0, %s18
    %s21 = sphi 0, %s19
    %s22 = sphi 0, %s20
    %s23 = sphi 0, %s21
    %s33 = sphi 0, %s35
    %s36 = sphi 0, %s33
    %s37 = sphi 0, %s36
    %s53 = sphi 0, %s37
    %s57 = sphi 0, %s57
    %s59 = sphi 0, %s57
    %s60 = sphi 0, %s59
    %s74 = sphi 0, %s60
    %s78 = sphi 0, %s78
    %s80 = sphi 0, %s78
    %s81 = sphi 0, %s80
    %s95 = sphi 0, %s81
    %s99 = sphi 0, %s99
    %s101 = sphi 0, %s99
    %s102 = sphi 0, %s101
    %s116 = sphi 0, %s102
    %s120 = sphi 0, %s120
    %s122 = sphi 0, %s120
    %s123 = sphi 0, %s122
    %s137 = sphi 0, %s123
    %s145 = sphi 0, %s147
    %s148 = sphi 0, %s145
    %s149 = sphi 0, %s148
    %s165 = sphi 0, %s149
  $region4: #{dense_block_forward.2} parent=0 // loop_header_branch
    %14 = sbr.rel (%p12) target = $region8
  $region5: #{dense_block_forward.2} parent=0 // loop_body
    %s16 = ssub.s32 %s11, 1
    %s17 = ssub.s32 %s11, 2
    %s24 = sadd.s32 1, %s19
    %p25 = scmp.ge.s32.totalorder %s24, 1
    %s26 = scalar_select %p25, 0, %s24
    %s27 = sadd.s32 1, %s18
    %s28 = scalar_select %p25, %s27, %s18
    %p29 = scmp.ge.s32.totalorder %s28, 2
    %s30 = scalar_select %p29, 0, %s28
    %s31 = ssub.s32 %s18, %s30
    %p32 = scmp.eq.s32.totalorder %s31, 0
    %s34 = sadd.s32 %s33, 1
    %s35 = scalar_select %p32, %s33, %s34
    %p38 = pneg %p32
    %p39 = scmp.eq.s32.totalorder %s11, 1
    %p40 = por %p38, %p39
    %p41 = scmp.ne.s32.totalorder %s33, %s36
    %p42 = scmp.eq.s32.totalorder %s11, 0
    %p43 = por %p41, %p42
    %p44 = scmp.ne.s32.totalorder %s33, %s36
    %p45 = scmp.eq.s32.totalorder %s16, 1
    %p46 = por %p44, %p45
    %p47 = scmp.ne.s32.totalorder %s36, %s37
    %p48 = scmp.eq.s32.totalorder %s16, 0
    %p49 = por %p47, %p48
    %p50 = scmp.ne.s32.totalorder %s36, %s37
    %p51 = scmp.eq.s32.totalorder %s17, 1
    %p52 = por %p50, %p51
    %p54 = scmp.ne.s32.totalorder %s37, %s53
    %p55 = scmp.eq.s32.totalorder %s17, 0
    %p56 = por %p54, %p55
    %s58 = sadd.s32 %s57, 1
    %p61 = scmp.eq.s32.totalorder %s11, 1
    %p62 = scmp.ne.s32.totalorder %s57, %s59
    %p63 = scmp.eq.s32.totalorder %s11, 0
    %p64 = por %p62, %p63
    %p65 = scmp.ne.s32.totalorder %s57, %s59
    %p66 = scmp.eq.s32.totalorder %s16, 1
    %p67 = por %p65, %p66
    %p68 = scmp.ne.s32.totalorder %s59, %s60
    %p69 = scmp.eq.s32.totalorder %s16, 0
    %p70 = por %p68, %p69
    %p71 = scmp.ne.s32.totalorder %s59, %s60
    %p72 = scmp.eq.s32.totalorder %s17, 1
    %p73 = por %p71, %p72
    %p75 = scmp.ne.s32.totalorder %s60, %s74
    %p76 = scmp.eq.s32.totalorder %s17, 0
    %p77 = por %p75, %p76
    %s79 = sadd.s32 %s78, 1
    %p82 = scmp.eq.s32.totalorder %s11, 1
    %p83 = scmp.ne.s32.totalorder %s78, %s80
    %p84 = scmp.eq.s32.totalorder %s11, 0
    %p85 = por %p83, %p84
    %p86 = scmp.ne.s32.totalorder %s78, %s80
    %p87 = scmp.eq.s32.totalorder %s16, 1
    %p88 = por %p86, %p87
    %p89 = scmp.ne.s32.totalorder %s80, %s81
    %p90 = scmp.eq.s32.totalorder %s16, 0
    %p91 = por %p89, %p90
    %p92 = scmp.ne.s32.totalorder %s80, %s81
    %p93 = scmp.eq.s32.totalorder %s17, 1
    %p94 = por %p92, %p93
    %p96 = scmp.ne.s32.totalorder %s81, %s95
    %p97 = scmp.eq.s32.totalorder %s17, 0
    %p98 = por %p96, %p97
    %s100 = sadd.s32 %s99, 1
    %p103 = scmp.eq.s32.totalorder %s11, 1
    %p104 = scmp.ne.s32.totalorder %s99, %s101
    %p105 = scmp.eq.s32.totalorder %s11, 0
    %p106 = por %p104, %p105
    %p107 = scmp.ne.s32.totalorder %s99, %s101
    %p108 = scmp.eq.s32.totalorder %s16, 1
    %p109 = por %p107, %p108
    %p110 = scmp.ne.s32.totalorder %s101, %s102
    %p111 = scmp.eq.s32.totalorder %s16, 0
    %p112 = por %p110, %p111
    %p113 = scmp.ne.s32.totalorder %s101, %s102
    %p114 = scmp.eq.s32.totalorder %s17, 1
    %p115 = por %p113, %p114
    %p117 = scmp.ne.s32.totalorder %s102, %s116
    %p118 = scmp.eq.s32.totalorder %s17, 0
    %p119 = por %p117, %p118
    %s121 = sadd.s32 %s120, 1
    %p124 = scmp.eq.s32.totalorder %s11, 1
    %p125 = scmp.ne.s32.totalorder %s120, %s122
    %p126 = scmp.eq.s32.totalorder %s11, 0
    %p127 = por %p125, %p126
    %p128 = scmp.ne.s32.totalorder %s120, %s122
    %p129 = scmp.eq.s32.totalorder %s16, 1
    %p130 = por %p128, %p129
    %p131 = scmp.ne.s32.totalorder %s122, %s123
    %p132 = scmp.eq.s32.totalorder %s16, 0
    %p133 = por %p131, %p132
    %p134 = scmp.ne.s32.totalorder %s122, %s123
    %p135 = scmp.eq.s32.totalorder %s17, 1
    %p136 = por %p134, %p135
    %p138 = scmp.ne.s32.totalorder %s123, %s137
    %p139 = scmp.eq.s32.totalorder %s17, 0
    %p140 = por %p138, %p139
    %s141 = ssub.s32 %s18, %s30
    %s142 = ssub.s32 %s19, %s26
    %s143 = sor.u32 %s141, %s142
    %p144 = scmp.eq.s32.totalorder %s143, 0
    %s146 = sadd.s32 %s145, 1
    %s147 = scalar_select %p144, %s145, %s146
    %p150 = pneg %p144
    %p151 = scmp.eq.s32.totalorder %s11, 1
    %p152 = por %p150, %p151
    %p153 = scmp.ne.s32.totalorder %s145, %s148
    %p154 = scmp.eq.s32.totalorder %s11, 0
    %p155 = por %p153, %p154
    %p156 = scmp.ne.s32.totalorder %s145, %s148
    %p157 = scmp.eq.s32.totalorder %s16, 1
    %p158 = por %p156, %p157
    %p159 = scmp.ne.s32.totalorder %s148, %s149
    %p160 = scmp.eq.s32.totalorder %s16, 0
    %p161 = por %p159, %p160
    %p162 = scmp.ne.s32.totalorder %s148, %s149
    %p163 = scmp.eq.s32.totalorder %s17, 1
    %p164 = por %p162, %p163
    %p166 = scmp.ne.s32.totalorder %s149, %s165
    %p167 = scmp.eq.s32.totalorder %s17, 0
    %p168 = por %p166, %p167
    %p169 = scmp.le.s32.totalorder 1, %s11
    %p170 = scmp.lt.s32.totalorder %s11, 3
    %p171 = pnand %p169, %p170
    %p172 = pneg %p171
    // Predicated region
    $region9: #{dense_block_forward.2} parent=5 // pred_check
      _
    $region10: #{dense_block_forward.2} parent=5 // pred_check_branch
      %174 = sbr.rel (%p171) target = $region12
    $region11: #{dense_block_forward.2} parent=5 // pred_region
      %s175 = ssub.s32 %s11, 1
      // Predicated region
      $region13: #{dense_block_forward.2} parent=11 // pred_check
        %p176 = pneg %p70
      $region14: #{dense_block_forward.2} parent=11 // pred_check_branch
        %178 = sbr.rel (%p176) target = $region16
      $region15: #{dense_block_forward.2} parent=11 // pred_region
        _
      $region16: #{dense_block_forward.2} parent=11 // pred_fallthru
        _
      // Predicated region
      $region17: #{dense_block_forward.2} parent=11 // pred_check
        %p179 = pneg %p91
      $region18: #{dense_block_forward.2} parent=11 // pred_check_branch
        %181 = sbr.rel (%p179) target = $region20
      $region19: #{dense_block_forward.2} parent=11 // pred_region
        _
      $region20: #{dense_block_forward.2} parent=11 // pred_fallthru
        _
      // Predicated region
      $region21: #{dense_block_forward.2} parent=11 // pred_check
        %p182 = pneg %p112
      $region22: #{dense_block_forward.2} parent=11 // pred_check_branch
        %184 = sbr.rel (%p182) target = $region24
      $region23: #{dense_block_forward.2} parent=11 // pred_region
        _
      $region24: #{dense_block_forward.2} parent=11 // pred_fallthru
        _
      // Predicated region
      $region25: #{dense_block_forward.2} parent=11 // pred_check
        %p185 = pneg %p133
      $region26: #{dense_block_forward.2} parent=11 // pred_check_branch
        %187 = sbr.rel (%p185) target = $region28
      $region27: #{dense_block_forward.2} parent=11 // pred_region
        _
      $region28: #{dense_block_forward.2} parent=11 // pred_fallthru
        _
    $region12: #{dense_block_forward.2} parent=5 // pred_fallthru
      _
    %p188 = scmp.lt.s32.totalorder %s11, 2
    // Predicated region
    $region29: #{dense_block_forward.2} parent=5 // pred_check
      %p189 = pneg %p188
    $region30: #{dense_block_forward.2} parent=5 // pred_check_branch
      %191 = sbr.rel (%p189) target = $region32
    $region31: #{dense_block_forward.2} parent=5 // pred_region
      // Predicated region
      $region33: #{dense_block_forward.2} parent=31 // pred_check
        %p192 = pneg %p43
      $region34: #{dense_block_forward.2} parent=31 // pred_check_branch
        %194 = sbr.rel (%p192) target = $region36
      $region35: #{dense_block_forward.2} parent=31 // pred_region
        %p195 = scmp.lt.s32.totalorder %s18, 1
        %s196 = scalar_select %p195, %s18, 1
        %s197 = smul.addr %s196, 32
        %s198 = smul.addr %s197, 8
        %s199 = scalar_lea.vmem %s0, %s198
      $region36: #{dense_block_forward.2} parent=31 // pred_fallthru
        _
    $region32: #{dense_block_forward.2} parent=5 // pred_fallthru
      _
    %p200 = scmp.le.s32.totalorder 1, %s11
    %p201 = scmp.lt.s32.totalorder %s11, 3
    %p202 = pnand %p200, %p201
    %p203 = pneg %p202
    // Predicated region
    $region37: #{dense_block_forward.2} parent=5 // pred_check
      _
    $region38: #{dense_block_forward.2} parent=5 // pred_check_branch
      %205 = sbr.rel (%p202) target = $region40
    $region39: #{dense_block_forward.2} parent=5 // pred_region
      %s206 = ssub.s32 %s11, 1
      %p207 = scmp.lt.s32.totalorder %s20, 1
      %s208 = scalar_select %p207, %s20, 1
      %s209 = smul.addr %s208, 32
      %s210 = smul.addr %s209, 8
      %s211 = scalar_lea.vmem %s0, %s210
      %p212 = pneg %p49
      %p213 = pneg %p46
      %p214 = pneg %p70
      %p215 = pneg %p67
      %p216 = pneg %p91
      %p217 = pneg %p88
      %p218 = pneg %p112
      %p219 = pneg %p109
      %p220 = pneg %p133
      %p221 = pneg %p130
      %p222 = pneg %p161
      %p223 = pneg %p158
      %s224 = smul.u32 16, %s21
      %p225 = scmp.lt.s32.totalorder %s20, 1
      %s226 = scalar_select %p225, %s20, 1
      %p227 = scmp.lt.s32.totalorder %s224, 15
      %s228 = scalar_select %p227, %s224, 15
      %s229 = smul.addr %s228, 2
      %s230 = smul.addr %s226, 32
      %s231 = sadd.s32 %s229, %s230
      %s232 = smul.addr %s231, 8
      %s233 = scalar_lea.vmem %s5, %s232
      %p234 = scmp.lt.s32.totalorder %s20, 1
      %s235 = scalar_select %p234, %s20, 1
      %s236 = smul.addr %s235, 32
      %s237 = smul.addr %s236, 8
      %s238 = scalar_lea.vmem %s0, %s237
      %s239 = smul.u32 16, %s21
      %p240 = scmp.lt.s32.totalorder %s20, 1
      %s241 = scalar_select %p240, %s20, 1
      %p242 = scmp.lt.s32.totalorder %s239, 15
      %s243 = scalar_select %p242, %s239, 15
      %s244 = smul.addr %s243, 2
      %s245 = smul.addr %s241, 32
      %s246 = sadd.s32 %s244, %s245
      %s247 = smul.addr %s246, 8
      %s248 = scalar_lea.vmem %s5, %s247
      %s249 = smul.u32 16, %s21
      %p250 = scmp.eq.s32.totalorder %s21, 0
      // Predicated region
      $region41: #{dense_block_forward.2} parent=39 // pred_check
        %p251 = pneg %p250
      $region42: #{dense_block_forward.2} parent=39 // pred_check_branch
        %253 = sbr.rel (%p251) target = $region44
      $region43: #{dense_block_forward.2} parent=39 // pred_region
        %254 = vst [vmem:[#allocation2] sm:$0xff] 0.0
        %255 = vst [vmem:[#allocation2 + $0x8] sm:$0xff] 0.0
        %256 = vst [vmem:[#allocation2 + $0x10] sm:$0x3] 0.0
        %257 = vst [vmem:[#allocation2 + $0x18] sm:$0xff] 0.0
        %258 = vst [vmem:[#allocation2 + $0x20] sm:$0xff] 0.0
        %259 = vst [vmem:[#allocation2 + $0x28] sm:$0x3] 0.0
        %260 = vst [vmem:[#allocation2 + $0x30] sm:$0xff] 0.0
        %261 = vst [vmem:[#allocation2 + $0x38] sm:$0xff] 0.0
        %262 = vst [vmem:[#allocation2 + $0x40] sm:$0x3] 0.0
        %263 = vst [vmem:[#allocation2 + $0x48] sm:$0xff] 0.0
        %264 = vst [vmem:[#allocation2 + $0x50] sm:$0xff] 0.0
        %265 = vst [vmem:[#allocation2 + $0x58] sm:$0x3] 0.0
        %266 = vst [vmem:[#allocation2 + $0x60] sm:$0xff] 0.0
        %267 = vst [vmem:[#allocation2 + $0x68] sm:$0xff] 0.0
        %268 = vst [vmem:[#allocation2 + $0x70] sm:$0x3] 0.0
        %269 = vst [vmem:[#allocation2 + $0x78] sm:$0xff] 0.0
        %270 = vst [vmem:[#allocation2 + $0x80] sm:$0xff] 0.0
        %271 = vst [vmem:[#allocation2 + $0x88] sm:$0x3] 0.0
        %272 = vst [vmem:[#allocation2 + $0x90] sm:$0xff] 0.0
        %273 = vst [vmem:[#allocation2 + $0x98] sm:$0xff] 0.0
        %274 = vst [vmem:[#allocation2 + $0xa0] sm:$0x3] 0.0
        %275 = vst [vmem:[#allocation2 + $0xa8] sm:$0xff] 0.0
        %276 = vst [vmem:[#allocation2 + $0xb0] sm:$0xff] 0.0
        %277 = vst [vmem:[#allocation2 + $0xb8] sm:$0x3] 0.0
        %278 = vst [vmem:[#allocation2 + $0xc0] sm:$0xff] 0.0
        %279 = vst [vmem:[#allocation2 + $0xc8] sm:$0xff] 0.0
        %280 = vst [vmem:[#allocation2 + $0xd0] sm:$0x3] 0.0
        %281 = vst [vmem:[#allocation2 + $0xd8] sm:$0xff] 0.0
        %282 = vst [vmem:[#allocation2 + $0xe0] sm:$0xff] 0.0
        %283 = vst [vmem:[#allocation2 + $0xe8] sm:$0x3] 0.0
        %284 = vst [vmem:[#allocation2 + $0xf0] sm:$0xff] 0.0
        %285 = vst [vmem:[#allocation2 + $0xf8] sm:$0xff] 0.0
        %286 = vst [vmem:[#allocation2 + $0x100] sm:$0x3] 0.0
        %287 = vst [vmem:[#allocation2 + $0x108] sm:$0xff] 0.0
        %288 = vst [vmem:[#allocation2 + $0x110] sm:$0xff] 0.0
        %289 = vst [vmem:[#allocation2 + $0x118] sm:$0x3] 0.0
        %290 = vst [vmem:[#allocation2 + $0x120] sm:$0xff] 0.0
        %291 = vst [vmem:[#allocation2 + $0x128] sm:$0xff] 0.0
        %292 = vst [vmem:[#allocation2 + $0x130] sm:$0x3] 0.0
        %293 = vst [vmem:[#allocation2 + $0x138] sm:$0xff] 0.0
        %294 = vst [vmem:[#allocation2 + $0x140] sm:$0xff] 0.0
        %295 = vst [vmem:[#allocation2 + $0x148] sm:$0x3] 0.0
        %296 = vst [vmem:[#allocation2 + $0x150] sm:$0xff] 0.0
        %297 = vst [vmem:[#allocation2 + $0x158] sm:$0xff] 0.0
        %298 = vst [vmem:[#allocation2 + $0x160] sm:$0x3] 0.0
        %299 = vst [vmem:[#allocation2 + $0x168] sm:$0xff] 0.0
        %300 = vst [vmem:[#allocation2 + $0x170] sm:$0xff] 0.0
        %301 = vst [vmem:[#allocation2 + $0x178] sm:$0x3] 0.0
        %302 = vst [vmem:[#allocation2 + $0x180] sm:$0xff] 0.0
        %303 = vst [vmem:[#allocation2 + $0x188] sm:$0xff] 0.0
        %304 = vst [vmem:[#allocation2 + $0x190] sm:$0x3] 0.0
        %305 = vst [vmem:[#allocation2 + $0x198] sm:$0xff] 0.0
        %306 = vst [vmem:[#allocation2 + $0x1a0] sm:$0xff] 0.0
        %307 = vst [vmem:[#allocation2 + $0x1a8] sm:$0x3] 0.0
        %v308 = vld [vmem:[%s238] sm:$0xff]
        %v309 = vld [vmem:[%s238 + $0x8] sm:$0xff]
        %v310 = vld [vmem:[%s238 + $0x10] sm:$0xff]
        %v311 = vld [vmem:[%s238 + $0x18] sm:$0xff]
        %v312 = vld [vmem:[%s238 + $0x20] sm:$0xff]
        %v313 = vld [vmem:[%s238 + $0x28] sm:$0xff]
        %v314 = vld [vmem:[%s238 + $0x30] sm:$0xff]
        %v315 = vld [vmem:[%s238 + $0x38] sm:$0xff]
        %v316 = vld [vmem:[%s238 + $0x40] sm:$0xff]
        %v317 = vld [vmem:[%s238 + $0x48] sm:$0xff]
        %v318 = vld [vmem:[%s238 + $0x50] sm:$0xff]
        %v319 = vld [vmem:[%s238 + $0x58] sm:$0xff]
        %v320 = vld [vmem:[%s238 + $0x60] sm:$0xff]
        %v321 = vld [vmem:[%s238 + $0x68] sm:$0xff]
        %v322 = vld [vmem:[%s238 + $0x70] sm:$0xff]
        %v323 = vld [vmem:[%s238 + $0x78] sm:$0xff]
        %v324 = vld [vmem:[%s238 + $0x80] sm:$0xff]
        %v325 = vld [vmem:[%s238 + $0x88] sm:$0xff]
        %v326 = vld [vmem:[%s238 + $0x90] sm:$0xff]
        %v327 = vld [vmem:[%s238 + $0x98] sm:$0xff]
        %v328 = vld [vmem:[%s238 + $0xa0] sm:$0xff]
        %v329 = vld [vmem:[%s238 + $0xa8] sm:$0xff]
        %v330 = vld [vmem:[%s238 + $0xb0] sm:$0xff]
        %v331 = vld [vmem:[%s238 + $0xb8] sm:$0xff]
        %v332 = vld [vmem:[%s238 + $0xc0] sm:$0xff]
        %v333 = vld [vmem:[%s238 + $0xc8] sm:$0xff]
        %v334 = vld [vmem:[%s238 + $0xd0] sm:$0xff]
        %v335 = vld [vmem:[%s238 + $0xd8] sm:$0xff]
        %v336 = vld [vmem:[%s238 + $0xe0] sm:$0xff]
        %v337 = vld [vmem:[%s238 + $0xe8] sm:$0xff]
        %v338 = vld [vmem:[%s238 + $0xf0] sm:$0xff]
        %v339 = vld [vmem:[%s238 + $0xf8] sm:$0xff]
        %v340 = vld [vmem:[%s1] sm:$0x1]
        %v341 = vld [vmem:[%s2] sm:$0x1]
        %v343 = vperm.slane %v340, 0
        %v345 = vmul.f32 %v308, %v343
        %v346 = vmul.f32 %v309, %v343
        %v347 = vmul.f32 %v310, %v343
        %v348 = vmul.f32 %v311, %v343
        %v349 = vmul.f32 %v312, %v343
        %v350 = vmul.f32 %v313, %v343
        %v351 = vmul.f32 %v314, %v343
        %v352 = vmul.f32 %v315, %v343
        %v353 = vmul.f32 %v316, %v343
        %v354 = vmul.f32 %v317, %v343
        %v355 = vmul.f32 %v318, %v343
        %v356 = vmul.f32 %v319, %v343
        %v357 = vmul.f32 %v320, %v343
        %v358 = vmul.f32 %v321, %v343
        %v359 = vmul.f32 %v322, %v343
        %v360 = vmul.f32 %v323, %v343
        %v361 = vmul.f32 %v324, %v343
        %v362 = vmul.f32 %v325, %v343
        %v363 = vmul.f32 %v326, %v343
        %v364 = vmul.f32 %v327, %v343
        %v365 = vmul.f32 %v328, %v343
        %v366 = vmul.f32 %v329, %v343
        %v367 = vmul.f32 %v330, %v343
        %v368 = vmul.f32 %v331, %v343
        %v369 = vmul.f32 %v332, %v343
        %v370 = vmul.f32 %v333, %v343
        %v371 = vmul.f32 %v334, %v343
        %v372 = vmul.f32 %v335, %v343
        %v373 = vmul.f32 %v336, %v343
        %v374 = vmul.f32 %v337, %v343
        %v375 = vmul.f32 %v338, %v343
        %v376 = vmul.f32 %v339, %v343
        %v378 = vperm.slane %v341, 0
        %v380 = vadd.f32 %v345, %v378
        %v381 = vadd.f32 %v346, %v378
        %v382 = vadd.f32 %v347, %v378
        %v383 = vadd.f32 %v348, %v378
        %v384 = vadd.f32 %v349, %v378
        %v385 = vadd.f32 %v350, %v378
        %v386 = vadd.f32 %v351, %v378
        %v387 = vadd.f32 %v352, %v378
        %v388 = vadd.f32 %v353, %v378
        %v389 = vadd.f32 %v354, %v378
        %v390 = vadd.f32 %v355, %v378
        %v391 = vadd.f32 %v356, %v378
        %v392 = vadd.f32 %v357, %v378
        %v393 = vadd.f32 %v358, %v378
        %v394 = vadd.f32 %v359, %v378
        %v395 = vadd.f32 %v360, %v378
        %v396 = vadd.f32 %v361, %v378
        %v397 = vadd.f32 %v362, %v378
        %v398 = vadd.f32 %v363, %v378
        %v399 = vadd.f32 %v364, %v378
        %v400 = vadd.f32 %v365, %v378
        %v401 = vadd.f32 %v366, %v378
        %v402 = vadd.f32 %v367, %v378
        %v403 = vadd.f32 %v368, %v378
        %v404 = vadd.f32 %v369, %v378
        %v405 = vadd.f32 %v370, %v378
        %v406 = vadd.f32 %v371, %v378
        %v407 = vadd.f32 %v372, %v378
        %v408 = vadd.f32 %v373, %v378
        %v409 = vadd.f32 %v374, %v378
        %v410 = vadd.f32 %v375, %v378
        %v411 = vadd.f32 %v376, %v378
        %v412 = vmax.f32 %v380, 0.0
        %v413 = vmax.f32 %v381, 0.0
        %v414 = vmax.f32 %v382, 0.0
        %v415 = vmax.f32 %v383, 0.0
        %v416 = vmax.f32 %v384, 0.0
        %v417 = vmax.f32 %v385, 0.0
        %v418 = vmax.f32 %v386, 0.0
        %v419 = vmax.f32 %v387, 0.0
        %v420 = vmax.f32 %v388, 0.0
        %v421 = vmax.f32 %v389, 0.0
        %v422 = vmax.f32 %v390, 0.0
        %v423 = vmax.f32 %v391, 0.0
        %v424 = vmax.f32 %v392, 0.0
        %v425 = vmax.f32 %v393, 0.0
        %v426 = vmax.f32 %v394, 0.0
        %v427 = vmax.f32 %v395, 0.0
        %v428 = vmax.f32 %v396, 0.0
        %v429 = vmax.f32 %v397, 0.0
        %v430 = vmax.f32 %v398, 0.0
        %v431 = vmax.f32 %v399, 0.0
        %v432 = vmax.f32 %v400, 0.0
        %v433 = vmax.f32 %v401, 0.0
        %v434 = vmax.f32 %v402, 0.0
        %v435 = vmax.f32 %v403, 0.0
        %v436 = vmax.f32 %v404, 0.0
        %v437 = vmax.f32 %v405, 0.0
        %v438 = vmax.f32 %v406, 0.0
        %v439 = vmax.f32 %v407, 0.0
        %v440 = vmax.f32 %v408, 0.0
        %v441 = vmax.f32 %v409, 0.0
        %v442 = vmax.f32 %v410, 0.0
        %v443 = vmax.f32 %v411, 0.0
        %s444 = scalar_lea.vmem [#allocation2], 24
        %vm445 = vcmask 31744
        %446 = vst.msk [vmem:[%s444 + $0x1] sm:$0xff] %vm445, %v412
        %447 = vst.msk [vmem:[%s444 + $0x9] sm:$0xff] %vm445, %v413
        %448 = vst.msk [vmem:[%s444 + $0x19] sm:$0xff] %vm445, %v414
        %449 = vst.msk [vmem:[%s444 + $0x21] sm:$0xff] %vm445, %v415
        %450 = vst.msk [vmem:[%s444 + $0x31] sm:$0xff] %vm445, %v416
        %451 = vst.msk [vmem:[%s444 + $0x39] sm:$0xff] %vm445, %v417
        %452 = vst.msk [vmem:[%s444 + $0x49] sm:$0xff] %vm445, %v418
        %453 = vst.msk [vmem:[%s444 + $0x51] sm:$0xff] %vm445, %v419
        %454 = vst.msk [vmem:[%s444 + $0x61] sm:$0xff] %vm445, %v420
        %455 = vst.msk [vmem:[%s444 + $0x69] sm:$0xff] %vm445, %v421
        %456 = vst.msk [vmem:[%s444 + $0x79] sm:$0xff] %vm445, %v422
        %457 = vst.msk [vmem:[%s444 + $0x81] sm:$0xff] %vm445, %v423
        %458 = vst.msk [vmem:[%s444 + $0x91] sm:$0xff] %vm445, %v424
        %459 = vst.msk [vmem:[%s444 + $0x99] sm:$0xff] %vm445, %v425
        %460 = vst.msk [vmem:[%s444 + $0xa9] sm:$0xff] %vm445, %v426
        %461 = vst.msk [vmem:[%s444 + $0xb1] sm:$0xff] %vm445, %v427
        %462 = vst.msk [vmem:[%s444 + $0xc1] sm:$0xff] %vm445, %v428
        %463 = vst.msk [vmem:[%s444 + $0xc9] sm:$0xff] %vm445, %v429
        %464 = vst.msk [vmem:[%s444 + $0xd9] sm:$0xff] %vm445, %v430
        %465 = vst.msk [vmem:[%s444 + $0xe1] sm:$0xff] %vm445, %v431
        %466 = vst.msk [vmem:[%s444 + $0xf1] sm:$0xff] %vm445, %v432
        %467 = vst.msk [vmem:[%s444 + $0xf9] sm:$0xff] %vm445, %v433
        %468 = vst.msk [vmem:[%s444 + $0x109] sm:$0xff] %vm445, %v434
        %469 = vst.msk [vmem:[%s444 + $0x111] sm:$0xff] %vm445, %v435
        %470 = vst.msk [vmem:[%s444 + $0x121] sm:$0xff] %vm445, %v436
        %471 = vst.msk [vmem:[%s444 + $0x129] sm:$0xff] %vm445, %v437
        %472 = vst.msk [vmem:[%s444 + $0x139] sm:$0xff] %vm445, %v438
        %473 = vst.msk [vmem:[%s444 + $0x141] sm:$0xff] %vm445, %v439
        %474 = vst.msk [vmem:[%s444 + $0x151] sm:$0xff] %vm445, %v440
        %475 = vst.msk [vmem:[%s444 + $0x159] sm:$0xff] %vm445, %v441
        %476 = vst.msk [vmem:[%s444 + $0x169] sm:$0xff] %vm445, %v442
        %477 = vst.msk [vmem:[%s444 + $0x171] sm:$0xff] %vm445, %v443
      $region44: #{dense_block_forward.2} parent=39 // pred_fallthru
        _
      %s478 = smul.u32 %s21, 16
      %s479 = smul.u32 %s478, 24
      %s480 = scalar_lea.vmem [#allocation2], %s479
      %v481 = vld [vmem:[%s480] sm:$0xff]
      %v482 = vld [vmem:[%s480 + $0x8] sm:$0xff]
      %v483 = vld [vmem:[%s480 + $0x18] sm:$0xff]
      %v484 = vld [vmem:[%s480 + $0x20] sm:$0xff]
      %v485 = vld [vmem:[%s480 + $0x30] sm:$0xff]
      %v486 = vld [vmem:[%s480 + $0x38] sm:$0xff]
      %v487 = vld [vmem:[%s480 + $0x48] sm:$0xff]
      %v488 = vld [vmem:[%s480 + $0x50] sm:$0xff]
      %v489 = vld [vmem:[%s480 + $0x60] sm:$0xff]
      %v490 = vld [vmem:[%s480 + $0x68] sm:$0xff]
      %v491 = vld [vmem:[%s480 + $0x78] sm:$0xff]
      %v492 = vld [vmem:[%s480 + $0x80] sm:$0xff]
      %v493 = vld [vmem:[%s480 + $0x90] sm:$0xff]
      %v494 = vld [vmem:[%s480 + $0x98] sm:$0xff]
      %v495 = vld [vmem:[%s480 + $0xa8] sm:$0xff]
      %v496 = vld [vmem:[%s480 + $0xb0] sm:$0xff]
      %v497 = vld [vmem:[%s480 + $0xc0] sm:$0xff]
      %v498 = vld [vmem:[%s480 + $0xc8] sm:$0xff]
      %v499 = vld [vmem:[%s480 + $0xd8] sm:$0xff]
      %v500 = vld [vmem:[%s480 + $0xe0] sm:$0xff]
      %v501 = vld [vmem:[%s480 + $0xf0] sm:$0xff]
      %v502 = vld [vmem:[%s480 + $0xf8] sm:$0xff]
      %v503 = vld [vmem:[%s480 + $0x108] sm:$0xff]
      %v504 = vld [vmem:[%s480 + $0x110] sm:$0xff]
      %v505 = vld [vmem:[%s480 + $0x120] sm:$0xff]
      %v506 = vld [vmem:[%s480 + $0x128] sm:$0xff]
      %v507 = vld [vmem:[%s480 + $0x138] sm:$0xff]
      %v508 = vld [vmem:[%s480 + $0x140] sm:$0xff]
      %v509 = vld [vmem:[%s480 + $0x150] sm:$0xff]
      %v510 = vld [vmem:[%s480 + $0x158] sm:$0xff]
      %v511 = vld [vmem:[%s480 + $0x168] sm:$0xff]
      %v512 = vld [vmem:[%s480 + $0x170] sm:$0xff]
      %513 = vst [vmem:[#allocation3] sm:$0xff] %v481
      %514 = vst [vmem:[#allocation3 + $0x48] sm:$0xff] %v482
      %515 = vst [vmem:[#allocation3 + $0x90] sm:$0xff] %v483
      %516 = vst [vmem:[#allocation3 + $0xd8] sm:$0xff] %v484
      %517 = vst [vmem:[#allocation3 + $0x120] sm:$0xff] %v485
      %518 = vst [vmem:[#allocation3 + $0x168] sm:$0xff] %v486
      %519 = vst [vmem:[#allocation3 + $0x1b0] sm:$0xff] %v487
      %520 = vst [vmem:[#allocation3 + $0x1f8] sm:$0xff] %v488
      %521 = vst [vmem:[#allocation3 + $0x240] sm:$0xff] %v489
      %522 = vst [vmem:[#allocation3 + $0x288] sm:$0xff] %v490
      %523 = vst [vmem:[#allocation3 + $0x2d0] sm:$0xff] %v491
      %524 = vst [vmem:[#allocation3 + $0x318] sm:$0xff] %v492
      %525 = vst [vmem:[#allocation3 + $0x360] sm:$0xff] %v493
      %526 = vst [vmem:[#allocation3 + $0x3a8] sm:$0xff] %v494
      %527 = vst [vmem:[#allocation3 + $0x3f0] sm:$0xff] %v495
      %528 = vst [vmem:[#allocation3 + $0x438] sm:$0xff] %v496
      %529 = vst [vmem:[#allocation3 + $0x480] sm:$0xff] %v497
      %530 = vst [vmem:[#allocation3 + $0x4c8] sm:$0xff] %v498
      %531 = vst [vmem:[#allocation3 + $0x510] sm:$0xff] %v499
      %532 = vst [vmem:[#allocation3 + $0x558] sm:$0xff] %v500
      %533 = vst [vmem:[#allocation3 + $0x5a0] sm:$0xff] %v501
      %534 = vst [vmem:[#allocation3 + $0x5e8] sm:$0xff] %v502
      %535 = vst [vmem:[#allocation3 + $0x630] sm:$0xff] %v503
      %536 = vst [vmem:[#allocation3 + $0x678] sm:$0xff] %v504
      %537 = vst [vmem:[#allocation3 + $0x6c0] sm:$0xff] %v505
      %538 = vst [vmem:[#allocation3 + $0x708] sm:$0xff] %v506
      %539 = vst [vmem:[#allocation3 + $0x750] sm:$0xff] %v507
      %540 = vst [vmem:[#allocation3 + $0x798] sm:$0xff] %v508
      %541 = vst [vmem:[#allocation3 + $0x7e0] sm:$0xff] %v509
      %542 = vst [vmem:[#allocation3 + $0x828] sm:$0xff] %v510
      %543 = vst [vmem:[#allocation3 + $0x870] sm:$0xff] %v511
      %544 = vst [vmem:[#allocation3 + $0x8b8] sm:$0xff] %v512
      %v545 = vld [vmem:[%s480 + $0x1] sm:$0xff]
      %v546 = vld [vmem:[%s480 + $0x9] sm:$0xff]
      %v547 = vld [vmem:[%s480 + $0x19] sm:$0xff]
      %v548 = vld [vmem:[%s480 + $0x21] sm:$0xff]
      %v549 = vld [vmem:[%s480 + $0x31] sm:$0xff]
      %v550 = vld [vmem:[%s480 + $0x39] sm:$0xff]
      %v551 = vld [vmem:[%s480 + $0x49] sm:$0xff]
      %v552 = vld [vmem:[%s480 + $0x51] sm:$0xff]
      %v553 = vld [vmem:[%s480 + $0x61] sm:$0xff]
      %v554 = vld [vmem:[%s480 + $0x69] sm:$0xff]
      %v555 = vld [vmem:[%s480 + $0x79] sm:$0xff]
      %v556 = vld [vmem:[%s480 + $0x81] sm:$0xff]
      %v557 = vld [vmem:[%s480 + $0x91] sm:$0xff]
      %v558 = vld [vmem:[%s480 + $0x99] sm:$0xff]
      %v559 = vld [vmem:[%s480 + $0xa9] sm:$0xff]
      %v560 = vld [vmem:[%s480 + $0xb1] sm:$0xff]
      %v561 = vld [vmem:[%s480 + $0xc1] sm:$0xff]
      %v562 = vld [vmem:[%s480 + $0xc9] sm:$0xff]
      %v563 = vld [vmem:[%s480 + $0xd9] sm:$0xff]
      %v564 = vld [vmem:[%s480 + $0xe1] sm:$0xff]
      %v565 = vld [vmem:[%s480 + $0xf1] sm:$0xff]
      %v566 = vld [vmem:[%s480 + $0xf9] sm:$0xff]
      %v567 = vld [vmem:[%s480 + $0x109] sm:$0xff]
      %v568 = vld [vmem:[%s480 + $0x111] sm:$0xff]
      %v569 = vld [vmem:[%s480 + $0x121] sm:$0xff]
      %v570 = vld [vmem:[%s480 + $0x129] sm:$0xff]
      %v571 = vld [vmem:[%s480 + $0x139] sm:$0xff]
      %v572 = vld [vmem:[%s480 + $0x141] sm:$0xff]
      %v573 = vld [vmem:[%s480 + $0x151] sm:$0xff]
      %v574 = vld [vmem:[%s480 + $0x159] sm:$0xff]
      %v575 = vld [vmem:[%s480 + $0x169] sm:$0xff]
      %v576 = vld [vmem:[%s480 + $0x171] sm:$0xff]
      %577 = vst [vmem:[#allocation3 + $0x8] sm:$0xff] %v545
      %578 = vst [vmem:[#allocation3 + $0x50] sm:$0xff] %v546
      %579 = vst [vmem:[#allocation3 + $0x98] sm:$0xff] %v547
      %580 = vst [vmem:[#allocation3 + $0xe0] sm:$0xff] %v548
      %581 = vst [vmem:[#allocation3 + $0x128] sm:$0xff] %v549
      %582 = vst [vmem:[#allocation3 + $0x170] sm:$0xff] %v550
      %583 = vst [vmem:[#allocation3 + $0x1b8] sm:$0xff] %v551
      %584 = vst [vmem:[#allocation3 + $0x200] sm:$0xff] %v552
      %585 = vst [vmem:[#allocation3 + $0x248] sm:$0xff] %v553
      %586 = vst [vmem:[#allocation3 + $0x290] sm:$0xff] %v554
      %587 = vst [vmem:[#allocation3 + $0x2d8] sm:$0xff] %v555
      %588 = vst [vmem:[#allocation3 + $0x320] sm:$0xff] %v556
      %589 = vst [vmem:[#allocation3 + $0x368] sm:$0xff] %v557
      %590 = vst [vmem:[#allocation3 + $0x3b0] sm:$0xff] %v558
      %591 = vst [vmem:[#allocation3 + $0x3f8] sm:$0xff] %v559
      %592 = vst [vmem:[#allocation3 + $0x440] sm:$0xff] %v560
      %593 = vst [vmem:[#allocation3 + $0x488] sm:$0xff] %v561
      %594 = vst [vmem:[#allocation3 + $0x4d0] sm:$0xff] %v562
      %595 = vst [vmem:[#allocation3 + $0x518] sm:$0xff] %v563
      %596 = vst [vmem:[#allocation3 + $0x560] sm:$0xff] %v564
      %597 = vst [vmem:[#allocation3 + $0x5a8] sm:$0xff] %v565
      %598 = vst [vmem:[#allocation3 + $0x5f0] sm:$0xff] %v566
      %599 = vst [vmem:[#allocation3 + $0x638] sm:$0xff] %v567
      %600 = vst [vmem:[#allocation3 + $0x680] sm:$0xff] %v568
      %601 = vst [vmem:[#allocation3 + $0x6c8] sm:$0xff] %v569
      %602 = vst [vmem:[#allocation3 + $0x710] sm:$0xff] %v570
      %603 = vst [vmem:[#allocation3 + $0x758] sm:$0xff] %v571
      %604 = vst [vmem:[#allocation3 + $0x7a0] sm:$0xff] %v572
      %605 = vst [vmem:[#allocation3 + $0x7e8] sm:$0xff] %v573
      %606 = vst [vmem:[#allocation3 + $0x830] sm:$0xff] %v574
      %607 = vst [vmem:[#allocation3 + $0x878] sm:$0xff] %v575
      %608 = vst [vmem:[#allocation3 + $0x8c0] sm:$0xff] %v576
      %v609 = vld [vmem:[%s480 + $0x2] sm:$0xff]
      %v610 = vld [vmem:[%s480 + $0xa] sm:$0xff]
      %v611 = vld [vmem:[%s480 + $0x1a] sm:$0xff]
      %v612 = vld [vmem:[%s480 + $0x22] sm:$0xff]
      %v613 = vld [vmem:[%s480 + $0x32] sm:$0xff]
      %v614 = vld [vmem:[%s480 + $0x3a] sm:$0xff]
      %v615 = vld [vmem:[%s480 + $0x4a] sm:$0xff]
      %v616 = vld [vmem:[%s480 + $0x52] sm:$0xff]
      %v617 = vld [vmem:[%s480 + $0x62] sm:$0xff]
      %v618 = vld [vmem:[%s480 + $0x6a] sm:$0xff]
      %v619 = vld [vmem:[%s480 + $0x7a] sm:$0xff]
      %v620 = vld [vmem:[%s480 + $0x82] sm:$0xff]
      %v621 = vld [vmem:[%s480 + $0x92] sm:$0xff]
      %v622 = vld [vmem:[%s480 + $0x9a] sm:$0xff]
      %v623 = vld [vmem:[%s480 + $0xaa] sm:$0xff]
      %v624 = vld [vmem:[%s480 + $0xb2] sm:$0xff]
      %v625 = vld [vmem:[%s480 + $0xc2] sm:$0xff]
      %v626 = vld [vmem:[%s480 + $0xca] sm:$0xff]
      %v627 = vld [vmem:[%s480 + $0xda] sm:$0xff]
      %v628 = vld [vmem:[%s480 + $0xe2] sm:$0xff]
      %v629 = vld [vmem:[%s480 + $0xf2] sm:$0xff]
      %v630 = vld [vmem:[%s480 + $0xfa] sm:$0xff]
      %v631 = vld [vmem:[%s480 + $0x10a] sm:$0xff]
      %v632 = vld [vmem:[%s480 + $0x112] sm:$0xff]
      %v633 = vld [vmem:[%s480 + $0x122] sm:$0xff]
      %v634 = vld [vmem:[%s480 + $0x12a] sm:$0xff]
      %v635 = vld [vmem:[%s480 + $0x13a] sm:$0xff]
      %v636 = vld [vmem:[%s480 + $0x142] sm:$0xff]
      %v637 = vld [vmem:[%s480 + $0x152] sm:$0xff]
      %v638 = vld [vmem:[%s480 + $0x15a] sm:$0xff]
      %v639 = vld [vmem:[%s480 + $0x16a] sm:$0xff]
      %v640 = vld [vmem:[%s480 + $0x172] sm:$0xff]
      %641 = vst [vmem:[#allocation3 + $0x10] sm:$0xff] %v609
      %642 = vst [vmem:[#allocation3 + $0x58] sm:$0xff] %v610
      %643 = vst [vmem:[#allocation3 + $0xa0] sm:$0xff] %v611
      %644 = vst [vmem:[#allocation3 + $0xe8] sm:$0xff] %v612
      %645 = vst [vmem:[#allocation3 + $0x130] sm:$0xff] %v613
      %646 = vst [vmem:[#allocation3 + $0x178] sm:$0xff] %v614
      %647 = vst [vmem:[#allocation3 + $0x1c0] sm:$0xff] %v615
      %648 = vst [vmem:[#allocation3 + $0x208] sm:$0xff] %v616
      %649 = vst [vmem:[#allocation3 + $0x250] sm:$0xff] %v617
      %650 = vst [vmem:[#allocation3 + $0x298] sm:$0xff] %v618
      %651 = vst [vmem:[#allocation3 + $0x2e0] sm:$0xff] %v619
      %652 = vst [vmem:[#allocation3 + $0x328] sm:$0xff] %v620
      %653 = vst [vmem:[#allocation3 + $0x370] sm:$0xff] %v621
      %654 = vst [vmem:[#allocation3 + $0x3b8] sm:$0xff] %v622
      %655 = vst [vmem:[#allocation3 + $0x400] sm:$0xff] %v623
      %656 = vst [vmem:[#allocation3 + $0x448] sm:$0xff] %v624
      %657 = vst [vmem:[#allocation3 + $0x490] sm:$0xff] %v625
      %658 = vst [vmem:[#allocation3 + $0x4d8] sm:$0xff] %v626
      %659 = vst [vmem:[#allocation3 + $0x520] sm:$0xff] %v627
      %660 = vst [vmem:[#allocation3 + $0x568] sm:$0xff] %v628
      %661 = vst [vmem:[#allocation3 + $0x5b0] sm:$0xff] %v629
      %662 = vst [vmem:[#allocation3 + $0x5f8] sm:$0xff] %v630
      %663 = vst [vmem:[#allocation3 + $0x640] sm:$0xff] %v631
      %664 = vst [vmem:[#allocation3 + $0x688] sm:$0xff] %v632
      %665 = vst [vmem:[#allocation3 + $0x6d0] sm:$0xff] %v633
      %666 = vst [vmem:[#allocation3 + $0x718] sm:$0xff] %v634
      %667 = vst [vmem:[#allocation3 + $0x760] sm:$0xff] %v635
      %668 = vst [vmem:[#allocation3 + $0x7a8] sm:$0xff] %v636
      %669 = vst [vmem:[#allocation3 + $0x7f0] sm:$0xff] %v637
      %670 = vst [vmem:[#allocation3 + $0x838] sm:$0xff] %v638
      %671 = vst [vmem:[#allocation3 + $0x880] sm:$0xff] %v639
      %672 = vst [vmem:[#allocation3 + $0x8c8] sm:$0xff] %v640
      %s673 = sadd.s32 %s478, 1
      %s674 = smul.u32 %s673, 24
      %s675 = scalar_lea.vmem [#allocation2], %s674
      %v676 = vld [vmem:[%s675] sm:$0xff]
      %v677 = vld [vmem:[%s675 + $0x8] sm:$0xff]
      %v678 = vld [vmem:[%s675 + $0x18] sm:$0xff]
      %v679 = vld [vmem:[%s675 + $0x20] sm:$0xff]
      %v680 = vld [vmem:[%s675 + $0x30] sm:$0xff]
      %v681 = vld [vmem:[%s675 + $0x38] sm:$0xff]
      %v682 = vld [vmem:[%s675 + $0x48] sm:$0xff]
      %v683 = vld [vmem:[%s675 + $0x50] sm:$0xff]
      %v684 = vld [vmem:[%s675 + $0x60] sm:$0xff]
      %v685 = vld [vmem:[%s675 + $0x68] sm:$0xff]
      %v686 = vld [vmem:[%s675 + $0x78] sm:$0xff]
      %v687 = vld [vmem:[%s675 + $0x80] sm:$0xff]
      %v688 = vld [vmem:[%s675 + $0x90] sm:$0xff]
      %v689 = vld [vmem:[%s675 + $0x98] sm:$0xff]
      %v690 = vld [vmem:[%s675 + $0xa8] sm:$0xff]
      %v691 = vld [vmem:[%s675 + $0xb0] sm:$0xff]
      %v692 = vld [vmem:[%s675 + $0xc0] sm:$0xff]
      %v693 = vld [vmem:[%s675 + $0xc8] sm:$0xff]
      %v694 = vld [vmem:[%s675 + $0xd8] sm:$0xff]
      %v695 = vld [vmem:[%s675 + $0xe0] sm:$0xff]
      %v696 = vld [vmem:[%s675 + $0xf0] sm:$0xff]
      %v697 = vld [vmem:[%s675 + $0xf8] sm:$0xff]
      %v698 = vld [vmem:[%s675 + $0x108] sm:$0xff]
      %v699 = vld [vmem:[%s675 + $0x110] sm:$0xff]
      %v700 = vld [vmem:[%s675 + $0x120] sm:$0xff]
      %v701 = vld [vmem:[%s675 + $0x128] sm:$0xff]
      %v702 = vld [vmem:[%s675 + $0x138] sm:$0xff]
      %v703 = vld [vmem:[%s675 + $0x140] sm:$0xff]
      %v704 = vld [vmem:[%s675 + $0x150] sm:$0xff]
      %v705 = vld [vmem:[%s675 + $0x158] sm:$0xff]
      %v706 = vld [vmem:[%s675 + $0x168] sm:$0xff]
      %v707 = vld [vmem:[%s675 + $0x170] sm:$0xff]
      %708 = vst [vmem:[#allocation3 + $0x18] sm:$0xff] %v676
      %709 = vst [vmem:[#allocation3 + $0x60] sm:$0xff] %v677
      %710 = vst [vmem:[#allocation3 + $0xa8] sm:$0xff] %v678
      %711 = vst [vmem:[#allocation3 + $0xf0] sm:$0xff] %v679
      %712 = vst [vmem:[#allocation3 + $0x138] sm:$0xff] %v680
      %713 = vst [vmem:[#allocation3 + $0x180] sm:$0xff] %v681
      %714 = vst [vmem:[#allocation3 + $0x1c8] sm:$0xff] %v682
      %715 = vst [vmem:[#allocation3 + $0x210] sm:$0xff] %v683
      %716 = vst [vmem:[#allocation3 + $0x258] sm:$0xff] %v684
      %717 = vst [vmem:[#allocation3 + $0x2a0] sm:$0xff] %v685
      %718 = vst [vmem:[#allocation3 + $0x2e8] sm:$0xff] %v686
      %719 = vst [vmem:[#allocation3 + $0x330] sm:$0xff] %v687
      %720 = vst [vmem:[#allocation3 + $0x378] sm:$0xff] %v688
      %721 = vst [vmem:[#allocation3 + $0x3c0] sm:$0xff] %v689
      %722 = vst [vmem:[#allocation3 + $0x408] sm:$0xff] %v690
      %723 = vst [vmem:[#allocation3 + $0x450] sm:$0xff] %v691
      %724 = vst [vmem:[#allocation3 + $0x498] sm:$0xff] %v692
      %725 = vst [vmem:[#allocation3 + $0x4e0] sm:$0xff] %v693
      %726 = vst [vmem:[#allocation3 + $0x528] sm:$0xff] %v694
      %727 = vst [vmem:[#allocation3 + $0x570] sm:$0xff] %v695
      %728 = vst [vmem:[#allocation3 + $0x5b8] sm:$0xff] %v696
      %729 = vst [vmem:[#allocation3 + $0x600] sm:$0xff] %v697
      %730 = vst [vmem:[#allocation3 + $0x648] sm:$0xff] %v698
      %731 = vst [vmem:[#allocation3 + $0x690] sm:$0xff] %v699
      %732 = vst [vmem:[#allocation3 + $0x6d8] sm:$0xff] %v700
      %733 = vst [vmem:[#allocation3 + $0x720] sm:$0xff] %v701
      %734 = vst [vmem:[#allocation3 + $0x768] sm:$0xff] %v702
      %735 = vst [vmem:[#allocation3 + $0x7b0] sm:$0xff] %v703
      %736 = vst [vmem:[#allocation3 + $0x7f8] sm:$0xff] %v704
      %737 = vst [vmem:[#allocation3 + $0x840] sm:$0xff] %v705
      %738 = vst [vmem:[#allocation3 + $0x888] sm:$0xff] %v706
      %739 = vst [vmem:[#allocation3 + $0x8d0] sm:$0xff] %v707
      %v740 = vld [vmem:[%s675 + $0x1] sm:$0xff]
      %v741 = vld [vmem:[%s675 + $0x9] sm:$0xff]
      %v742 = vld [vmem:[%s675 + $0x19] sm:$0xff]
      %v743 = vld [vmem:[%s675 + $0x21] sm:$0xff]
      %v744 = vld [vmem:[%s675 + $0x31] sm:$0xff]
      %v745 = vld [vmem:[%s675 + $0x39] sm:$0xff]
      %v746 = vld [vmem:[%s675 + $0x49] sm:$0xff]
      %v747 = vld [vmem:[%s675 + $0x51] sm:$0xff]
      %v748 = vld [vmem:[%s675 + $0x61] sm:$0xff]
      %v749 = vld [vmem:[%s675 + $0x69] sm:$0xff]
      %v750 = vld [vmem:[%s675 + $0x79] sm:$0xff]
      %v751 = vld [vmem:[%s675 + $0x81] sm:$0xff]
      %v752 = vld [vmem:[%s675 + $0x91] sm:$0xff]
      %v753 = vld [vmem:[%s675 + $0x99] sm:$0xff]
      %v754 = vld [vmem:[%s675 + $0xa9] sm:$0xff]
      %v755 = vld [vmem:[%s675 + $0xb1] sm:$0xff]
      %v756 = vld [vmem:[%s675 + $0xc1] sm:$0xff]
      %v757 = vld [vmem:[%s675 + $0xc9] sm:$0xff]
      %v758 = vld [vmem:[%s675 + $0xd9] sm:$0xff]
      %v759 = vld [vmem:[%s675 + $0xe1] sm:$0xff]
      %v760 = vld [vmem:[%s675 + $0xf1] sm:$0xff]
      %v761 = vld [vmem:[%s675 + $0xf9] sm:$0xff]
      %v762 = vld [vmem:[%s675 + $0x109] sm:$0xff]
      %v763 = vld [vmem:[%s675 + $0x111] sm:$0xff]
      %v764 = vld [vmem:[%s675 + $0x121] sm:$0xff]
      %v765 = vld [vmem:[%s675 + $0x129] sm:$0xff]
      %v766 = vld [vmem:[%s675 + $0x139] sm:$0xff]
      %v767 = vld [vmem:[%s675 + $0x141] sm:$0xff]
      %v768 = vld [vmem:[%s675 + $0x151] sm:$0xff]
      %v769 = vld [vmem:[%s675 + $0x159] sm:$0xff]
      %v770 = vld [vmem:[%s675 + $0x169] sm:$0xff]
      %v771 = vld [vmem:[%s675 + $0x171] sm:$0xff]
      %772 = vst [vmem:[#allocation3 + $0x20] sm:$0xff] %v740
      %773 = vst [vmem:[#allocation3 + $0x68] sm:$0xff] %v741
      %774 = vst [vmem:[#allocation3 + $0xb0] sm:$0xff] %v742
      %775 = vst [vmem:[#allocation3 + $0xf8] sm:$0xff] %v743
      %776 = vst [vmem:[#allocation3 + $0x140] sm:$0xff] %v744
      %777 = vst [vmem:[#allocation3 + $0x188] sm:$0xff] %v745
      %778 = vst [vmem:[#allocation3 + $0x1d0] sm:$0xff] %v746
      %779 = vst [vmem:[#allocation3 + $0x218] sm:$0xff] %v747
      %780 = vst [vmem:[#allocation3 + $0x260] sm:$0xff] %v748
      %781 = vst [vmem:[#allocation3 + $0x2a8] sm:$0xff] %v749
      %782 = vst [vmem:[#allocation3 + $0x2f0] sm:$0xff] %v750
      %783 = vst [vmem:[#allocation3 + $0x338] sm:$0xff] %v751
      %784 = vst [vmem:[#allocation3 + $0x380] sm:$0xff] %v752
      %785 = vst [vmem:[#allocation3 + $0x3c8] sm:$0xff] %v753
      %786 = vst [vmem:[#allocation3 + $0x410] sm:$0xff] %v754
      %787 = vst [vmem:[#allocation3 + $0x458] sm:$0xff] %v755
      %788 = vst [vmem:[#allocation3 + $0x4a0] sm:$0xff] %v756
      %789 = vst [vmem:[#allocation3 + $0x4e8] sm:$0xff] %v757
      %790 = vst [vmem:[#allocation3 + $0x530] sm:$0xff] %v758
      %791 = vst [vmem:[#allocation3 + $0x578] sm:$0xff] %v759
      %792 = vst [vmem:[#allocation3 + $0x5c0] sm:$0xff] %v760
      %793 = vst [vmem:[#allocation3 + $0x608] sm:$0xff] %v761
      %794 = vst [vmem:[#allocation3 + $0x650] sm:$0xff] %v762
      %795 = vst [vmem:[#allocation3 + $0x698] sm:$0xff] %v763
      %796 = vst [vmem:[#allocation3 + $0x6e0] sm:$0xff] %v764
      %797 = vst [vmem:[#allocation3 + $0x728] sm:$0xff] %v765
      %798 = vst [vmem:[#allocation3 + $0x770] sm:$0xff] %v766
      %799 = vst [vmem:[#allocation3 + $0x7b8] sm:$0xff] %v767
      %800 = vst [vmem:[#allocation3 + $0x800] sm:$0xff] %v768
      %801 = vst [vmem:[#allocation3 + $0x848] sm:$0xff] %v769
      %802 = vst [vmem:[#allocation3 + $0x890] sm:$0xff] %v770
      %803 = vst [vmem:[#allocation3 + $0x8d8] sm:$0xff] %v771
      %v804 = vld [vmem:[%s675 + $0x2] sm:$0xff]
      %v805 = vld [vmem:[%s675 + $0xa] sm:$0xff]
      %v806 = vld [vmem:[%s675 + $0x1a] sm:$0xff]
      %v807 = vld [vmem:[%s675 + $0x22] sm:$0xff]
      %v808 = vld [vmem:[%s675 + $0x32] sm:$0xff]
      %v809 = vld [vmem:[%s675 + $0x3a] sm:$0xff]
      %v810 = vld [vmem:[%s675 + $0x4a] sm:$0xff]
      %v811 = vld [vmem:[%s675 + $0x52] sm:$0xff]
      %v812 = vld [vmem:[%s675 + $0x62] sm:$0xff]
      %v813 = vld [vmem:[%s675 + $0x6a] sm:$0xff]
      %v814 = vld [vmem:[%s675 + $0x7a] sm:$0xff]
      %v815 = vld [vmem:[%s675 + $0x82] sm:$0xff]
      %v816 = vld [vmem:[%s675 + $0x92] sm:$0xff]
      %v817 = vld [vmem:[%s675 + $0x9a] sm:$0xff]
      %v818 = vld [vmem:[%s675 + $0xaa] sm:$0xff]
      %v819 = vld [vmem:[%s675 + $0xb2] sm:$0xff]
      %v820 = vld [vmem:[%s675 + $0xc2] sm:$0xff]
      %v821 = vld [vmem:[%s675 + $0xca] sm:$0xff]
      %v822 = vld [vmem:[%s675 + $0xda] sm:$0xff]
      %v823 = vld [vmem:[%s675 + $0xe2] sm:$0xff]
      %v824 = vld [vmem:[%s675 + $0xf2] sm:$0xff]
      %v825 = vld [vmem:[%s675 + $0xfa] sm:$0xff]
      %v826 = vld [vmem:[%s675 + $0x10a] sm:$0xff]
      %v827 = vld [vmem:[%s675 + $0x112] sm:$0xff]
      %v828 = vld [vmem:[%s675 + $0x122] sm:$0xff]
      %v829 = vld [vmem:[%s675 + $0x12a] sm:$0xff]
      %v830 = vld [vmem:[%s675 + $0x13a] sm:$0xff]
      %v831 = vld [vmem:[%s675 + $0x142] sm:$0xff]
      %v832 = vld [vmem:[%s675 + $0x152] sm:$0xff]
      %v833 = vld [vmem:[%s675 + $0x15a] sm:$0xff]
      %v834 = vld [vmem:[%s675 + $0x16a] sm:$0xff]
      %v835 = vld [vmem:[%s675 + $0x172] sm:$0xff]
      %836 = vst [vmem:[#allocation3 + $0x28] sm:$0xff] %v804
      %837 = vst [vmem:[#allocation3 + $0x70] sm:$0xff] %v805
      %838 = vst [vmem:[#allocation3 + $0xb8] sm:$0xff] %v806
      %839 = vst [vmem:[#allocation3 + $0x100] sm:$0xff] %v807
      %840 = vst [vmem:[#allocation3 + $0x148] sm:$0xff] %v808
      %841 = vst [vmem:[#allocation3 + $0x190] sm:$0xff] %v809
      %842 = vst [vmem:[#allocation3 + $0x1d8] sm:$0xff] %v810
      %843 = vst [vmem:[#allocation3 + $0x220] sm:$0xff] %v811
      %844 = vst [vmem:[#allocation3 + $0x268] sm:$0xff] %v812
      %845 = vst [vmem:[#allocation3 + $0x2b0] sm:$0xff] %v813
      %846 = vst [vmem:[#allocation3 + $0x2f8] sm:$0xff] %v814
      %847 = vst [vmem:[#allocation3 + $0x340] sm:$0xff] %v815
      %848 = vst [vmem:[#allocation3 + $0x388] sm:$0xff] %v816
      %849 = vst [vmem:[#allocation3 + $0x3d0] sm:$0xff] %v817
      %850 = vst [vmem:[#allocation3 + $0x418] sm:$0xff] %v818
      %851 = vst [vmem:[#allocation3 + $0x460] sm:$0xff] %v819
      %852 = vst [vmem:[#allocation3 + $0x4a8] sm:$0xff] %v820
      %853 = vst [vmem:[#allocation3 + $0x4f0] sm:$0xff] %v821
      %854 = vst [vmem:[#allocation3 + $0x538] sm:$0xff] %v822
      %855 = vst [vmem:[#allocation3 + $0x580] sm:$0xff] %v823
      %856 = vst [vmem:[#allocation3 + $0x5c8] sm:$0xff] %v824
      %857 = vst [vmem:[#allocation3 + $0x610] sm:$0xff] %v825
      %858 = vst [vmem:[#allocation3 + $0x658] sm:$0xff] %v826
      %859 = vst [vmem:[#allocation3 + $0x6a0] sm:$0xff] %v827
      %860 = vst [vmem:[#allocation3 + $0x6e8] sm:$0xff] %v828
      %861 = vst [vmem:[#allocation3 + $0x730] sm:$0xff] %v829
      %862 = vst [vmem:[#allocation3 + $0x778] sm:$0xff] %v830
      %863 = vst [vmem:[#allocation3 + $0x7c0] sm:$0xff] %v831
      %864 = vst [vmem:[#allocation3 + $0x808] sm:$0xff] %v832
      %865 = vst [vmem:[#allocation3 + $0x850] sm:$0xff] %v833
      %866 = vst [vmem:[#allocation3 + $0x898] sm:$0xff] %v834
      %867 = vst [vmem:[#allocation3 + $0x8e0] sm:$0xff] %v835
      %s868 = sadd.s32 %s478, 2
      %s869 = smul.u32 %s868, 24
      %s870 = scalar_lea.vmem [#allocation2], %s869
      %v871 = vld [vmem:[%s870] sm:$0xff]
      %v872 = vld [vmem:[%s870 + $0x8] sm:$0xff]
      %v873 = vld [vmem:[%s870 + $0x18] sm:$0xff]
      %v874 = vld [vmem:[%s870 + $0x20] sm:$0xff]
      %v875 = vld [vmem:[%s870 + $0x30] sm:$0xff]
      %v876 = vld [vmem:[%s870 + $0x38] sm:$0xff]
      %v877 = vld [vmem:[%s870 + $0x48] sm:$0xff]
      %v878 = vld [vmem:[%s870 + $0x50] sm:$0xff]
      %v879 = vld [vmem:[%s870 + $0x60] sm:$0xff]
      %v880 = vld [vmem:[%s870 + $0x68] sm:$0xff]
      %v881 = vld [vmem:[%s870 + $0x78] sm:$0xff]
      %v882 = vld [vmem:[%s870 + $0x80] sm:$0xff]
      %v883 = vld [vmem:[%s870 + $0x90] sm:$0xff]
      %v884 = vld [vmem:[%s870 + $0x98] sm:$0xff]
      %v885 = vld [vmem:[%s870 + $0xa8] sm:$0xff]
      %v886 = vld [vmem:[%s870 + $0xb0] sm:$0xff]
      %v887 = vld [vmem:[%s870 + $0xc0] sm:$0xff]
      %v888 = vld [vmem:[%s870 + $0xc8] sm:$0xff]
      %v889 = vld [vmem:[%s870 + $0xd8] sm:$0xff]
      %v890 = vld [vmem:[%s870 + $0xe0] sm:$0xff]
      %v891 = vld [vmem:[%s870 + $0xf0] sm:$0xff]
      %v892 = vld [vmem:[%s870 + $0xf8] sm:$0xff]
      %v893 = vld [vmem:[%s870 + $0x108] sm:$0xff]
      %v894 = vld [vmem:[%s870 + $0x110] sm:$0xff]
      %v895 = vld [vmem:[%s870 + $0x120] sm:$0xff]
      %v896 = vld [vmem:[%s870 + $0x128] sm:$0xff]
      %v897 = vld [vmem:[%s870 + $0x138] sm:$0xff]
      %v898 = vld [vmem:[%s870 + $0x140] sm:$0xff]
      %v899 = vld [vmem:[%s870 + $0x150] sm:$0xff]
      %v900 = vld [vmem:[%s870 + $0x158] sm:$0xff]
      %v901 = vld [vmem:[%s870 + $0x168] sm:$0xff]
      %v902 = vld [vmem:[%s870 + $0x170] sm:$0xff]
      %903 = vst [vmem:[#allocation3 + $0x30] sm:$0xff] %v871
      %904 = vst [vmem:[#allocation3 + $0x78] sm:$0xff] %v872
      %905 = vst [vmem:[#allocation3 + $0xc0] sm:$0xff] %v873
      %906 = vst [vmem:[#allocation3 + $0x108] sm:$0xff] %v874
      %907 = vst [vmem:[#allocation3 + $0x150] sm:$0xff] %v875
      %908 = vst [vmem:[#allocation3 + $0x198] sm:$0xff] %v876
      %909 = vst [vmem:[#allocation3 + $0x1e0] sm:$0xff] %v877
      %910 = vst [vmem:[#allocation3 + $0x228] sm:$0xff] %v878
      %911 = vst [vmem:[#allocation3 + $0x270] sm:$0xff] %v879
      %912 = vst [vmem:[#allocation3 + $0x2b8] sm:$0xff] %v880
      %913 = vst [vmem:[#allocation3 + $0x300] sm:$0xff] %v881
      %914 = vst [vmem:[#allocation3 + $0x348] sm:$0xff] %v882
      %915 = vst [vmem:[#allocation3 + $0x390] sm:$0xff] %v883
      %916 = vst [vmem:[#allocation3 + $0x3d8] sm:$0xff] %v884
      %917 = vst [vmem:[#allocation3 + $0x420] sm:$0xff] %v885
      %918 = vst [vmem:[#allocation3 + $0x468] sm:$0xff] %v886
      %919 = vst [vmem:[#allocation3 + $0x4b0] sm:$0xff] %v887
      %920 = vst [vmem:[#allocation3 + $0x4f8] sm:$0xff] %v888
      %921 = vst [vmem:[#allocation3 + $0x540] sm:$0xff] %v889
      %922 = vst [vmem:[#allocation3 + $0x588] sm:$0xff] %v890
      %923 = vst [vmem:[#allocation3 + $0x5d0] sm:$0xff] %v891
      %924 = vst [vmem:[#allocation3 + $0x618] sm:$0xff] %v892
      %925 = vst [vmem:[#allocation3 + $0x660] sm:$0xff] %v893
      %926 = vst [vmem:[#allocation3 + $0x6a8] sm:$0xff] %v894
      %927 = vst [vmem:[#allocation3 + $0x6f0] sm:$0xff] %v895
      %928 = vst [vmem:[#allocation3 + $0x738] sm:$0xff] %v896
      %929 = vst [vmem:[#allocation3 + $0x780] sm:$0xff] %v897
      %930 = vst [vmem:[#allocation3 + $0x7c8] sm:$0xff] %v898
      %931 = vst [vmem:[#allocation3 + $0x810] sm:$0xff] %v899
      %932 = vst [vmem:[#allocation3 + $0x858] sm:$0xff] %v900
      %933 = vst [vmem:[#allocation3 + $0x8a0] sm:$0xff] %v901
      %934 = vst [vmem:[#allocation3 + $0x8e8] sm:$0xff] %v902
      %v935 = vld [vmem:[%s870 + $0x1] sm:$0xff]
      %v936 = vld [vmem:[%s870 + $0x9] sm:$0xff]
      %v937 = vld [vmem:[%s870 + $0x19] sm:$0xff]
      %v938 = vld [vmem:[%s870 + $0x21] sm:$0xff]
      %v939 = vld [vmem:[%s870 + $0x31] sm:$0xff]
      %v940 = vld [vmem:[%s870 + $0x39] sm:$0xff]
      %v941 = vld [vmem:[%s870 + $0x49] sm:$0xff]
      %v942 = vld [vmem:[%s870 + $0x51] sm:$0xff]
      %v943 = vld [vmem:[%s870 + $0x61] sm:$0xff]
      %v944 = vld [vmem:[%s870 + $0x69] sm:$0xff]
      %v945 = vld [vmem:[%s870 + $0x79] sm:$0xff]
      %v946 = vld [vmem:[%s870 + $0x81] sm:$0xff]
      %v947 = vld [vmem:[%s870 + $0x91] sm:$0xff]
      %v948 = vld [vmem:[%s870 + $0x99] sm:$0xff]
      %v949 = vld [vmem:[%s870 + $0xa9] sm:$0xff]
      %v950 = vld [vmem:[%s870 + $0xb1] sm:$0xff]
      %v951 = vld [vmem:[%s870 + $0xc1] sm:$0xff]
      %v952 = vld [vmem:[%s870 + $0xc9] sm:$0xff]
      %v953 = vld [vmem:[%s870 + $0xd9] sm:$0xff]
      %v954 = vld [vmem:[%s870 + $0xe1] sm:$0xff]
      %v955 = vld [vmem:[%s870 + $0xf1] sm:$0xff]
      %v956 = vld [vmem:[%s870 + $0xf9] sm:$0xff]
      %v957 = vld [vmem:[%s870 + $0x109] sm:$0xff]
      %v958 = vld [vmem:[%s870 + $0x111] sm:$0xff]
      %v959 = vld [vmem:[%s870 + $0x121] sm:$0xff]
      %v960 = vld [vmem:[%s870 + $0x129] sm:$0xff]
      %v961 = vld [vmem:[%s870 + $0x139] sm:$0xff]
      %v962 = vld [vmem:[%s870 + $0x141] sm:$0xff]
      %v963 = vld [vmem:[%s870 + $0x151] sm:$0xff]
      %v964 = vld [vmem:[%s870 + $0x159] sm:$0xff]
      %v965 = vld [vmem:[%s870 + $0x169] sm:$0xff]
      %v966 = vld [vmem:[%s870 + $0x171] sm:$0xff]
      %967 = vst [vmem:[#allocation3 + $0x38] sm:$0xff] %v935
      %968 = vst [vmem:[#allocation3 + $0x80] sm:$0xff] %v936
      %969 = vst [vmem:[#allocation3 + $0xc8] sm:$0xff] %v937
      %970 = vst [vmem:[#allocation3 + $0x110] sm:$0xff] %v938
      %971 = vst [vmem:[#allocation3 + $0x158] sm:$0xff] %v939
      %972 = vst [vmem:[#allocation3 + $0x1a0] sm:$0xff] %v940
      %973 = vst [vmem:[#allocation3 + $0x1e8] sm:$0xff] %v941
      %974 = vst [vmem:[#allocation3 + $0x230] sm:$0xff] %v942
      %975 = vst [vmem:[#allocation3 + $0x278] sm:$0xff] %v943
      %976 = vst [vmem:[#allocation3 + $0x2c0] sm:$0xff] %v944
      %977 = vst [vmem:[#allocation3 + $0x308] sm:$0xff] %v945
      %978 = vst [vmem:[#allocation3 + $0x350] sm:$0xff] %v946
      %979 = vst [vmem:[#allocation3 + $0x398] sm:$0xff] %v947
      %980 = vst [vmem:[#allocation3 + $0x3e0] sm:$0xff] %v948
      %981 = vst [vmem:[#allocation3 + $0x428] sm:$0xff] %v949
      %982 = vst [vmem:[#allocation3 + $0x470] sm:$0xff] %v950
      %983 = vst [vmem:[#allocation3 + $0x4b8] sm:$0xff] %v951
      %984 = vst [vmem:[#allocation3 + $0x500] sm:$0xff] %v952
      %985 = vst [vmem:[#allocation3 + $0x548] sm:$0xff] %v953
      %986 = vst [vmem:[#allocation3 + $0x590] sm:$0xff] %v954
      %987 = vst [vmem:[#allocation3 + $0x5d8] sm:$0xff] %v955
      %988 = vst [vmem:[#allocation3 + $0x620] sm:$0xff] %v956
      %989 = vst [vmem:[#allocation3 + $0x668] sm:$0xff] %v957
      %990 = vst [vmem:[#allocation3 + $0x6b0] sm:$0xff] %v958
      %991 = vst [vmem:[#allocation3 + $0x6f8] sm:$0xff] %v959
      %992 = vst [vmem:[#allocation3 + $0x740] sm:$0xff] %v960
      %993 = vst [vmem:[#allocation3 + $0x788] sm:$0xff] %v961
      %994 = vst [vmem:[#allocation3 + $0x7d0] sm:$0xff] %v962
      %995 = vst [vmem:[#allocation3 + $0x818] sm:$0xff] %v963
      %996 = vst [vmem:[#allocation3 + $0x860] sm:$0xff] %v964
      %997 = vst [vmem:[#allocation3 + $0x8a8] sm:$0xff] %v965
      %998 = vst [vmem:[#allocation3 + $0x8f0] sm:$0xff] %v966
      %v999 = vld [vmem:[%s870 + $0x2] sm:$0xff]
      %v1000 = vld [vmem:[%s870 + $0xa] sm:$0xff]
      %v1001 = vld [vmem:[%s870 + $0x1a] sm:$0xff]
      %v1002 = vld [vmem:[%s870 + $0x22] sm:$0xff]
      %v1003 = vld [vmem:[%s870 + $0x32] sm:$0xff]
      %v1004 = vld [vmem:[%s870 + $0x3a] sm:$0xff]
      %v1005 = vld [vmem:[%s870 + $0x4a] sm:$0xff]
      %v1006 = vld [vmem:[%s870 + $0x52] sm:$0xff]
      %v1007 = vld [vmem:[%s870 + $0x62] sm:$0xff]
      %v1008 = vld [vmem:[%s870 + $0x6a] sm:$0xff]
      %v1009 = vld [vmem:[%s870 + $0x7a] sm:$0xff]
      %v1010 = vld [vmem:[%s870 + $0x82] sm:$0xff]
      %v1011 = vld [vmem:[%s870 + $0x92] sm:$0xff]
      %v1012 = vld [vmem:[%s870 + $0x9a] sm:$0xff]
      %v1013 = vld [vmem:[%s870 + $0xaa] sm:$0xff]
      %v1014 = vld [vmem:[%s870 + $0xb2] sm:$0xff]
      %v1015 = vld [vmem:[%s870 + $0xc2] sm:$0xff]
      %v1016 = vld [vmem:[%s870 + $0xca] sm:$0xff]
      %v1017 = vld [vmem:[%s870 + $0xda] sm:$0xff]
      %v1018 = vld [vmem:[%s870 + $0xe2] sm:$0xff]
      %v1019 = vld [vmem:[%s870 + $0xf2] sm:$0xff]
      %v1020 = vld [vmem:[%s870 + $0xfa] sm:$0xff]
      %v1021 = vld [vmem:[%s870 + $0x10a] sm:$0xff]
      %v1022 = vld [vmem:[%s870 + $0x112] sm:$0xff]
      %v1023 = vld [vmem:[%s870 + $0x122] sm:$0xff]
      %v1024 = vld [vmem:[%s870 + $0x12a] sm:$0xff]
      %v1025 = vld [vmem:[%s870 + $0x13a] sm:$0xff]
      %v1026 = vld [vmem:[%s870 + $0x142] sm:$0xff]
      %v1027 = vld [vmem:[%s870 + $0x152] sm:$0xff]
      %v1028 = vld [vmem:[%s870 + $0x15a] sm:$0xff]
      %v1029 = vld [vmem:[%s870 + $0x16a] sm:$0xff]
      %v1030 = vld [vmem:[%s870 + $0x172] sm:$0xff]
      %1031 = vst [vmem:[#allocation3 + $0x40] sm:$0xff] %v999
      %1032 = vst [vmem:[#allocation3 + $0x88] sm:$0xff] %v1000
      %1033 = vst [vmem:[#allocation3 + $0xd0] sm:$0xff] %v1001
      %1034 = vst [vmem:[#allocation3 + $0x118] sm:$0xff] %v1002
      %1035 = vst [vmem:[#allocation3 + $0x160] sm:$0xff] %v1003
      %1036 = vst [vmem:[#allocation3 + $0x1a8] sm:$0xff] %v1004
      %1037 = vst [vmem:[#allocation3 + $0x1f0] sm:$0xff] %v1005
      %1038 = vst [vmem:[#allocation3 + $0x238] sm:$0xff] %v1006
      %1039 = vst [vmem:[#allocation3 + $0x280] sm:$0xff] %v1007
      %1040 = vst [vmem:[#allocation3 + $0x2c8] sm:$0xff] %v1008
      %1041 = vst [vmem:[#allocation3 + $0x310] sm:$0xff] %v1009
      %1042 = vst [vmem:[#allocation3 + $0x358] sm:$0xff] %v1010
      %1043 = vst [vmem:[#allocation3 + $0x3a0] sm:$0xff] %v1011
      %1044 = vst [vmem:[#allocation3 + $0x3e8] sm:$0xff] %v1012
      %1045 = vst [vmem:[#allocation3 + $0x430] sm:$0xff] %v1013
      %1046 = vst [vmem:[#allocation3 + $0x478] sm:$0xff] %v1014
      %1047 = vst [vmem:[#allocation3 + $0x4c0] sm:$0xff] %v1015
      %1048 = vst [vmem:[#allocation3 + $0x508] sm:$0xff] %v1016
      %1049 = vst [vmem:[#allocation3 + $0x550] sm:$0xff] %v1017
      %1050 = vst [vmem:[#allocation3 + $0x598] sm:$0xff] %v1018
      %1051 = vst [vmem:[#allocation3 + $0x5e0] sm:$0xff] %v1019
      %1052 = vst [vmem:[#allocation3 + $0x628] sm:$0xff] %v1020
      %1053 = vst [vmem:[#allocation3 + $0x670] sm:$0xff] %v1021
      %1054 = vst [vmem:[#allocation3 + $0x6b8] sm:$0xff] %v1022
      %1055 = vst [vmem:[#allocation3 + $0x700] sm:$0xff] %v1023
      %1056 = vst [vmem:[#allocation3 + $0x748] sm:$0xff] %v1024
      %1057 = vst [vmem:[#allocation3 + $0x790] sm:$0xff] %v1025
      %1058 = vst [vmem:[#allocation3 + $0x7d8] sm:$0xff] %v1026
      %1059 = vst [vmem:[#allocation3 + $0x820] sm:$0xff] %v1027
      %1060 = vst [vmem:[#allocation3 + $0x868] sm:$0xff] %v1028
      %1061 = vst [vmem:[#allocation3 + $0x8b0] sm:$0xff] %v1029
      %1062 = vst [vmem:[#allocation3 + $0x8f8] sm:$0xff] %v1030
      %v1063 = vld [vmem:[#allocation3] sm:$0xff]
      %v1064 = vld [vmem:[#allocation3 + $0x8] sm:$0xff]
      %v1065 = vld [vmem:[#allocation3 + $0x10] sm:$0xff]
      %v1066 = vld [vmem:[#allocation3 + $0x18] sm:$0xff]
      %v1067 = vld [vmem:[#allocation3 + $0x20] sm:$0xff]
      %v1068 = vld [vmem:[#allocation3 + $0x28] sm:$0xff]
      %v1069 = vld [vmem:[#allocation3 + $0x30] sm:$0xff]
      %v1070 = vld [vmem:[#allocation3 + $0x38] sm:$0xff]
      %v1071 = vld [vmem:[#allocation3 + $0x40] sm:$0xff]
      %v1072 = vld [vmem:[#allocation3 + $0x48] sm:$0xff]
      %v1073 = vld [vmem:[#allocation3 + $0x50] sm:$0xff]
      %v1074 = vld [vmem:[#allocation3 + $0x58] sm:$0xff]
      %v1075 = vld [vmem:[#allocation3 + $0x60] sm:$0xff]
      %v1076 = vld [vmem:[#allocation3 + $0x68] sm:$0xff]
      %v1077 = vld [vmem:[#allocation3 + $0x70] sm:$0xff]
      %v1078 = vld [vmem:[#allocation3 + $0x78] sm:$0xff]
      %v1079 = vld [vmem:[#allocation3 + $0x80] sm:$0xff]
      %v1080 = vld [vmem:[#allocation3 + $0x88] sm:$0xff]
      %v1081 = vld [vmem:[#allocation3 + $0x90] sm:$0xff]
      %v1082 = vld [vmem:[#allocation3 + $0x98] sm:$0xff]
      %v1083 = vld [vmem:[#allocation3 + $0xa0] sm:$0xff]
      %v1084 = vld [vmem:[#allocation3 + $0xa8] sm:$0xff]
      %v1085 = vld [vmem:[#allocation3 + $0xb0] sm:$0xff]
      %v1086 = vld [vmem:[#allocation3 + $0xb8] sm:$0xff]
      %v1087 = vld [vmem:[#allocation3 + $0xc0] sm:$0xff]
      %v1088 = vld [vmem:[#allocation3 + $0xc8] sm:$0xff]
      %v1089 = vld [vmem:[#allocation3 + $0xd0] sm:$0xff]
      %v1090 = vld [vmem:[#allocation3 + $0xd8] sm:$0xff]
      %v1091 = vld [vmem:[#allocation3 + $0xe0] sm:$0xff]
      %v1092 = vld [vmem:[#allocation3 + $0xe8] sm:$0xff]
      %v1093 = vld [vmem:[#allocation3 + $0xf0] sm:$0xff]
      %v1094 = vld [vmem:[#allocation3 + $0xf8] sm:$0xff]
      %v1095 = vld [vmem:[#allocation3 + $0x100] sm:$0xff]
      %v1096 = vld [vmem:[#allocation3 + $0x108] sm:$0xff]
      %v1097 = vld [vmem:[#allocation3 + $0x110] sm:$0xff]
      %v1098 = vld [vmem:[#allocation3 + $0x118] sm:$0xff]
      %v1099 = vld [vmem:[#allocation3 + $0x120] sm:$0xff]
      %v1100 = vld [vmem:[#allocation3 + $0x128] sm:$0xff]
      %v1101 = vld [vmem:[#allocation3 + $0x130] sm:$0xff]
      %v1102 = vld [vmem:[#allocation3 + $0x138] sm:$0xff]
      %v1103 = vld [vmem:[#allocation3 + $0x140] sm:$0xff]
      %v1104 = vld [vmem:[#allocation3 + $0x148] sm:$0xff]
      %v1105 = vld [vmem:[#allocation3 + $0x150] sm:$0xff]
      %v1106 = vld [vmem:[#allocation3 + $0x158] sm:$0xff]
      %v1107 = vld [vmem:[#allocation3 + $0x160] sm:$0xff]
      %v1108 = vld [vmem:[#allocation3 + $0x168] sm:$0xff]
      %v1109 = vld [vmem:[#allocation3 + $0x170] sm:$0xff]
      %v1110 = vld [vmem:[#allocation3 + $0x178] sm:$0xff]
      %v1111 = vld [vmem:[#allocation3 + $0x180] sm:$0xff]
      %v1112 = vld [vmem:[#allocation3 + $0x188] sm:$0xff]
      %v1113 = vld [vmem:[#allocation3 + $0x190] sm:$0xff]
      %v1114 = vld [vmem:[#allocation3 + $0x198] sm:$0xff]
      %v1115 = vld [vmem:[#allocation3 + $0x1a0] sm:$0xff]
      %v1116 = vld [vmem:[#allocation3 + $0x1a8] sm:$0xff]
      %v1117 = vld [vmem:[#allocation3 + $0x1b0] sm:$0xff]
      %v1118 = vld [vmem:[#allocation3 + $0x1b8] sm:$0xff]
      %v1119 = vld [vmem:[#allocation3 + $0x1c0] sm:$0xff]
      %v1120 = vld [vmem:[#allocation3 + $0x1c8] sm:$0xff]
      %v1121 = vld [vmem:[#allocation3 + $0x1d0] sm:$0xff]
      %v1122 = vld [vmem:[#allocation3 + $0x1d8] sm:$0xff]
      %v1123 = vld [vmem:[#allocation3 + $0x1e0] sm:$0xff]
      %v1124 = vld [vmem:[#allocation3 + $0x1e8] sm:$0xff]
      %v1125 = vld [vmem:[#allocation3 + $0x1f0] sm:$0xff]
      %v1126 = vld [vmem:[#allocation3 + $0x1f8] sm:$0xff]
      %v1127 = vld [vmem:[#allocation3 + $0x200] sm:$0xff]
      %v1128 = vld [vmem:[#allocation3 + $0x208] sm:$0xff]
      %v1129 = vld [vmem:[#allocation3 + $0x210] sm:$0xff]
      %v1130 = vld [vmem:[#allocation3 + $0x218] sm:$0xff]
      %v1131 = vld [vmem:[#allocation3 + $0x220] sm:$0xff]
      %v1132 = vld [vmem:[#allocation3 + $0x228] sm:$0xff]
      %v1133 = vld [vmem:[#allocation3 + $0x230] sm:$0xff]
      %v1134 = vld [vmem:[#allocation3 + $0x238] sm:$0xff]
      %v1135 = vld [vmem:[#allocation3 + $0x240] sm:$0xff]
      %v1136 = vld [vmem:[#allocation3 + $0x248] sm:$0xff]
      %v1137 = vld [vmem:[#allocation3 + $0x250] sm:$0xff]
      %v1138 = vld [vmem:[#allocation3 + $0x258] sm:$0xff]
      %v1139 = vld [vmem:[#allocation3 + $0x260] sm:$0xff]
      %v1140 = vld [vmem:[#allocation3 + $0x268] sm:$0xff]
      %v1141 = vld [vmem:[#allocation3 + $0x270] sm:$0xff]
      %v1142 = vld [vmem:[#allocation3 + $0x278] sm:$0xff]
      %v1143 = vld [vmem:[#allocation3 + $0x280] sm:$0xff]
      %v1144 = vld [vmem:[#allocation3 + $0x288] sm:$0xff]
      %v1145 = vld [vmem:[#allocation3 + $0x290] sm:$0xff]
      %v1146 = vld [vmem:[#allocation3 + $0x298] sm:$0xff]
      %v1147 = vld [vmem:[#allocation3 + $0x2a0] sm:$0xff]
      %v1148 = vld [vmem:[#allocation3 + $0x2a8] sm:$0xff]
      %v1149 = vld [vmem:[#allocation3 + $0x2b0] sm:$0xff]
      %v1150 = vld [vmem:[#allocation3 + $0x2b8] sm:$0xff]
      %v1151 = vld [vmem:[#allocation3 + $0x2c0] sm:$0xff]
      %v1152 = vld [vmem:[#allocation3 + $0x2c8] sm:$0xff]
      %v1153 = vld [vmem:[#allocation3 + $0x2d0] sm:$0xff]
      %v1154 = vld [vmem:[#allocation3 + $0x2d8] sm:$0xff]
      %v1155 = vld [vmem:[#allocation3 + $0x2e0] sm:$0xff]
      %v1156 = vld [vmem:[#allocation3 + $0x2e8] sm:$0xff]
      %v1157 = vld [vmem:[#allocation3 + $0x2f0] sm:$0xff]
      %v1158 = vld [vmem:[#allocation3 + $0x2f8] sm:$0xff]
      %v1159 = vld [vmem:[#allocation3 + $0x300] sm:$0xff]
      %v1160 = vld [vmem:[#allocation3 + $0x308] sm:$0xff]
      %v1161 = vld [vmem:[#allocation3 + $0x310] sm:$0xff]
      %v1162 = vld [vmem:[#allocation3 + $0x318] sm:$0xff]
      %v1163 = vld [vmem:[#allocation3 + $0x320] sm:$0xff]
      %v1164 = vld [vmem:[#allocation3 + $0x328] sm:$0xff]
      %v1165 = vld [vmem:[#allocation3 + $0x330] sm:$0xff]
      %v1166 = vld [vmem:[#allocation3 + $0x338] sm:$0xff]
      %v1167 = vld [vmem:[#allocation3 + $0x340] sm:$0xff]
      %v1168 = vld [vmem:[#allocation3 + $0x348] sm:$0xff]
      %v1169 = vld [vmem:[#allocation3 + $0x350] sm:$0xff]
      %v1170 = vld [vmem:[#allocation3 + $0x358] sm:$0xff]
      %v1171 = vld [vmem:[#allocation3 + $0x360] sm:$0xff]
      %v1172 = vld [vmem:[#allocation3 + $0x368] sm:$0xff]
      %v1173 = vld [vmem:[#allocation3 + $0x370] sm:$0xff]
      %v1174 = vld [vmem:[#allocation3 + $0x378] sm:$0xff]
      %v1175 = vld [vmem:[#allocation3 + $0x380] sm:$0xff]
      %v1176 = vld [vmem:[#allocation3 + $0x388] sm:$0xff]
      %v1177 = vld [vmem:[#allocation3 + $0x390] sm:$0xff]
      %v1178 = vld [vmem:[#allocation3 + $0x398] sm:$0xff]
      %v1179 = vld [vmem:[#allocation3 + $0x3a0] sm:$0xff]
      %v1180 = vld [vmem:[#allocation3 + $0x3a8] sm:$0xff]
      %v1181 = vld [vmem:[#allocation3 + $0x3b0] sm:$0xff]
      %v1182 = vld [vmem:[#allocation3 + $0x3b8] sm:$0xff]
      %v1183 = vld [vmem:[#allocation3 + $0x3c0] sm:$0xff]
      %v1184 = vld [vmem:[#allocation3 + $0x3c8] sm:$0xff]
      %v1185 = vld [vmem:[#allocation3 + $0x3d0] sm:$0xff]
      %v1186 = vld [vmem:[#allocation3 + $0x3d8] sm:$0xff]
      %v1187 = vld [vmem:[#allocation3 + $0x3e0] sm:$0xff]
      %v1188 = vld [vmem:[#allocation3 + $0x3e8] sm:$0xff]
      %v1189 = vld [vmem:[#allocation3 + $0x3f0] sm:$0xff]
      %v1190 = vld [vmem:[#allocation3 + $0x3f8] sm:$0xff]
      %v1191 = vld [vmem:[#allocation3 + $0x400] sm:$0xff]
      %v1192 = vld [vmem:[#allocation3 + $0x408] sm:$0xff]
      %v1193 = vld [vmem:[#allocation3 + $0x410] sm:$0xff]
      %v1194 = vld [vmem:[#allocation3 + $0x418] sm:$0xff]
      %v1195 = vld [vmem:[#allocation3 + $0x420] sm:$0xff]
      %v1196 = vld [vmem:[#allocation3 + $0x428] sm:$0xff]
      %v1197 = vld [vmem:[#allocation3 + $0x430] sm:$0xff]
      %v1198 = vld [vmem:[#allocation3 + $0x438] sm:$0xff]
      %v1199 = vld [vmem:[#allocation3 + $0x440] sm:$0xff]
      %v1200 = vld [vmem:[#allocation3 + $0x448] sm:$0xff]
      %v1201 = vld [vmem:[#allocation3 + $0x450] sm:$0xff]
      %v1202 = vld [vmem:[#allocation3 + $0x458] sm:$0xff]
      %v1203 = vld [vmem:[#allocation3 + $0x460] sm:$0xff]
      %v1204 = vld [vmem:[#allocation3 + $0x468] sm:$0xff]
      %v1205 = vld [vmem:[#allocation3 + $0x470] sm:$0xff]
      %v1206 = vld [vmem:[#allocation3 + $0x478] sm:$0xff]
      %v1207 = vld [vmem:[#allocation3 + $0x480] sm:$0xff]
      %v1208 = vld [vmem:[#allocation3 + $0x488] sm:$0xff]
      %v1209 = vld [vmem:[#allocation3 + $0x490] sm:$0xff]
      %v1210 = vld [vmem:[#allocation3 + $0x498] sm:$0xff]
      %v1211 = vld [vmem:[#allocation3 + $0x4a0] sm:$0xff]
      %v1212 = vld [vmem:[#allocation3 + $0x4a8] sm:$0xff]
      %v1213 = vld [vmem:[#allocation3 + $0x4b0] sm:$0xff]
      %v1214 = vld [vmem:[#allocation3 + $0x4b8] sm:$0xff]
      %v1215 = vld [vmem:[#allocation3 + $0x4c0] sm:$0xff]
      %v1216 = vld [vmem:[#allocation3 + $0x4c8] sm:$0xff]
      %v1217 = vld [vmem:[#allocation3 + $0x4d0] sm:$0xff]
      %v1218 = vld [vmem:[#allocation3 + $0x4d8] sm:$0xff]
      %v1219 = vld [vmem:[#allocation3 + $0x4e0] sm:$0xff]
      %v1220 = vld [vmem:[#allocation3 + $0x4e8] sm:$0xff]
      %v1221 = vld [vmem:[#allocation3 + $0x4f0] sm:$0xff]
      %v1222 = vld [vmem:[#allocation3 + $0x4f8] sm:$0xff]
      %v1223 = vld [vmem:[#allocation3 + $0x500] sm:$0xff]
      %v1224 = vld [vmem:[#allocation3 + $0x508] sm:$0xff]
      %v1225 = vld [vmem:[#allocation3 + $0x510] sm:$0xff]
      %v1226 = vld [vmem:[#allocation3 + $0x518] sm:$0xff]
      %v1227 = vld [vmem:[#allocation3 + $0x520] sm:$0xff]
      %v1228 = vld [vmem:[#allocation3 + $0x528] sm:$0xff]
      %v1229 = vld [vmem:[#allocation3 + $0x530] sm:$0xff]
      %v1230 = vld [vmem:[#allocation3 + $0x538] sm:$0xff]
      %v1231 = vld [vmem:[#allocation3 + $0x540] sm:$0xff]
      %v1232 = vld [vmem:[#allocation3 + $0x548] sm:$0xff]
      %v1233 = vld [vmem:[#allocation3 + $0x550] sm:$0xff]
      %v1234 = vld [vmem:[#allocation3 + $0x558] sm:$0xff]
      %v1235 = vld [vmem:[#allocation3 + $0x560] sm:$0xff]
      %v1236 = vld [vmem:[#allocation3 + $0x568] sm:$0xff]
      %v1237 = vld [vmem:[#allocation3 + $0x570] sm:$0xff]
      %v1238 = vld [vmem:[#allocation3 + $0x578] sm:$0xff]
      %v1239 = vld [vmem:[#allocation3 + $0x580] sm:$0xff]
      %v1240 = vld [vmem:[#allocation3 + $0x588] sm:$0xff]
      %v1241 = vld [vmem:[#allocation3 + $0x590] sm:$0xff]
      %v1242 = vld [vmem:[#allocation3 + $0x598] sm:$0xff]
      %v1243 = vld [vmem:[#allocation3 + $0x5a0] sm:$0xff]
      %v1244 = vld [vmem:[#allocation3 + $0x5a8] sm:$0xff]
      %v1245 = vld [vmem:[#allocation3 + $0x5b0] sm:$0xff]
      %v1246 = vld [vmem:[#allocation3 + $0x5b8] sm:$0xff]
      %v1247 = vld [vmem:[#allocation3 + $0x5c0] sm:$0xff]
      %v1248 = vld [vmem:[#allocation3 + $0x5c8] sm:$0xff]
      %v1249 = vld [vmem:[#allocation3 + $0x5d0] sm:$0xff]
      %v1250 = vld [vmem:[#allocation3 + $0x5d8] sm:$0xff]
      %v1251 = vld [vmem:[#allocation3 + $0x5e0] sm:$0xff]
      %v1252 = vld [vmem:[#allocation3 + $0x5e8] sm:$0xff]
      %v1253 = vld [vmem:[#allocation3 + $0x5f0] sm:$0xff]
      %v1254 = vld [vmem:[#allocation3 + $0x5f8] sm:$0xff]
      %v1255 = vld [vmem:[#allocation3 + $0x600] sm:$0xff]
      %v1256 = vld [vmem:[#allocation3 + $0x608] sm:$0xff]
      %v1257 = vld [vmem:[#allocation3 + $0x610] sm:$0xff]
      %v1258 = vld [vmem:[#allocation3 + $0x618] sm:$0xff]
      %v1259 = vld [vmem:[#allocation3 + $0x620] sm:$0xff]
      %v1260 = vld [vmem:[#allocation3 + $0x628] sm:$0xff]
      %v1261 = vld [vmem:[#allocation3 + $0x630] sm:$0xff]
      %v1262 = vld [vmem:[#allocation3 + $0x638] sm:$0xff]
      %v1263 = vld [vmem:[#allocation3 + $0x640] sm:$0xff]
      %v1264 = vld [vmem:[#allocation3 + $0x648] sm:$0xff]
      %v1265 = vld [vmem:[#allocation3 + $0x650] sm:$0xff]
      %v1266 = vld [vmem:[#allocation3 + $0x658] sm:$0xff]
      %v1267 = vld [vmem:[#allocation3 + $0x660] sm:$0xff]
      %v1268 = vld [vmem:[#allocation3 + $0x668] sm:$0xff]
      %v1269 = vld [vmem:[#allocation3 + $0x670] sm:$0xff]
      %v1270 = vld [vmem:[#allocation3 + $0x678] sm:$0xff]
      %v1271 = vld [vmem:[#allocation3 + $0x680] sm:$0xff]
      %v1272 = vld [vmem:[#allocation3 + $0x688] sm:$0xff]
      %v1273 = vld [vmem:[#allocation3 + $0x690] sm:$0xff]
      %v1274 = vld [vmem:[#allocation3 + $0x698] sm:$0xff]
      %v1275 = vld [vmem:[#allocation3 + $0x6a0] sm:$0xff]
      %v1276 = vld [vmem:[#allocation3 + $0x6a8] sm:$0xff]
      %v1277 = vld [vmem:[#allocation3 + $0x6b0] sm:$0xff]
      %v1278 = vld [vmem:[#allocation3 + $0x6b8] sm:$0xff]
      %v1279 = vld [vmem:[#allocation3 + $0x6c0] sm:$0xff]
      %v1280 = vld [vmem:[#allocation3 + $0x6c8] sm:$0xff]
      %v1281 = vld [vmem:[#allocation3 + $0x6d0] sm:$0xff]
      %v1282 = vld [vmem:[#allocation3 + $0x6d8] sm:$0xff]
      %v1283 = vld [vmem:[#allocation3 + $0x6e0] sm:$0xff]
      %v1284 = vld [vmem:[#allocation3 + $0x6e8] sm:$0xff]
      %v1285 = vld [vmem:[#allocation3 + $0x6f0] sm:$0xff]
      %v1286 = vld [vmem:[#allocation3 + $0x6f8] sm:$0xff]
      %v1287 = vld [vmem:[#allocation3 + $0x700] sm:$0xff]
      %v1288 = vld [vmem:[#allocation3 + $0x708] sm:$0xff]
      %v1289 = vld [vmem:[#allocation3 + $0x710] sm:$0xff]
      %v1290 = vld [vmem:[#allocation3 + $0x718] sm:$0xff]
      %v1291 = vld [vmem:[#allocation3 + $0x720] sm:$0xff]
      %v1292 = vld [vmem:[#allocation3 + $0x728] sm:$0xff]
      %v1293 = vld [vmem:[#allocation3 + $0x730] sm:$0xff]
      %v1294 = vld [vmem:[#allocation3 + $0x738] sm:$0xff]
      %v1295 = vld [vmem:[#allocation3 + $0x740] sm:$0xff]
      %v1296 = vld [vmem:[#allocation3 + $0x748] sm:$0xff]
      %v1297 = vld [vmem:[#allocation3 + $0x750] sm:$0xff]
      %v1298 = vld [vmem:[#allocation3 + $0x758] sm:$0xff]
      %v1299 = vld [vmem:[#allocation3 + $0x760] sm:$0xff]
      %v1300 = vld [vmem:[#allocation3 + $0x768] sm:$0xff]
      %v1301 = vld [vmem:[#allocation3 + $0x770] sm:$0xff]
      %v1302 = vld [vmem:[#allocation3 + $0x778] sm:$0xff]
      %v1303 = vld [vmem:[#allocation3 + $0x780] sm:$0xff]
      %v1304 = vld [vmem:[#allocation3 + $0x788] sm:$0xff]
      %v1305 = vld [vmem:[#allocation3 + $0x790] sm:$0xff]
      %v1306 = vld [vmem:[#allocation3 + $0x798] sm:$0xff]
      %v1307 = vld [vmem:[#allocation3 + $0x7a0] sm:$0xff]
      %v1308 = vld [vmem:[#allocation3 + $0x7a8] sm:$0xff]
      %v1309 = vld [vmem:[#allocation3 + $0x7b0] sm:$0xff]
      %v1310 = vld [vmem:[#allocation3 + $0x7b8] sm:$0xff]
      %v1311 = vld [vmem:[#allocation3 + $0x7c0] sm:$0xff]
      %v1312 = vld [vmem:[#allocation3 + $0x7c8] sm:$0xff]
      %v1313 = vld [vmem:[#allocation3 + $0x7d0] sm:$0xff]
      %v1314 = vld [vmem:[#allocation3 + $0x7d8] sm:$0xff]
      %v1315 = vld [vmem:[#allocation3 + $0x7e0] sm:$0xff]
      %v1316 = vld [vmem:[#allocation3 + $0x7e8] sm:$0xff]
      %v1317 = vld [vmem:[#allocation3 + $0x7f0] sm:$0xff]
      %v1318 = vld [vmem:[#allocation3 + $0x7f8] sm:$0xff]
      %v1319 = vld [vmem:[#allocation3 + $0x800] sm:$0xff]
      %v1320 = vld [vmem:[#allocation3 + $0x808] sm:$0xff]
      %v1321 = vld [vmem:[#allocation3 + $0x810] sm:$0xff]
      %v1322 = vld [vmem:[#allocation3 + $0x818] sm:$0xff]
      %v1323 = vld [vmem:[#allocation3 + $0x820] sm:$0xff]
      %v1324 = vld [vmem:[#allocation3 + $0x828] sm:$0xff]
      %v1325 = vld [vmem:[#allocation3 + $0x830] sm:$0xff]
      %v1326 = vld [vmem:[#allocation3 + $0x838] sm:$0xff]
      %v1327 = vld [vmem:[#allocation3 + $0x840] sm:$0xff]
      %v1328 = vld [vmem:[#allocation3 + $0x848] sm:$0xff]
      %v1329 = vld [vmem:[#allocation3 + $0x850] sm:$0xff]
      %v1330 = vld [vmem:[#allocation3 + $0x858] sm:$0xff]
      %v1331 = vld [vmem:[#allocation3 + $0x860] sm:$0xff]
      %v1332 = vld [vmem:[#allocation3 + $0x868] sm:$0xff]
      %v1333 = vld [vmem:[#allocation3 + $0x870] sm:$0xff]
      %v1334 = vld [vmem:[#allocation3 + $0x878] sm:$0xff]
      %v1335 = vld [vmem:[#allocation3 + $0x880] sm:$0xff]
      %v1336 = vld [vmem:[#allocation3 + $0x888] sm:$0xff]
      %v1337 = vld [vmem:[#allocation3 + $0x890] sm:$0xff]
      %v1338 = vld [vmem:[#allocation3 + $0x898] sm:$0xff]
      %v1339 = vld [vmem:[#allocation3 + $0x8a0] sm:$0xff]
      %v1340 = vld [vmem:[#allocation3 + $0x8a8] sm:$0xff]
      %v1341 = vld [vmem:[#allocation3 + $0x8b0] sm:$0xff]
      %v1342 = vld [vmem:[#allocation3 + $0x8b8] sm:$0xff]
      %v1343 = vld [vmem:[#allocation3 + $0x8c0] sm:$0xff]
      %v1344 = vld [vmem:[#allocation3 + $0x8c8] sm:$0xff]
      %v1345 = vld [vmem:[#allocation3 + $0x8d0] sm:$0xff]
      %v1346 = vld [vmem:[#allocation3 + $0x8d8] sm:$0xff]
      %v1347 = vld [vmem:[#allocation3 + $0x8e0] sm:$0xff]
      %v1348 = vld [vmem:[#allocation3 + $0x8e8] sm:$0xff]
      %v1349 = vld [vmem:[#allocation3 + $0x8f0] sm:$0xff]
      %v1350 = vld [vmem:[#allocation3 + $0x8f8] sm:$0xff]
      %v1351 = vld [vmem:[%s3] sm:$0xff]
      %v1352 = vld [vmem:[%s3 + $0x8] sm:$0xff]
      %v1353 = vld [vmem:[%s3 + $0x10] sm:$0xff]
      %v1354 = vld [vmem:[%s3 + $0x18] sm:$0xff]
      %v1355 = vld [vmem:[%s3 + $0x20] sm:$0xff]
      %v1356 = vld [vmem:[%s3 + $0x28] sm:$0xff]
      %v1357 = vld [vmem:[%s3 + $0x30] sm:$0xff]
      %v1358 = vld [vmem:[%s3 + $0x38] sm:$0xff]
      %v1359 = vld [vmem:[%s3 + $0x40] sm:$0xff]
      %v1360 = vld [vmem:[%s3 + $0x48] sm:$0xff]
      %v1361 = vld [vmem:[%s3 + $0x50] sm:$0xff]
      %v1362 = vld [vmem:[%s3 + $0x58] sm:$0xff]
      %v1363 = vld [vmem:[%s3 + $0x60] sm:$0xff]
      %v1364 = vld [vmem:[%s3 + $0x68] sm:$0xff]
      %v1365 = vld [vmem:[%s3 + $0x70] sm:$0xff]
      %v1366 = vld [vmem:[%s3 + $0x78] sm:$0xff]
      %v1367 = vld [vmem:[%s3 + $0x80] sm:$0xff]
      %v1368 = vld [vmem:[%s3 + $0x88] sm:$0xff]
      %v1369 = vld [vmem:[%s3 + $0x90] sm:$0xff]
      %v1370 = vld [vmem:[%s3 + $0x98] sm:$0xff]
      %v1371 = vld [vmem:[%s3 + $0xa0] sm:$0xff]
      %v1372 = vld [vmem:[%s3 + $0xa8] sm:$0xff]
      %v1373 = vld [vmem:[%s3 + $0xb0] sm:$0xff]
      %v1374 = vld [vmem:[%s3 + $0xb8] sm:$0xff]
      %v1375 = vld [vmem:[%s3 + $0xc0] sm:$0xff]
      %v1376 = vld [vmem:[%s3 + $0xc8] sm:$0xff]
      %v1377 = vld [vmem:[%s3 + $0xd0] sm:$0xff]
      %v1378 = vld [vmem:[%s3 + $0xd8] sm:$0xff]
      %v1379 = vld [vmem:[%s3 + $0xe0] sm:$0xff]
      %v1380 = vld [vmem:[%s3 + $0xe8] sm:$0xff]
      %v1381 = vld [vmem:[%s3 + $0xf0] sm:$0xff]
      %v1382 = vld [vmem:[%s3 + $0xf8] sm:$0xff]
      %v1383 = vld [vmem:[%s3 + $0x100] sm:$0xff]
      %v1384 = vld [vmem:[%s3 + $0x108] sm:$0xff]
      %v1385 = vld [vmem:[%s3 + $0x110] sm:$0xff]
      %v1386 = vld [vmem:[%s3 + $0x118] sm:$0xff]
      %v1387 = vld [vmem:[%s3 + $0x120] sm:$0xff]
      %v1388 = vld [vmem:[%s3 + $0x128] sm:$0xff]
      %v1389 = vld [vmem:[%s3 + $0x130] sm:$0xff]
      %v1390 = vld [vmem:[%s3 + $0x138] sm:$0xff]
      %v1391 = vld [vmem:[%s3 + $0x140] sm:$0xff]
      %v1392 = vld [vmem:[%s3 + $0x148] sm:$0xff]
      %v1393 = vld [vmem:[%s3 + $0x150] sm:$0xff]
      %v1394 = vld [vmem:[%s3 + $0x158] sm:$0xff]
      %v1395 = vld [vmem:[%s3 + $0x160] sm:$0xff]
      %v1396 = vld [vmem:[%s3 + $0x168] sm:$0xff]
      %v1397 = vld [vmem:[%s3 + $0x170] sm:$0xff]
      %v1398 = vld [vmem:[%s3 + $0x178] sm:$0xff]
      %v1399 = vld [vmem:[%s3 + $0x180] sm:$0xff]
      %v1400 = vld [vmem:[%s3 + $0x188] sm:$0xff]
      %v1401 = vld [vmem:[%s3 + $0x190] sm:$0xff]
      %v1402 = vld [vmem:[%s3 + $0x198] sm:$0xff]
      %v1403 = vld [vmem:[%s3 + $0x1a0] sm:$0xff]
      %v1404 = vld [vmem:[%s3 + $0x1a8] sm:$0xff]
      %v1405 = vld [vmem:[%s3 + $0x1b0] sm:$0xff]
      %v1406 = vld [vmem:[%s3 + $0x1b8] sm:$0xff]
      %v1407 = vld [vmem:[%s3 + $0x1c0] sm:$0xff]
      %v1408 = vld [vmem:[%s3 + $0x1c8] sm:$0xff]
      %v1409 = vld [vmem:[%s3 + $0x1d0] sm:$0xff]
      %v1410 = vld [vmem:[%s3 + $0x1d8] sm:$0xff]
      %v1411 = vld [vmem:[%s3 + $0x1e0] sm:$0xff]
      %v1412 = vld [vmem:[%s3 + $0x1e8] sm:$0xff]
      %v1413 = vld [vmem:[%s3 + $0x1f0] sm:$0xff]
      %v1414 = vld [vmem:[%s3 + $0x1f8] sm:$0xff]
      %v1415 = vld [vmem:[%s3 + $0x200] sm:$0xff]
      %v1416 = vld [vmem:[%s3 + $0x208] sm:$0xff]
      %v1417 = vld [vmem:[%s3 + $0x210] sm:$0xff]
      %v1418 = vld [vmem:[%s3 + $0x218] sm:$0xff]
      %v1419 = vld [vmem:[%s3 + $0x220] sm:$0xff]
      %v1420 = vld [vmem:[%s3 + $0x228] sm:$0xff]
      %v1421 = vld [vmem:[%s3 + $0x230] sm:$0xff]
      %v1422 = vld [vmem:[%s3 + $0x238] sm:$0xff]
      %v1423 = vld [vmem:[%s3 + $0x240] sm:$0xff]
      %v1424 = vld [vmem:[%s3 + $0x248] sm:$0xff]
      %v1425 = vld [vmem:[%s3 + $0x250] sm:$0xff]
      %v1426 = vld [vmem:[%s3 + $0x258] sm:$0xff]
      %v1427 = vld [vmem:[%s3 + $0x260] sm:$0xff]
      %v1428 = vld [vmem:[%s3 + $0x268] sm:$0xff]
      %v1429 = vld [vmem:[%s3 + $0x270] sm:$0xff]
      %v1430 = vld [vmem:[%s3 + $0x278] sm:$0xff]
      %v1431 = vld [vmem:[%s3 + $0x280] sm:$0xff]
      %v1432 = vld [vmem:[%s3 + $0x288] sm:$0xff]
      %v1433 = vld [vmem:[%s3 + $0x290] sm:$0xff]
      %v1434 = vld [vmem:[%s3 + $0x298] sm:$0xff]
      %v1435 = vld [vmem:[%s3 + $0x2a0] sm:$0xff]
      %v1436 = vld [vmem:[%s3 + $0x2a8] sm:$0xff]
      %v1437 = vld [vmem:[%s3 + $0x2b0] sm:$0xff]
      %v1438 = vld [vmem:[%s3 + $0x2b8] sm:$0xff]
      %v1439 = vld [vmem:[%s3 + $0x2c0] sm:$0xff]
      %v1440 = vld [vmem:[%s3 + $0x2c8] sm:$0xff]
      %v1441 = vld [vmem:[%s3 + $0x2d0] sm:$0xff]
      %v1442 = vld [vmem:[%s3 + $0x2d8] sm:$0xff]
      %v1443 = vld [vmem:[%s3 + $0x2e0] sm:$0xff]
      %v1444 = vld [vmem:[%s3 + $0x2e8] sm:$0xff]
      %v1445 = vld [vmem:[%s3 + $0x2f0] sm:$0xff]
      %v1446 = vld [vmem:[%s3 + $0x2f8] sm:$0xff]
      %v1447 = vld [vmem:[%s3 + $0x300] sm:$0xff]
      %v1448 = vld [vmem:[%s3 + $0x308] sm:$0xff]
      %v1449 = vld [vmem:[%s3 + $0x310] sm:$0xff]
      %v1450 = vld [vmem:[%s3 + $0x318] sm:$0xff]
      %v1451 = vld [vmem:[%s3 + $0x320] sm:$0xff]
      %v1452 = vld [vmem:[%s3 + $0x328] sm:$0xff]
      %v1453 = vld [vmem:[%s3 + $0x330] sm:$0xff]
      %v1454 = vld [vmem:[%s3 + $0x338] sm:$0xff]
      %v1455 = vld [vmem:[%s3 + $0x340] sm:$0xff]
      %v1456 = vld [vmem:[%s3 + $0x348] sm:$0xff]
      %v1457 = vld [vmem:[%s3 + $0x350] sm:$0xff]
      %v1458 = vld [vmem:[%s3 + $0x358] sm:$0xff]
      %v1459 = vld [vmem:[%s3 + $0x360] sm:$0xff]
      %v1460 = vld [vmem:[%s3 + $0x368] sm:$0xff]
      %v1461 = vld [vmem:[%s3 + $0x370] sm:$0xff]
      %v1462 = vld [vmem:[%s3 + $0x378] sm:$0xff]
      %v1463 = vld [vmem:[%s3 + $0x380] sm:$0xff]
      %v1464 = vld [vmem:[%s3 + $0x388] sm:$0xff]
      %v1465 = vld [vmem:[%s3 + $0x390] sm:$0xff]
      %v1466 = vld [vmem:[%s3 + $0x398] sm:$0xff]
      %v1467 = vld [vmem:[%s3 + $0x3a0] sm:$0xff]
      %v1468 = vld [vmem:[%s3 + $0x3a8] sm:$0xff]
      %v1469 = vld [vmem:[%s3 + $0x3b0] sm:$0xff]
      %v1470 = vld [vmem:[%s3 + $0x3b8] sm:$0xff]
      %v1471 = vld [vmem:[%s3 + $0x3c0] sm:$0xff]
      %v1472 = vld [vmem:[%s3 + $0x3c8] sm:$0xff]
      %v1473 = vld [vmem:[%s3 + $0x3d0] sm:$0xff]
      %v1474 = vld [vmem:[%s3 + $0x3d8] sm:$0xff]
      %v1475 = vld [vmem:[%s3 + $0x3e0] sm:$0xff]
      %v1476 = vld [vmem:[%s3 + $0x3e8] sm:$0xff]
      %v1477 = vld [vmem:[%s3 + $0x3f0] sm:$0xff]
      %v1478 = vld [vmem:[%s3 + $0x3f8] sm:$0xff]
      %v1479 = vld [vmem:[%s3 + $0x400] sm:$0xff]
      %v1480 = vld [vmem:[%s3 + $0x408] sm:$0xff]
      %v1481 = vld [vmem:[%s3 + $0x410] sm:$0xff]
      %v1482 = vld [vmem:[%s3 + $0x418] sm:$0xff]
      %v1483 = vld [vmem:[%s3 + $0x420] sm:$0xff]
      %v1484 = vld [vmem:[%s3 + $0x428] sm:$0xff]
      %v1485 = vld [vmem:[%s3 + $0x430] sm:$0xff]
      %v1486 = vld [vmem:[%s3 + $0x438] sm:$0xff]
      %v1487 = vld [vmem:[%s3 + $0x440] sm:$0xff]
      %v1488 = vld [vmem:[%s3 + $0x448] sm:$0xff]
      %v1489 = vld [vmem:[%s3 + $0x450] sm:$0xff]
      %v1490 = vld [vmem:[%s3 + $0x458] sm:$0xff]
      %v1491 = vld [vmem:[%s3 + $0x460] sm:$0xff]
      %v1492 = vld [vmem:[%s3 + $0x468] sm:$0xff]
      %v1493 = vld [vmem:[%s3 + $0x470] sm:$0xff]
      %v1494 = vld [vmem:[%s3 + $0x478] sm:$0xff]
      %v1495 = vld [vmem:[%s4] sm:$0x1]
      %v1497 = vperm.slane %v1495, 0
      %1499 = vmatpush.msra.mxu0 %v1366
      %1500 = vmatpush.msra.mxu0 %v1365
      %1501 = vmatpush.msra.mxu0 %v1364
      %1502 = vmatpush.msra.mxu0 %v1363
      %1503 = vmatpush.msra.mxu0 %v1362
      %1504 = vmatpush.msra.mxu0 %v1361
      %1505 = vmatpush.msra.mxu0 %v1360
      %1506 = vmatpush.msra.mxu0 %v1359
      %1507 = vmatpush.msra.mxu0 %v1358
      %1508 = vmatpush.msra.mxu0 %v1357
      %1509 = vmatpush.msra.mxu0 %v1356
      %1510 = vmatpush.msra.mxu0 %v1355
      %1511 = vmatpush.msra.mxu0 %v1354
      %1512 = vmatpush.msra.mxu0 %v1353
      %1513 = vmatpush.msra.mxu0 %v1352
      %1514 = vmatpush.msra.mxu0 %v1351
      %1515 = vmatmul.f32.gmra.mxu0 %v1063
      %v1516 = vpop.f32.mrf.mxu0
      %v1517 = vadd.f32 %v1497, %v1516
      %1518 = vmatmul.f32.gmra.mxu0 %v1072
      %v1519 = vpop.f32.mrf.mxu0
      %v1520 = vadd.f32 %v1497, %v1519
      %1521 = vmatmul.f32.gmra.mxu0 %v1081
      %v1522 = vpop.f32.mrf.mxu0
      %v1523 = vadd.f32 %v1497, %v1522
      %1524 = vmatmul.f32.gmra.mxu0 %v1090
      %v1525 = vpop.f32.mrf.mxu0
      %v1526 = vadd.f32 %v1497, %v1525
      %1527 = vmatmul.f32.gmra.mxu0 %v1099
      %v1528 = vpop.f32.mrf.mxu0
      %v1529 = vadd.f32 %v1497, %v1528
      %1530 = vmatmul.f32.gmra.mxu0 %v1108
      %v1531 = vpop.f32.mrf.mxu0
      %v1532 = vadd.f32 %v1497, %v1531
      %1533 = vmatmul.f32.gmra.mxu0 %v1117
      %v1534 = vpop.f32.mrf.mxu0
      %v1535 = vadd.f32 %v1497, %v1534
      %1536 = vmatmul.f32.gmra.mxu0 %v1126
      %v1537 = vpop.f32.mrf.mxu0
      %v1538 = vadd.f32 %v1497, %v1537
      %1539 = vmatmul.f32.gmra.mxu0 %v1135
      %v1540 = vpop.f32.mrf.mxu0
      %v1541 = vadd.f32 %v1497, %v1540
      %1542 = vmatmul.f32.gmra.mxu0 %v1144
      %v1543 = vpop.f32.mrf.mxu0
      %v1544 = vadd.f32 %v1497, %v1543
      %1545 = vmatmul.f32.gmra.mxu0 %v1153
      %v1546 = vpop.f32.mrf.mxu0
      %v1547 = vadd.f32 %v1497, %v1546
      %1548 = vmatmul.f32.gmra.mxu0 %v1162
      %v1549 = vpop.f32.mrf.mxu0
      %v1550 = vadd.f32 %v1497, %v1549
      %1551 = vmatmul.f32.gmra.mxu0 %v1171
      %v1552 = vpop.f32.mrf.mxu0
      %v1553 = vadd.f32 %v1497, %v1552
      %1554 = vmatmul.f32.gmra.mxu0 %v1180
      %v1555 = vpop.f32.mrf.mxu0
      %v1556 = vadd.f32 %v1497, %v1555
      %1557 = vmatmul.f32.gmra.mxu0 %v1189
      %v1558 = vpop.f32.mrf.mxu0
      %v1559 = vadd.f32 %v1497, %v1558
      %1560 = vmatmul.f32.gmra.mxu0 %v1198
      %v1561 = vpop.f32.mrf.mxu0
      %v1562 = vadd.f32 %v1497, %v1561
      %1563 = vmatmul.f32.gmra.mxu0 %v1207
      %v1564 = vpop.f32.mrf.mxu0
      %v1565 = vadd.f32 %v1497, %v1564
      %1566 = vmatmul.f32.gmra.mxu0 %v1216
      %v1567 = vpop.f32.mrf.mxu0
      %v1568 = vadd.f32 %v1497, %v1567
      %1569 = vmatmul.f32.gmra.mxu0 %v1225
      %v1570 = vpop.f32.mrf.mxu0
      %v1571 = vadd.f32 %v1497, %v1570
      %1572 = vmatmul.f32.gmra.mxu0 %v1234
      %v1573 = vpop.f32.mrf.mxu0
      %v1574 = vadd.f32 %v1497, %v1573
      %1575 = vmatmul.f32.gmra.mxu0 %v1243
      %v1576 = vpop.f32.mrf.mxu0
      %v1577 = vadd.f32 %v1497, %v1576
      %1578 = vmatmul.f32.gmra.mxu0 %v1252
      %v1579 = vpop.f32.mrf.mxu0
      %v1580 = vadd.f32 %v1497, %v1579
      %1581 = vmatmul.f32.gmra.mxu0 %v1261
      %v1582 = vpop.f32.mrf.mxu0
      %v1583 = vadd.f32 %v1497, %v1582
      %1584 = vmatmul.f32.gmra.mxu0 %v1270
      %v1585 = vpop.f32.mrf.mxu0
      %v1586 = vadd.f32 %v1497, %v1585
      %1587 = vmatmul.f32.gmra.mxu0 %v1279
      %v1588 = vpop.f32.mrf.mxu0
      %v1589 = vadd.f32 %v1497, %v1588
      %1590 = vmatmul.f32.gmra.mxu0 %v1288
      %v1591 = vpop.f32.mrf.mxu0
      %v1592 = vadd.f32 %v1497, %v1591
      %1593 = vmatmul.f32.gmra.mxu0 %v1297
      %v1594 = vpop.f32.mrf.mxu0
      %v1595 = vadd.f32 %v1497, %v1594
      %1596 = vmatmul.f32.gmra.mxu0 %v1306
      %v1597 = vpop.f32.mrf.mxu0
      %v1598 = vadd.f32 %v1497, %v1597
      %1599 = vmatmul.f32.gmra.mxu0 %v1315
      %v1600 = vpop.f32.mrf.mxu0
      %v1601 = vadd.f32 %v1497, %v1600
      %1602 = vmatmul.f32.gmra.mxu0 %v1324
      %v1603 = vpop.f32.mrf.mxu0
      %v1604 = vadd.f32 %v1497, %v1603
      %1605 = vmatmul.f32.gmra.mxu0 %v1333
      %v1606 = vpop.f32.mrf.mxu0
      %v1607 = vadd.f32 %v1497, %v1606
      %1608 = vmatmul.f32.gmra.mxu0 %v1342
      %v1609 = vpop.f32.mrf.mxu0
      %v1610 = vadd.f32 %v1497, %v1609
      %1611 = vdwg.mxu0
      %1612 = vmatpush.msra.mxu0 %v1382
      %1613 = vmatpush.msra.mxu0 %v1381
      %1614 = vmatpush.msra.mxu0 %v1380
      %1615 = vmatpush.msra.mxu0 %v1379
      %1616 = vmatpush.msra.mxu0 %v1378
      %1617 = vmatpush.msra.mxu0 %v1377
      %1618 = vmatpush.msra.mxu0 %v1376
      %1619 = vmatpush.msra.mxu0 %v1375
      %1620 = vmatpush.msra.mxu0 %v1374
      %1621 = vmatpush.msra.mxu0 %v1373
      %1622 = vmatpush.msra.mxu0 %v1372
      %1623 = vmatpush.msra.mxu0 %v1371
      %1624 = vmatpush.msra.mxu0 %v1370
      %1625 = vmatpush.msra.mxu0 %v1369
      %1626 = vmatpush.msra.mxu0 %v1368
      %1627 = vmatpush.msra.mxu0 %v1367
      %1628 = vmatmul.f32.gmra.mxu0 %v1064
      %v1629 = vpop.f32.mrf.mxu0
      %v1630 = vadd.f32 %v1517, %v1629
      %1631 = vmatmul.f32.gmra.mxu0 %v1073
      %v1632 = vpop.f32.mrf.mxu0
      %v1633 = vadd.f32 %v1520, %v1632
      %1634 = vmatmul.f32.gmra.mxu0 %v1082
      %v1635 = vpop.f32.mrf.mxu0
      %v1636 = vadd.f32 %v1523, %v1635
      %1637 = vmatmul.f32.gmra.mxu0 %v1091
      %v1638 = vpop.f32.mrf.mxu0
      %v1639 = vadd.f32 %v1526, %v1638
      %1640 = vmatmul.f32.gmra.mxu0 %v1100
      %v1641 = vpop.f32.mrf.mxu0
      %v1642 = vadd.f32 %v1529, %v1641
      %1643 = vmatmul.f32.gmra.mxu0 %v1109
      %v1644 = vpop.f32.mrf.mxu0
      %v1645 = vadd.f32 %v1532, %v1644
      %1646 = vmatmul.f32.gmra.mxu0 %v1118
      %v1647 = vpop.f32.mrf.mxu0
      %v1648 = vadd.f32 %v1535, %v1647
      %1649 = vmatmul.f32.gmra.mxu0 %v1127
      %v1650 = vpop.f32.mrf.mxu0
      %v1651 = vadd.f32 %v1538, %v1650
      %1652 = vmatmul.f32.gmra.mxu0 %v1136
      %v1653 = vpop.f32.mrf.mxu0
      %v1654 = vadd.f32 %v1541, %v1653
      %1655 = vmatmul.f32.gmra.mxu0 %v1145
      %v1656 = vpop.f32.mrf.mxu0
      %v1657 = vadd.f32 %v1544, %v1656
      %1658 = vmatmul.f32.gmra.mxu0 %v1154
      %v1659 = vpop.f32.mrf.mxu0
      %v1660 = vadd.f32 %v1547, %v1659
      %1661 = vmatmul.f32.gmra.mxu0 %v1163
      %v1662 = vpop.f32.mrf.mxu0
      %v1663 = vadd.f32 %v1550, %v1662
      %1664 = vmatmul.f32.gmra.mxu0 %v1172
      %v1665 = vpop.f32.mrf.mxu0
      %v1666 = vadd.f32 %v1553, %v1665
      %1667 = vmatmul.f32.gmra.mxu0 %v1181
      %v1668 = vpop.f32.mrf.mxu0
      %v1669 = vadd.f32 %v1556, %v1668
      %1670 = vmatmul.f32.gmra.mxu0 %v1190
      %v1671 = vpop.f32.mrf.mxu0
      %v1672 = vadd.f32 %v1559, %v1671
      %1673 = vmatmul.f32.gmra.mxu0 %v1199
      %v1674 = vpop.f32.mrf.mxu0
      %v1675 = vadd.f32 %v1562, %v1674
      %1676 = vmatmul.f32.gmra.mxu0 %v1208
      %v1677 = vpop.f32.mrf.mxu0
      %v1678 = vadd.f32 %v1565, %v1677
      %1679 = vmatmul.f32.gmra.mxu0 %v1217
      %v1680 = vpop.f32.mrf.mxu0
      %v1681 = vadd.f32 %v1568, %v1680
      %1682 = vmatmul.f32.gmra.mxu0 %v1226
      %v1683 = vpop.f32.mrf.mxu0
      %v1684 = vadd.f32 %v1571, %v1683
      %1685 = vmatmul.f32.gmra.mxu0 %v1235
      %v1686 = vpop.f32.mrf.mxu0
      %v1687 = vadd.f32 %v1574, %v1686
      %1688 = vmatmul.f32.gmra.mxu0 %v1244
      %v1689 = vpop.f32.mrf.mxu0
      %v1690 = vadd.f32 %v1577, %v1689
      %1691 = vmatmul.f32.gmra.mxu0 %v1253
      %v1692 = vpop.f32.mrf.mxu0
      %v1693 = vadd.f32 %v1580, %v1692
      %1694 = vmatmul.f32.gmra.mxu0 %v1262
      %v1695 = vpop.f32.mrf.mxu0
      %v1696 = vadd.f32 %v1583, %v1695
      %1697 = vmatmul.f32.gmra.mxu0 %v1271
      %v1698 = vpop.f32.mrf.mxu0
      %v1699 = vadd.f32 %v1586, %v1698
      %1700 = vmatmul.f32.gmra.mxu0 %v1280
      %v1701 = vpop.f32.mrf.mxu0
      %v1702 = vadd.f32 %v1589, %v1701
      %1703 = vmatmul.f32.gmra.mxu0 %v1289
      %v1704 = vpop.f32.mrf.mxu0
      %v1705 = vadd.f32 %v1592, %v1704
      %1706 = vmatmul.f32.gmra.mxu0 %v1298
      %v1707 = vpop.f32.mrf.mxu0
      %v1708 = vadd.f32 %v1595, %v1707
      %1709 = vmatmul.f32.gmra.mxu0 %v1307
      %v1710 = vpop.f32.mrf.mxu0
      %v1711 = vadd.f32 %v1598, %v1710
      %1712 = vmatmul.f32.gmra.mxu0 %v1316
      %v1713 = vpop.f32.mrf.mxu0
      %v1714 = vadd.f32 %v1601, %v1713
      %1715 = vmatmul.f32.gmra.mxu0 %v1325
      %v1716 = vpop.f32.mrf.mxu0
      %v1717 = vadd.f32 %v1604, %v1716
      %1718 = vmatmul.f32.gmra.mxu0 %v1334
      %v1719 = vpop.f32.mrf.mxu0
      %v1720 = vadd.f32 %v1607, %v1719
      %1721 = vmatmul.f32.gmra.mxu0 %v1343
      %v1722 = vpop.f32.mrf.mxu0
      %v1723 = vadd.f32 %v1610, %v1722
      %1724 = vdwg.mxu0
      %1725 = vmatpush.msra.mxu0 %v1398
      %1726 = vmatpush.msra.mxu0 %v1397
      %1727 = vmatpush.msra.mxu0 %v1396
      %1728 = vmatpush.msra.mxu0 %v1395
      %1729 = vmatpush.msra.mxu0 %v1394
      %1730 = vmatpush.msra.mxu0 %v1393
      %1731 = vmatpush.msra.mxu0 %v1392
      %1732 = vmatpush.msra.mxu0 %v1391
      %1733 = vmatpush.msra.mxu0 %v1390
      %1734 = vmatpush.msra.mxu0 %v1389
      %1735 = vmatpush.msra.mxu0 %v1388
      %1736 = vmatpush.msra.mxu0 %v1387
      %1737 = vmatpush.msra.mxu0 %v1386
      %1738 = vmatpush.msra.mxu0 %v1385
      %1739 = vmatpush.msra.mxu0 %v1384
      %1740 = vmatpush.msra.mxu0 %v1383
      %1741 = vmatmul.f32.gmra.mxu0 %v1065
      %v1742 = vpop.f32.mrf.mxu0
      %v1743 = vadd.f32 %v1630, %v1742
      %1744 = vmatmul.f32.gmra.mxu0 %v1074
      %v1745 = vpop.f32.mrf.mxu0
      %v1746 = vadd.f32 %v1633, %v1745
      %1747 = vmatmul.f32.gmra.mxu0 %v1083
      %v1748 = vpop.f32.mrf.mxu0
      %v1749 = vadd.f32 %v1636, %v1748
      %1750 = vmatmul.f32.gmra.mxu0 %v1092
      %v1751 = vpop.f32.mrf.mxu0
      %v1752 = vadd.f32 %v1639, %v1751
      %1753 = vmatmul.f32.gmra.mxu0 %v1101
      %v1754 = vpop.f32.mrf.mxu0
      %v1755 = vadd.f32 %v1642, %v1754
      %1756 = vmatmul.f32.gmra.mxu0 %v1110
      %v1757 = vpop.f32.mrf.mxu0
      %v1758 = vadd.f32 %v1645, %v1757
      %1759 = vmatmul.f32.gmra.mxu0 %v1119
      %v1760 = vpop.f32.mrf.mxu0
      %v1761 = vadd.f32 %v1648, %v1760
      %1762 = vmatmul.f32.gmra.mxu0 %v1128
      %v1763 = vpop.f32.mrf.mxu0
      %v1764 = vadd.f32 %v1651, %v1763
      %1765 = vmatmul.f32.gmra.mxu0 %v1137
      %v1766 = vpop.f32.mrf.mxu0
      %v1767 = vadd.f32 %v1654, %v1766
      %1768 = vmatmul.f32.gmra.mxu0 %v1146
      %v1769 = vpop.f32.mrf.mxu0
      %v1770 = vadd.f32 %v1657, %v1769
      %1771 = vmatmul.f32.gmra.mxu0 %v1155
      %v1772 = vpop.f32.mrf.mxu0
      %v1773 = vadd.f32 %v1660, %v1772
      %1774 = vmatmul.f32.gmra.mxu0 %v1164
      %v1775 = vpop.f32.mrf.mxu0
      %v1776 = vadd.f32 %v1663, %v1775
      %1777 = vmatmul.f32.gmra.mxu0 %v1173
      %v1778 = vpop.f32.mrf.mxu0
      %v1779 = vadd.f32 %v1666, %v1778
      %1780 = vmatmul.f32.gmra.mxu0 %v1182
      %v1781 = vpop.f32.mrf.mxu0
      %v1782 = vadd.f32 %v1669, %v1781
      %1783 = vmatmul.f32.gmra.mxu0 %v1191
      %v1784 = vpop.f32.mrf.mxu0
      %v1785 = vadd.f32 %v1672, %v1784
      %1786 = vmatmul.f32.gmra.mxu0 %v1200
      %v1787 = vpop.f32.mrf.mxu0
      %v1788 = vadd.f32 %v1675, %v1787
      %1789 = vmatmul.f32.gmra.mxu0 %v1209
      %v1790 = vpop.f32.mrf.mxu0
      %v1791 = vadd.f32 %v1678, %v1790
      %1792 = vmatmul.f32.gmra.mxu0 %v1218
      %v1793 = vpop.f32.mrf.mxu0
      %v1794 = vadd.f32 %v1681, %v1793
      %1795 = vmatmul.f32.gmra.mxu0 %v1227
      %v1796 = vpop.f32.mrf.mxu0
      %v1797 = vadd.f32 %v1684, %v1796
      %1798 = vmatmul.f32.gmra.mxu0 %v1236
      %v1799 = vpop.f32.mrf.mxu0
      %v1800 = vadd.f32 %v1687, %v1799
      %1801 = vmatmul.f32.gmra.mxu0 %v1245
      %v1802 = vpop.f32.mrf.mxu0
      %v1803 = vadd.f32 %v1690, %v1802
      %1804 = vmatmul.f32.gmra.mxu0 %v1254
      %v1805 = vpop.f32.mrf.mxu0
      %v1806 = vadd.f32 %v1693, %v1805
      %1807 = vmatmul.f32.gmra.mxu0 %v1263
      %v1808 = vpop.f32.mrf.mxu0
      %v1809 = vadd.f32 %v1696, %v1808
      %1810 = vmatmul.f32.gmra.mxu0 %v1272
      %v1811 = vpop.f32.mrf.mxu0
      %v1812 = vadd.f32 %v1699, %v1811
      %1813 = vmatmul.f32.gmra.mxu0 %v1281
      %v1814 = vpop.f32.mrf.mxu0
      %v1815 = vadd.f32 %v1702, %v1814
      %1816 = vmatmul.f32.gmra.mxu0 %v1290
      %v1817 = vpop.f32.mrf.mxu0
      %v1818 = vadd.f32 %v1705, %v1817
      %1819 = vmatmul.f32.gmra.mxu0 %v1299
      %v1820 = vpop.f32.mrf.mxu0
      %v1821 = vadd.f32 %v1708, %v1820
      %1822 = vmatmul.f32.gmra.mxu0 %v1308
      %v1823 = vpop.f32.mrf.mxu0
      %v1824 = vadd.f32 %v1711, %v1823
      %1825 = vmatmul.f32.gmra.mxu0 %v1317
      %v1826 = vpop.f32.mrf.mxu0
      %v1827 = vadd.f32 %v1714, %v1826
      %1828 = vmatmul.f32.gmra.mxu0 %v1326
      %v1829 = vpop.f32.mrf.mxu0
      %v1830 = vadd.f32 %v1717, %v1829
      %1831 = vmatmul.f32.gmra.mxu0 %v1335
      %v1832 = vpop.f32.mrf.mxu0
      %v1833 = vadd.f32 %v1720, %v1832
      %1834 = vmatmul.f32.gmra.mxu0 %v1344
      %v1835 = vpop.f32.mrf.mxu0
      %v1836 = vadd.f32 %v1723, %v1835
      %1837 = vdwg.mxu0
      %1838 = vmatpush.msra.mxu0 %v1414
      %1839 = vmatpush.msra.mxu0 %v1413
      %1840 = vmatpush.msra.mxu0 %v1412
      %1841 = vmatpush.msra.mxu0 %v1411
      %1842 = vmatpush.msra.mxu0 %v1410
      %1843 = vmatpush.msra.mxu0 %v1409
      %1844 = vmatpush.msra.mxu0 %v1408
      %1845 = vmatpush.msra.mxu0 %v1407
      %1846 = vmatpush.msra.mxu0 %v1406
      %1847 = vmatpush.msra.mxu0 %v1405
      %1848 = vmatpush.msra.mxu0 %v1404
      %1849 = vmatpush.msra.mxu0 %v1403
      %1850 = vmatpush.msra.mxu0 %v1402
      %1851 = vmatpush.msra.mxu0 %v1401
      %1852 = vmatpush.msra.mxu0 %v1400
      %1853 = vmatpush.msra.mxu0 %v1399
      %1854 = vmatmul.f32.gmra.mxu0 %v1066
      %v1855 = vpop.f32.mrf.mxu0
      %v1856 = vadd.f32 %v1743, %v1855
      %1857 = vmatmul.f32.gmra.mxu0 %v1075
      %v1858 = vpop.f32.mrf.mxu0
      %v1859 = vadd.f32 %v1746, %v1858
      %1860 = vmatmul.f32.gmra.mxu0 %v1084
      %v1861 = vpop.f32.mrf.mxu0
      %v1862 = vadd.f32 %v1749, %v1861
      %1863 = vmatmul.f32.gmra.mxu0 %v1093
      %v1864 = vpop.f32.mrf.mxu0
      %v1865 = vadd.f32 %v1752, %v1864
      %1866 = vmatmul.f32.gmra.mxu0 %v1102
      %v1867 = vpop.f32.mrf.mxu0
      %v1868 = vadd.f32 %v1755, %v1867
      %1869 = vmatmul.f32.gmra.mxu0 %v1111
      %v1870 = vpop.f32.mrf.mxu0
      %v1871 = vadd.f32 %v1758, %v1870
      %1872 = vmatmul.f32.gmra.mxu0 %v1120
      %v1873 = vpop.f32.mrf.mxu0
      %v1874 = vadd.f32 %v1761, %v1873
      %1875 = vmatmul.f32.gmra.mxu0 %v1129
      %v1876 = vpop.f32.mrf.mxu0
      %v1877 = vadd.f32 %v1764, %v1876
      %1878 = vmatmul.f32.gmra.mxu0 %v1138
      %v1879 = vpop.f32.mrf.mxu0
      %v1880 = vadd.f32 %v1767, %v1879
      %1881 = vmatmul.f32.gmra.mxu0 %v1147
      %v1882 = vpop.f32.mrf.mxu0
      %v1883 = vadd.f32 %v1770, %v1882
      %1884 = vmatmul.f32.gmra.mxu0 %v1156
      %v1885 = vpop.f32.mrf.mxu0
      %v1886 = vadd.f32 %v1773, %v1885
      %1887 = vmatmul.f32.gmra.mxu0 %v1165
      %v1888 = vpop.f32.mrf.mxu0
      %v1889 = vadd.f32 %v1776, %v1888
      %1890 = vmatmul.f32.gmra.mxu0 %v1174
      %v1891 = vpop.f32.mrf.mxu0
      %v1892 = vadd.f32 %v1779, %v1891
      %1893 = vmatmul.f32.gmra.mxu0 %v1183
      %v1894 = vpop.f32.mrf.mxu0
      %v1895 = vadd.f32 %v1782, %v1894
      %1896 = vmatmul.f32.gmra.mxu0 %v1192
      %v1897 = vpop.f32.mrf.mxu0
      %v1898 = vadd.f32 %v1785, %v1897
      %1899 = vmatmul.f32.gmra.mxu0 %v1201
      %v1900 = vpop.f32.mrf.mxu0
      %v1901 = vadd.f32 %v1788, %v1900
      %1902 = vmatmul.f32.gmra.mxu0 %v1210
      %v1903 = vpop.f32.mrf.mxu0
      %v1904 = vadd.f32 %v1791, %v1903
      %1905 = vmatmul.f32.gmra.mxu0 %v1219
      %v1906 = vpop.f32.mrf.mxu0
      %v1907 = vadd.f32 %v1794, %v1906
      %1908 = vmatmul.f32.gmra.mxu0 %v1228
      %v1909 = vpop.f32.mrf.mxu0
      %v1910 = vadd.f32 %v1797, %v1909
      %1911 = vmatmul.f32.gmra.mxu0 %v1237
      %v1912 = vpop.f32.mrf.mxu0
      %v1913 = vadd.f32 %v1800, %v1912
      %1914 = vmatmul.f32.gmra.mxu0 %v1246
      %v1915 = vpop.f32.mrf.mxu0
      %v1916 = vadd.f32 %v1803, %v1915
      %1917 = vmatmul.f32.gmra.mxu0 %v1255
      %v1918 = vpop.f32.mrf.mxu0
      %v1919 = vadd.f32 %v1806, %v1918
      %1920 = vmatmul.f32.gmra.mxu0 %v1264
      %v1921 = vpop.f32.mrf.mxu0
      %v1922 = vadd.f32 %v1809, %v1921
      %1923 = vmatmul.f32.gmra.mxu0 %v1273
      %v1924 = vpop.f32.mrf.mxu0
      %v1925 = vadd.f32 %v1812, %v1924
      %1926 = vmatmul.f32.gmra.mxu0 %v1282
      %v1927 = vpop.f32.mrf.mxu0
      %v1928 = vadd.f32 %v1815, %v1927
      %1929 = vmatmul.f32.gmra.mxu0 %v1291
      %v1930 = vpop.f32.mrf.mxu0
      %v1931 = vadd.f32 %v1818, %v1930
      %1932 = vmatmul.f32.gmra.mxu0 %v1300
      %v1933 = vpop.f32.mrf.mxu0
      %v1934 = vadd.f32 %v1821, %v1933
      %1935 = vmatmul.f32.gmra.mxu0 %v1309
      %v1936 = vpop.f32.mrf.mxu0
      %v1937 = vadd.f32 %v1824, %v1936
      %1938 = vmatmul.f32.gmra.mxu0 %v1318
      %v1939 = vpop.f32.mrf.mxu0
      %v1940 = vadd.f32 %v1827, %v1939
      %1941 = vmatmul.f32.gmra.mxu0 %v1327
      %v1942 = vpop.f32.mrf.mxu0
      %v1943 = vadd.f32 %v1830, %v1942
      %1944 = vmatmul.f32.gmra.mxu0 %v1336
      %v1945 = vpop.f32.mrf.mxu0
      %v1946 = vadd.f32 %v1833, %v1945
      %1947 = vmatmul.f32.gmra.mxu0 %v1345
      %v1948 = vpop.f32.mrf.mxu0
      %v1949 = vadd.f32 %v1836, %v1948
      %1950 = vdwg.mxu0
      %1951 = vmatpush.msra.mxu0 %v1430
      %1952 = vmatpush.msra.mxu0 %v1429
      %1953 = vmatpush.msra.mxu0 %v1428
      %1954 = vmatpush.msra.mxu0 %v1427
      %1955 = vmatpush.msra.mxu0 %v1426
      %1956 = vmatpush.msra.mxu0 %v1425
      %1957 = vmatpush.msra.mxu0 %v1424
      %1958 = vmatpush.msra.mxu0 %v1423
      %1959 = vmatpush.msra.mxu0 %v1422
      %1960 = vmatpush.msra.mxu0 %v1421
      %1961 = vmatpush.msra.mxu0 %v1420
      %1962 = vmatpush.msra.mxu0 %v1419
      %1963 = vmatpush.msra.mxu0 %v1418
      %1964 = vmatpush.msra.mxu0 %v1417
      %1965 = vmatpush.msra.mxu0 %v1416
      %1966 = vmatpush.msra.mxu0 %v1415
      %1967 = vmatmul.f32.gmra.mxu0 %v1067
      %v1968 = vpop.f32.mrf.mxu0
      %v1969 = vadd.f32 %v1856, %v1968
      %1970 = vmatmul.f32.gmra.mxu0 %v1076
      %v1971 = vpop.f32.mrf.mxu0
      %v1972 = vadd.f32 %v1859, %v1971
      %1973 = vmatmul.f32.gmra.mxu0 %v1085
      %v1974 = vpop.f32.mrf.mxu0
      %v1975 = vadd.f32 %v1862, %v1974
      %1976 = vmatmul.f32.gmra.mxu0 %v1094
      %v1977 = vpop.f32.mrf.mxu0
      %v1978 = vadd.f32 %v1865, %v1977
      %1979 = vmatmul.f32.gmra.mxu0 %v1103
      %v1980 = vpop.f32.mrf.mxu0
      %v1981 = vadd.f32 %v1868, %v1980
      %1982 = vmatmul.f32.gmra.mxu0 %v1112
      %v1983 = vpop.f32.mrf.mxu0
      %v1984 = vadd.f32 %v1871, %v1983
      %1985 = vmatmul.f32.gmra.mxu0 %v1121
      %v1986 = vpop.f32.mrf.mxu0
      %v1987 = vadd.f32 %v1874, %v1986
      %1988 = vmatmul.f32.gmra.mxu0 %v1130
      %v1989 = vpop.f32.mrf.mxu0
      %v1990 = vadd.f32 %v1877, %v1989
      %1991 = vmatmul.f32.gmra.mxu0 %v1139
      %v1992 = vpop.f32.mrf.mxu0
      %v1993 = vadd.f32 %v1880, %v1992
      %1994 = vmatmul.f32.gmra.mxu0 %v1148
      %v1995 = vpop.f32.mrf.mxu0
      %v1996 = vadd.f32 %v1883, %v1995
      %1997 = vmatmul.f32.gmra.mxu0 %v1157
      %v1998 = vpop.f32.mrf.mxu0
      %v1999 = vadd.f32 %v1886, %v1998
      %2000 = vmatmul.f32.gmra.mxu0 %v1166
      %v2001 = vpop.f32.mrf.mxu0
      %v2002 = vadd.f32 %v1889, %v2001
      %2003 = vmatmul.f32.gmra.mxu0 %v1175
      %v2004 = vpop.f32.mrf.mxu0
      %v2005 = vadd.f32 %v1892, %v2004
      %2006 = vmatmul.f32.gmra.mxu0 %v1184
      %v2007 = vpop.f32.mrf.mxu0
      %v2008 = vadd.f32 %v1895, %v2007
      %2009 = vmatmul.f32.gmra.mxu0 %v1193
      %v2010 = vpop.f32.mrf.mxu0
      %v2011 = vadd.f32 %v1898, %v2010
      %2012 = vmatmul.f32.gmra.mxu0 %v1202
      %v2013 = vpop.f32.mrf.mxu0
      %v2014 = vadd.f32 %v1901, %v2013
      %2015 = vmatmul.f32.gmra.mxu0 %v1211
      %v2016 = vpop.f32.mrf.mxu0
      %v2017 = vadd.f32 %v1904, %v2016
      %2018 = vmatmul.f32.gmra.mxu0 %v1220
      %v2019 = vpop.f32.mrf.mxu0
      %v2020 = vadd.f32 %v1907, %v2019
      %2021 = vmatmul.f32.gmra.mxu0 %v1229
      %v2022 = vpop.f32.mrf.mxu0
      %v2023 = vadd.f32 %v1910, %v2022
      %2024 = vmatmul.f32.gmra.mxu0 %v1238
      %v2025 = vpop.f32.mrf.mxu0
      %v2026 = vadd.f32 %v1913, %v2025
      %2027 = vmatmul.f32.gmra.mxu0 %v1247
      %v2028 = vpop.f32.mrf.mxu0
      %v2029 = vadd.f32 %v1916, %v2028
      %2030 = vmatmul.f32.gmra.mxu0 %v1256
      %v2031 = vpop.f32.mrf.mxu0
      %v2032 = vadd.f32 %v1919, %v2031
      %2033 = vmatmul.f32.gmra.mxu0 %v1265
      %v2034 = vpop.f32.mrf.mxu0
      %v2035 = vadd.f32 %v1922, %v2034
      %2036 = vmatmul.f32.gmra.mxu0 %v1274
      %v2037 = vpop.f32.mrf.mxu0
      %v2038 = vadd.f32 %v1925, %v2037
      %2039 = vmatmul.f32.gmra.mxu0 %v1283
      %v2040 = vpop.f32.mrf.mxu0
      %v2041 = vadd.f32 %v1928, %v2040
      %2042 = vmatmul.f32.gmra.mxu0 %v1292
      %v2043 = vpop.f32.mrf.mxu0
      %v2044 = vadd.f32 %v1931, %v2043
      %2045 = vmatmul.f32.gmra.mxu0 %v1301
      %v2046 = vpop.f32.mrf.mxu0
      %v2047 = vadd.f32 %v1934, %v2046
      %2048 = vmatmul.f32.gmra.mxu0 %v1310
      %v2049 = vpop.f32.mrf.mxu0
      %v2050 = vadd.f32 %v1937, %v2049
      %2051 = vmatmul.f32.gmra.mxu0 %v1319
      %v2052 = vpop.f32.mrf.mxu0
      %v2053 = vadd.f32 %v1940, %v2052
      %2054 = vmatmul.f32.gmra.mxu0 %v1328
      %v2055 = vpop.f32.mrf.mxu0
      %v2056 = vadd.f32 %v1943, %v2055
      %2057 = vmatmul.f32.gmra.mxu0 %v1337
      %v2058 = vpop.f32.mrf.mxu0
      %v2059 = vadd.f32 %v1946, %v2058
      %2060 = vmatmul.f32.gmra.mxu0 %v1346
      %v2061 = vpop.f32.mrf.mxu0
      %v2062 = vadd.f32 %v1949, %v2061
      %2063 = vdwg.mxu0
      %2064 = vmatpush.msra.mxu0 %v1446
      %2065 = vmatpush.msra.mxu0 %v1445
      %2066 = vmatpush.msra.mxu0 %v1444
      %2067 = vmatpush.msra.mxu0 %v1443
      %2068 = vmatpush.msra.mxu0 %v1442
      %2069 = vmatpush.msra.mxu0 %v1441
      %2070 = vmatpush.msra.mxu0 %v1440
      %2071 = vmatpush.msra.mxu0 %v1439
      %2072 = vmatpush.msra.mxu0 %v1438
      %2073 = vmatpush.msra.mxu0 %v1437
      %2074 = vmatpush.msra.mxu0 %v1436
      %2075 = vmatpush.msra.mxu0 %v1435
      %2076 = vmatpush.msra.mxu0 %v1434
      %2077 = vmatpush.msra.mxu0 %v1433
      %2078 = vmatpush.msra.mxu0 %v1432
      %2079 = vmatpush.msra.mxu0 %v1431
      %2080 = vmatmul.f32.gmra.mxu0 %v1068
      %v2081 = vpop.f32.mrf.mxu0
      %v2082 = vadd.f32 %v1969, %v2081
      %2083 = vmatmul.f32.gmra.mxu0 %v1077
      %v2084 = vpop.f32.mrf.mxu0
      %v2085 = vadd.f32 %v1972, %v2084
      %2086 = vmatmul.f32.gmra.mxu0 %v1086
      %v2087 = vpop.f32.mrf.mxu0
      %v2088 = vadd.f32 %v1975, %v2087
      %2089 = vmatmul.f32.gmra.mxu0 %v1095
      %v2090 = vpop.f32.mrf.mxu0
      %v2091 = vadd.f32 %v1978, %v2090
      %2092 = vmatmul.f32.gmra.mxu0 %v1104
      %v2093 = vpop.f32.mrf.mxu0
      %v2094 = vadd.f32 %v1981, %v2093
      %2095 = vmatmul.f32.gmra.mxu0 %v1113
      %v2096 = vpop.f32.mrf.mxu0
      %v2097 = vadd.f32 %v1984, %v2096
      %2098 = vmatmul.f32.gmra.mxu0 %v1122
      %v2099 = vpop.f32.mrf.mxu0
      %v2100 = vadd.f32 %v1987, %v2099
      %2101 = vmatmul.f32.gmra.mxu0 %v1131
      %v2102 = vpop.f32.mrf.mxu0
      %v2103 = vadd.f32 %v1990, %v2102
      %2104 = vmatmul.f32.gmra.mxu0 %v1140
      %v2105 = vpop.f32.mrf.mxu0
      %v2106 = vadd.f32 %v1993, %v2105
      %2107 = vmatmul.f32.gmra.mxu0 %v1149
      %v2108 = vpop.f32.mrf.mxu0
      %v2109 = vadd.f32 %v1996, %v2108
      %2110 = vmatmul.f32.gmra.mxu0 %v1158
      %v2111 = vpop.f32.mrf.mxu0
      %v2112 = vadd.f32 %v1999, %v2111
      %2113 = vmatmul.f32.gmra.mxu0 %v1167
      %v2114 = vpop.f32.mrf.mxu0
      %v2115 = vadd.f32 %v2002, %v2114
      %2116 = vmatmul.f32.gmra.mxu0 %v1176
      %v2117 = vpop.f32.mrf.mxu0
      %v2118 = vadd.f32 %v2005, %v2117
      %2119 = vmatmul.f32.gmra.mxu0 %v1185
      %v2120 = vpop.f32.mrf.mxu0
      %v2121 = vadd.f32 %v2008, %v2120
      %2122 = vmatmul.f32.gmra.mxu0 %v1194
      %v2123 = vpop.f32.mrf.mxu0
      %v2124 = vadd.f32 %v2011, %v2123
      %2125 = vmatmul.f32.gmra.mxu0 %v1203
      %v2126 = vpop.f32.mrf.mxu0
      %v2127 = vadd.f32 %v2014, %v2126
      %2128 = vmatmul.f32.gmra.mxu0 %v1212
      %v2129 = vpop.f32.mrf.mxu0
      %v2130 = vadd.f32 %v2017, %v2129
      %2131 = vmatmul.f32.gmra.mxu0 %v1221
      %v2132 = vpop.f32.mrf.mxu0
      %v2133 = vadd.f32 %v2020, %v2132
      %2134 = vmatmul.f32.gmra.mxu0 %v1230
      %v2135 = vpop.f32.mrf.mxu0
      %v2136 = vadd.f32 %v2023, %v2135
      %2137 = vmatmul.f32.gmra.mxu0 %v1239
      %v2138 = vpop.f32.mrf.mxu0
      %v2139 = vadd.f32 %v2026, %v2138
      %2140 = vmatmul.f32.gmra.mxu0 %v1248
      %v2141 = vpop.f32.mrf.mxu0
      %v2142 = vadd.f32 %v2029, %v2141
      %2143 = vmatmul.f32.gmra.mxu0 %v1257
      %v2144 = vpop.f32.mrf.mxu0
      %v2145 = vadd.f32 %v2032, %v2144
      %2146 = vmatmul.f32.gmra.mxu0 %v1266
      %v2147 = vpop.f32.mrf.mxu0
      %v2148 = vadd.f32 %v2035, %v2147
      %2149 = vmatmul.f32.gmra.mxu0 %v1275
      %v2150 = vpop.f32.mrf.mxu0
      %v2151 = vadd.f32 %v2038, %v2150
      %2152 = vmatmul.f32.gmra.mxu0 %v1284
      %v2153 = vpop.f32.mrf.mxu0
      %v2154 = vadd.f32 %v2041, %v2153
      %2155 = vmatmul.f32.gmra.mxu0 %v1293
      %v2156 = vpop.f32.mrf.mxu0
      %v2157 = vadd.f32 %v2044, %v2156
      %2158 = vmatmul.f32.gmra.mxu0 %v1302
      %v2159 = vpop.f32.mrf.mxu0
      %v2160 = vadd.f32 %v2047, %v2159
      %2161 = vmatmul.f32.gmra.mxu0 %v1311
      %v2162 = vpop.f32.mrf.mxu0
      %v2163 = vadd.f32 %v2050, %v2162
      %2164 = vmatmul.f32.gmra.mxu0 %v1320
      %v2165 = vpop.f32.mrf.mxu0
      %v2166 = vadd.f32 %v2053, %v2165
      %2167 = vmatmul.f32.gmra.mxu0 %v1329
      %v2168 = vpop.f32.mrf.mxu0
      %v2169 = vadd.f32 %v2056, %v2168
      %2170 = vmatmul.f32.gmra.mxu0 %v1338
      %v2171 = vpop.f32.mrf.mxu0
      %v2172 = vadd.f32 %v2059, %v2171
      %2173 = vmatmul.f32.gmra.mxu0 %v1347
      %v2174 = vpop.f32.mrf.mxu0
      %v2175 = vadd.f32 %v2062, %v2174
      %2176 = vdwg.mxu0
      %2177 = vmatpush.msra.mxu0 %v1462
      %2178 = vmatpush.msra.mxu0 %v1461
      %2179 = vmatpush.msra.mxu0 %v1460
      %2180 = vmatpush.msra.mxu0 %v1459
      %2181 = vmatpush.msra.mxu0 %v1458
      %2182 = vmatpush.msra.mxu0 %v1457
      %2183 = vmatpush.msra.mxu0 %v1456
      %2184 = vmatpush.msra.mxu0 %v1455
      %2185 = vmatpush.msra.mxu0 %v1454
      %2186 = vmatpush.msra.mxu0 %v1453
      %2187 = vmatpush.msra.mxu0 %v1452
      %2188 = vmatpush.msra.mxu0 %v1451
      %2189 = vmatpush.msra.mxu0 %v1450
      %2190 = vmatpush.msra.mxu0 %v1449
      %2191 = vmatpush.msra.mxu0 %v1448
      %2192 = vmatpush.msra.mxu0 %v1447
      %2193 = vmatmul.f32.gmra.mxu0 %v1069
      %v2194 = vpop.f32.mrf.mxu0
      %v2195 = vadd.f32 %v2082, %v2194
      %2196 = vmatmul.f32.gmra.mxu0 %v1078
      %v2197 = vpop.f32.mrf.mxu0
      %v2198 = vadd.f32 %v2085, %v2197
      %2199 = vmatmul.f32.gmra.mxu0 %v1087
      %v2200 = vpop.f32.mrf.mxu0
      %v2201 = vadd.f32 %v2088, %v2200
      %2202 = vmatmul.f32.gmra.mxu0 %v1096
      %v2203 = vpop.f32.mrf.mxu0
      %v2204 = vadd.f32 %v2091, %v2203
      %2205 = vmatmul.f32.gmra.mxu0 %v1105
      %v2206 = vpop.f32.mrf.mxu0
      %v2207 = vadd.f32 %v2094, %v2206
      %2208 = vmatmul.f32.gmra.mxu0 %v1114
      %v2209 = vpop.f32.mrf.mxu0
      %v2210 = vadd.f32 %v2097, %v2209
      %2211 = vmatmul.f32.gmra.mxu0 %v1123
      %v2212 = vpop.f32.mrf.mxu0
      %v2213 = vadd.f32 %v2100, %v2212
      %2214 = vmatmul.f32.gmra.mxu0 %v1132
      %v2215 = vpop.f32.mrf.mxu0
      %v2216 = vadd.f32 %v2103, %v2215
      %2217 = vmatmul.f32.gmra.mxu0 %v1141
      %v2218 = vpop.f32.mrf.mxu0
      %v2219 = vadd.f32 %v2106, %v2218
      %2220 = vmatmul.f32.gmra.mxu0 %v1150
      %v2221 = vpop.f32.mrf.mxu0
      %v2222 = vadd.f32 %v2109, %v2221
      %2223 = vmatmul.f32.gmra.mxu0 %v1159
      %v2224 = vpop.f32.mrf.mxu0
      %v2225 = vadd.f32 %v2112, %v2224
      %2226 = vmatmul.f32.gmra.mxu0 %v1168
      %v2227 = vpop.f32.mrf.mxu0
      %v2228 = vadd.f32 %v2115, %v2227
      %2229 = vmatmul.f32.gmra.mxu0 %v1177
      %v2230 = vpop.f32.mrf.mxu0
      %v2231 = vadd.f32 %v2118, %v2230
      %2232 = vmatmul.f32.gmra.mxu0 %v1186
      %v2233 = vpop.f32.mrf.mxu0
      %v2234 = vadd.f32 %v2121, %v2233
      %2235 = vmatmul.f32.gmra.mxu0 %v1195
      %v2236 = vpop.f32.mrf.mxu0
      %v2237 = vadd.f32 %v2124, %v2236
      %2238 = vmatmul.f32.gmra.mxu0 %v1204
      %v2239 = vpop.f32.mrf.mxu0
      %v2240 = vadd.f32 %v2127, %v2239
      %2241 = vmatmul.f32.gmra.mxu0 %v1213
      %v2242 = vpop.f32.mrf.mxu0
      %v2243 = vadd.f32 %v2130, %v2242
      %2244 = vmatmul.f32.gmra.mxu0 %v1222
      %v2245 = vpop.f32.mrf.mxu0
      %v2246 = vadd.f32 %v2133, %v2245
      %2247 = vmatmul.f32.gmra.mxu0 %v1231
      %v2248 = vpop.f32.mrf.mxu0
      %v2249 = vadd.f32 %v2136, %v2248
      %2250 = vmatmul.f32.gmra.mxu0 %v1240
      %v2251 = vpop.f32.mrf.mxu0
      %v2252 = vadd.f32 %v2139, %v2251
      %2253 = vmatmul.f32.gmra.mxu0 %v1249
      %v2254 = vpop.f32.mrf.mxu0
      %v2255 = vadd.f32 %v2142, %v2254
      %2256 = vmatmul.f32.gmra.mxu0 %v1258
      %v2257 = vpop.f32.mrf.mxu0
      %v2258 = vadd.f32 %v2145, %v2257
      %2259 = vmatmul.f32.gmra.mxu0 %v1267
      %v2260 = vpop.f32.mrf.mxu0
      %v2261 = vadd.f32 %v2148, %v2260
      %2262 = vmatmul.f32.gmra.mxu0 %v1276
      %v2263 = vpop.f32.mrf.mxu0
      %v2264 = vadd.f32 %v2151, %v2263
      %2265 = vmatmul.f32.gmra.mxu0 %v1285
      %v2266 = vpop.f32.mrf.mxu0
      %v2267 = vadd.f32 %v2154, %v2266
      %2268 = vmatmul.f32.gmra.mxu0 %v1294
      %v2269 = vpop.f32.mrf.mxu0
      %v2270 = vadd.f32 %v2157, %v2269
      %2271 = vmatmul.f32.gmra.mxu0 %v1303
      %v2272 = vpop.f32.mrf.mxu0
      %v2273 = vadd.f32 %v2160, %v2272
      %2274 = vmatmul.f32.gmra.mxu0 %v1312
      %v2275 = vpop.f32.mrf.mxu0
      %v2276 = vadd.f32 %v2163, %v2275
      %2277 = vmatmul.f32.gmra.mxu0 %v1321
      %v2278 = vpop.f32.mrf.mxu0
      %v2279 = vadd.f32 %v2166, %v2278
      %2280 = vmatmul.f32.gmra.mxu0 %v1330
      %v2281 = vpop.f32.mrf.mxu0
      %v2282 = vadd.f32 %v2169, %v2281
      %2283 = vmatmul.f32.gmra.mxu0 %v1339
      %v2284 = vpop.f32.mrf.mxu0
      %v2285 = vadd.f32 %v2172, %v2284
      %2286 = vmatmul.f32.gmra.mxu0 %v1348
      %v2287 = vpop.f32.mrf.mxu0
      %v2288 = vadd.f32 %v2175, %v2287
      %2289 = vdwg.mxu0
      %2290 = vmatpush.msra.mxu0 %v1478
      %2291 = vmatpush.msra.mxu0 %v1477
      %2292 = vmatpush.msra.mxu0 %v1476
      %2293 = vmatpush.msra.mxu0 %v1475
      %2294 = vmatpush.msra.mxu0 %v1474
      %2295 = vmatpush.msra.mxu0 %v1473
      %2296 = vmatpush.msra.mxu0 %v1472
      %2297 = vmatpush.msra.mxu0 %v1471
      %2298 = vmatpush.msra.mxu0 %v1470
      %2299 = vmatpush.msra.mxu0 %v1469
      %2300 = vmatpush.msra.mxu0 %v1468
      %2301 = vmatpush.msra.mxu0 %v1467
      %2302 = vmatpush.msra.mxu0 %v1466
      %2303 = vmatpush.msra.mxu0 %v1465
      %2304 = vmatpush.msra.mxu0 %v1464
      %2305 = vmatpush.msra.mxu0 %v1463
      %2306 = vmatmul.f32.gmra.mxu0 %v1070
      %v2307 = vpop.f32.mrf.mxu0
      %v2308 = vadd.f32 %v2195, %v2307
      %2309 = vmatmul.f32.gmra.mxu0 %v1079
      %v2310 = vpop.f32.mrf.mxu0
      %v2311 = vadd.f32 %v2198, %v2310
      %2312 = vmatmul.f32.gmra.mxu0 %v1088
      %v2313 = vpop.f32.mrf.mxu0
      %v2314 = vadd.f32 %v2201, %v2313
      %2315 = vmatmul.f32.gmra.mxu0 %v1097
      %v2316 = vpop.f32.mrf.mxu0
      %v2317 = vadd.f32 %v2204, %v2316
      %2318 = vmatmul.f32.gmra.mxu0 %v1106
      %v2319 = vpop.f32.mrf.mxu0
      %v2320 = vadd.f32 %v2207, %v2319
      %2321 = vmatmul.f32.gmra.mxu0 %v1115
      %v2322 = vpop.f32.mrf.mxu0
      %v2323 = vadd.f32 %v2210, %v2322
      %2324 = vmatmul.f32.gmra.mxu0 %v1124
      %v2325 = vpop.f32.mrf.mxu0
      %v2326 = vadd.f32 %v2213, %v2325
      %2327 = vmatmul.f32.gmra.mxu0 %v1133
      %v2328 = vpop.f32.mrf.mxu0
      %v2329 = vadd.f32 %v2216, %v2328
      %2330 = vmatmul.f32.gmra.mxu0 %v1142
      %v2331 = vpop.f32.mrf.mxu0
      %v2332 = vadd.f32 %v2219, %v2331
      %2333 = vmatmul.f32.gmra.mxu0 %v1151
      %v2334 = vpop.f32.mrf.mxu0
      %v2335 = vadd.f32 %v2222, %v2334
      %2336 = vmatmul.f32.gmra.mxu0 %v1160
      %v2337 = vpop.f32.mrf.mxu0
      %v2338 = vadd.f32 %v2225, %v2337
      %2339 = vmatmul.f32.gmra.mxu0 %v1169
      %v2340 = vpop.f32.mrf.mxu0
      %v2341 = vadd.f32 %v2228, %v2340
      %2342 = vmatmul.f32.gmra.mxu0 %v1178
      %v2343 = vpop.f32.mrf.mxu0
      %v2344 = vadd.f32 %v2231, %v2343
      %2345 = vmatmul.f32.gmra.mxu0 %v1187
      %v2346 = vpop.f32.mrf.mxu0
      %v2347 = vadd.f32 %v2234, %v2346
      %2348 = vmatmul.f32.gmra.mxu0 %v1196
      %v2349 = vpop.f32.mrf.mxu0
      %v2350 = vadd.f32 %v2237, %v2349
      %2351 = vmatmul.f32.gmra.mxu0 %v1205
      %v2352 = vpop.f32.mrf.mxu0
      %v2353 = vadd.f32 %v2240, %v2352
      %2354 = vmatmul.f32.gmra.mxu0 %v1214
      %v2355 = vpop.f32.mrf.mxu0
      %v2356 = vadd.f32 %v2243, %v2355
      %2357 = vmatmul.f32.gmra.mxu0 %v1223
      %v2358 = vpop.f32.mrf.mxu0
      %v2359 = vadd.f32 %v2246, %v2358
      %2360 = vmatmul.f32.gmra.mxu0 %v1232
      %v2361 = vpop.f32.mrf.mxu0
      %v2362 = vadd.f32 %v2249, %v2361
      %2363 = vmatmul.f32.gmra.mxu0 %v1241
      %v2364 = vpop.f32.mrf.mxu0
      %v2365 = vadd.f32 %v2252, %v2364
      %2366 = vmatmul.f32.gmra.mxu0 %v1250
      %v2367 = vpop.f32.mrf.mxu0
      %v2368 = vadd.f32 %v2255, %v2367
      %2369 = vmatmul.f32.gmra.mxu0 %v1259
      %v2370 = vpop.f32.mrf.mxu0
      %v2371 = vadd.f32 %v2258, %v2370
      %2372 = vmatmul.f32.gmra.mxu0 %v1268
      %v2373 = vpop.f32.mrf.mxu0
      %v2374 = vadd.f32 %v2261, %v2373
      %2375 = vmatmul.f32.gmra.mxu0 %v1277
      %v2376 = vpop.f32.mrf.mxu0
      %v2377 = vadd.f32 %v2264, %v2376
      %2378 = vmatmul.f32.gmra.mxu0 %v1286
      %v2379 = vpop.f32.mrf.mxu0
      %v2380 = vadd.f32 %v2267, %v2379
      %2381 = vmatmul.f32.gmra.mxu0 %v1295
      %v2382 = vpop.f32.mrf.mxu0
      %v2383 = vadd.f32 %v2270, %v2382
      %2384 = vmatmul.f32.gmra.mxu0 %v1304
      %v2385 = vpop.f32.mrf.mxu0
      %v2386 = vadd.f32 %v2273, %v2385
      %2387 = vmatmul.f32.gmra.mxu0 %v1313
      %v2388 = vpop.f32.mrf.mxu0
      %v2389 = vadd.f32 %v2276, %v2388
      %2390 = vmatmul.f32.gmra.mxu0 %v1322
      %v2391 = vpop.f32.mrf.mxu0
      %v2392 = vadd.f32 %v2279, %v2391
      %2393 = vmatmul.f32.gmra.mxu0 %v1331
      %v2394 = vpop.f32.mrf.mxu0
      %v2395 = vadd.f32 %v2282, %v2394
      %2396 = vmatmul.f32.gmra.mxu0 %v1340
      %v2397 = vpop.f32.mrf.mxu0
      %v2398 = vadd.f32 %v2285, %v2397
      %2399 = vmatmul.f32.gmra.mxu0 %v1349
      %v2400 = vpop.f32.mrf.mxu0
      %v2401 = vadd.f32 %v2288, %v2400
      %2402 = vdwg.mxu0
      %2403 = vmatpush.msra.mxu0 %v1494
      %2404 = vmatpush.msra.mxu0 %v1493
      %2405 = vmatpush.msra.mxu0 %v1492
      %2406 = vmatpush.msra.mxu0 %v1491
      %2407 = vmatpush.msra.mxu0 %v1490
      %2408 = vmatpush.msra.mxu0 %v1489
      %2409 = vmatpush.msra.mxu0 %v1488
      %2410 = vmatpush.msra.mxu0 %v1487
      %2411 = vmatpush.msra.mxu0 %v1486
      %2412 = vmatpush.msra.mxu0 %v1485
      %2413 = vmatpush.msra.mxu0 %v1484
      %2414 = vmatpush.msra.mxu0 %v1483
      %2415 = vmatpush.msra.mxu0 %v1482
      %2416 = vmatpush.msra.mxu0 %v1481
      %2417 = vmatpush.msra.mxu0 %v1480
      %2418 = vmatpush.msra.mxu0 %v1479
      %2419 = vmatmul.f32.gmra.mxu0 %v1071
      %v2420 = vpop.f32.mrf.mxu0
      %v2421 = vadd.f32 %v2308, %v2420
      %2422 = vmatmul.f32.gmra.mxu0 %v1080
      %v2423 = vpop.f32.mrf.mxu0
      %v2424 = vadd.f32 %v2311, %v2423
      %2425 = vmatmul.f32.gmra.mxu0 %v1089
      %v2426 = vpop.f32.mrf.mxu0
      %v2427 = vadd.f32 %v2314, %v2426
      %2428 = vmatmul.f32.gmra.mxu0 %v1098
      %v2429 = vpop.f32.mrf.mxu0
      %v2430 = vadd.f32 %v2317, %v2429
      %2431 = vmatmul.f32.gmra.mxu0 %v1107
      %v2432 = vpop.f32.mrf.mxu0
      %v2433 = vadd.f32 %v2320, %v2432
      %2434 = vmatmul.f32.gmra.mxu0 %v1116
      %v2435 = vpop.f32.mrf.mxu0
      %v2436 = vadd.f32 %v2323, %v2435
      %2437 = vmatmul.f32.gmra.mxu0 %v1125
      %v2438 = vpop.f32.mrf.mxu0
      %v2439 = vadd.f32 %v2326, %v2438
      %2440 = vmatmul.f32.gmra.mxu0 %v1134
      %v2441 = vpop.f32.mrf.mxu0
      %v2442 = vadd.f32 %v2329, %v2441
      %2443 = vmatmul.f32.gmra.mxu0 %v1143
      %v2444 = vpop.f32.mrf.mxu0
      %v2445 = vadd.f32 %v2332, %v2444
      %2446 = vmatmul.f32.gmra.mxu0 %v1152
      %v2447 = vpop.f32.mrf.mxu0
      %v2448 = vadd.f32 %v2335, %v2447
      %2449 = vmatmul.f32.gmra.mxu0 %v1161
      %v2450 = vpop.f32.mrf.mxu0
      %v2451 = vadd.f32 %v2338, %v2450
      %2452 = vmatmul.f32.gmra.mxu0 %v1170
      %v2453 = vpop.f32.mrf.mxu0
      %v2454 = vadd.f32 %v2341, %v2453
      %2455 = vmatmul.f32.gmra.mxu0 %v1179
      %v2456 = vpop.f32.mrf.mxu0
      %v2457 = vadd.f32 %v2344, %v2456
      %2458 = vmatmul.f32.gmra.mxu0 %v1188
      %v2459 = vpop.f32.mrf.mxu0
      %v2460 = vadd.f32 %v2347, %v2459
      %2461 = vmatmul.f32.gmra.mxu0 %v1197
      %v2462 = vpop.f32.mrf.mxu0
      %v2463 = vadd.f32 %v2350, %v2462
      %2464 = vmatmul.f32.gmra.mxu0 %v1206
      %v2465 = vpop.f32.mrf.mxu0
      %v2466 = vadd.f32 %v2353, %v2465
      %2467 = vmatmul.f32.gmra.mxu0 %v1215
      %v2468 = vpop.f32.mrf.mxu0
      %v2469 = vadd.f32 %v2356, %v2468
      %2470 = vmatmul.f32.gmra.mxu0 %v1224
      %v2471 = vpop.f32.mrf.mxu0
      %v2472 = vadd.f32 %v2359, %v2471
      %2473 = vmatmul.f32.gmra.mxu0 %v1233
      %v2474 = vpop.f32.mrf.mxu0
      %v2475 = vadd.f32 %v2362, %v2474
      %2476 = vmatmul.f32.gmra.mxu0 %v1242
      %v2477 = vpop.f32.mrf.mxu0
      %v2478 = vadd.f32 %v2365, %v2477
      %2479 = vmatmul.f32.gmra.mxu0 %v1251
      %v2480 = vpop.f32.mrf.mxu0
      %v2481 = vadd.f32 %v2368, %v2480
      %2482 = vmatmul.f32.gmra.mxu0 %v1260
      %v2483 = vpop.f32.mrf.mxu0
      %v2484 = vadd.f32 %v2371, %v2483
      %2485 = vmatmul.f32.gmra.mxu0 %v1269
      %v2486 = vpop.f32.mrf.mxu0
      %v2487 = vadd.f32 %v2374, %v2486
      %2488 = vmatmul.f32.gmra.mxu0 %v1278
      %v2489 = vpop.f32.mrf.mxu0
      %v2490 = vadd.f32 %v2377, %v2489
      %2491 = vmatmul.f32.gmra.mxu0 %v1287
      %v2492 = vpop.f32.mrf.mxu0
      %v2493 = vadd.f32 %v2380, %v2492
      %2494 = vmatmul.f32.gmra.mxu0 %v1296
      %v2495 = vpop.f32.mrf.mxu0
      %v2496 = vadd.f32 %v2383, %v2495
      %2497 = vmatmul.f32.gmra.mxu0 %v1305
      %v2498 = vpop.f32.mrf.mxu0
      %v2499 = vadd.f32 %v2386, %v2498
      %2500 = vmatmul.f32.gmra.mxu0 %v1314
      %v2501 = vpop.f32.mrf.mxu0
      %v2502 = vadd.f32 %v2389, %v2501
      %2503 = vmatmul.f32.gmra.mxu0 %v1323
      %v2504 = vpop.f32.mrf.mxu0
      %v2505 = vadd.f32 %v2392, %v2504
      %2506 = vmatmul.f32.gmra.mxu0 %v1332
      %v2507 = vpop.f32.mrf.mxu0
      %v2508 = vadd.f32 %v2395, %v2507
      %2509 = vmatmul.f32.gmra.mxu0 %v1341
      %v2510 = vpop.f32.mrf.mxu0
      %v2511 = vadd.f32 %v2398, %v2510
      %2512 = vmatmul.f32.gmra.mxu0 %v1350
      %v2513 = vpop.f32.mrf.mxu0
      %v2514 = vadd.f32 %v2401, %v2513
      %2515 = vdwg.mxu0
      %vm2516 = vcmask 64512
      %2517 = vst.msk [vmem:[%s248] sm:$0xff] %vm2516, %v2421
      %2518 = vst.msk [vmem:[%s248 + $0x8] sm:$0xff] %vm2516, %v2424
      %2519 = vst.msk [vmem:[%s248 + $0x10] sm:$0xff] %vm2516, %v2427
      %2520 = vst.msk [vmem:[%s248 + $0x18] sm:$0xff] %vm2516, %v2430
      %2521 = vst.msk [vmem:[%s248 + $0x20] sm:$0xff] %vm2516, %v2433
      %2522 = vst.msk [vmem:[%s248 + $0x28] sm:$0xff] %vm2516, %v2436
      %2523 = vst.msk [vmem:[%s248 + $0x30] sm:$0xff] %vm2516, %v2439
      %2524 = vst.msk [vmem:[%s248 + $0x38] sm:$0xff] %vm2516, %v2442
      %2525 = vst.msk [vmem:[%s248 + $0x40] sm:$0xff] %vm2516, %v2445
      %2526 = vst.msk [vmem:[%s248 + $0x48] sm:$0xff] %vm2516, %v2448
      %2527 = vst.msk [vmem:[%s248 + $0x50] sm:$0xff] %vm2516, %v2451
      %2528 = vst.msk [vmem:[%s248 + $0x58] sm:$0xff] %vm2516, %v2454
      %2529 = vst.msk [vmem:[%s248 + $0x60] sm:$0xff] %vm2516, %v2457
      %2530 = vst.msk [vmem:[%s248 + $0x68] sm:$0xff] %vm2516, %v2460
      %2531 = vst.msk [vmem:[%s248 + $0x70] sm:$0xff] %vm2516, %v2463
      %2532 = vst.msk [vmem:[%s248 + $0x78] sm:$0xff] %vm2516, %v2466
      %2533 = vst.msk [vmem:[%s248 + $0x80] sm:$0xff] %vm2516, %v2469
      %2534 = vst.msk [vmem:[%s248 + $0x88] sm:$0xff] %vm2516, %v2472
      %2535 = vst.msk [vmem:[%s248 + $0x90] sm:$0xff] %vm2516, %v2475
      %2536 = vst.msk [vmem:[%s248 + $0x98] sm:$0xff] %vm2516, %v2478
      %2537 = vst.msk [vmem:[%s248 + $0xa0] sm:$0xff] %vm2516, %v2481
      %2538 = vst.msk [vmem:[%s248 + $0xa8] sm:$0xff] %vm2516, %v2484
      %2539 = vst.msk [vmem:[%s248 + $0xb0] sm:$0xff] %vm2516, %v2487
      %2540 = vst.msk [vmem:[%s248 + $0xb8] sm:$0xff] %vm2516, %v2490
      %2541 = vst.msk [vmem:[%s248 + $0xc0] sm:$0xff] %vm2516, %v2493
      %2542 = vst.msk [vmem:[%s248 + $0xc8] sm:$0xff] %vm2516, %v2496
      %2543 = vst.msk [vmem:[%s248 + $0xd0] sm:$0xff] %vm2516, %v2499
      %2544 = vst.msk [vmem:[%s248 + $0xd8] sm:$0xff] %vm2516, %v2502
      %2545 = vst.msk [vmem:[%s248 + $0xe0] sm:$0xff] %vm2516, %v2505
      %2546 = vst.msk [vmem:[%s248 + $0xe8] sm:$0xff] %vm2516, %v2508
      %2547 = vst.msk [vmem:[%s248 + $0xf0] sm:$0xff] %vm2516, %v2511
      %2548 = vst.msk [vmem:[%s248 + $0xf8] sm:$0xff] %vm2516, %v2514
      %s2549 = smul.u32 16, %s21
      %p2550 = scmp.lt.s32.totalorder %s20, 1
      %s2551 = scalar_select %p2550, %s20, 1
      %p2552 = scmp.lt.s32.totalorder %s2549, 15
      %s2553 = scalar_select %p2552, %s2549, 15
      %s2554 = smul.addr %s2553, 2
      %s2555 = smul.addr %s2551, 32
      %s2556 = sadd.s32 %s2554, %s2555
      %s2557 = smul.addr %s2556, 8
      %s2558 = scalar_lea.vmem %s5, %s2557
      // Predicated region
      $region45: #{dense_block_forward.2} parent=39 // pred_check
        %p2559 = pneg %p158
      $region46: #{dense_block_forward.2} parent=39 // pred_check_branch
        %2561 = sbr.rel (%p2559) target = $region48
      $region47: #{dense_block_forward.2} parent=39 // pred_region
        %s2562 = smul.u32 16, %s21
      $region48: #{dense_block_forward.2} parent=39 // pred_fallthru
        _
    $region40: #{dense_block_forward.2} parent=5 // pred_fallthru
      _
    %p2563 = scmp.le.s32.totalorder 2, %s11
    // Predicated region
    $region49: #{dense_block_forward.2} parent=5 // pred_check
      %p2564 = pneg %p2563
    $region50: #{dense_block_forward.2} parent=5 // pred_check_branch
      %2566 = sbr.rel (%p2564) target = $region52
    $region51: #{dense_block_forward.2} parent=5 // pred_region
      %s2567 = ssub.s32 %s11, 2
      // Predicated region
      $region53: #{dense_block_forward.2} parent=51 // pred_check
        %p2568 = pneg %p164
      $region54: #{dense_block_forward.2} parent=51 // pred_check_branch
        %2570 = sbr.rel (%p2568) target = $region56
      $region55: #{dense_block_forward.2} parent=51 // pred_region
        %s2571 = smul.u32 16, %s23
        %p2572 = scmp.lt.s32.totalorder %s22, 1
        %s2573 = scalar_select %p2572, %s22, 1
        %p2574 = scmp.lt.s32.totalorder %s2571, 15
        %s2575 = scalar_select %p2574, %s2571, 15
        %s2576 = smul.addr %s2575, 2
        %s2577 = smul.addr %s2573, 32
        %s2578 = sadd.s32 %s2576, %s2577
        %s2579 = smul.addr %s2578, 8
        %s2580 = scalar_lea.vmem %s5, %s2579
      $region56: #{dense_block_forward.2} parent=51 // pred_fallthru
        _
    $region52: #{dense_block_forward.2} parent=5 // pred_fallthru
      _
  $region6: #{dense_block_forward.2} parent=0 // loop_footer
    %s15 = sadd.s32 1, %s11
  $region7: #{dense_block_forward.2} parent=0 // loop_footer_branch
    %10 = sbr.rel target = $region3
  $region8: #{dense_block_forward.2} parent=0 // loop_exit
    _

// kernel: dense_block_forward.3
$region0: #{dense_block_forward.3}
  #allocation0 [shape = 'u32[]', space=smem, size = 0x4, offset = 0x4, fixed_abs, tag = 'smem constant byte address 0x4 - core index']
  #allocation1 [shape = 'u32[72,128]{1,0:T(1,128)}', space=vmem, size = 0x9000, scoped, tag = 'internal scratch']
  #allocation2 [shape = 'f32[18,18,128]{2,1,0:T(8,128)}', space=vmem, size = 0x36000, scoped, tag = 'scratch operand']
  #allocation3 [shape = 'f32[16,16,1152]{2,1,0:T(8,128)}', space=vmem, size = 0x120000, scoped, tag = 'scratch operand']
  %s0 = inlined_call_operand.vmem [shape: f32[2,16,16,4], index: 0, kind: input, shape index: {}]
  %s1 = inlined_call_operand.vmem [shape: f32[2,16,16,8], index: 1, kind: input, shape index: {}]
  %s2 = inlined_call_operand.vmem [shape: f32[1,12], index: 2, kind: input, shape index: {}]
  %s3 = inlined_call_operand.vmem [shape: f32[1,12], index: 3, kind: input, shape index: {}]
  %s4 = inlined_call_operand.vmem [shape: f32[1152,128], index: 4, kind: input, shape index: {}]
  %s5 = inlined_call_operand.vmem [shape: f32[1,128], index: 5, kind: input, shape index: {}]
  %s6 = inlined_call_operand.vmem [shape: f32[2,16,16,8], index: 6, kind: output, shape index: {}]
  %s7 = sld [smem:[#allocation0]]
  $region61: #{dense_block_forward.3} parent=0
    _
  %s9 = ssub.s32 1, %s7
  %s10 = scalar_select 0, %s9, %s7
  loop: start=0, step=1, limit=4
  $region2: #{dense_block_forward.3} parent=0 // loop_pre_header
    _
  $region3: #{dense_block_forward.3} parent=0 // loop_header
    %s12 = sphi 0, %s16
    %p13 = scmp.ge.s32.totalorder %s12, 4
    %s19 = sphi 0, %s31
    %s20 = sphi 0, %s27
    %s21 = sphi 0, %s19
    %s22 = sphi 0, %s20
    %s23 = sphi 0, %s21
    %s24 = sphi 0, %s22
    %s34 = sphi 0, %s36
    %s37 = sphi 0, %s34
    %s38 = sphi 0, %s37
    %s54 = sphi 0, %s38
    %s60 = sphi 0, %s62
    %s63 = sphi 0, %s60
    %s64 = sphi 0, %s63
    %s80 = sphi 0, %s64
    %s84 = sphi 0, %s84
    %s86 = sphi 0, %s84
    %s87 = sphi 0, %s86
    %s101 = sphi 0, %s87
    %s105 = sphi 0, %s105
    %s107 = sphi 0, %s105
    %s108 = sphi 0, %s107
    %s122 = sphi 0, %s108
    %s126 = sphi 0, %s126
    %s128 = sphi 0, %s126
    %s129 = sphi 0, %s128
    %s143 = sphi 0, %s129
    %s147 = sphi 0, %s147
    %s149 = sphi 0, %s147
    %s150 = sphi 0, %s149
    %s164 = sphi 0, %s150
    %s172 = sphi 0, %s174
    %s175 = sphi 0, %s172
    %s176 = sphi 0, %s175
    %s192 = sphi 0, %s176
  $region4: #{dense_block_forward.3} parent=0 // loop_header_branch
    %15 = sbr.rel (%p13) target = $region8
  $region5: #{dense_block_forward.3} parent=0 // loop_body
    %s17 = ssub.s32 %s12, 1
    %s18 = ssub.s32 %s12, 2
    %s25 = sadd.s32 1, %s20
    %p26 = scmp.ge.s32.totalorder %s25, 1
    %s27 = scalar_select %p26, 0, %s25
    %s28 = sadd.s32 1, %s19
    %s29 = scalar_select %p26, %s28, %s19
    %p30 = scmp.ge.s32.totalorder %s29, 2
    %s31 = scalar_select %p30, 0, %s29
    %s32 = ssub.s32 %s19, %s31
    %p33 = scmp.eq.s32.totalorder %s32, 0
    %s35 = sadd.s32 %s34, 1
    %s36 = scalar_select %p33, %s34, %s35
    %p39 = pneg %p33
    %p40 = scmp.eq.s32.totalorder %s12, 1
    %p41 = por %p39, %p40
    %p42 = scmp.ne.s32.totalorder %s34, %s37
    %p43 = scmp.eq.s32.totalorder %s12, 0
    %p44 = por %p42, %p43
    %p45 = scmp.ne.s32.totalorder %s34, %s37
    %p46 = scmp.eq.s32.totalorder %s17, 1
    %p47 = por %p45, %p46
    %p48 = scmp.ne.s32.totalorder %s37, %s38
    %p49 = scmp.eq.s32.totalorder %s17, 0
    %p50 = por %p48, %p49
    %p51 = scmp.ne.s32.totalorder %s37, %s38
    %p52 = scmp.eq.s32.totalorder %s18, 1
    %p53 = por %p51, %p52
    %p55 = scmp.ne.s32.totalorder %s38, %s54
    %p56 = scmp.eq.s32.totalorder %s18, 0
    %p57 = por %p55, %p56
    %s58 = ssub.s32 %s19, %s31
    %p59 = scmp.eq.s32.totalorder %s58, 0
    %s61 = sadd.s32 %s60, 1
    %s62 = scalar_select %p59, %s60, %s61
    %p65 = pneg %p59
    %p66 = scmp.eq.s32.totalorder %s12, 1
    %p67 = por %p65, %p66
    %p68 = scmp.ne.s32.totalorder %s60, %s63
    %p69 = scmp.eq.s32.totalorder %s12, 0
    %p70 = por %p68, %p69
    %p71 = scmp.ne.s32.totalorder %s60, %s63
    %p72 = scmp.eq.s32.totalorder %s17, 1
    %p73 = por %p71, %p72
    %p74 = scmp.ne.s32.totalorder %s63, %s64
    %p75 = scmp.eq.s32.totalorder %s17, 0
    %p76 = por %p74, %p75
    %p77 = scmp.ne.s32.totalorder %s63, %s64
    %p78 = scmp.eq.s32.totalorder %s18, 1
    %p79 = por %p77, %p78
    %p81 = scmp.ne.s32.totalorder %s64, %s80
    %p82 = scmp.eq.s32.totalorder %s18, 0
    %p83 = por %p81, %p82
    %s85 = sadd.s32 %s84, 1
    %p88 = scmp.eq.s32.totalorder %s12, 1
    %p89 = scmp.ne.s32.totalorder %s84, %s86
    %p90 = scmp.eq.s32.totalorder %s12, 0
    %p91 = por %p89, %p90
    %p92 = scmp.ne.s32.totalorder %s84, %s86
    %p93 = scmp.eq.s32.totalorder %s17, 1
    %p94 = por %p92, %p93
    %p95 = scmp.ne.s32.totalorder %s86, %s87
    %p96 = scmp.eq.s32.totalorder %s17, 0
    %p97 = por %p95, %p96
    %p98 = scmp.ne.s32.totalorder %s86, %s87
    %p99 = scmp.eq.s32.totalorder %s18, 1
    %p100 = por %p98, %p99
    %p102 = scmp.ne.s32.totalorder %s87, %s101
    %p103 = scmp.eq.s32.totalorder %s18, 0
    %p104 = por %p102, %p103
    %s106 = sadd.s32 %s105, 1
    %p109 = scmp.eq.s32.totalorder %s12, 1
    %p110 = scmp.ne.s32.totalorder %s105, %s107
    %p111 = scmp.eq.s32.totalorder %s12, 0
    %p112 = por %p110, %p111
    %p113 = scmp.ne.s32.totalorder %s105, %s107
    %p114 = scmp.eq.s32.totalorder %s17, 1
    %p115 = por %p113, %p114
    %p116 = scmp.ne.s32.totalorder %s107, %s108
    %p117 = scmp.eq.s32.totalorder %s17, 0
    %p118 = por %p116, %p117
    %p119 = scmp.ne.s32.totalorder %s107, %s108
    %p120 = scmp.eq.s32.totalorder %s18, 1
    %p121 = por %p119, %p120
    %p123 = scmp.ne.s32.totalorder %s108, %s122
    %p124 = scmp.eq.s32.totalorder %s18, 0
    %p125 = por %p123, %p124
    %s127 = sadd.s32 %s126, 1
    %p130 = scmp.eq.s32.totalorder %s12, 1
    %p131 = scmp.ne.s32.totalorder %s126, %s128
    %p132 = scmp.eq.s32.totalorder %s12, 0
    %p133 = por %p131, %p132
    %p134 = scmp.ne.s32.totalorder %s126, %s128
    %p135 = scmp.eq.s32.totalorder %s17, 1
    %p136 = por %p134, %p135
    %p137 = scmp.ne.s32.totalorder %s128, %s129
    %p138 = scmp.eq.s32.totalorder %s17, 0
    %p139 = por %p137, %p138
    %p140 = scmp.ne.s32.totalorder %s128, %s129
    %p141 = scmp.eq.s32.totalorder %s18, 1
    %p142 = por %p140, %p141
    %p144 = scmp.ne.s32.totalorder %s129, %s143
    %p145 = scmp.eq.s32.totalorder %s18, 0
    %p146 = por %p144, %p145
    %s148 = sadd.s32 %s147, 1
    %p151 = scmp.eq.s32.totalorder %s12, 1
    %p152 = scmp.ne.s32.totalorder %s147, %s149
    %p153 = scmp.eq.s32.totalorder %s12, 0
    %p154 = por %p152, %p153
    %p155 = scmp.ne.s32.totalorder %s147, %s149
    %p156 = scmp.eq.s32.totalorder %s17, 1
    %p157 = por %p155, %p156
    %p158 = scmp.ne.s32.totalorder %s149, %s150
    %p159 = scmp.eq.s32.totalorder %s17, 0
    %p160 = por %p158, %p159
    %p161 = scmp.ne.s32.totalorder %s149, %s150
    %p162 = scmp.eq.s32.totalorder %s18, 1
    %p163 = por %p161, %p162
    %p165 = scmp.ne.s32.totalorder %s150, %s164
    %p166 = scmp.eq.s32.totalorder %s18, 0
    %p167 = por %p165, %p166
    %s168 = ssub.s32 %s19, %s31
    %s169 = ssub.s32 %s20, %s27
    %s170 = sor.u32 %s168, %s169
    %p171 = scmp.eq.s32.totalorder %s170, 0
    %s173 = sadd.s32 %s172, 1
    %s174 = scalar_select %p171, %s172, %s173
    %p177 = pneg %p171
    %p178 = scmp.eq.s32.totalorder %s12, 1
    %p179 = por %p177, %p178
    %p180 = scmp.ne.s32.totalorder %s172, %s175
    %p181 = scmp.eq.s32.totalorder %s12, 0
    %p182 = por %p180, %p181
    %p183 = scmp.ne.s32.totalorder %s172, %s175
    %p184 = scmp.eq.s32.totalorder %s17, 1
    %p185 = por %p183, %p184
    %p186 = scmp.ne.s32.totalorder %s175, %s176
    %p187 = scmp.eq.s32.totalorder %s17, 0
    %p188 = por %p186, %p187
    %p189 = scmp.ne.s32.totalorder %s175, %s176
    %p190 = scmp.eq.s32.totalorder %s18, 1
    %p191 = por %p189, %p190
    %p193 = scmp.ne.s32.totalorder %s176, %s192
    %p194 = scmp.eq.s32.totalorder %s18, 0
    %p195 = por %p193, %p194
    %p196 = scmp.le.s32.totalorder 1, %s12
    %p197 = scmp.lt.s32.totalorder %s12, 3
    %p198 = pnand %p196, %p197
    %p199 = pneg %p198
    // Predicated region
    $region9: #{dense_block_forward.3} parent=5 // pred_check
      _
    $region10: #{dense_block_forward.3} parent=5 // pred_check_branch
      %201 = sbr.rel (%p198) target = $region12
    $region11: #{dense_block_forward.3} parent=5 // pred_region
      %s202 = ssub.s32 %s12, 1
      // Predicated region
      $region13: #{dense_block_forward.3} parent=11 // pred_check
        %p203 = pneg %p97
      $region14: #{dense_block_forward.3} parent=11 // pred_check_branch
        %205 = sbr.rel (%p203) target = $region16
      $region15: #{dense_block_forward.3} parent=11 // pred_region
        _
      $region16: #{dense_block_forward.3} parent=11 // pred_fallthru
        _
      // Predicated region
      $region17: #{dense_block_forward.3} parent=11 // pred_check
        %p206 = pneg %p118
      $region18: #{dense_block_forward.3} parent=11 // pred_check_branch
        %208 = sbr.rel (%p206) target = $region20
      $region19: #{dense_block_forward.3} parent=11 // pred_region
        _
      $region20: #{dense_block_forward.3} parent=11 // pred_fallthru
        _
      // Predicated region
      $region21: #{dense_block_forward.3} parent=11 // pred_check
        %p209 = pneg %p139
      $region22: #{dense_block_forward.3} parent=11 // pred_check_branch
        %211 = sbr.rel (%p209) target = $region24
      $region23: #{dense_block_forward.3} parent=11 // pred_region
        _
      $region24: #{dense_block_forward.3} parent=11 // pred_fallthru
        _
      // Predicated region
      $region25: #{dense_block_forward.3} parent=11 // pred_check
        %p212 = pneg %p160
      $region26: #{dense_block_forward.3} parent=11 // pred_check_branch
        %214 = sbr.rel (%p212) target = $region28
      $region27: #{dense_block_forward.3} parent=11 // pred_region
        _
      $region28: #{dense_block_forward.3} parent=11 // pred_fallthru
        _
    $region12: #{dense_block_forward.3} parent=5 // pred_fallthru
      _
    %p215 = scmp.lt.s32.totalorder %s12, 2
    // Predicated region
    $region29: #{dense_block_forward.3} parent=5 // pred_check
      %p216 = pneg %p215
    $region30: #{dense_block_forward.3} parent=5 // pred_check_branch
      %218 = sbr.rel (%p216) target = $region32
    $region31: #{dense_block_forward.3} parent=5 // pred_region
      // Predicated region
      $region33: #{dense_block_forward.3} parent=31 // pred_check
        %p219 = pneg %p44
      $region34: #{dense_block_forward.3} parent=31 // pred_check_branch
        %221 = sbr.rel (%p219) target = $region36
      $region35: #{dense_block_forward.3} parent=31 // pred_region
        %p222 = scmp.lt.s32.totalorder %s19, 1
        %s223 = scalar_select %p222, %s19, 1
        %s224 = smul.addr %s223, 32
        %s225 = smul.addr %s224, 8
        %s226 = scalar_lea.vmem %s0, %s225
      $region36: #{dense_block_forward.3} parent=31 // pred_fallthru
        _
      // Predicated region
      $region37: #{dense_block_forward.3} parent=31 // pred_check
        %p227 = pneg %p70
      $region38: #{dense_block_forward.3} parent=31 // pred_check_branch
        %229 = sbr.rel (%p227) target = $region40
      $region39: #{dense_block_forward.3} parent=31 // pred_region
        %p230 = scmp.lt.s32.totalorder %s19, 1
        %s231 = scalar_select %p230, %s19, 1
        %s232 = smul.addr %s231, 32
        %s233 = smul.addr %s232, 8
        %s234 = scalar_lea.vmem %s1, %s233
      $region40: #{dense_block_forward.3} parent=31 // pred_fallthru
        _
    $region32: #{dense_block_forward.3} parent=5 // pred_fallthru
      _
    %p235 = scmp.le.s32.totalorder 1, %s12
    %p236 = scmp.lt.s32.totalorder %s12, 3
    %p237 = pnand %p235, %p236
    %p238 = pneg %p237
    // Predicated region
    $region41: #{dense_block_forward.3} parent=5 // pred_check
      _
    $region42: #{dense_block_forward.3} parent=5 // pred_check_branch
      %240 = sbr.rel (%p237) target = $region44
    $region43: #{dense_block_forward.3} parent=5 // pred_region
      %s241 = ssub.s32 %s12, 1
      %p242 = scmp.lt.s32.totalorder %s21, 1
      %s243 = scalar_select %p242, %s21, 1
      %s244 = smul.addr %s243, 32
      %s245 = smul.addr %s244, 8
      %s246 = scalar_lea.vmem %s0, %s245
      %p247 = pneg %p50
      %p248 = pneg %p47
      %p249 = scmp.lt.s32.totalorder %s21, 1
      %s250 = scalar_select %p249, %s21, 1
      %s251 = smul.addr %s250, 32
      %s252 = smul.addr %s251, 8
      %s253 = scalar_lea.vmem %s1, %s252
      %p254 = pneg %p76
      %p255 = pneg %p73
      %p256 = pneg %p97
      %p257 = pneg %p94
      %p258 = pneg %p118
      %p259 = pneg %p115
      %p260 = pneg %p139
      %p261 = pneg %p136
      %p262 = pneg %p160
      %p263 = pneg %p157
      %p264 = pneg %p188
      %p265 = pneg %p185
      %s266 = smul.u32 16, %s22
      %p267 = scmp.lt.s32.totalorder %s21, 1
      %s268 = scalar_select %p267, %s21, 1
      %p269 = scmp.lt.s32.totalorder %s266, 15
      %s270 = scalar_select %p269, %s266, 15
      %s271 = smul.addr %s270, 2
      %s272 = smul.addr %s268, 32
      %s273 = sadd.s32 %s271, %s272
      %s274 = smul.addr %s273, 8
      %s275 = scalar_lea.vmem %s6, %s274
      %p276 = scmp.lt.s32.totalorder %s21, 1
      %s277 = scalar_select %p276, %s21, 1
      %s278 = smul.addr %s277, 32
      %s279 = smul.addr %s278, 8
      %s280 = scalar_lea.vmem %s0, %s279
      %p281 = scmp.lt.s32.totalorder %s21, 1
      %s282 = scalar_select %p281, %s21, 1
      %s283 = smul.addr %s282, 32
      %s284 = smul.addr %s283, 8
      %s285 = scalar_lea.vmem %s1, %s284
      %s286 = smul.u32 16, %s22
      %p287 = scmp.lt.s32.totalorder %s21, 1
      %s288 = scalar_select %p287, %s21, 1
      %p289 = scmp.lt.s32.totalorder %s286, 15
      %s290 = scalar_select %p289, %s286, 15
      %s291 = smul.addr %s290, 2
      %s292 = smul.addr %s288, 32
      %s293 = sadd.s32 %s291, %s292
      %s294 = smul.addr %s293, 8
      %s295 = scalar_lea.vmem %s6, %s294
      %s296 = smul.u32 16, %s22
      %p297 = scmp.eq.s32.totalorder %s22, 0
      // Predicated region
      $region45: #{dense_block_forward.3} parent=43 // pred_check
        %p298 = pneg %p297
      $region46: #{dense_block_forward.3} parent=43 // pred_check_branch
        %300 = sbr.rel (%p298) target = $region48
      $region47: #{dense_block_forward.3} parent=43 // pred_region
        %301 = vst [vmem:[#allocation2] sm:$0xff] 0.0
        %302 = vst [vmem:[#allocation2 + $0x8] sm:$0xff] 0.0
        %303 = vst [vmem:[#allocation2 + $0x10] sm:$0x3] 0.0
        %304 = vst [vmem:[#allocation2 + $0x18] sm:$0xff] 0.0
        %305 = vst [vmem:[#allocation2 + $0x20] sm:$0xff] 0.0
        %306 = vst [vmem:[#allocation2 + $0x28] sm:$0x3] 0.0
        %307 = vst [vmem:[#allocation2 + $0x30] sm:$0xff] 0.0
        %308 = vst [vmem:[#allocation2 + $0x38] sm:$0xff] 0.0
        %309 = vst [vmem:[#allocation2 + $0x40] sm:$0x3] 0.0
        %310 = vst [vmem:[#allocation2 + $0x48] sm:$0xff] 0.0
        %311 = vst [vmem:[#allocation2 + $0x50] sm:$0xff] 0.0
        %312 = vst [vmem:[#allocation2 + $0x58] sm:$0x3] 0.0
        %313 = vst [vmem:[#allocation2 + $0x60] sm:$0xff] 0.0
        %314 = vst [vmem:[#allocation2 + $0x68] sm:$0xff] 0.0
        %315 = vst [vmem:[#allocation2 + $0x70] sm:$0x3] 0.0
        %316 = vst [vmem:[#allocation2 + $0x78] sm:$0xff] 0.0
        %317 = vst [vmem:[#allocation2 + $0x80] sm:$0xff] 0.0
        %318 = vst [vmem:[#allocation2 + $0x88] sm:$0x3] 0.0
        %319 = vst [vmem:[#allocation2 + $0x90] sm:$0xff] 0.0
        %320 = vst [vmem:[#allocation2 + $0x98] sm:$0xff] 0.0
        %321 = vst [vmem:[#allocation2 + $0xa0] sm:$0x3] 0.0
        %322 = vst [vmem:[#allocation2 + $0xa8] sm:$0xff] 0.0
        %323 = vst [vmem:[#allocation2 + $0xb0] sm:$0xff] 0.0
        %324 = vst [vmem:[#allocation2 + $0xb8] sm:$0x3] 0.0
        %325 = vst [vmem:[#allocation2 + $0xc0] sm:$0xff] 0.0
        %326 = vst [vmem:[#allocation2 + $0xc8] sm:$0xff] 0.0
        %327 = vst [vmem:[#allocation2 + $0xd0] sm:$0x3] 0.0
        %328 = vst [vmem:[#allocation2 + $0xd8] sm:$0xff] 0.0
        %329 = vst [vmem:[#allocation2 + $0xe0] sm:$0xff] 0.0
        %330 = vst [vmem:[#allocation2 + $0xe8] sm:$0x3] 0.0
        %331 = vst [vmem:[#allocation2 + $0xf0] sm:$0xff] 0.0
        %332 = vst [vmem:[#allocation2 + $0xf8] sm:$0xff] 0.0
        %333 = vst [vmem:[#allocation2 + $0x100] sm:$0x3] 0.0
        %334 = vst [vmem:[#allocation2 + $0x108] sm:$0xff] 0.0
        %335 = vst [vmem:[#allocation2 + $0x110] sm:$0xff] 0.0
        %336 = vst [vmem:[#allocation2 + $0x118] sm:$0x3] 0.0
        %337 = vst [vmem:[#allocation2 + $0x120] sm:$0xff] 0.0
        %338 = vst [vmem:[#allocation2 + $0x128] sm:$0xff] 0.0
        %339 = vst [vmem:[#allocation2 + $0x130] sm:$0x3] 0.0
        %340 = vst [vmem:[#allocation2 + $0x138] sm:$0xff] 0.0
        %341 = vst [vmem:[#allocation2 + $0x140] sm:$0xff] 0.0
        %342 = vst [vmem:[#allocation2 + $0x148] sm:$0x3] 0.0
        %343 = vst [vmem:[#allocation2 + $0x150] sm:$0xff] 0.0
        %344 = vst [vmem:[#allocation2 + $0x158] sm:$0xff] 0.0
        %345 = vst [vmem:[#allocation2 + $0x160] sm:$0x3] 0.0
        %346 = vst [vmem:[#allocation2 + $0x168] sm:$0xff] 0.0
        %347 = vst [vmem:[#allocation2 + $0x170] sm:$0xff] 0.0
        %348 = vst [vmem:[#allocation2 + $0x178] sm:$0x3] 0.0
        %349 = vst [vmem:[#allocation2 + $0x180] sm:$0xff] 0.0
        %350 = vst [vmem:[#allocation2 + $0x188] sm:$0xff] 0.0
        %351 = vst [vmem:[#allocation2 + $0x190] sm:$0x3] 0.0
        %352 = vst [vmem:[#allocation2 + $0x198] sm:$0xff] 0.0
        %353 = vst [vmem:[#allocation2 + $0x1a0] sm:$0xff] 0.0
        %354 = vst [vmem:[#allocation2 + $0x1a8] sm:$0x3] 0.0
        %v355 = vld [vmem:[%s280] sm:$0xff]
        %v356 = vld [vmem:[%s280 + $0x8] sm:$0xff]
        %v357 = vld [vmem:[%s280 + $0x10] sm:$0xff]
        %v358 = vld [vmem:[%s280 + $0x18] sm:$0xff]
        %v359 = vld [vmem:[%s280 + $0x20] sm:$0xff]
        %v360 = vld [vmem:[%s280 + $0x28] sm:$0xff]
        %v361 = vld [vmem:[%s280 + $0x30] sm:$0xff]
        %v362 = vld [vmem:[%s280 + $0x38] sm:$0xff]
        %v363 = vld [vmem:[%s280 + $0x40] sm:$0xff]
        %v364 = vld [vmem:[%s280 + $0x48] sm:$0xff]
        %v365 = vld [vmem:[%s280 + $0x50] sm:$0xff]
        %v366 = vld [vmem:[%s280 + $0x58] sm:$0xff]
        %v367 = vld [vmem:[%s280 + $0x60] sm:$0xff]
        %v368 = vld [vmem:[%s280 + $0x68] sm:$0xff]
        %v369 = vld [vmem:[%s280 + $0x70] sm:$0xff]
        %v370 = vld [vmem:[%s280 + $0x78] sm:$0xff]
        %v371 = vld [vmem:[%s280 + $0x80] sm:$0xff]
        %v372 = vld [vmem:[%s280 + $0x88] sm:$0xff]
        %v373 = vld [vmem:[%s280 + $0x90] sm:$0xff]
        %v374 = vld [vmem:[%s280 + $0x98] sm:$0xff]
        %v375 = vld [vmem:[%s280 + $0xa0] sm:$0xff]
        %v376 = vld [vmem:[%s280 + $0xa8] sm:$0xff]
        %v377 = vld [vmem:[%s280 + $0xb0] sm:$0xff]
        %v378 = vld [vmem:[%s280 + $0xb8] sm:$0xff]
        %v379 = vld [vmem:[%s280 + $0xc0] sm:$0xff]
        %v380 = vld [vmem:[%s280 + $0xc8] sm:$0xff]
        %v381 = vld [vmem:[%s280 + $0xd0] sm:$0xff]
        %v382 = vld [vmem:[%s280 + $0xd8] sm:$0xff]
        %v383 = vld [vmem:[%s280 + $0xe0] sm:$0xff]
        %v384 = vld [vmem:[%s280 + $0xe8] sm:$0xff]
        %v385 = vld [vmem:[%s280 + $0xf0] sm:$0xff]
        %v386 = vld [vmem:[%s280 + $0xf8] sm:$0xff]
        %v387 = vld [vmem:[%s2] sm:$0x1]
        %v388 = vld [vmem:[%s3] sm:$0x1]
        %v390 = vperm.slane %v387, 0
        %v392 = vmul.f32 %v355, %v390
        %v393 = vmul.f32 %v356, %v390
        %v394 = vmul.f32 %v357, %v390
        %v395 = vmul.f32 %v358, %v390
        %v396 = vmul.f32 %v359, %v390
        %v397 = vmul.f32 %v360, %v390
        %v398 = vmul.f32 %v361, %v390
        %v399 = vmul.f32 %v362, %v390
        %v400 = vmul.f32 %v363, %v390
        %v401 = vmul.f32 %v364, %v390
        %v402 = vmul.f32 %v365, %v390
        %v403 = vmul.f32 %v366, %v390
        %v404 = vmul.f32 %v367, %v390
        %v405 = vmul.f32 %v368, %v390
        %v406 = vmul.f32 %v369, %v390
        %v407 = vmul.f32 %v370, %v390
        %v408 = vmul.f32 %v371, %v390
        %v409 = vmul.f32 %v372, %v390
        %v410 = vmul.f32 %v373, %v390
        %v411 = vmul.f32 %v374, %v390
        %v412 = vmul.f32 %v375, %v390
        %v413 = vmul.f32 %v376, %v390
        %v414 = vmul.f32 %v377, %v390
        %v415 = vmul.f32 %v378, %v390
        %v416 = vmul.f32 %v379, %v390
        %v417 = vmul.f32 %v380, %v390
        %v418 = vmul.f32 %v381, %v390
        %v419 = vmul.f32 %v382, %v390
        %v420 = vmul.f32 %v383, %v390
        %v421 = vmul.f32 %v384, %v390
        %v422 = vmul.f32 %v385, %v390
        %v423 = vmul.f32 %v386, %v390
        %v425 = vperm.slane %v388, 0
        %v427 = vadd.f32 %v392, %v425
        %v428 = vadd.f32 %v393, %v425
        %v429 = vadd.f32 %v394, %v425
        %v430 = vadd.f32 %v395, %v425
        %v431 = vadd.f32 %v396, %v425
        %v432 = vadd.f32 %v397, %v425
        %v433 = vadd.f32 %v398, %v425
        %v434 = vadd.f32 %v399, %v425
        %v435 = vadd.f32 %v400, %v425
        %v436 = vadd.f32 %v401, %v425
        %v437 = vadd.f32 %v402, %v425
        %v438 = vadd.f32 %v403, %v425
        %v439 = vadd.f32 %v404, %v425
        %v440 = vadd.f32 %v405, %v425
        %v441 = vadd.f32 %v406, %v425
        %v442 = vadd.f32 %v407, %v425
        %v443 = vadd.f32 %v408, %v425
        %v444 = vadd.f32 %v409, %v425
        %v445 = vadd.f32 %v410, %v425
        %v446 = vadd.f32 %v411, %v425
        %v447 = vadd.f32 %v412, %v425
        %v448 = vadd.f32 %v413, %v425
        %v449 = vadd.f32 %v414, %v425
        %v450 = vadd.f32 %v415, %v425
        %v451 = vadd.f32 %v416, %v425
        %v452 = vadd.f32 %v417, %v425
        %v453 = vadd.f32 %v418, %v425
        %v454 = vadd.f32 %v419, %v425
        %v455 = vadd.f32 %v420, %v425
        %v456 = vadd.f32 %v421, %v425
        %v457 = vadd.f32 %v422, %v425
        %v458 = vadd.f32 %v423, %v425
        %v459 = vmax.f32 %v427, 0.0
        %v460 = vmax.f32 %v428, 0.0
        %v461 = vmax.f32 %v429, 0.0
        %v462 = vmax.f32 %v430, 0.0
        %v463 = vmax.f32 %v431, 0.0
        %v464 = vmax.f32 %v432, 0.0
        %v465 = vmax.f32 %v433, 0.0
        %v466 = vmax.f32 %v434, 0.0
        %v467 = vmax.f32 %v435, 0.0
        %v468 = vmax.f32 %v436, 0.0
        %v469 = vmax.f32 %v437, 0.0
        %v470 = vmax.f32 %v438, 0.0
        %v471 = vmax.f32 %v439, 0.0
        %v472 = vmax.f32 %v440, 0.0
        %v473 = vmax.f32 %v441, 0.0
        %v474 = vmax.f32 %v442, 0.0
        %v475 = vmax.f32 %v443, 0.0
        %v476 = vmax.f32 %v444, 0.0
        %v477 = vmax.f32 %v445, 0.0
        %v478 = vmax.f32 %v446, 0.0
        %v479 = vmax.f32 %v447, 0.0
        %v480 = vmax.f32 %v448, 0.0
        %v481 = vmax.f32 %v449, 0.0
        %v482 = vmax.f32 %v450, 0.0
        %v483 = vmax.f32 %v451, 0.0
        %v484 = vmax.f32 %v452, 0.0
        %v485 = vmax.f32 %v453, 0.0
        %v486 = vmax.f32 %v454, 0.0
        %v487 = vmax.f32 %v455, 0.0
        %v488 = vmax.f32 %v456, 0.0
        %v489 = vmax.f32 %v457, 0.0
        %v490 = vmax.f32 %v458, 0.0
        %s491 = scalar_lea.vmem [#allocation2], 24
        %vm492 = vcmask 31744
        %493 = vst.msk [vmem:[%s491 + $0x1] sm:$0xff] %vm492, %v459
        %494 = vst.msk [vmem:[%s491 + $0x9] sm:$0xff] %vm492, %v460
        %495 = vst.msk [vmem:[%s491 + $0x19] sm:$0xff] %vm492, %v461
        %496 = vst.msk [vmem:[%s491 + $0x21] sm:$0xff] %vm492, %v462
        %497 = vst.msk [vmem:[%s491 + $0x31] sm:$0xff] %vm492, %v463
        %498 = vst.msk [vmem:[%s491 + $0x39] sm:$0xff] %vm492, %v464
        %499 = vst.msk [vmem:[%s491 + $0x49] sm:$0xff] %vm492, %v465
        %500 = vst.msk [vmem:[%s491 + $0x51] sm:$0xff] %vm492, %v466
        %501 = vst.msk [vmem:[%s491 + $0x61] sm:$0xff] %vm492, %v467
        %502 = vst.msk [vmem:[%s491 + $0x69] sm:$0xff] %vm492, %v468
        %503 = vst.msk [vmem:[%s491 + $0x79] sm:$0xff] %vm492, %v469
        %504 = vst.msk [vmem:[%s491 + $0x81] sm:$0xff] %vm492, %v470
        %505 = vst.msk [vmem:[%s491 + $0x91] sm:$0xff] %vm492, %v471
        %506 = vst.msk [vmem:[%s491 + $0x99] sm:$0xff] %vm492, %v472
        %507 = vst.msk [vmem:[%s491 + $0xa9] sm:$0xff] %vm492, %v473
        %508 = vst.msk [vmem:[%s491 + $0xb1] sm:$0xff] %vm492, %v474
        %509 = vst.msk [vmem:[%s491 + $0xc1] sm:$0xff] %vm492, %v475
        %510 = vst.msk [vmem:[%s491 + $0xc9] sm:$0xff] %vm492, %v476
        %511 = vst.msk [vmem:[%s491 + $0xd9] sm:$0xff] %vm492, %v477
        %512 = vst.msk [vmem:[%s491 + $0xe1] sm:$0xff] %vm492, %v478
        %513 = vst.msk [vmem:[%s491 + $0xf1] sm:$0xff] %vm492, %v479
        %514 = vst.msk [vmem:[%s491 + $0xf9] sm:$0xff] %vm492, %v480
        %515 = vst.msk [vmem:[%s491 + $0x109] sm:$0xff] %vm492, %v481
        %516 = vst.msk [vmem:[%s491 + $0x111] sm:$0xff] %vm492, %v482
        %517 = vst.msk [vmem:[%s491 + $0x121] sm:$0xff] %vm492, %v483
        %518 = vst.msk [vmem:[%s491 + $0x129] sm:$0xff] %vm492, %v484
        %519 = vst.msk [vmem:[%s491 + $0x139] sm:$0xff] %vm492, %v485
        %520 = vst.msk [vmem:[%s491 + $0x141] sm:$0xff] %vm492, %v486
        %521 = vst.msk [vmem:[%s491 + $0x151] sm:$0xff] %vm492, %v487
        %522 = vst.msk [vmem:[%s491 + $0x159] sm:$0xff] %vm492, %v488
        %523 = vst.msk [vmem:[%s491 + $0x169] sm:$0xff] %vm492, %v489
        %524 = vst.msk [vmem:[%s491 + $0x171] sm:$0xff] %vm492, %v490
        %v525 = vld [vmem:[%s285] sm:$0xff]
        %v526 = vld [vmem:[%s285 + $0x8] sm:$0xff]
        %v527 = vld [vmem:[%s285 + $0x10] sm:$0xff]
        %v528 = vld [vmem:[%s285 + $0x18] sm:$0xff]
        %v529 = vld [vmem:[%s285 + $0x20] sm:$0xff]
        %v530 = vld [vmem:[%s285 + $0x28] sm:$0xff]
        %v531 = vld [vmem:[%s285 + $0x30] sm:$0xff]
        %v532 = vld [vmem:[%s285 + $0x38] sm:$0xff]
        %v533 = vld [vmem:[%s285 + $0x40] sm:$0xff]
        %v534 = vld [vmem:[%s285 + $0x48] sm:$0xff]
        %v535 = vld [vmem:[%s285 + $0x50] sm:$0xff]
        %v536 = vld [vmem:[%s285 + $0x58] sm:$0xff]
        %v537 = vld [vmem:[%s285 + $0x60] sm:$0xff]
        %v538 = vld [vmem:[%s285 + $0x68] sm:$0xff]
        %v539 = vld [vmem:[%s285 + $0x70] sm:$0xff]
        %v540 = vld [vmem:[%s285 + $0x78] sm:$0xff]
        %v541 = vld [vmem:[%s285 + $0x80] sm:$0xff]
        %v542 = vld [vmem:[%s285 + $0x88] sm:$0xff]
        %v543 = vld [vmem:[%s285 + $0x90] sm:$0xff]
        %v544 = vld [vmem:[%s285 + $0x98] sm:$0xff]
        %v545 = vld [vmem:[%s285 + $0xa0] sm:$0xff]
        %v546 = vld [vmem:[%s285 + $0xa8] sm:$0xff]
        %v547 = vld [vmem:[%s285 + $0xb0] sm:$0xff]
        %v548 = vld [vmem:[%s285 + $0xb8] sm:$0xff]
        %v549 = vld [vmem:[%s285 + $0xc0] sm:$0xff]
        %v550 = vld [vmem:[%s285 + $0xc8] sm:$0xff]
        %v551 = vld [vmem:[%s285 + $0xd0] sm:$0xff]
        %v552 = vld [vmem:[%s285 + $0xd8] sm:$0xff]
        %v553 = vld [vmem:[%s285 + $0xe0] sm:$0xff]
        %v554 = vld [vmem:[%s285 + $0xe8] sm:$0xff]
        %v555 = vld [vmem:[%s285 + $0xf0] sm:$0xff]
        %v556 = vld [vmem:[%s285 + $0xf8] sm:$0xff]
        %v557 = vld [vmem:[%s2] sm:$0x1]
        %v558 = vld [vmem:[%s3] sm:$0x1]
        %v560 = vperm.slane %v557, 0
        %561 = vrot.lane.b32.xlu0 %v560, 124
        %v562 = vpop.permute.xlu0 %561
        %v564 = vmul.f32 %v525, %v562
        %v565 = vmul.f32 %v526, %v562
        %v566 = vmul.f32 %v527, %v562
        %v567 = vmul.f32 %v528, %v562
        %v568 = vmul.f32 %v529, %v562
        %v569 = vmul.f32 %v530, %v562
        %v570 = vmul.f32 %v531, %v562
        %v571 = vmul.f32 %v532, %v562
        %v572 = vmul.f32 %v533, %v562
        %v573 = vmul.f32 %v534, %v562
        %v574 = vmul.f32 %v535, %v562
        %v575 = vmul.f32 %v536, %v562
        %v576 = vmul.f32 %v537, %v562
        %v577 = vmul.f32 %v538, %v562
        %v578 = vmul.f32 %v539, %v562
        %v579 = vmul.f32 %v540, %v562
        %v580 = vmul.f32 %v541, %v562
        %v581 = vmul.f32 %v542, %v562
        %v582 = vmul.f32 %v543, %v562
        %v583 = vmul.f32 %v544, %v562
        %v584 = vmul.f32 %v545, %v562
        %v585 = vmul.f32 %v546, %v562
        %v586 = vmul.f32 %v547, %v562
        %v587 = vmul.f32 %v548, %v562
        %v588 = vmul.f32 %v549, %v562
        %v589 = vmul.f32 %v550, %v562
        %v590 = vmul.f32 %v551, %v562
        %v591 = vmul.f32 %v552, %v562
        %v592 = vmul.f32 %v553, %v562
        %v593 = vmul.f32 %v554, %v562
        %v594 = vmul.f32 %v555, %v562
        %v595 = vmul.f32 %v556, %v562
        %v597 = vperm.slane %v558, 0
        %598 = vrot.lane.b32.xlu0 %v597, 124
        %v599 = vpop.permute.xlu0 %598
        %v601 = vadd.f32 %v564, %v599
        %v602 = vadd.f32 %v565, %v599
        %v603 = vadd.f32 %v566, %v599
        %v604 = vadd.f32 %v567, %v599
        %v605 = vadd.f32 %v568, %v599
        %v606 = vadd.f32 %v569, %v599
        %v607 = vadd.f32 %v570, %v599
        %v608 = vadd.f32 %v571, %v599
        %v609 = vadd.f32 %v572, %v599
        %v610 = vadd.f32 %v573, %v599
        %v611 = vadd.f32 %v574, %v599
        %v612 = vadd.f32 %v575, %v599
        %v613 = vadd.f32 %v576, %v599
        %v614 = vadd.f32 %v577, %v599
        %v615 = vadd.f32 %v578, %v599
        %v616 = vadd.f32 %v579, %v599
        %v617 = vadd.f32 %v580, %v599
        %v618 = vadd.f32 %v581, %v599
        %v619 = vadd.f32 %v582, %v599
        %v620 = vadd.f32 %v583, %v599
        %v621 = vadd.f32 %v584, %v599
        %v622 = vadd.f32 %v585, %v599
        %v623 = vadd.f32 %v586, %v599
        %v624 = vadd.f32 %v587, %v599
        %v625 = vadd.f32 %v588, %v599
        %v626 = vadd.f32 %v589, %v599
        %v627 = vadd.f32 %v590, %v599
        %v628 = vadd.f32 %v591, %v599
        %v629 = vadd.f32 %v592, %v599
        %v630 = vadd.f32 %v593, %v599
        %v631 = vadd.f32 %v594, %v599
        %v632 = vadd.f32 %v595, %v599
        %v633 = vmax.f32 %v601, 0.0
        %v634 = vmax.f32 %v602, 0.0
        %v635 = vmax.f32 %v603, 0.0
        %v636 = vmax.f32 %v604, 0.0
        %v637 = vmax.f32 %v605, 0.0
        %v638 = vmax.f32 %v606, 0.0
        %v639 = vmax.f32 %v607, 0.0
        %v640 = vmax.f32 %v608, 0.0
        %v641 = vmax.f32 %v609, 0.0
        %v642 = vmax.f32 %v610, 0.0
        %v643 = vmax.f32 %v611, 0.0
        %v644 = vmax.f32 %v612, 0.0
        %v645 = vmax.f32 %v613, 0.0
        %v646 = vmax.f32 %v614, 0.0
        %v647 = vmax.f32 %v615, 0.0
        %v648 = vmax.f32 %v616, 0.0
        %v649 = vmax.f32 %v617, 0.0
        %v650 = vmax.f32 %v618, 0.0
        %v651 = vmax.f32 %v619, 0.0
        %v652 = vmax.f32 %v620, 0.0
        %v653 = vmax.f32 %v621, 0.0
        %v654 = vmax.f32 %v622, 0.0
        %v655 = vmax.f32 %v623, 0.0
        %v656 = vmax.f32 %v624, 0.0
        %v657 = vmax.f32 %v625, 0.0
        %v658 = vmax.f32 %v626, 0.0
        %v659 = vmax.f32 %v627, 0.0
        %v660 = vmax.f32 %v628, 0.0
        %v661 = vmax.f32 %v629, 0.0
        %v662 = vmax.f32 %v630, 0.0
        %v663 = vmax.f32 %v631, 0.0
        %v664 = vmax.f32 %v632, 0.0
        %697 = vrot.lane.b32.xlu0 %v633, 4
        %v698 = vpop.permute.xlu0 %697
        %699 = vrot.lane.b32.xlu0 %v634, 4
        %v700 = vpop.permute.xlu0 %699
        %701 = vrot.lane.b32.xlu0 %v635, 4
        %v702 = vpop.permute.xlu0 %701
        %703 = vrot.lane.b32.xlu0 %v636, 4
        %v704 = vpop.permute.xlu0 %703
        %705 = vrot.lane.b32.xlu0 %v637, 4
        %v706 = vpop.permute.xlu0 %705
        %707 = vrot.lane.b32.xlu0 %v638, 4
        %v708 = vpop.permute.xlu0 %707
        %709 = vrot.lane.b32.xlu0 %v639, 4
        %v710 = vpop.permute.xlu0 %709
        %711 = vrot.lane.b32.xlu0 %v640, 4
        %v712 = vpop.permute.xlu0 %711
        %713 = vrot.lane.b32.xlu0 %v641, 4
        %v714 = vpop.permute.xlu0 %713
        %715 = vrot.lane.b32.xlu0 %v642, 4
        %v716 = vpop.permute.xlu0 %715
        %717 = vrot.lane.b32.xlu0 %v643, 4
        %v718 = vpop.permute.xlu0 %717
        %719 = vrot.lane.b32.xlu0 %v644, 4
        %v720 = vpop.permute.xlu0 %719
        %721 = vrot.lane.b32.xlu0 %v645, 4
        %v722 = vpop.permute.xlu0 %721
        %723 = vrot.lane.b32.xlu0 %v646, 4
        %v724 = vpop.permute.xlu0 %723
        %725 = vrot.lane.b32.xlu0 %v647, 4
        %v726 = vpop.permute.xlu0 %725
        %727 = vrot.lane.b32.xlu0 %v648, 4
        %v728 = vpop.permute.xlu0 %727
        %729 = vrot.lane.b32.xlu0 %v649, 4
        %v730 = vpop.permute.xlu0 %729
        %731 = vrot.lane.b32.xlu0 %v650, 4
        %v732 = vpop.permute.xlu0 %731
        %733 = vrot.lane.b32.xlu0 %v651, 4
        %v734 = vpop.permute.xlu0 %733
        %735 = vrot.lane.b32.xlu0 %v652, 4
        %v736 = vpop.permute.xlu0 %735
        %737 = vrot.lane.b32.xlu0 %v653, 4
        %v738 = vpop.permute.xlu0 %737
        %739 = vrot.lane.b32.xlu0 %v654, 4
        %v740 = vpop.permute.xlu0 %739
        %741 = vrot.lane.b32.xlu0 %v655, 4
        %v742 = vpop.permute.xlu0 %741
        %743 = vrot.lane.b32.xlu0 %v656, 4
        %v744 = vpop.permute.xlu0 %743
        %745 = vrot.lane.b32.xlu0 %v657, 4
        %v746 = vpop.permute.xlu0 %745
        %747 = vrot.lane.b32.xlu0 %v658, 4
        %v748 = vpop.permute.xlu0 %747
        %749 = vrot.lane.b32.xlu0 %v659, 4
        %v750 = vpop.permute.xlu0 %749
        %751 = vrot.lane.b32.xlu0 %v660, 4
        %v752 = vpop.permute.xlu0 %751
        %753 = vrot.lane.b32.xlu0 %v661, 4
        %v754 = vpop.permute.xlu0 %753
        %755 = vrot.lane.b32.xlu0 %v662, 4
        %v756 = vpop.permute.xlu0 %755
        %757 = vrot.lane.b32.xlu0 %v663, 4
        %v758 = vpop.permute.xlu0 %757
        %759 = vrot.lane.b32.xlu0 %v664, 4
        %v760 = vpop.permute.xlu0 %759
        %vm793 = vcmask 97312
        %794 = vst.msk [vmem:[%s491 + $0x1] sm:$0xff] %vm793, %v698
        %795 = vst.msk [vmem:[%s491 + $0x9] sm:$0xff] %vm793, %v700
        %796 = vst.msk [vmem:[%s491 + $0x19] sm:$0xff] %vm793, %v702
        %797 = vst.msk [vmem:[%s491 + $0x21] sm:$0xff] %vm793, %v704
        %798 = vst.msk [vmem:[%s491 + $0x31] sm:$0xff] %vm793, %v706
        %799 = vst.msk [vmem:[%s491 + $0x39] sm:$0xff] %vm793, %v708
        %800 = vst.msk [vmem:[%s491 + $0x49] sm:$0xff] %vm793, %v710
        %801 = vst.msk [vmem:[%s491 + $0x51] sm:$0xff] %vm793, %v712
        %802 = vst.msk [vmem:[%s491 + $0x61] sm:$0xff] %vm793, %v714
        %803 = vst.msk [vmem:[%s491 + $0x69] sm:$0xff] %vm793, %v716
        %804 = vst.msk [vmem:[%s491 + $0x79] sm:$0xff] %vm793, %v718
        %805 = vst.msk [vmem:[%s491 + $0x81] sm:$0xff] %vm793, %v720
        %806 = vst.msk [vmem:[%s491 + $0x91] sm:$0xff] %vm793, %v722
        %807 = vst.msk [vmem:[%s491 + $0x99] sm:$0xff] %vm793, %v724
        %808 = vst.msk [vmem:[%s491 + $0xa9] sm:$0xff] %vm793, %v726
        %809 = vst.msk [vmem:[%s491 + $0xb1] sm:$0xff] %vm793, %v728
        %810 = vst.msk [vmem:[%s491 + $0xc1] sm:$0xff] %vm793, %v730
        %811 = vst.msk [vmem:[%s491 + $0xc9] sm:$0xff] %vm793, %v732
        %812 = vst.msk [vmem:[%s491 + $0xd9] sm:$0xff] %vm793, %v734
        %813 = vst.msk [vmem:[%s491 + $0xe1] sm:$0xff] %vm793, %v736
        %814 = vst.msk [vmem:[%s491 + $0xf1] sm:$0xff] %vm793, %v738
        %815 = vst.msk [vmem:[%s491 + $0xf9] sm:$0xff] %vm793, %v740
        %816 = vst.msk [vmem:[%s491 + $0x109] sm:$0xff] %vm793, %v742
        %817 = vst.msk [vmem:[%s491 + $0x111] sm:$0xff] %vm793, %v744
        %818 = vst.msk [vmem:[%s491 + $0x121] sm:$0xff] %vm793, %v746
        %819 = vst.msk [vmem:[%s491 + $0x129] sm:$0xff] %vm793, %v748
        %820 = vst.msk [vmem:[%s491 + $0x139] sm:$0xff] %vm793, %v750
        %821 = vst.msk [vmem:[%s491 + $0x141] sm:$0xff] %vm793, %v752
        %822 = vst.msk [vmem:[%s491 + $0x151] sm:$0xff] %vm793, %v754
        %823 = vst.msk [vmem:[%s491 + $0x159] sm:$0xff] %vm793, %v756
        %824 = vst.msk [vmem:[%s491 + $0x169] sm:$0xff] %vm793, %v758
        %825 = vst.msk [vmem:[%s491 + $0x171] sm:$0xff] %vm793, %v760
      $region48: #{dense_block_forward.3} parent=43 // pred_fallthru
        _
      %s826 = smul.u32 %s22, 16
      %s827 = smul.u32 %s826, 24
      %s828 = scalar_lea.vmem [#allocation2], %s827
      %v829 = vld [vmem:[%s828] sm:$0xff]
      %v830 = vld [vmem:[%s828 + $0x8] sm:$0xff]
      %v831 = vld [vmem:[%s828 + $0x18] sm:$0xff]
      %v832 = vld [vmem:[%s828 + $0x20] sm:$0xff]
      %v833 = vld [vmem:[%s828 + $0x30] sm:$0xff]
      %v834 = vld [vmem:[%s828 + $0x38] sm:$0xff]
      %v835 = vld [vmem:[%s828 + $0x48] sm:$0xff]
      %v836 = vld [vmem:[%s828 + $0x50] sm:$0xff]
      %v837 = vld [vmem:[%s828 + $0x60] sm:$0xff]
      %v838 = vld [vmem:[%s828 + $0x68] sm:$0xff]
      %v839 = vld [vmem:[%s828 + $0x78] sm:$0xff]
      %v840 = vld [vmem:[%s828 + $0x80] sm:$0xff]
      %v841 = vld [vmem:[%s828 + $0x90] sm:$0xff]
      %v842 = vld [vmem:[%s828 + $0x98] sm:$0xff]
      %v843 = vld [vmem:[%s828 + $0xa8] sm:$0xff]
      %v844 = vld [vmem:[%s828 + $0xb0] sm:$0xff]
      %v845 = vld [vmem:[%s828 + $0xc0] sm:$0xff]
      %v846 = vld [vmem:[%s828 + $0xc8] sm:$0xff]
      %v847 = vld [vmem:[%s828 + $0xd8] sm:$0xff]
      %v848 = vld [vmem:[%s828 + $0xe0] sm:$0xff]
      %v849 = vld [vmem:[%s828 + $0xf0] sm:$0xff]
      %v850 = vld [vmem:[%s828 + $0xf8] sm:$0xff]
      %v851 = vld [vmem:[%s828 + $0x108] sm:$0xff]
      %v852 = vld [vmem:[%s828 + $0x110] sm:$0xff]
      %v853 = vld [vmem:[%s828 + $0x120] sm:$0xff]
      %v854 = vld [vmem:[%s828 + $0x128] sm:$0xff]
      %v855 = vld [vmem:[%s828 + $0x138] sm:$0xff]
      %v856 = vld [vmem:[%s828 + $0x140] sm:$0xff]
      %v857 = vld [vmem:[%s828 + $0x150] sm:$0xff]
      %v858 = vld [vmem:[%s828 + $0x158] sm:$0xff]
      %v859 = vld [vmem:[%s828 + $0x168] sm:$0xff]
      %v860 = vld [vmem:[%s828 + $0x170] sm:$0xff]
      %861 = vst [vmem:[#allocation3] sm:$0xff] %v829
      %862 = vst [vmem:[#allocation3 + $0x48] sm:$0xff] %v830
      %863 = vst [vmem:[#allocation3 + $0x90] sm:$0xff] %v831
      %864 = vst [vmem:[#allocation3 + $0xd8] sm:$0xff] %v832
      %865 = vst [vmem:[#allocation3 + $0x120] sm:$0xff] %v833
      %866 = vst [vmem:[#allocation3 + $0x168] sm:$0xff] %v834
      %867 = vst [vmem:[#allocation3 + $0x1b0] sm:$0xff] %v835
      %868 = vst [vmem:[#allocation3 + $0x1f8] sm:$0xff] %v836
      %869 = vst [vmem:[#allocation3 + $0x240] sm:$0xff] %v837
      %870 = vst [vmem:[#allocation3 + $0x288] sm:$0xff] %v838
      %871 = vst [vmem:[#allocation3 + $0x2d0] sm:$0xff] %v839
      %872 = vst [vmem:[#allocation3 + $0x318] sm:$0xff] %v840
      %873 = vst [vmem:[#allocation3 + $0x360] sm:$0xff] %v841
      %874 = vst [vmem:[#allocation3 + $0x3a8] sm:$0xff] %v842
      %875 = vst [vmem:[#allocation3 + $0x3f0] sm:$0xff] %v843
      %876 = vst [vmem:[#allocation3 + $0x438] sm:$0xff] %v844
      %877 = vst [vmem:[#allocation3 + $0x480] sm:$0xff] %v845
      %878 = vst [vmem:[#allocation3 + $0x4c8] sm:$0xff] %v846
      %879 = vst [vmem:[#allocation3 + $0x510] sm:$0xff] %v847
      %880 = vst [vmem:[#allocation3 + $0x558] sm:$0xff] %v848
      %881 = vst [vmem:[#allocation3 + $0x5a0] sm:$0xff] %v849
      %882 = vst [vmem:[#allocation3 + $0x5e8] sm:$0xff] %v850
      %883 = vst [vmem:[#allocation3 + $0x630] sm:$0xff] %v851
      %884 = vst [vmem:[#allocation3 + $0x678] sm:$0xff] %v852
      %885 = vst [vmem:[#allocation3 + $0x6c0] sm:$0xff] %v853
      %886 = vst [vmem:[#allocation3 + $0x708] sm:$0xff] %v854
      %887 = vst [vmem:[#allocation3 + $0x750] sm:$0xff] %v855
      %888 = vst [vmem:[#allocation3 + $0x798] sm:$0xff] %v856
      %889 = vst [vmem:[#allocation3 + $0x7e0] sm:$0xff] %v857
      %890 = vst [vmem:[#allocation3 + $0x828] sm:$0xff] %v858
      %891 = vst [vmem:[#allocation3 + $0x870] sm:$0xff] %v859
      %892 = vst [vmem:[#allocation3 + $0x8b8] sm:$0xff] %v860
      %v893 = vld [vmem:[%s828 + $0x1] sm:$0xff]
      %v894 = vld [vmem:[%s828 + $0x9] sm:$0xff]
      %v895 = vld [vmem:[%s828 + $0x19] sm:$0xff]
      %v896 = vld [vmem:[%s828 + $0x21] sm:$0xff]
      %v897 = vld [vmem:[%s828 + $0x31] sm:$0xff]
      %v898 = vld [vmem:[%s828 + $0x39] sm:$0xff]
      %v899 = vld [vmem:[%s828 + $0x49] sm:$0xff]
      %v900 = vld [vmem:[%s828 + $0x51] sm:$0xff]
      %v901 = vld [vmem:[%s828 + $0x61] sm:$0xff]
      %v902 = vld [vmem:[%s828 + $0x69] sm:$0xff]
      %v903 = vld [vmem:[%s828 + $0x79] sm:$0xff]
      %v904 = vld [vmem:[%s828 + $0x81] sm:$0xff]
      %v905 = vld [vmem:[%s828 + $0x91] sm:$0xff]
      %v906 = vld [vmem:[%s828 + $0x99] sm:$0xff]
      %v907 = vld [vmem:[%s828 + $0xa9] sm:$0xff]
      %v908 = vld [vmem:[%s828 + $0xb1] sm:$0xff]
      %v909 = vld [vmem:[%s828 + $0xc1] sm:$0xff]
      %v910 = vld [vmem:[%s828 + $0xc9] sm:$0xff]
      %v911 = vld [vmem:[%s828 + $0xd9] sm:$0xff]
      %v912 = vld [vmem:[%s828 + $0xe1] sm:$0xff]
      %v913 = vld [vmem:[%s828 + $0xf1] sm:$0xff]
      %v914 = vld [vmem:[%s828 + $0xf9] sm:$0xff]
      %v915 = vld [vmem:[%s828 + $0x109] sm:$0xff]
      %v916 = vld [vmem:[%s828 + $0x111] sm:$0xff]
      %v917 = vld [vmem:[%s828 + $0x121] sm:$0xff]
      %v918 = vld [vmem:[%s828 + $0x129] sm:$0xff]
      %v919 = vld [vmem:[%s828 + $0x139] sm:$0xff]
      %v920 = vld [vmem:[%s828 + $0x141] sm:$0xff]
      %v921 = vld [vmem:[%s828 + $0x151] sm:$0xff]
      %v922 = vld [vmem:[%s828 + $0x159] sm:$0xff]
      %v923 = vld [vmem:[%s828 + $0x169] sm:$0xff]
      %v924 = vld [vmem:[%s828 + $0x171] sm:$0xff]
      %925 = vst [vmem:[#allocation3 + $0x8] sm:$0xff] %v893
      %926 = vst [vmem:[#allocation3 + $0x50] sm:$0xff] %v894
      %927 = vst [vmem:[#allocation3 + $0x98] sm:$0xff] %v895
      %928 = vst [vmem:[#allocation3 + $0xe0] sm:$0xff] %v896
      %929 = vst [vmem:[#allocation3 + $0x128] sm:$0xff] %v897
      %930 = vst [vmem:[#allocation3 + $0x170] sm:$0xff] %v898
      %931 = vst [vmem:[#allocation3 + $0x1b8] sm:$0xff] %v899
      %932 = vst [vmem:[#allocation3 + $0x200] sm:$0xff] %v900
      %933 = vst [vmem:[#allocation3 + $0x248] sm:$0xff] %v901
      %934 = vst [vmem:[#allocation3 + $0x290] sm:$0xff] %v902
      %935 = vst [vmem:[#allocation3 + $0x2d8] sm:$0xff] %v903
      %936 = vst [vmem:[#allocation3 + $0x320] sm:$0xff] %v904
      %937 = vst [vmem:[#allocation3 + $0x368] sm:$0xff] %v905
      %938 = vst [vmem:[#allocation3 + $0x3b0] sm:$0xff] %v906
      %939 = vst [vmem:[#allocation3 + $0x3f8] sm:$0xff] %v907
      %940 = vst [vmem:[#allocation3 + $0x440] sm:$0xff] %v908
      %941 = vst [vmem:[#allocation3 + $0x488] sm:$0xff] %v909
      %942 = vst [vmem:[#allocation3 + $0x4d0] sm:$0xff] %v910
      %943 = vst [vmem:[#allocation3 + $0x518] sm:$0xff] %v911
      %944 = vst [vmem:[#allocation3 + $0x560] sm:$0xff] %v912
      %945 = vst [vmem:[#allocation3 + $0x5a8] sm:$0xff] %v913
      %946 = vst [vmem:[#allocation3 + $0x5f0] sm:$0xff] %v914
      %947 = vst [vmem:[#allocation3 + $0x638] sm:$0xff] %v915
      %948 = vst [vmem:[#allocation3 + $0x680] sm:$0xff] %v916
      %949 = vst [vmem:[#allocation3 + $0x6c8] sm:$0xff] %v917
      %950 = vst [vmem:[#allocation3 + $0x710] sm:$0xff] %v918
      %951 = vst [vmem:[#allocation3 + $0x758] sm:$0xff] %v919
      %952 = vst [vmem:[#allocation3 + $0x7a0] sm:$0xff] %v920
      %953 = vst [vmem:[#allocation3 + $0x7e8] sm:$0xff] %v921
      %954 = vst [vmem:[#allocation3 + $0x830] sm:$0xff] %v922
      %955 = vst [vmem:[#allocation3 + $0x878] sm:$0xff] %v923
      %956 = vst [vmem:[#allocation3 + $0x8c0] sm:$0xff] %v924
      %v957 = vld [vmem:[%s828 + $0x2] sm:$0xff]
      %v958 = vld [vmem:[%s828 + $0xa] sm:$0xff]
      %v959 = vld [vmem:[%s828 + $0x1a] sm:$0xff]
      %v960 = vld [vmem:[%s828 + $0x22] sm:$0xff]
      %v961 = vld [vmem:[%s828 + $0x32] sm:$0xff]
      %v962 = vld [vmem:[%s828 + $0x3a] sm:$0xff]
      %v963 = vld [vmem:[%s828 + $0x4a] sm:$0xff]
      %v964 = vld [vmem:[%s828 + $0x52] sm:$0xff]
      %v965 = vld [vmem:[%s828 + $0x62] sm:$0xff]
      %v966 = vld [vmem:[%s828 + $0x6a] sm:$0xff]
      %v967 = vld [vmem:[%s828 + $0x7a] sm:$0xff]
      %v968 = vld [vmem:[%s828 + $0x82] sm:$0xff]
      %v969 = vld [vmem:[%s828 + $0x92] sm:$0xff]
      %v970 = vld [vmem:[%s828 + $0x9a] sm:$0xff]
      %v971 = vld [vmem:[%s828 + $0xaa] sm:$0xff]
      %v972 = vld [vmem:[%s828 + $0xb2] sm:$0xff]
      %v973 = vld [vmem:[%s828 + $0xc2] sm:$0xff]
      %v974 = vld [vmem:[%s828 + $0xca] sm:$0xff]
      %v975 = vld [vmem:[%s828 + $0xda] sm:$0xff]
      %v976 = vld [vmem:[%s828 + $0xe2] sm:$0xff]
      %v977 = vld [vmem:[%s828 + $0xf2] sm:$0xff]
      %v978 = vld [vmem:[%s828 + $0xfa] sm:$0xff]
      %v979 = vld [vmem:[%s828 + $0x10a] sm:$0xff]
      %v980 = vld [vmem:[%s828 + $0x112] sm:$0xff]
      %v981 = vld [vmem:[%s828 + $0x122] sm:$0xff]
      %v982 = vld [vmem:[%s828 + $0x12a] sm:$0xff]
      %v983 = vld [vmem:[%s828 + $0x13a] sm:$0xff]
      %v984 = vld [vmem:[%s828 + $0x142] sm:$0xff]
      %v985 = vld [vmem:[%s828 + $0x152] sm:$0xff]
      %v986 = vld [vmem:[%s828 + $0x15a] sm:$0xff]
      %v987 = vld [vmem:[%s828 + $0x16a] sm:$0xff]
      %v988 = vld [vmem:[%s828 + $0x172] sm:$0xff]
      %989 = vst [vmem:[#allocation3 + $0x10] sm:$0xff] %v957
      %990 = vst [vmem:[#allocation3 + $0x58] sm:$0xff] %v958
      %991 = vst [vmem:[#allocation3 + $0xa0] sm:$0xff] %v959
      %992 = vst [vmem:[#allocation3 + $0xe8] sm:$0xff] %v960
      %993 = vst [vmem:[#allocation3 + $0x130] sm:$0xff] %v961
      %994 = vst [vmem:[#allocation3 + $0x178] sm:$0xff] %v962
      %995 = vst [vmem:[#allocation3 + $0x1c0] sm:$0xff] %v963
      %996 = vst [vmem:[#allocation3 + $0x208] sm:$0xff] %v964
      %997 = vst [vmem:[#allocation3 + $0x250] sm:$0xff] %v965
      %998 = vst [vmem:[#allocation3 + $0x298] sm:$0xff] %v966
      %999 = vst [vmem:[#allocation3 + $0x2e0] sm:$0xff] %v967
      %1000 = vst [vmem:[#allocation3 + $0x328] sm:$0xff] %v968
      %1001 = vst [vmem:[#allocation3 + $0x370] sm:$0xff] %v969
      %1002 = vst [vmem:[#allocation3 + $0x3b8] sm:$0xff] %v970
      %1003 = vst [vmem:[#allocation3 + $0x400] sm:$0xff] %v971
      %1004 = vst [vmem:[#allocation3 + $0x448] sm:$0xff] %v972
      %1005 = vst [vmem:[#allocation3 + $0x490] sm:$0xff] %v973
      %1006 = vst [vmem:[#allocation3 + $0x4d8] sm:$0xff] %v974
      %1007 = vst [vmem:[#allocation3 + $0x520] sm:$0xff] %v975
      %1008 = vst [vmem:[#allocation3 + $0x568] sm:$0xff] %v976
      %1009 = vst [vmem:[#allocation3 + $0x5b0] sm:$0xff] %v977
      %1010 = vst [vmem:[#allocation3 + $0x5f8] sm:$0xff] %v978
      %1011 = vst [vmem:[#allocation3 + $0x640] sm:$0xff] %v979
      %1012 = vst [vmem:[#allocation3 + $0x688] sm:$0xff] %v980
      %1013 = vst [vmem:[#allocation3 + $0x6d0] sm:$0xff] %v981
      %1014 = vst [vmem:[#allocation3 + $0x718] sm:$0xff] %v982
      %1015 = vst [vmem:[#allocation3 + $0x760] sm:$0xff] %v983
      %1016 = vst [vmem:[#allocation3 + $0x7a8] sm:$0xff] %v984
      %1017 = vst [vmem:[#allocation3 + $0x7f0] sm:$0xff] %v985
      %1018 = vst [vmem:[#allocation3 + $0x838] sm:$0xff] %v986
      %1019 = vst [vmem:[#allocation3 + $0x880] sm:$0xff] %v987
      %1020 = vst [vmem:[#allocation3 + $0x8c8] sm:$0xff] %v988
      %s1021 = sadd.s32 %s826, 1
      %s1022 = smul.u32 %s1021, 24
      %s1023 = scalar_lea.vmem [#allocation2], %s1022
      %v1024 = vld [vmem:[%s1023] sm:$0xff]
      %v1025 = vld [vmem:[%s1023 + $0x8] sm:$0xff]
      %v1026 = vld [vmem:[%s1023 + $0x18] sm:$0xff]
      %v1027 = vld [vmem:[%s1023 + $0x20] sm:$0xff]
      %v1028 = vld [vmem:[%s1023 + $0x30] sm:$0xff]
      %v1029 = vld [vmem:[%s1023 + $0x38] sm:$0xff]
      %v1030 = vld [vmem:[%s1023 + $0x48] sm:$0xff]
      %v1031 = vld [vmem:[%s1023 + $0x50] sm:$0xff]
      %v1032 = vld [vmem:[%s1023 + $0x60] sm:$0xff]
      %v1033 = vld [vmem:[%s1023 + $0x68] sm:$0xff]
      %v1034 = vld [vmem:[%s1023 + $0x78] sm:$0xff]
      %v1035 = vld [vmem:[%s1023 + $0x80] sm:$0xff]
      %v1036 = vld [vmem:[%s1023 + $0x90] sm:$0xff]
      %v1037 = vld [vmem:[%s1023 + $0x98] sm:$0xff]
      %v1038 = vld [vmem:[%s1023 + $0xa8] sm:$0xff]
      %v1039 = vld [vmem:[%s1023 + $0xb0] sm:$0xff]
      %v1040 = vld [vmem:[%s1023 + $0xc0] sm:$0xff]
      %v1041 = vld [vmem:[%s1023 + $0xc8] sm:$0xff]
      %v1042 = vld [vmem:[%s1023 + $0xd8] sm:$0xff]
      %v1043 = vld [vmem:[%s1023 + $0xe0] sm:$0xff]
      %v1044 = vld [vmem:[%s1023 + $0xf0] sm:$0xff]
      %v1045 = vld [vmem:[%s1023 + $0xf8] sm:$0xff]
      %v1046 = vld [vmem:[%s1023 + $0x108] sm:$0xff]
      %v1047 = vld [vmem:[%s1023 + $0x110] sm:$0xff]
      %v1048 = vld [vmem:[%s1023 + $0x120] sm:$0xff]
      %v1049 = vld [vmem:[%s1023 + $0x128] sm:$0xff]
      %v1050 = vld [vmem:[%s1023 + $0x138] sm:$0xff]
      %v1051 = vld [vmem:[%s1023 + $0x140] sm:$0xff]
      %v1052 = vld [vmem:[%s1023 + $0x150] sm:$0xff]
      %v1053 = vld [vmem:[%s1023 + $0x158] sm:$0xff]
      %v1054 = vld [vmem:[%s1023 + $0x168] sm:$0xff]
      %v1055 = vld [vmem:[%s1023 + $0x170] sm:$0xff]
      %1056 = vst [vmem:[#allocation3 + $0x18] sm:$0xff] %v1024
      %1057 = vst [vmem:[#allocation3 + $0x60] sm:$0xff] %v1025
      %1058 = vst [vmem:[#allocation3 + $0xa8] sm:$0xff] %v1026
      %1059 = vst [vmem:[#allocation3 + $0xf0] sm:$0xff] %v1027
      %1060 = vst [vmem:[#allocation3 + $0x138] sm:$0xff] %v1028
      %1061 = vst [vmem:[#allocation3 + $0x180] sm:$0xff] %v1029
      %1062 = vst [vmem:[#allocation3 + $0x1c8] sm:$0xff] %v1030
      %1063 = vst [vmem:[#allocation3 + $0x210] sm:$0xff] %v1031
      %1064 = vst [vmem:[#allocation3 + $0x258] sm:$0xff] %v1032
      %1065 = vst [vmem:[#allocation3 + $0x2a0] sm:$0xff] %v1033
      %1066 = vst [vmem:[#allocation3 + $0x2e8] sm:$0xff] %v1034
      %1067 = vst [vmem:[#allocation3 + $0x330] sm:$0xff] %v1035
      %1068 = vst [vmem:[#allocation3 + $0x378] sm:$0xff] %v1036
      %1069 = vst [vmem:[#allocation3 + $0x3c0] sm:$0xff] %v1037
      %1070 = vst [vmem:[#allocation3 + $0x408] sm:$0xff] %v1038
      %1071 = vst [vmem:[#allocation3 + $0x450] sm:$0xff] %v1039
      %1072 = vst [vmem:[#allocation3 + $0x498] sm:$0xff] %v1040
      %1073 = vst [vmem:[#allocation3 + $0x4e0] sm:$0xff] %v1041
      %1074 = vst [vmem:[#allocation3 + $0x528] sm:$0xff] %v1042
      %1075 = vst [vmem:[#allocation3 + $0x570] sm:$0xff] %v1043
      %1076 = vst [vmem:[#allocation3 + $0x5b8] sm:$0xff] %v1044
      %1077 = vst [vmem:[#allocation3 + $0x600] sm:$0xff] %v1045
      %1078 = vst [vmem:[#allocation3 + $0x648] sm:$0xff] %v1046
      %1079 = vst [vmem:[#allocation3 + $0x690] sm:$0xff] %v1047
      %1080 = vst [vmem:[#allocation3 + $0x6d8] sm:$0xff] %v1048
      %1081 = vst [vmem:[#allocation3 + $0x720] sm:$0xff] %v1049
      %1082 = vst [vmem:[#allocation3 + $0x768] sm:$0xff] %v1050
      %1083 = vst [vmem:[#allocation3 + $0x7b0] sm:$0xff] %v1051
      %1084 = vst [vmem:[#allocation3 + $0x7f8] sm:$0xff] %v1052
      %1085 = vst [vmem:[#allocation3 + $0x840] sm:$0xff] %v1053
      %1086 = vst [vmem:[#allocation3 + $0x888] sm:$0xff] %v1054
      %1087 = vst [vmem:[#allocation3 + $0x8d0] sm:$0xff] %v1055
      %v1088 = vld [vmem:[%s1023 + $0x1] sm:$0xff]
      %v1089 = vld [vmem:[%s1023 + $0x9] sm:$0xff]
      %v1090 = vld [vmem:[%s1023 + $0x19] sm:$0xff]
      %v1091 = vld [vmem:[%s1023 + $0x21] sm:$0xff]
      %v1092 = vld [vmem:[%s1023 + $0x31] sm:$0xff]
      %v1093 = vld [vmem:[%s1023 + $0x39] sm:$0xff]
      %v1094 = vld [vmem:[%s1023 + $0x49] sm:$0xff]
      %v1095 = vld [vmem:[%s1023 + $0x51] sm:$0xff]
      %v1096 = vld [vmem:[%s1023 + $0x61] sm:$0xff]
      %v1097 = vld [vmem:[%s1023 + $0x69] sm:$0xff]
      %v1098 = vld [vmem:[%s1023 + $0x79] sm:$0xff]
      %v1099 = vld [vmem:[%s1023 + $0x81] sm:$0xff]
      %v1100 = vld [vmem:[%s1023 + $0x91] sm:$0xff]
      %v1101 = vld [vmem:[%s1023 + $0x99] sm:$0xff]
      %v1102 = vld [vmem:[%s1023 + $0xa9] sm:$0xff]
      %v1103 = vld [vmem:[%s1023 + $0xb1] sm:$0xff]
      %v1104 = vld [vmem:[%s1023 + $0xc1] sm:$0xff]
      %v1105 = vld [vmem:[%s1023 + $0xc9] sm:$0xff]
      %v1106 = vld [vmem:[%s1023 + $0xd9] sm:$0xff]
      %v1107 = vld [vmem:[%s1023 + $0xe1] sm:$0xff]
      %v1108 = vld [vmem:[%s1023 + $0xf1] sm:$0xff]
      %v1109 = vld [vmem:[%s1023 + $0xf9] sm:$0xff]
      %v1110 = vld [vmem:[%s1023 + $0x109] sm:$0xff]
      %v1111 = vld [vmem:[%s1023 + $0x111] sm:$0xff]
      %v1112 = vld [vmem:[%s1023 + $0x121] sm:$0xff]
      %v1113 = vld [vmem:[%s1023 + $0x129] sm:$0xff]
      %v1114 = vld [vmem:[%s1023 + $0x139] sm:$0xff]
      %v1115 = vld [vmem:[%s1023 + $0x141] sm:$0xff]
      %v1116 = vld [vmem:[%s1023 + $0x151] sm:$0xff]
      %v1117 = vld [vmem:[%s1023 + $0x159] sm:$0xff]
      %v1118 = vld [vmem:[%s1023 + $0x169] sm:$0xff]
      %v1119 = vld [vmem:[%s1023 + $0x171] sm:$0xff]
      %1120 = vst [vmem:[#allocation3 + $0x20] sm:$0xff] %v1088
      %1121 = vst [vmem:[#allocation3 + $0x68] sm:$0xff] %v1089
      %1122 = vst [vmem:[#allocation3 + $0xb0] sm:$0xff] %v1090
      %1123 = vst [vmem:[#allocation3 + $0xf8] sm:$0xff] %v1091
      %1124 = vst [vmem:[#allocation3 + $0x140] sm:$0xff] %v1092
      %1125 = vst [vmem:[#allocation3 + $0x188] sm:$0xff] %v1093
      %1126 = vst [vmem:[#allocation3 + $0x1d0] sm:$0xff] %v1094
      %1127 = vst [vmem:[#allocation3 + $0x218] sm:$0xff] %v1095
      %1128 = vst [vmem:[#allocation3 + $0x260] sm:$0xff] %v1096
      %1129 = vst [vmem:[#allocation3 + $0x2a8] sm:$0xff] %v1097
      %1130 = vst [vmem:[#allocation3 + $0x2f0] sm:$0xff] %v1098
      %1131 = vst [vmem:[#allocation3 + $0x338] sm:$0xff] %v1099
      %1132 = vst [vmem:[#allocation3 + $0x380] sm:$0xff] %v1100
      %1133 = vst [vmem:[#allocation3 + $0x3c8] sm:$0xff] %v1101
      %1134 = vst [vmem:[#allocation3 + $0x410] sm:$0xff] %v1102
      %1135 = vst [vmem:[#allocation3 + $0x458] sm:$0xff] %v1103
      %1136 = vst [vmem:[#allocation3 + $0x4a0] sm:$0xff] %v1104
      %1137 = vst [vmem:[#allocation3 + $0x4e8] sm:$0xff] %v1105
      %1138 = vst [vmem:[#allocation3 + $0x530] sm:$0xff] %v1106
      %1139 = vst [vmem:[#allocation3 + $0x578] sm:$0xff] %v1107
      %1140 = vst [vmem:[#allocation3 + $0x5c0] sm:$0xff] %v1108
      %1141 = vst [vmem:[#allocation3 + $0x608] sm:$0xff] %v1109
      %1142 = vst [vmem:[#allocation3 + $0x650] sm:$0xff] %v1110
      %1143 = vst [vmem:[#allocation3 + $0x698] sm:$0xff] %v1111
      %1144 = vst [vmem:[#allocation3 + $0x6e0] sm:$0xff] %v1112
      %1145 = vst [vmem:[#allocation3 + $0x728] sm:$0xff] %v1113
      %1146 = vst [vmem:[#allocation3 + $0x770] sm:$0xff] %v1114
      %1147 = vst [vmem:[#allocation3 + $0x7b8] sm:$0xff] %v1115
      %1148 = vst [vmem:[#allocation3 + $0x800] sm:$0xff] %v1116
      %1149 = vst [vmem:[#allocation3 + $0x848] sm:$0xff] %v1117
      %1150 = vst [vmem:[#allocation3 + $0x890] sm:$0xff] %v1118
      %1151 = vst [vmem:[#allocation3 + $0x8d8] sm:$0xff] %v1119
      %v1152 = vld [vmem:[%s1023 + $0x2] sm:$0xff]
      %v1153 = vld [vmem:[%s1023 + $0xa] sm:$0xff]
      %v1154 = vld [vmem:[%s1023 + $0x1a] sm:$0xff]
      %v1155 = vld [vmem:[%s1023 + $0x22] sm:$0xff]
      %v1156 = vld [vmem:[%s1023 + $0x32] sm:$0xff]
      %v1157 = vld [vmem:[%s1023 + $0x3a] sm:$0xff]
      %v1158 = vld [vmem:[%s1023 + $0x4a] sm:$0xff]
      %v1159 = vld [vmem:[%s1023 + $0x52] sm:$0xff]
      %v1160 = vld [vmem:[%s1023 + $0x62] sm:$0xff]
      %v1161 = vld [vmem:[%s1023 + $0x6a] sm:$0xff]
      %v1162 = vld [vmem:[%s1023 + $0x7a] sm:$0xff]
      %v1163 = vld [vmem:[%s1023 + $0x82] sm:$0xff]
      %v1164 = vld [vmem:[%s1023 + $0x92] sm:$0xff]
      %v1165 = vld [vmem:[%s1023 + $0x9a] sm:$0xff]
      %v1166 = vld [vmem:[%s1023 + $0xaa] sm:$0xff]
      %v1167 = vld [vmem:[%s1023 + $0xb2] sm:$0xff]
      %v1168 = vld [vmem:[%s1023 + $0xc2] sm:$0xff]
      %v1169 = vld [vmem:[%s1023 + $0xca] sm:$0xff]
      %v1170 = vld [vmem:[%s1023 + $0xda] sm:$0xff]
      %v1171 = vld [vmem:[%s1023 + $0xe2] sm:$0xff]
      %v1172 = vld [vmem:[%s1023 + $0xf2] sm:$0xff]
      %v1173 = vld [vmem:[%s1023 + $0xfa] sm:$0xff]
      %v1174 = vld [vmem:[%s1023 + $0x10a] sm:$0xff]
      %v1175 = vld [vmem:[%s1023 + $0x112] sm:$0xff]
      %v1176 = vld [vmem:[%s1023 + $0x122] sm:$0xff]
      %v1177 = vld [vmem:[%s1023 + $0x12a] sm:$0xff]
      %v1178 = vld [vmem:[%s1023 + $0x13a] sm:$0xff]
      %v1179 = vld [vmem:[%s1023 + $0x142] sm:$0xff]
      %v1180 = vld [vmem:[%s1023 + $0x152] sm:$0xff]
      %v1181 = vld [vmem:[%s1023 + $0x15a] sm:$0xff]
      %v1182 = vld [vmem:[%s1023 + $0x16a] sm:$0xff]
      %v1183 = vld [vmem:[%s1023 + $0x172] sm:$0xff]
      %1184 = vst [vmem:[#allocation3 + $0x28] sm:$0xff] %v1152
      %1185 = vst [vmem:[#allocation3 + $0x70] sm:$0xff] %v1153
      %1186 = vst [vmem:[#allocation3 + $0xb8] sm:$0xff] %v1154
      %1187 = vst [vmem:[#allocation3 + $0x100] sm:$0xff] %v1155
      %1188 = vst [vmem:[#allocation3 + $0x148] sm:$0xff] %v1156
      %1189 = vst [vmem:[#allocation3 + $0x190] sm:$0xff] %v1157
      %1190 = vst [vmem:[#allocation3 + $0x1d8] sm:$0xff] %v1158
      %1191 = vst [vmem:[#allocation3 + $0x220] sm:$0xff] %v1159
      %1192 = vst [vmem:[#allocation3 + $0x268] sm:$0xff] %v1160
      %1193 = vst [vmem:[#allocation3 + $0x2b0] sm:$0xff] %v1161
      %1194 = vst [vmem:[#allocation3 + $0x2f8] sm:$0xff] %v1162
      %1195 = vst [vmem:[#allocation3 + $0x340] sm:$0xff] %v1163
      %1196 = vst [vmem:[#allocation3 + $0x388] sm:$0xff] %v1164
      %1197 = vst [vmem:[#allocation3 + $0x3d0] sm:$0xff] %v1165
      %1198 = vst [vmem:[#allocation3 + $0x418] sm:$0xff] %v1166
      %1199 = vst [vmem:[#allocation3 + $0x460] sm:$0xff] %v1167
      %1200 = vst [vmem:[#allocation3 + $0x4a8] sm:$0xff] %v1168
      %1201 = vst [vmem:[#allocation3 + $0x4f0] sm:$0xff] %v1169
      %1202 = vst [vmem:[#allocation3 + $0x538] sm:$0xff] %v1170
      %1203 = vst [vmem:[#allocation3 + $0x580] sm:$0xff] %v1171
      %1204 = vst [vmem:[#allocation3 + $0x5c8] sm:$0xff] %v1172
      %1205 = vst [vmem:[#allocation3 + $0x610] sm:$0xff] %v1173
      %1206 = vst [vmem:[#allocation3 + $0x658] sm:$0xff] %v1174
      %1207 = vst [vmem:[#allocation3 + $0x6a0] sm:$0xff] %v1175
      %1208 = vst [vmem:[#allocation3 + $0x6e8] sm:$0xff] %v1176
      %1209 = vst [vmem:[#allocation3 + $0x730] sm:$0xff] %v1177
      %1210 = vst [vmem:[#allocation3 + $0x778] sm:$0xff] %v1178
      %1211 = vst [vmem:[#allocation3 + $0x7c0] sm:$0xff] %v1179
      %1212 = vst [vmem:[#allocation3 + $0x808] sm:$0xff] %v1180
      %1213 = vst [vmem:[#allocation3 + $0x850] sm:$0xff] %v1181
      %1214 = vst [vmem:[#allocation3 + $0x898] sm:$0xff] %v1182
      %1215 = vst [vmem:[#allocation3 + $0x8e0] sm:$0xff] %v1183
      %s1216 = sadd.s32 %s826, 2
      %s1217 = smul.u32 %s1216, 24
      %s1218 = scalar_lea.vmem [#allocation2], %s1217
      %v1219 = vld [vmem:[%s1218] sm:$0xff]
      %v1220 = vld [vmem:[%s1218 + $0x8] sm:$0xff]
      %v1221 = vld [vmem:[%s1218 + $0x18] sm:$0xff]
      %v1222 = vld [vmem:[%s1218 + $0x20] sm:$0xff]
      %v1223 = vld [vmem:[%s1218 + $0x30] sm:$0xff]
      %v1224 = vld [vmem:[%s1218 + $0x38] sm:$0xff]
      %v1225 = vld [vmem:[%s1218 + $0x48] sm:$0xff]
      %v1226 = vld [vmem:[%s1218 + $0x50] sm:$0xff]
      %v1227 = vld [vmem:[%s1218 + $0x60] sm:$0xff]
      %v1228 = vld [vmem:[%s1218 + $0x68] sm:$0xff]
      %v1229 = vld [vmem:[%s1218 + $0x78] sm:$0xff]
      %v1230 = vld [vmem:[%s1218 + $0x80] sm:$0xff]
      %v1231 = vld [vmem:[%s1218 + $0x90] sm:$0xff]
      %v1232 = vld [vmem:[%s1218 + $0x98] sm:$0xff]
      %v1233 = vld [vmem:[%s1218 + $0xa8] sm:$0xff]
      %v1234 = vld [vmem:[%s1218 + $0xb0] sm:$0xff]
      %v1235 = vld [vmem:[%s1218 + $0xc0] sm:$0xff]
      %v1236 = vld [vmem:[%s1218 + $0xc8] sm:$0xff]
      %v1237 = vld [vmem:[%s1218 + $0xd8] sm:$0xff]
      %v1238 = vld [vmem:[%s1218 + $0xe0] sm:$0xff]
      %v1239 = vld [vmem:[%s1218 + $0xf0] sm:$0xff]
      %v1240 = vld [vmem:[%s1218 + $0xf8] sm:$0xff]
      %v1241 = vld [vmem:[%s1218 + $0x108] sm:$0xff]
      %v1242 = vld [vmem:[%s1218 + $0x110] sm:$0xff]
      %v1243 = vld [vmem:[%s1218 + $0x120] sm:$0xff]
      %v1244 = vld [vmem:[%s1218 + $0x128] sm:$0xff]
      %v1245 = vld [vmem:[%s1218 + $0x138] sm:$0xff]
      %v1246 = vld [vmem:[%s1218 + $0x140] sm:$0xff]
      %v1247 = vld [vmem:[%s1218 + $0x150] sm:$0xff]
      %v1248 = vld [vmem:[%s1218 + $0x158] sm:$0xff]
      %v1249 = vld [vmem:[%s1218 + $0x168] sm:$0xff]
      %v1250 = vld [vmem:[%s1218 + $0x170] sm:$0xff]
      %1251 = vst [vmem:[#allocation3 + $0x30] sm:$0xff] %v1219
      %1252 = vst [vmem:[#allocation3 + $0x78] sm:$0xff] %v1220
      %1253 = vst [vmem:[#allocation3 + $0xc0] sm:$0xff] %v1221
      %1254 = vst [vmem:[#allocation3 + $0x108] sm:$0xff] %v1222
      %1255 = vst [vmem:[#allocation3 + $0x150] sm:$0xff] %v1223
      %1256 = vst [vmem:[#allocation3 + $0x198] sm:$0xff] %v1224
      %1257 = vst [vmem:[#allocation3 + $0x1e0] sm:$0xff] %v1225
      %1258 = vst [vmem:[#allocation3 + $0x228] sm:$0xff] %v1226
      %1259 = vst [vmem:[#allocation3 + $0x270] sm:$0xff] %v1227
      %1260 = vst [vmem:[#allocation3 + $0x2b8] sm:$0xff] %v1228
      %1261 = vst [vmem:[#allocation3 + $0x300] sm:$0xff] %v1229
      %1262 = vst [vmem:[#allocation3 + $0x348] sm:$0xff] %v1230
      %1263 = vst [vmem:[#allocation3 + $0x390] sm:$0xff] %v1231
      %1264 = vst [vmem:[#allocation3 + $0x3d8] sm:$0xff] %v1232
      %1265 = vst [vmem:[#allocation3 + $0x420] sm:$0xff] %v1233
      %1266 = vst [vmem:[#allocation3 + $0x468] sm:$0xff] %v1234
      %1267 = vst [vmem:[#allocation3 + $0x4b0] sm:$0xff] %v1235
      %1268 = vst [vmem:[#allocation3 + $0x4f8] sm:$0xff] %v1236
      %1269 = vst [vmem:[#allocation3 + $0x540] sm:$0xff] %v1237
      %1270 = vst [vmem:[#allocation3 + $0x588] sm:$0xff] %v1238
      %1271 = vst [vmem:[#allocation3 + $0x5d0] sm:$0xff] %v1239
      %1272 = vst [vmem:[#allocation3 + $0x618] sm:$0xff] %v1240
      %1273 = vst [vmem:[#allocation3 + $0x660] sm:$0xff] %v1241
      %1274 = vst [vmem:[#allocation3 + $0x6a8] sm:$0xff] %v1242
      %1275 = vst [vmem:[#allocation3 + $0x6f0] sm:$0xff] %v1243
      %1276 = vst [vmem:[#allocation3 + $0x738] sm:$0xff] %v1244
      %1277 = vst [vmem:[#allocation3 + $0x780] sm:$0xff] %v1245
      %1278 = vst [vmem:[#allocation3 + $0x7c8] sm:$0xff] %v1246
      %1279 = vst [vmem:[#allocation3 + $0x810] sm:$0xff] %v1247
      %1280 = vst [vmem:[#allocation3 + $0x858] sm:$0xff] %v1248
      %1281 = vst [vmem:[#allocation3 + $0x8a0] sm:$0xff] %v1249
      %1282 = vst [vmem:[#allocation3 + $0x8e8] sm:$0xff] %v1250
      %v1283 = vld [vmem:[%s1218 + $0x1] sm:$0xff]
      %v1284 = vld [vmem:[%s1218 + $0x9] sm:$0xff]
      %v1285 = vld [vmem:[%s1218 + $0x19] sm:$0xff]
      %v1286 = vld [vmem:[%s1218 + $0x21] sm:$0xff]
      %v1287 = vld [vmem:[%s1218 + $0x31] sm:$0xff]
      %v1288 = vld [vmem:[%s1218 + $0x39] sm:$0xff]
      %v1289 = vld [vmem:[%s1218 + $0x49] sm:$0xff]
      %v1290 = vld [vmem:[%s1218 + $0x51] sm:$0xff]
      %v1291 = vld [vmem:[%s1218 + $0x61] sm:$0xff]
      %v1292 = vld [vmem:[%s1218 + $0x69] sm:$0xff]
      %v1293 = vld [vmem:[%s1218 + $0x79] sm:$0xff]
      %v1294 = vld [vmem:[%s1218 + $0x81] sm:$0xff]
      %v1295 = vld [vmem:[%s1218 + $0x91] sm:$0xff]
      %v1296 = vld [vmem:[%s1218 + $0x99] sm:$0xff]
      %v1297 = vld [vmem:[%s1218 + $0xa9] sm:$0xff]
      %v1298 = vld [vmem:[%s1218 + $0xb1] sm:$0xff]
      %v1299 = vld [vmem:[%s1218 + $0xc1] sm:$0xff]
      %v1300 = vld [vmem:[%s1218 + $0xc9] sm:$0xff]
      %v1301 = vld [vmem:[%s1218 + $0xd9] sm:$0xff]
      %v1302 = vld [vmem:[%s1218 + $0xe1] sm:$0xff]
      %v1303 = vld [vmem:[%s1218 + $0xf1] sm:$0xff]
      %v1304 = vld [vmem:[%s1218 + $0xf9] sm:$0xff]
      %v1305 = vld [vmem:[%s1218 + $0x109] sm:$0xff]
      %v1306 = vld [vmem:[%s1218 + $0x111] sm:$0xff]
      %v1307 = vld [vmem:[%s1218 + $0x121] sm:$0xff]
      %v1308 = vld [vmem:[%s1218 + $0x129] sm:$0xff]
      %v1309 = vld [vmem:[%s1218 + $0x139] sm:$0xff]
      %v1310 = vld [vmem:[%s1218 + $0x141] sm:$0xff]
      %v1311 = vld [vmem:[%s1218 + $0x151] sm:$0xff]
      %v1312 = vld [vmem:[%s1218 + $0x159] sm:$0xff]
      %v1313 = vld [vmem:[%s1218 + $0x169] sm:$0xff]
      %v1314 = vld [vmem:[%s1218 + $0x171] sm:$0xff]
      %1315 = vst [vmem:[#allocation3 + $0x38] sm:$0xff] %v1283
      %1316 = vst [vmem:[#allocation3 + $0x80] sm:$0xff] %v1284
      %1317 = vst [vmem:[#allocation3 + $0xc8] sm:$0xff] %v1285
      %1318 = vst [vmem:[#allocation3 + $0x110] sm:$0xff] %v1286
      %1319 = vst [vmem:[#allocation3 + $0x158] sm:$0xff] %v1287
      %1320 = vst [vmem:[#allocation3 + $0x1a0] sm:$0xff] %v1288
      %1321 = vst [vmem:[#allocation3 + $0x1e8] sm:$0xff] %v1289
      %1322 = vst [vmem:[#allocation3 + $0x230] sm:$0xff] %v1290
      %1323 = vst [vmem:[#allocation3 + $0x278] sm:$0xff] %v1291
      %1324 = vst [vmem:[#allocation3 + $0x2c0] sm:$0xff] %v1292
      %1325 = vst [vmem:[#allocation3 + $0x308] sm:$0xff] %v1293
      %1326 = vst [vmem:[#allocation3 + $0x350] sm:$0xff] %v1294
      %1327 = vst [vmem:[#allocation3 + $0x398] sm:$0xff] %v1295
      %1328 = vst [vmem:[#allocation3 + $0x3e0] sm:$0xff] %v1296
      %1329 = vst [vmem:[#allocation3 + $0x428] sm:$0xff] %v1297
      %1330 = vst [vmem:[#allocation3 + $0x470] sm:$0xff] %v1298
      %1331 = vst [vmem:[#allocation3 + $0x4b8] sm:$0xff] %v1299
      %1332 = vst [vmem:[#allocation3 + $0x500] sm:$0xff] %v1300
      %1333 = vst [vmem:[#allocation3 + $0x548] sm:$0xff] %v1301
      %1334 = vst [vmem:[#allocation3 + $0x590] sm:$0xff] %v1302
      %1335 = vst [vmem:[#allocation3 + $0x5d8] sm:$0xff] %v1303
      %1336 = vst [vmem:[#allocation3 + $0x620] sm:$0xff] %v1304
      %1337 = vst [vmem:[#allocation3 + $0x668] sm:$0xff] %v1305
      %1338 = vst [vmem:[#allocation3 + $0x6b0] sm:$0xff] %v1306
      %1339 = vst [vmem:[#allocation3 + $0x6f8] sm:$0xff] %v1307
      %1340 = vst [vmem:[#allocation3 + $0x740] sm:$0xff] %v1308
      %1341 = vst [vmem:[#allocation3 + $0x788] sm:$0xff] %v1309
      %1342 = vst [vmem:[#allocation3 + $0x7d0] sm:$0xff] %v1310
      %1343 = vst [vmem:[#allocation3 + $0x818] sm:$0xff] %v1311
      %1344 = vst [vmem:[#allocation3 + $0x860] sm:$0xff] %v1312
      %1345 = vst [vmem:[#allocation3 + $0x8a8] sm:$0xff] %v1313
      %1346 = vst [vmem:[#allocation3 + $0x8f0] sm:$0xff] %v1314
      %v1347 = vld [vmem:[%s1218 + $0x2] sm:$0xff]
      %v1348 = vld [vmem:[%s1218 + $0xa] sm:$0xff]
      %v1349 = vld [vmem:[%s1218 + $0x1a] sm:$0xff]
      %v1350 = vld [vmem:[%s1218 + $0x22] sm:$0xff]
      %v1351 = vld [vmem:[%s1218 + $0x32] sm:$0xff]
      %v1352 = vld [vmem:[%s1218 + $0x3a] sm:$0xff]
      %v1353 = vld [vmem:[%s1218 + $0x4a] sm:$0xff]
      %v1354 = vld [vmem:[%s1218 + $0x52] sm:$0xff]
      %v1355 = vld [vmem:[%s1218 + $0x62] sm:$0xff]
      %v1356 = vld [vmem:[%s1218 + $0x6a] sm:$0xff]
      %v1357 = vld [vmem:[%s1218 + $0x7a] sm:$0xff]
      %v1358 = vld [vmem:[%s1218 + $0x82] sm:$0xff]
      %v1359 = vld [vmem:[%s1218 + $0x92] sm:$0xff]
      %v1360 = vld [vmem:[%s1218 + $0x9a] sm:$0xff]
      %v1361 = vld [vmem:[%s1218 + $0xaa] sm:$0xff]
      %v1362 = vld [vmem:[%s1218 + $0xb2] sm:$0xff]
      %v1363 = vld [vmem:[%s1218 + $0xc2] sm:$0xff]
      %v1364 = vld [vmem:[%s1218 + $0xca] sm:$0xff]
      %v1365 = vld [vmem:[%s1218 + $0xda] sm:$0xff]
      %v1366 = vld [vmem:[%s1218 + $0xe2] sm:$0xff]
      %v1367 = vld [vmem:[%s1218 + $0xf2] sm:$0xff]
      %v1368 = vld [vmem:[%s1218 + $0xfa] sm:$0xff]
      %v1369 = vld [vmem:[%s1218 + $0x10a] sm:$0xff]
      %v1370 = vld [vmem:[%s1218 + $0x112] sm:$0xff]
      %v1371 = vld [vmem:[%s1218 + $0x122] sm:$0xff]
      %v1372 = vld [vmem:[%s1218 + $0x12a] sm:$0xff]
      %v1373 = vld [vmem:[%s1218 + $0x13a] sm:$0xff]
      %v1374 = vld [vmem:[%s1218 + $0x142] sm:$0xff]
      %v1375 = vld [vmem:[%s1218 + $0x152] sm:$0xff]
      %v1376 = vld [vmem:[%s1218 + $0x15a] sm:$0xff]
      %v1377 = vld [vmem:[%s1218 + $0x16a] sm:$0xff]
      %v1378 = vld [vmem:[%s1218 + $0x172] sm:$0xff]
      %1379 = vst [vmem:[#allocation3 + $0x40] sm:$0xff] %v1347
      %1380 = vst [vmem:[#allocation3 + $0x88] sm:$0xff] %v1348
      %1381 = vst [vmem:[#allocation3 + $0xd0] sm:$0xff] %v1349
      %1382 = vst [vmem:[#allocation3 + $0x118] sm:$0xff] %v1350
      %1383 = vst [vmem:[#allocation3 + $0x160] sm:$0xff] %v1351
      %1384 = vst [vmem:[#allocation3 + $0x1a8] sm:$0xff] %v1352
      %1385 = vst [vmem:[#allocation3 + $0x1f0] sm:$0xff] %v1353
      %1386 = vst [vmem:[#allocation3 + $0x238] sm:$0xff] %v1354
      %1387 = vst [vmem:[#allocation3 + $0x280] sm:$0xff] %v1355
      %1388 = vst [vmem:[#allocation3 + $0x2c8] sm:$0xff] %v1356
      %1389 = vst [vmem:[#allocation3 + $0x310] sm:$0xff] %v1357
      %1390 = vst [vmem:[#allocation3 + $0x358] sm:$0xff] %v1358
      %1391 = vst [vmem:[#allocation3 + $0x3a0] sm:$0xff] %v1359
      %1392 = vst [vmem:[#allocation3 + $0x3e8] sm:$0xff] %v1360
      %1393 = vst [vmem:[#allocation3 + $0x430] sm:$0xff] %v1361
      %1394 = vst [vmem:[#allocation3 + $0x478] sm:$0xff] %v1362
      %1395 = vst [vmem:[#allocation3 + $0x4c0] sm:$0xff] %v1363
      %1396 = vst [vmem:[#allocation3 + $0x508] sm:$0xff] %v1364
      %1397 = vst [vmem:[#allocation3 + $0x550] sm:$0xff] %v1365
      %1398 = vst [vmem:[#allocation3 + $0x598] sm:$0xff] %v1366
      %1399 = vst [vmem:[#allocation3 + $0x5e0] sm:$0xff] %v1367
      %1400 = vst [vmem:[#allocation3 + $0x628] sm:$0xff] %v1368
      %1401 = vst [vmem:[#allocation3 + $0x670] sm:$0xff] %v1369
      %1402 = vst [vmem:[#allocation3 + $0x6b8] sm:$0xff] %v1370
      %1403 = vst [vmem:[#allocation3 + $0x700] sm:$0xff] %v1371
      %1404 = vst [vmem:[#allocation3 + $0x748] sm:$0xff] %v1372
      %1405 = vst [vmem:[#allocation3 + $0x790] sm:$0xff] %v1373
      %1406 = vst [vmem:[#allocation3 + $0x7d8] sm:$0xff] %v1374
      %1407 = vst [vmem:[#allocation3 + $0x820] sm:$0xff] %v1375
      %1408 = vst [vmem:[#allocation3 + $0x868] sm:$0xff] %v1376
      %1409 = vst [vmem:[#allocation3 + $0x8b0] sm:$0xff] %v1377
      %1410 = vst [vmem:[#allocation3 + $0x8f8] sm:$0xff] %v1378
      %v1411 = vld [vmem:[#allocation3] sm:$0xff]
      %v1412 = vld [vmem:[#allocation3 + $0x8] sm:$0xff]
      %v1413 = vld [vmem:[#allocation3 + $0x10] sm:$0xff]
      %v1414 = vld [vmem:[#allocation3 + $0x18] sm:$0xff]
      %v1415 = vld [vmem:[#allocation3 + $0x20] sm:$0xff]
      %v1416 = vld [vmem:[#allocation3 + $0x28] sm:$0xff]
      %v1417 = vld [vmem:[#allocation3 + $0x30] sm:$0xff]
      %v1418 = vld [vmem:[#allocation3 + $0x38] sm:$0xff]
      %v1419 = vld [vmem:[#allocation3 + $0x40] sm:$0xff]
      %v1420 = vld [vmem:[#allocation3 + $0x48] sm:$0xff]
      %v1421 = vld [vmem:[#allocation3 + $0x50] sm:$0xff]
      %v1422 = vld [vmem:[#allocation3 + $0x58] sm:$0xff]
      %v1423 = vld [vmem:[#allocation3 + $0x60] sm:$0xff]
      %v1424 = vld [vmem:[#allocation3 + $0x68] sm:$0xff]
      %v1425 = vld [vmem:[#allocation3 + $0x70] sm:$0xff]
      %v1426 = vld [vmem:[#allocation3 + $0x78] sm:$0xff]
      %v1427 = vld [vmem:[#allocation3 + $0x80] sm:$0xff]
      %v1428 = vld [vmem:[#allocation3 + $0x88] sm:$0xff]
      %v1429 = vld [vmem:[#allocation3 + $0x90] sm:$0xff]
      %v1430 = vld [vmem:[#allocation3 + $0x98] sm:$0xff]
      %v1431 = vld [vmem:[#allocation3 + $0xa0] sm:$0xff]
      %v1432 = vld [vmem:[#allocation3 + $0xa8] sm:$0xff]
      %v1433 = vld [vmem:[#allocation3 + $0xb0] sm:$0xff]
      %v1434 = vld [vmem:[#allocation3 + $0xb8] sm:$0xff]
      %v1435 = vld [vmem:[#allocation3 + $0xc0] sm:$0xff]
      %v1436 = vld [vmem:[#allocation3 + $0xc8] sm:$0xff]
      %v1437 = vld [vmem:[#allocation3 + $0xd0] sm:$0xff]
      %v1438 = vld [vmem:[#allocation3 + $0xd8] sm:$0xff]
      %v1439 = vld [vmem:[#allocation3 + $0xe0] sm:$0xff]
      %v1440 = vld [vmem:[#allocation3 + $0xe8] sm:$0xff]
      %v1441 = vld [vmem:[#allocation3 + $0xf0] sm:$0xff]
      %v1442 = vld [vmem:[#allocation3 + $0xf8] sm:$0xff]
      %v1443 = vld [vmem:[#allocation3 + $0x100] sm:$0xff]
      %v1444 = vld [vmem:[#allocation3 + $0x108] sm:$0xff]
      %v1445 = vld [vmem:[#allocation3 + $0x110] sm:$0xff]
      %v1446 = vld [vmem:[#allocation3 + $0x118] sm:$0xff]
      %v1447 = vld [vmem:[#allocation3 + $0x120] sm:$0xff]
      %v1448 = vld [vmem:[#allocation3 + $0x128] sm:$0xff]
      %v1449 = vld [vmem:[#allocation3 + $0x130] sm:$0xff]
      %v1450 = vld [vmem:[#allocation3 + $0x138] sm:$0xff]
      %v1451 = vld [vmem:[#allocation3 + $0x140] sm:$0xff]
      %v1452 = vld [vmem:[#allocation3 + $0x148] sm:$0xff]
      %v1453 = vld [vmem:[#allocation3 + $0x150] sm:$0xff]
      %v1454 = vld [vmem:[#allocation3 + $0x158] sm:$0xff]
      %v1455 = vld [vmem:[#allocation3 + $0x160] sm:$0xff]
      %v1456 = vld [vmem:[#allocation3 + $0x168] sm:$0xff]
      %v1457 = vld [vmem:[#allocation3 + $0x170] sm:$0xff]
      %v1458 = vld [vmem:[#allocation3 + $0x178] sm:$0xff]
      %v1459 = vld [vmem:[#allocation3 + $0x180] sm:$0xff]
      %v1460 = vld [vmem:[#allocation3 + $0x188] sm:$0xff]
      %v1461 = vld [vmem:[#allocation3 + $0x190] sm:$0xff]
      %v1462 = vld [vmem:[#allocation3 + $0x198] sm:$0xff]
      %v1463 = vld [vmem:[#allocation3 + $0x1a0] sm:$0xff]
      %v1464 = vld [vmem:[#allocation3 + $0x1a8] sm:$0xff]
      %v1465 = vld [vmem:[#allocation3 + $0x1b0] sm:$0xff]
      %v1466 = vld [vmem:[#allocation3 + $0x1b8] sm:$0xff]
      %v1467 = vld [vmem:[#allocation3 + $0x1c0] sm:$0xff]
      %v1468 = vld [vmem:[#allocation3 + $0x1c8] sm:$0xff]
      %v1469 = vld [vmem:[#allocation3 + $0x1d0] sm:$0xff]
      %v1470 = vld [vmem:[#allocation3 + $0x1d8] sm:$0xff]
      %v1471 = vld [vmem:[#allocation3 + $0x1e0] sm:$0xff]
      %v1472 = vld [vmem:[#allocation3 + $0x1e8] sm:$0xff]
      %v1473 = vld [vmem:[#allocation3 + $0x1f0] sm:$0xff]
      %v1474 = vld [vmem:[#allocation3 + $0x1f8] sm:$0xff]
      %v1475 = vld [vmem:[#allocation3 + $0x200] sm:$0xff]
      %v1476 = vld [vmem:[#allocation3 + $0x208] sm:$0xff]
      %v1477 = vld [vmem:[#allocation3 + $0x210] sm:$0xff]
      %v1478 = vld [vmem:[#allocation3 + $0x218] sm:$0xff]
      %v1479 = vld [vmem:[#allocation3 + $0x220] sm:$0xff]
      %v1480 = vld [vmem:[#allocation3 + $0x228] sm:$0xff]
      %v1481 = vld [vmem:[#allocation3 + $0x230] sm:$0xff]
      %v1482 = vld [vmem:[#allocation3 + $0x238] sm:$0xff]
      %v1483 = vld [vmem:[#allocation3 + $0x240] sm:$0xff]
      %v1484 = vld [vmem:[#allocation3 + $0x248] sm:$0xff]
      %v1485 = vld [vmem:[#allocation3 + $0x250] sm:$0xff]
      %v1486 = vld [vmem:[#allocation3 + $0x258] sm:$0xff]
      %v1487 = vld [vmem:[#allocation3 + $0x260] sm:$0xff]
      %v1488 = vld [vmem:[#allocation3 + $0x268] sm:$0xff]
      %v1489 = vld [vmem:[#allocation3 + $0x270] sm:$0xff]
      %v1490 = vld [vmem:[#allocation3 + $0x278] sm:$0xff]
      %v1491 = vld [vmem:[#allocation3 + $0x280] sm:$0xff]
      %v1492 = vld [vmem:[#allocation3 + $0x288] sm:$0xff]
      %v1493 = vld [vmem:[#allocation3 + $0x290] sm:$0xff]
      %v1494 = vld [vmem:[#allocation3 + $0x298] sm:$0xff]
      %v1495 = vld [vmem:[#allocation3 + $0x2a0] sm:$0xff]
      %v1496 = vld [vmem:[#allocation3 + $0x2a8] sm:$0xff]
      %v1497 = vld [vmem:[#allocation3 + $0x2b0] sm:$0xff]
      %v1498 = vld [vmem:[#allocation3 + $0x2b8] sm:$0xff]
      %v1499 = vld [vmem:[#allocation3 + $0x2c0] sm:$0xff]
      %v1500 = vld [vmem:[#allocation3 + $0x2c8] sm:$0xff]
      %v1501 = vld [vmem:[#allocation3 + $0x2d0] sm:$0xff]
      %v1502 = vld [vmem:[#allocation3 + $0x2d8] sm:$0xff]
      %v1503 = vld [vmem:[#allocation3 + $0x2e0] sm:$0xff]
      %v1504 = vld [vmem:[#allocation3 + $0x2e8] sm:$0xff]
      %v1505 = vld [vmem:[#allocation3 + $0x2f0] sm:$0xff]
      %v1506 = vld [vmem:[#allocation3 + $0x2f8] sm:$0xff]
      %v1507 = vld [vmem:[#allocation3 + $0x300] sm:$0xff]
      %v1508 = vld [vmem:[#allocation3 + $0x308] sm:$0xff]
      %v1509 = vld [vmem:[#allocation3 + $0x310] sm:$0xff]
      %v1510 = vld [vmem:[#allocation3 + $0x318] sm:$0xff]
      %v1511 = vld [vmem:[#allocation3 + $0x320] sm:$0xff]
      %v1512 = vld [vmem:[#allocation3 + $0x328] sm:$0xff]
      %v1513 = vld [vmem:[#allocation3 + $0x330] sm:$0xff]
      %v1514 = vld [vmem:[#allocation3 + $0x338] sm:$0xff]
      %v1515 = vld [vmem:[#allocation3 + $0x340] sm:$0xff]
      %v1516 = vld [vmem:[#allocation3 + $0x348] sm:$0xff]
      %v1517 = vld [vmem:[#allocation3 + $0x350] sm:$0xff]
      %v1518 = vld [vmem:[#allocation3 + $0x358] sm:$0xff]
      %v1519 = vld [vmem:[#allocation3 + $0x360] sm:$0xff]
      %v1520 = vld [vmem:[#allocation3 + $0x368] sm:$0xff]
      %v1521 = vld [vmem:[#allocation3 + $0x370] sm:$0xff]
      %v1522 = vld [vmem:[#allocation3 + $0x378] sm:$0xff]
      %v1523 = vld [vmem:[#allocation3 + $0x380] sm:$0xff]
      %v1524 = vld [vmem:[#allocation3 + $0x388] sm:$0xff]
      %v1525 = vld [vmem:[#allocation3 + $0x390] sm:$0xff]
      %v1526 = vld [vmem:[#allocation3 + $0x398] sm:$0xff]
      %v1527 = vld [vmem:[#allocation3 + $0x3a0] sm:$0xff]
      %v1528 = vld [vmem:[#allocation3 + $0x3a8] sm:$0xff]
      %v1529 = vld [vmem:[#allocation3 + $0x3b0] sm:$0xff]
      %v1530 = vld [vmem:[#allocation3 + $0x3b8] sm:$0xff]
      %v1531 = vld [vmem:[#allocation3 + $0x3c0] sm:$0xff]
      %v1532 = vld [vmem:[#allocation3 + $0x3c8] sm:$0xff]
      %v1533 = vld [vmem:[#allocation3 + $0x3d0] sm:$0xff]
      %v1534 = vld [vmem:[#allocation3 + $0x3d8] sm:$0xff]
      %v1535 = vld [vmem:[#allocation3 + $0x3e0] sm:$0xff]
      %v1536 = vld [vmem:[#allocation3 + $0x3e8] sm:$0xff]
      %v1537 = vld [vmem:[#allocation3 + $0x3f0] sm:$0xff]
      %v1538 = vld [vmem:[#allocation3 + $0x3f8] sm:$0xff]
      %v1539 = vld [vmem:[#allocation3 + $0x400] sm:$0xff]
      %v1540 = vld [vmem:[#allocation3 + $0x408] sm:$0xff]
      %v1541 = vld [vmem:[#allocation3 + $0x410] sm:$0xff]
      %v1542 = vld [vmem:[#allocation3 + $0x418] sm:$0xff]
      %v1543 = vld [vmem:[#allocation3 + $0x420] sm:$0xff]
      %v1544 = vld [vmem:[#allocation3 + $0x428] sm:$0xff]
      %v1545 = vld [vmem:[#allocation3 + $0x430] sm:$0xff]
      %v1546 = vld [vmem:[#allocation3 + $0x438] sm:$0xff]
      %v1547 = vld [vmem:[#allocation3 + $0x440] sm:$0xff]
      %v1548 = vld [vmem:[#allocation3 + $0x448] sm:$0xff]
      %v1549 = vld [vmem:[#allocation3 + $0x450] sm:$0xff]
      %v1550 = vld [vmem:[#allocation3 + $0x458] sm:$0xff]
      %v1551 = vld [vmem:[#allocation3 + $0x460] sm:$0xff]
      %v1552 = vld [vmem:[#allocation3 + $0x468] sm:$0xff]
      %v1553 = vld [vmem:[#allocation3 + $0x470] sm:$0xff]
      %v1554 = vld [vmem:[#allocation3 + $0x478] sm:$0xff]
      %v1555 = vld [vmem:[#allocation3 + $0x480] sm:$0xff]
      %v1556 = vld [vmem:[#allocation3 + $0x488] sm:$0xff]
      %v1557 = vld [vmem:[#allocation3 + $0x490] sm:$0xff]
      %v1558 = vld [vmem:[#allocation3 + $0x498] sm:$0xff]
      %v1559 = vld [vmem:[#allocation3 + $0x4a0] sm:$0xff]
      %v1560 = vld [vmem:[#allocation3 + $0x4a8] sm:$0xff]
      %v1561 = vld [vmem:[#allocation3 + $0x4b0] sm:$0xff]
      %v1562 = vld [vmem:[#allocation3 + $0x4b8] sm:$0xff]
      %v1563 = vld [vmem:[#allocation3 + $0x4c0] sm:$0xff]
      %v1564 = vld [vmem:[#allocation3 + $0x4c8] sm:$0xff]
      %v1565 = vld [vmem:[#allocation3 + $0x4d0] sm:$0xff]
      %v1566 = vld [vmem:[#allocation3 + $0x4d8] sm:$0xff]
      %v1567 = vld [vmem:[#allocation3 + $0x4e0] sm:$0xff]
      %v1568 = vld [vmem:[#allocation3 + $0x4e8] sm:$0xff]
      %v1569 = vld [vmem:[#allocation3 + $0x4f0] sm:$0xff]
      %v1570 = vld [vmem:[#allocation3 + $0x4f8] sm:$0xff]
      %v1571 = vld [vmem:[#allocation3 + $0x500] sm:$0xff]
      %v1572 = vld [vmem:[#allocation3 + $0x508] sm:$0xff]
      %v1573 = vld [vmem:[#allocation3 + $0x510] sm:$0xff]
      %v1574 = vld [vmem:[#allocation3 + $0x518] sm:$0xff]
      %v1575 = vld [vmem:[#allocation3 + $0x520] sm:$0xff]
      %v1576 = vld [vmem:[#allocation3 + $0x528] sm:$0xff]
      %v1577 = vld [vmem:[#allocation3 + $0x530] sm:$0xff]
      %v1578 = vld [vmem:[#allocation3 + $0x538] sm:$0xff]
      %v1579 = vld [vmem:[#allocation3 + $0x540] sm:$0xff]
      %v1580 = vld [vmem:[#allocation3 + $0x548] sm:$0xff]
      %v1581 = vld [vmem:[#allocation3 + $0x550] sm:$0xff]
      %v1582 = vld [vmem:[#allocation3 + $0x558] sm:$0xff]
      %v1583 = vld [vmem:[#allocation3 + $0x560] sm:$0xff]
      %v1584 = vld [vmem:[#allocation3 + $0x568] sm:$0xff]
      %v1585 = vld [vmem:[#allocation3 + $0x570] sm:$0xff]
      %v1586 = vld [vmem:[#allocation3 + $0x578] sm:$0xff]
      %v1587 = vld [vmem:[#allocation3 + $0x580] sm:$0xff]
      %v1588 = vld [vmem:[#allocation3 + $0x588] sm:$0xff]
      %v1589 = vld [vmem:[#allocation3 + $0x590] sm:$0xff]
      %v1590 = vld [vmem:[#allocation3 + $0x598] sm:$0xff]
      %v1591 = vld [vmem:[#allocation3 + $0x5a0] sm:$0xff]
      %v1592 = vld [vmem:[#allocation3 + $0x5a8] sm:$0xff]
      %v1593 = vld [vmem:[#allocation3 + $0x5b0] sm:$0xff]
      %v1594 = vld [vmem:[#allocation3 + $0x5b8] sm:$0xff]
      %v1595 = vld [vmem:[#allocation3 + $0x5c0] sm:$0xff]
      %v1596 = vld [vmem:[#allocation3 + $0x5c8] sm:$0xff]
      %v1597 = vld [vmem:[#allocation3 + $0x5d0] sm:$0xff]
      %v1598 = vld [vmem:[#allocation3 + $0x5d8] sm:$0xff]
      %v1599 = vld [vmem:[#allocation3 + $0x5e0] sm:$0xff]
      %v1600 = vld [vmem:[#allocation3 + $0x5e8] sm:$0xff]
      %v1601 = vld [vmem:[#allocation3 + $0x5f0] sm:$0xff]
      %v1602 = vld [vmem:[#allocation3 + $0x5f8] sm:$0xff]
      %v1603 = vld [vmem:[#allocation3 + $0x600] sm:$0xff]
      %v1604 = vld [vmem:[#allocation3 + $0x608] sm:$0xff]
      %v1605 = vld [vmem:[#allocation3 + $0x610] sm:$0xff]
      %v1606 = vld [vmem:[#allocation3 + $0x618] sm:$0xff]
      %v1607 = vld [vmem:[#allocation3 + $0x620] sm:$0xff]
      %v1608 = vld [vmem:[#allocation3 + $0x628] sm:$0xff]
      %v1609 = vld [vmem:[#allocation3 + $0x630] sm:$0xff]
      %v1610 = vld [vmem:[#allocation3 + $0x638] sm:$0xff]
      %v1611 = vld [vmem:[#allocation3 + $0x640] sm:$0xff]
      %v1612 = vld [vmem:[#allocation3 + $0x648] sm:$0xff]
      %v1613 = vld [vmem:[#allocation3 + $0x650] sm:$0xff]
      %v1614 = vld [vmem:[#allocation3 + $0x658] sm:$0xff]
      %v1615 = vld [vmem:[#allocation3 + $0x660] sm:$0xff]
      %v1616 = vld [vmem:[#allocation3 + $0x668] sm:$0xff]
      %v1617 = vld [vmem:[#allocation3 + $0x670] sm:$0xff]
      %v1618 = vld [vmem:[#allocation3 + $0x678] sm:$0xff]
      %v1619 = vld [vmem:[#allocation3 + $0x680] sm:$0xff]
      %v1620 = vld [vmem:[#allocation3 + $0x688] sm:$0xff]
      %v1621 = vld [vmem:[#allocation3 + $0x690] sm:$0xff]
      %v1622 = vld [vmem:[#allocation3 + $0x698] sm:$0xff]
      %v1623 = vld [vmem:[#allocation3 + $0x6a0] sm:$0xff]
      %v1624 = vld [vmem:[#allocation3 + $0x6a8] sm:$0xff]
      %v1625 = vld [vmem:[#allocation3 + $0x6b0] sm:$0xff]
      %v1626 = vld [vmem:[#allocation3 + $0x6b8] sm:$0xff]
      %v1627 = vld [vmem:[#allocation3 + $0x6c0] sm:$0xff]
      %v1628 = vld [vmem:[#allocation3 + $0x6c8] sm:$0xff]
      %v1629 = vld [vmem:[#allocation3 + $0x6d0] sm:$0xff]
      %v1630 = vld [vmem:[#allocation3 + $0x6d8] sm:$0xff]
      %v1631 = vld [vmem:[#allocation3 + $0x6e0] sm:$0xff]
      %v1632 = vld [vmem:[#allocation3 + $0x6e8] sm:$0xff]
      %v1633 = vld [vmem:[#allocation3 + $0x6f0] sm:$0xff]
      %v1634 = vld [vmem:[#allocation3 + $0x6f8] sm:$0xff]
      %v1635 = vld [vmem:[#allocation3 + $0x700] sm:$0xff]
      %v1636 = vld [vmem:[#allocation3 + $0x708] sm:$0xff]
      %v1637 = vld [vmem:[#allocation3 + $0x710] sm:$0xff]
      %v1638 = vld [vmem:[#allocation3 + $0x718] sm:$0xff]
      %v1639 = vld [vmem:[#allocation3 + $0x720] sm:$0xff]
      %v1640 = vld [vmem:[#allocation3 + $0x728] sm:$0xff]
      %v1641 = vld [vmem:[#allocation3 + $0x730] sm:$0xff]
      %v1642 = vld [vmem:[#allocation3 + $0x738] sm:$0xff]
      %v1643 = vld [vmem:[#allocation3 + $0x740] sm:$0xff]
      %v1644 = vld [vmem:[#allocation3 + $0x748] sm:$0xff]
      %v1645 = vld [vmem:[#allocation3 + $0x750] sm:$0xff]
      %v1646 = vld [vmem:[#allocation3 + $0x758] sm:$0xff]
      %v1647 = vld [vmem:[#allocation3 + $0x760] sm:$0xff]
      %v1648 = vld [vmem:[#allocation3 + $0x768] sm:$0xff]
      %v1649 = vld [vmem:[#allocation3 + $0x770] sm:$0xff]
      %v1650 = vld [vmem:[#allocation3 + $0x778] sm:$0xff]
      %v1651 = vld [vmem:[#allocation3 + $0x780] sm:$0xff]
      %v1652 = vld [vmem:[#allocation3 + $0x788] sm:$0xff]
      %v1653 = vld [vmem:[#allocation3 + $0x790] sm:$0xff]
      %v1654 = vld [vmem:[#allocation3 + $0x798] sm:$0xff]
      %v1655 = vld [vmem:[#allocation3 + $0x7a0] sm:$0xff]
      %v1656 = vld [vmem:[#allocation3 + $0x7a8] sm:$0xff]
      %v1657 = vld [vmem:[#allocation3 + $0x7b0] sm:$0xff]
      %v1658 = vld [vmem:[#allocation3 + $0x7b8] sm:$0xff]
      %v1659 = vld [vmem:[#allocation3 + $0x7c0] sm:$0xff]
      %v1660 = vld [vmem:[#allocation3 + $0x7c8] sm:$0xff]
      %v1661 = vld [vmem:[#allocation3 + $0x7d0] sm:$0xff]
      %v1662 = vld [vmem:[#allocation3 + $0x7d8] sm:$0xff]
      %v1663 = vld [vmem:[#allocation3 + $0x7e0] sm:$0xff]
      %v1664 = vld [vmem:[#allocation3 + $0x7e8] sm:$0xff]
      %v1665 = vld [vmem:[#allocation3 + $0x7f0] sm:$0xff]
      %v1666 = vld [vmem:[#allocation3 + $0x7f8] sm:$0xff]
      %v1667 = vld [vmem:[#allocation3 + $0x800] sm:$0xff]
      %v1668 = vld [vmem:[#allocation3 + $0x808] sm:$0xff]
      %v1669 = vld [vmem:[#allocation3 + $0x810] sm:$0xff]
      %v1670 = vld [vmem:[#allocation3 + $0x818] sm:$0xff]
      %v1671 = vld [vmem:[#allocation3 + $0x820] sm:$0xff]
      %v1672 = vld [vmem:[#allocation3 + $0x828] sm:$0xff]
      %v1673 = vld [vmem:[#allocation3 + $0x830] sm:$0xff]
      %v1674 = vld [vmem:[#allocation3 + $0x838] sm:$0xff]
      %v1675 = vld [vmem:[#allocation3 + $0x840] sm:$0xff]
      %v1676 = vld [vmem:[#allocation3 + $0x848] sm:$0xff]
      %v1677 = vld [vmem:[#allocation3 + $0x850] sm:$0xff]
      %v1678 = vld [vmem:[#allocation3 + $0x858] sm:$0xff]
      %v1679 = vld [vmem:[#allocation3 + $0x860] sm:$0xff]
      %v1680 = vld [vmem:[#allocation3 + $0x868] sm:$0xff]
      %v1681 = vld [vmem:[#allocation3 + $0x870] sm:$0xff]
      %v1682 = vld [vmem:[#allocation3 + $0x878] sm:$0xff]
      %v1683 = vld [vmem:[#allocation3 + $0x880] sm:$0xff]
      %v1684 = vld [vmem:[#allocation3 + $0x888] sm:$0xff]
      %v1685 = vld [vmem:[#allocation3 + $0x890] sm:$0xff]
      %v1686 = vld [vmem:[#allocation3 + $0x898] sm:$0xff]
      %v1687 = vld [vmem:[#allocation3 + $0x8a0] sm:$0xff]
      %v1688 = vld [vmem:[#allocation3 + $0x8a8] sm:$0xff]
      %v1689 = vld [vmem:[#allocation3 + $0x8b0] sm:$0xff]
      %v1690 = vld [vmem:[#allocation3 + $0x8b8] sm:$0xff]
      %v1691 = vld [vmem:[#allocation3 + $0x8c0] sm:$0xff]
      %v1692 = vld [vmem:[#allocation3 + $0x8c8] sm:$0xff]
      %v1693 = vld [vmem:[#allocation3 + $0x8d0] sm:$0xff]
      %v1694 = vld [vmem:[#allocation3 + $0x8d8] sm:$0xff]
      %v1695 = vld [vmem:[#allocation3 + $0x8e0] sm:$0xff]
      %v1696 = vld [vmem:[#allocation3 + $0x8e8] sm:$0xff]
      %v1697 = vld [vmem:[#allocation3 + $0x8f0] sm:$0xff]
      %v1698 = vld [vmem:[#allocation3 + $0x8f8] sm:$0xff]
      %v1699 = vld [vmem:[%s4] sm:$0xff]
      %v1700 = vld [vmem:[%s4 + $0x8] sm:$0xff]
      %v1701 = vld [vmem:[%s4 + $0x10] sm:$0xff]
      %v1702 = vld [vmem:[%s4 + $0x18] sm:$0xff]
      %v1703 = vld [vmem:[%s4 + $0x20] sm:$0xff]
      %v1704 = vld [vmem:[%s4 + $0x28] sm:$0xff]
      %v1705 = vld [vmem:[%s4 + $0x30] sm:$0xff]
      %v1706 = vld [vmem:[%s4 + $0x38] sm:$0xff]
      %v1707 = vld [vmem:[%s4 + $0x40] sm:$0xff]
      %v1708 = vld [vmem:[%s4 + $0x48] sm:$0xff]
      %v1709 = vld [vmem:[%s4 + $0x50] sm:$0xff]
      %v1710 = vld [vmem:[%s4 + $0x58] sm:$0xff]
      %v1711 = vld [vmem:[%s4 + $0x60] sm:$0xff]
      %v1712 = vld [vmem:[%s4 + $0x68] sm:$0xff]
      %v1713 = vld [vmem:[%s4 + $0x70] sm:$0xff]
      %v1714 = vld [vmem:[%s4 + $0x78] sm:$0xff]
      %v1715 = vld [vmem:[%s4 + $0x80] sm:$0xff]
      %v1716 = vld [vmem:[%s4 + $0x88] sm:$0xff]
      %v1717 = vld [vmem:[%s4 + $0x90] sm:$0xff]
      %v1718 = vld [vmem:[%s4 + $0x98] sm:$0xff]
      %v1719 = vld [vmem:[%s4 + $0xa0] sm:$0xff]
      %v1720 = vld [vmem:[%s4 + $0xa8] sm:$0xff]
      %v1721 = vld [vmem:[%s4 + $0xb0] sm:$0xff]
      %v1722 = vld [vmem:[%s4 + $0xb8] sm:$0xff]
      %v1723 = vld [vmem:[%s4 + $0xc0] sm:$0xff]
      %v1724 = vld [vmem:[%s4 + $0xc8] sm:$0xff]
      %v1725 = vld [vmem:[%s4 + $0xd0] sm:$0xff]
      %v1726 = vld [vmem:[%s4 + $0xd8] sm:$0xff]
      %v1727 = vld [vmem:[%s4 + $0xe0] sm:$0xff]
      %v1728 = vld [vmem:[%s4 + $0xe8] sm:$0xff]
      %v1729 = vld [vmem:[%s4 + $0xf0] sm:$0xff]
      %v1730 = vld [vmem:[%s4 + $0xf8] sm:$0xff]
      %v1731 = vld [vmem:[%s4 + $0x100] sm:$0xff]
      %v1732 = vld [vmem:[%s4 + $0x108] sm:$0xff]
      %v1733 = vld [vmem:[%s4 + $0x110] sm:$0xff]
      %v1734 = vld [vmem:[%s4 + $0x118] sm:$0xff]
      %v1735 = vld [vmem:[%s4 + $0x120] sm:$0xff]
      %v1736 = vld [vmem:[%s4 + $0x128] sm:$0xff]
      %v1737 = vld [vmem:[%s4 + $0x130] sm:$0xff]
      %v1738 = vld [vmem:[%s4 + $0x138] sm:$0xff]
      %v1739 = vld [vmem:[%s4 + $0x140] sm:$0xff]
      %v1740 = vld [vmem:[%s4 + $0x148] sm:$0xff]
      %v1741 = vld [vmem:[%s4 + $0x150] sm:$0xff]
      %v1742 = vld [vmem:[%s4 + $0x158] sm:$0xff]
      %v1743 = vld [vmem:[%s4 + $0x160] sm:$0xff]
      %v1744 = vld [vmem:[%s4 + $0x168] sm:$0xff]
      %v1745 = vld [vmem:[%s4 + $0x170] sm:$0xff]
      %v1746 = vld [vmem:[%s4 + $0x178] sm:$0xff]
      %v1747 = vld [vmem:[%s4 + $0x180] sm:$0xff]
      %v1748 = vld [vmem:[%s4 + $0x188] sm:$0xff]
      %v1749 = vld [vmem:[%s4 + $0x190] sm:$0xff]
      %v1750 = vld [vmem:[%s4 + $0x198] sm:$0xff]
      %v1751 = vld [vmem:[%s4 + $0x1a0] sm:$0xff]
      %v1752 = vld [vmem:[%s4 + $0x1a8] sm:$0xff]
      %v1753 = vld [vmem:[%s4 + $0x1b0] sm:$0xff]
      %v1754 = vld [vmem:[%s4 + $0x1b8] sm:$0xff]
      %v1755 = vld [vmem:[%s4 + $0x1c0] sm:$0xff]
      %v1756 = vld [vmem:[%s4 + $0x1c8] sm:$0xff]
      %v1757 = vld [vmem:[%s4 + $0x1d0] sm:$0xff]
      %v1758 = vld [vmem:[%s4 + $0x1d8] sm:$0xff]
      %v1759 = vld [vmem:[%s4 + $0x1e0] sm:$0xff]
      %v1760 = vld [vmem:[%s4 + $0x1e8] sm:$0xff]
      %v1761 = vld [vmem:[%s4 + $0x1f0] sm:$0xff]
      %v1762 = vld [vmem:[%s4 + $0x1f8] sm:$0xff]
      %v1763 = vld [vmem:[%s4 + $0x200] sm:$0xff]
      %v1764 = vld [vmem:[%s4 + $0x208] sm:$0xff]
      %v1765 = vld [vmem:[%s4 + $0x210] sm:$0xff]
      %v1766 = vld [vmem:[%s4 + $0x218] sm:$0xff]
      %v1767 = vld [vmem:[%s4 + $0x220] sm:$0xff]
      %v1768 = vld [vmem:[%s4 + $0x228] sm:$0xff]
      %v1769 = vld [vmem:[%s4 + $0x230] sm:$0xff]
      %v1770 = vld [vmem:[%s4 + $0x238] sm:$0xff]
      %v1771 = vld [vmem:[%s4 + $0x240] sm:$0xff]
      %v1772 = vld [vmem:[%s4 + $0x248] sm:$0xff]
      %v1773 = vld [vmem:[%s4 + $0x250] sm:$0xff]
      %v1774 = vld [vmem:[%s4 + $0x258] sm:$0xff]
      %v1775 = vld [vmem:[%s4 + $0x260] sm:$0xff]
      %v1776 = vld [vmem:[%s4 + $0x268] sm:$0xff]
      %v1777 = vld [vmem:[%s4 + $0x270] sm:$0xff]
      %v1778 = vld [vmem:[%s4 + $0x278] sm:$0xff]
      %v1779 = vld [vmem:[%s4 + $0x280] sm:$0xff]
      %v1780 = vld [vmem:[%s4 + $0x288] sm:$0xff]
      %v1781 = vld [vmem:[%s4 + $0x290] sm:$0xff]
      %v1782 = vld [vmem:[%s4 + $0x298] sm:$0xff]
      %v1783 = vld [vmem:[%s4 + $0x2a0] sm:$0xff]
      %v1784 = vld [vmem:[%s4 + $0x2a8] sm:$0xff]
      %v1785 = vld [vmem:[%s4 + $0x2b0] sm:$0xff]
      %v1786 = vld [vmem:[%s4 + $0x2b8] sm:$0xff]
      %v1787 = vld [vmem:[%s4 + $0x2c0] sm:$0xff]
      %v1788 = vld [vmem:[%s4 + $0x2c8] sm:$0xff]
      %v1789 = vld [vmem:[%s4 + $0x2d0] sm:$0xff]
      %v1790 = vld [vmem:[%s4 + $0x2d8] sm:$0xff]
      %v1791 = vld [vmem:[%s4 + $0x2e0] sm:$0xff]
      %v1792 = vld [vmem:[%s4 + $0x2e8] sm:$0xff]
      %v1793 = vld [vmem:[%s4 + $0x2f0] sm:$0xff]
      %v1794 = vld [vmem:[%s4 + $0x2f8] sm:$0xff]
      %v1795 = vld [vmem:[%s4 + $0x300] sm:$0xff]
      %v1796 = vld [vmem:[%s4 + $0x308] sm:$0xff]
      %v1797 = vld [vmem:[%s4 + $0x310] sm:$0xff]
      %v1798 = vld [vmem:[%s4 + $0x318] sm:$0xff]
      %v1799 = vld [vmem:[%s4 + $0x320] sm:$0xff]
      %v1800 = vld [vmem:[%s4 + $0x328] sm:$0xff]
      %v1801 = vld [vmem:[%s4 + $0x330] sm:$0xff]
      %v1802 = vld [vmem:[%s4 + $0x338] sm:$0xff]
      %v1803 = vld [vmem:[%s4 + $0x340] sm:$0xff]
      %v1804 = vld [vmem:[%s4 + $0x348] sm:$0xff]
      %v1805 = vld [vmem:[%s4 + $0x350] sm:$0xff]
      %v1806 = vld [vmem:[%s4 + $0x358] sm:$0xff]
      %v1807 = vld [vmem:[%s4 + $0x360] sm:$0xff]
      %v1808 = vld [vmem:[%s4 + $0x368] sm:$0xff]
      %v1809 = vld [vmem:[%s4 + $0x370] sm:$0xff]
      %v1810 = vld [vmem:[%s4 + $0x378] sm:$0xff]
      %v1811 = vld [vmem:[%s4 + $0x380] sm:$0xff]
      %v1812 = vld [vmem:[%s4 + $0x388] sm:$0xff]
      %v1813 = vld [vmem:[%s4 + $0x390] sm:$0xff]
      %v1814 = vld [vmem:[%s4 + $0x398] sm:$0xff]
      %v1815 = vld [vmem:[%s4 + $0x3a0] sm:$0xff]
      %v1816 = vld [vmem:[%s4 + $0x3a8] sm:$0xff]
      %v1817 = vld [vmem:[%s4 + $0x3b0] sm:$0xff]
      %v1818 = vld [vmem:[%s4 + $0x3b8] sm:$0xff]
      %v1819 = vld [vmem:[%s4 + $0x3c0] sm:$0xff]
      %v1820 = vld [vmem:[%s4 + $0x3c8] sm:$0xff]
      %v1821 = vld [vmem:[%s4 + $0x3d0] sm:$0xff]
      %v1822 = vld [vmem:[%s4 + $0x3d8] sm:$0xff]
      %v1823 = vld [vmem:[%s4 + $0x3e0] sm:$0xff]
      %v1824 = vld [vmem:[%s4 + $0x3e8] sm:$0xff]
      %v1825 = vld [vmem:[%s4 + $0x3f0] sm:$0xff]
      %v1826 = vld [vmem:[%s4 + $0x3f8] sm:$0xff]
      %v1827 = vld [vmem:[%s4 + $0x400] sm:$0xff]
      %v1828 = vld [vmem:[%s4 + $0x408] sm:$0xff]
      %v1829 = vld [vmem:[%s4 + $0x410] sm:$0xff]
      %v1830 = vld [vmem:[%s4 + $0x418] sm:$0xff]
      %v1831 = vld [vmem:[%s4 + $0x420] sm:$0xff]
      %v1832 = vld [vmem:[%s4 + $0x428] sm:$0xff]
      %v1833 = vld [vmem:[%s4 + $0x430] sm:$0xff]
      %v1834 = vld [vmem:[%s4 + $0x438] sm:$0xff]
      %v1835 = vld [vmem:[%s4 + $0x440] sm:$0xff]
      %v1836 = vld [vmem:[%s4 + $0x448] sm:$0xff]
      %v1837 = vld [vmem:[%s4 + $0x450] sm:$0xff]
      %v1838 = vld [vmem:[%s4 + $0x458] sm:$0xff]
      %v1839 = vld [vmem:[%s4 + $0x460] sm:$0xff]
      %v1840 = vld [vmem:[%s4 + $0x468] sm:$0xff]
      %v1841 = vld [vmem:[%s4 + $0x470] sm:$0xff]
      %v1842 = vld [vmem:[%s4 + $0x478] sm:$0xff]
      %v1843 = vld [vmem:[%s5] sm:$0x1]
      %v1845 = vperm.slane %v1843, 0
      %1847 = vmatpush.msra.mxu0 %v1714
      %1848 = vmatpush.msra.mxu0 %v1713
      %1849 = vmatpush.msra.mxu0 %v1712
      %1850 = vmatpush.msra.mxu0 %v1711
      %1851 = vmatpush.msra.mxu0 %v1710
      %1852 = vmatpush.msra.mxu0 %v1709
      %1853 = vmatpush.msra.mxu0 %v1708
      %1854 = vmatpush.msra.mxu0 %v1707
      %1855 = vmatpush.msra.mxu0 %v1706
      %1856 = vmatpush.msra.mxu0 %v1705
      %1857 = vmatpush.msra.mxu0 %v1704
      %1858 = vmatpush.msra.mxu0 %v1703
      %1859 = vmatpush.msra.mxu0 %v1702
      %1860 = vmatpush.msra.mxu0 %v1701
      %1861 = vmatpush.msra.mxu0 %v1700
      %1862 = vmatpush.msra.mxu0 %v1699
      %1863 = vmatmul.f32.gmra.mxu0 %v1411
      %v1864 = vpop.f32.mrf.mxu0
      %v1865 = vadd.f32 %v1845, %v1864
      %1866 = vmatmul.f32.gmra.mxu0 %v1420
      %v1867 = vpop.f32.mrf.mxu0
      %v1868 = vadd.f32 %v1845, %v1867
      %1869 = vmatmul.f32.gmra.mxu0 %v1429
      %v1870 = vpop.f32.mrf.mxu0
      %v1871 = vadd.f32 %v1845, %v1870
      %1872 = vmatmul.f32.gmra.mxu0 %v1438
      %v1873 = vpop.f32.mrf.mxu0
      %v1874 = vadd.f32 %v1845, %v1873
      %1875 = vmatmul.f32.gmra.mxu0 %v1447
      %v1876 = vpop.f32.mrf.mxu0
      %v1877 = vadd.f32 %v1845, %v1876
      %1878 = vmatmul.f32.gmra.mxu0 %v1456
      %v1879 = vpop.f32.mrf.mxu0
      %v1880 = vadd.f32 %v1845, %v1879
      %1881 = vmatmul.f32.gmra.mxu0 %v1465
      %v1882 = vpop.f32.mrf.mxu0
      %v1883 = vadd.f32 %v1845, %v1882
      %1884 = vmatmul.f32.gmra.mxu0 %v1474
      %v1885 = vpop.f32.mrf.mxu0
      %v1886 = vadd.f32 %v1845, %v1885
      %1887 = vmatmul.f32.gmra.mxu0 %v1483
      %v1888 = vpop.f32.mrf.mxu0
      %v1889 = vadd.f32 %v1845, %v1888
      %1890 = vmatmul.f32.gmra.mxu0 %v1492
      %v1891 = vpop.f32.mrf.mxu0
      %v1892 = vadd.f32 %v1845, %v1891
      %1893 = vmatmul.f32.gmra.mxu0 %v1501
      %v1894 = vpop.f32.mrf.mxu0
      %v1895 = vadd.f32 %v1845, %v1894
      %1896 = vmatmul.f32.gmra.mxu0 %v1510
      %v1897 = vpop.f32.mrf.mxu0
      %v1898 = vadd.f32 %v1845, %v1897
      %1899 = vmatmul.f32.gmra.mxu0 %v1519
      %v1900 = vpop.f32.mrf.mxu0
      %v1901 = vadd.f32 %v1845, %v1900
      %1902 = vmatmul.f32.gmra.mxu0 %v1528
      %v1903 = vpop.f32.mrf.mxu0
      %v1904 = vadd.f32 %v1845, %v1903
      %1905 = vmatmul.f32.gmra.mxu0 %v1537
      %v1906 = vpop.f32.mrf.mxu0
      %v1907 = vadd.f32 %v1845, %v1906
      %1908 = vmatmul.f32.gmra.mxu0 %v1546
      %v1909 = vpop.f32.mrf.mxu0
      %v1910 = vadd.f32 %v1845, %v1909
      %1911 = vmatmul.f32.gmra.mxu0 %v1555
      %v1912 = vpop.f32.mrf.mxu0
      %v1913 = vadd.f32 %v1845, %v1912
      %1914 = vmatmul.f32.gmra.mxu0 %v1564
      %v1915 = vpop.f32.mrf.mxu0
      %v1916 = vadd.f32 %v1845, %v1915
      %1917 = vmatmul.f32.gmra.mxu0 %v1573
      %v1918 = vpop.f32.mrf.mxu0
      %v1919 = vadd.f32 %v1845, %v1918
      %1920 = vmatmul.f32.gmra.mxu0 %v1582
      %v1921 = vpop.f32.mrf.mxu0
      %v1922 = vadd.f32 %v1845, %v1921
      %1923 = vmatmul.f32.gmra.mxu0 %v1591
      %v1924 = vpop.f32.mrf.mxu0
      %v1925 = vadd.f32 %v1845, %v1924
      %1926 = vmatmul.f32.gmra.mxu0 %v1600
      %v1927 = vpop.f32.mrf.mxu0
      %v1928 = vadd.f32 %v1845, %v1927
      %1929 = vmatmul.f32.gmra.mxu0 %v1609
      %v1930 = vpop.f32.mrf.mxu0
      %v1931 = vadd.f32 %v1845, %v1930
      %1932 = vmatmul.f32.gmra.mxu0 %v1618
      %v1933 = vpop.f32.mrf.mxu0
      %v1934 = vadd.f32 %v1845, %v1933
      %1935 = vmatmul.f32.gmra.mxu0 %v1627
      %v1936 = vpop.f32.mrf.mxu0
      %v1937 = vadd.f32 %v1845, %v1936
      %1938 = vmatmul.f32.gmra.mxu0 %v1636
      %v1939 = vpop.f32.mrf.mxu0
      %v1940 = vadd.f32 %v1845, %v1939
      %1941 = vmatmul.f32.gmra.mxu0 %v1645
      %v1942 = vpop.f32.mrf.mxu0
      %v1943 = vadd.f32 %v1845, %v1942
      %1944 = vmatmul.f32.gmra.mxu0 %v1654
      %v1945 = vpop.f32.mrf.mxu0
      %v1946 = vadd.f32 %v1845, %v1945
      %1947 = vmatmul.f32.gmra.mxu0 %v1663
      %v1948 = vpop.f32.mrf.mxu0
      %v1949 = vadd.f32 %v1845, %v1948
      %1950 = vmatmul.f32.gmra.mxu0 %v1672
      %v1951 = vpop.f32.mrf.mxu0
      %v1952 = vadd.f32 %v1845, %v1951
      %1953 = vmatmul.f32.gmra.mxu0 %v1681
      %v1954 = vpop.f32.mrf.mxu0
      %v1955 = vadd.f32 %v1845, %v1954
      %1956 = vmatmul.f32.gmra.mxu0 %v1690
      %v1957 = vpop.f32.mrf.mxu0
      %v1958 = vadd.f32 %v1845, %v1957
      %1959 = vdwg.mxu0
      %1960 = vmatpush.msra.mxu0 %v1730
      %1961 = vmatpush.msra.mxu0 %v1729
      %1962 = vmatpush.msra.mxu0 %v1728
      %1963 = vmatpush.msra.mxu0 %v1727
      %1964 = vmatpush.msra.mxu0 %v1726
      %1965 = vmatpush.msra.mxu0 %v1725
      %1966 = vmatpush.msra.mxu0 %v1724
      %1967 = vmatpush.msra.mxu0 %v1723
      %1968 = vmatpush.msra.mxu0 %v1722
      %1969 = vmatpush.msra.mxu0 %v1721
      %1970 = vmatpush.msra.mxu0 %v1720
      %1971 = vmatpush.msra.mxu0 %v1719
      %1972 = vmatpush.msra.mxu0 %v1718
      %1973 = vmatpush.msra.mxu0 %v1717
      %1974 = vmatpush.msra.mxu0 %v1716
      %1975 = vmatpush.msra.mxu0 %v1715
      %1976 = vmatmul.f32.gmra.mxu0 %v1412
      %v1977 = vpop.f32.mrf.mxu0
      %v1978 = vadd.f32 %v1865, %v1977
      %1979 = vmatmul.f32.gmra.mxu0 %v1421
      %v1980 = vpop.f32.mrf.mxu0
      %v1981 = vadd.f32 %v1868, %v1980
      %1982 = vmatmul.f32.gmra.mxu0 %v1430
      %v1983 = vpop.f32.mrf.mxu0
      %v1984 = vadd.f32 %v1871, %v1983
      %1985 = vmatmul.f32.gmra.mxu0 %v1439
      %v1986 = vpop.f32.mrf.mxu0
      %v1987 = vadd.f32 %v1874, %v1986
      %1988 = vmatmul.f32.gmra.mxu0 %v1448
      %v1989 = vpop.f32.mrf.mxu0
      %v1990 = vadd.f32 %v1877, %v1989
      %1991 = vmatmul.f32.gmra.mxu0 %v1457
      %v1992 = vpop.f32.mrf.mxu0
      %v1993 = vadd.f32 %v1880, %v1992
      %1994 = vmatmul.f32.gmra.mxu0 %v1466
      %v1995 = vpop.f32.mrf.mxu0
      %v1996 = vadd.f32 %v1883, %v1995
      %1997 = vmatmul.f32.gmra.mxu0 %v1475
      %v1998 = vpop.f32.mrf.mxu0
      %v1999 = vadd.f32 %v1886, %v1998
      %2000 = vmatmul.f32.gmra.mxu0 %v1484
      %v2001 = vpop.f32.mrf.mxu0
      %v2002 = vadd.f32 %v1889, %v2001
      %2003 = vmatmul.f32.gmra.mxu0 %v1493
      %v2004 = vpop.f32.mrf.mxu0
      %v2005 = vadd.f32 %v1892, %v2004
      %2006 = vmatmul.f32.gmra.mxu0 %v1502
      %v2007 = vpop.f32.mrf.mxu0
      %v2008 = vadd.f32 %v1895, %v2007
      %2009 = vmatmul.f32.gmra.mxu0 %v1511
      %v2010 = vpop.f32.mrf.mxu0
      %v2011 = vadd.f32 %v1898, %v2010
      %2012 = vmatmul.f32.gmra.mxu0 %v1520
      %v2013 = vpop.f32.mrf.mxu0
      %v2014 = vadd.f32 %v1901, %v2013
      %2015 = vmatmul.f32.gmra.mxu0 %v1529
      %v2016 = vpop.f32.mrf.mxu0
      %v2017 = vadd.f32 %v1904, %v2016
      %2018 = vmatmul.f32.gmra.mxu0 %v1538
      %v2019 = vpop.f32.mrf.mxu0
      %v2020 = vadd.f32 %v1907, %v2019
      %2021 = vmatmul.f32.gmra.mxu0 %v1547
      %v2022 = vpop.f32.mrf.mxu0
      %v2023 = vadd.f32 %v1910, %v2022
      %2024 = vmatmul.f32.gmra.mxu0 %v1556
      %v2025 = vpop.f32.mrf.mxu0
      %v2026 = vadd.f32 %v1913, %v2025
      %2027 = vmatmul.f32.gmra.mxu0 %v1565
      %v2028 = vpop.f32.mrf.mxu0
      %v2029 = vadd.f32 %v1916, %v2028
      %2030 = vmatmul.f32.gmra.mxu0 %v1574
      %v2031 = vpop.f32.mrf.mxu0
      %v2032 = vadd.f32 %v1919, %v2031
      %2033 = vmatmul.f32.gmra.mxu0 %v1583
      %v2034 = vpop.f32.mrf.mxu0
      %v2035 = vadd.f32 %v1922, %v2034
      %2036 = vmatmul.f32.gmra.mxu0 %v1592
      %v2037 = vpop.f32.mrf.mxu0
      %v2038 = vadd.f32 %v1925, %v2037
      %2039 = vmatmul.f32.gmra.mxu0 %v1601
      %v2040 = vpop.f32.mrf.mxu0
      %v2041 = vadd.f32 %v1928, %v2040
      %2042 = vmatmul.f32.gmra.mxu0 %v1610
      %v2043 = vpop.f32.mrf.mxu0
      %v2044 = vadd.f32 %v1931, %v2043
      %2045 = vmatmul.f32.gmra.mxu0 %v1619
      %v2046 = vpop.f32.mrf.mxu0
      %v2047 = vadd.f32 %v1934, %v2046
      %2048 = vmatmul.f32.gmra.mxu0 %v1628
      %v2049 = vpop.f32.mrf.mxu0
      %v2050 = vadd.f32 %v1937, %v2049
      %2051 = vmatmul.f32.gmra.mxu0 %v1637
      %v2052 = vpop.f32.mrf.mxu0
      %v2053 = vadd.f32 %v1940, %v2052
      %2054 = vmatmul.f32.gmra.mxu0 %v1646
      %v2055 = vpop.f32.mrf.mxu0
      %v2056 = vadd.f32 %v1943, %v2055
      %2057 = vmatmul.f32.gmra.mxu0 %v1655
      %v2058 = vpop.f32.mrf.mxu0
      %v2059 = vadd.f32 %v1946, %v2058
      %2060 = vmatmul.f32.gmra.mxu0 %v1664
      %v2061 = vpop.f32.mrf.mxu0
      %v2062 = vadd.f32 %v1949, %v2061
      %2063 = vmatmul.f32.gmra.mxu0 %v1673
      %v2064 = vpop.f32.mrf.mxu0
      %v2065 = vadd.f32 %v1952, %v2064
      %2066 = vmatmul.f32.gmra.mxu0 %v1682
      %v2067 = vpop.f32.mrf.mxu0
      %v2068 = vadd.f32 %v1955, %v2067
      %2069 = vmatmul.f32.gmra.mxu0 %v1691
      %v2070 = vpop.f32.mrf.mxu0
      %v2071 = vadd.f32 %v1958, %v2070
      %2072 = vdwg.mxu0
      %2073 = vmatpush.msra.mxu0 %v1746
      %2074 = vmatpush.msra.mxu0 %v1745
      %2075 = vmatpush.msra.mxu0 %v1744
      %2076 = vmatpush.msra.mxu0 %v1743
      %2077 = vmatpush.msra.mxu0 %v1742
      %2078 = vmatpush.msra.mxu0 %v1741
      %2079 = vmatpush.msra.mxu0 %v1740
      %2080 = vmatpush.msra.mxu0 %v1739
      %2081 = vmatpush.msra.mxu0 %v1738
      %2082 = vmatpush.msra.mxu0 %v1737
      %2083 = vmatpush.msra.mxu0 %v1736
      %2084 = vmatpush.msra.mxu0 %v1735
      %2085 = vmatpush.msra.mxu0 %v1734
      %2086 = vmatpush.msra.mxu0 %v1733
      %2087 = vmatpush.msra.mxu0 %v1732
      %2088 = vmatpush.msra.mxu0 %v1731
      %2089 = vmatmul.f32.gmra.mxu0 %v1413
      %v2090 = vpop.f32.mrf.mxu0
      %v2091 = vadd.f32 %v1978, %v2090
      %2092 = vmatmul.f32.gmra.mxu0 %v1422
      %v2093 = vpop.f32.mrf.mxu0
      %v2094 = vadd.f32 %v1981, %v2093
      %2095 = vmatmul.f32.gmra.mxu0 %v1431
      %v2096 = vpop.f32.mrf.mxu0
      %v2097 = vadd.f32 %v1984, %v2096
      %2098 = vmatmul.f32.gmra.mxu0 %v1440
      %v2099 = vpop.f32.mrf.mxu0
      %v2100 = vadd.f32 %v1987, %v2099
      %2101 = vmatmul.f32.gmra.mxu0 %v1449
      %v2102 = vpop.f32.mrf.mxu0
      %v2103 = vadd.f32 %v1990, %v2102
      %2104 = vmatmul.f32.gmra.mxu0 %v1458
      %v2105 = vpop.f32.mrf.mxu0
      %v2106 = vadd.f32 %v1993, %v2105
      %2107 = vmatmul.f32.gmra.mxu0 %v1467
      %v2108 = vpop.f32.mrf.mxu0
      %v2109 = vadd.f32 %v1996, %v2108
      %2110 = vmatmul.f32.gmra.mxu0 %v1476
      %v2111 = vpop.f32.mrf.mxu0
      %v2112 = vadd.f32 %v1999, %v2111
      %2113 = vmatmul.f32.gmra.mxu0 %v1485
      %v2114 = vpop.f32.mrf.mxu0
      %v2115 = vadd.f32 %v2002, %v2114
      %2116 = vmatmul.f32.gmra.mxu0 %v1494
      %v2117 = vpop.f32.mrf.mxu0
      %v2118 = vadd.f32 %v2005, %v2117
      %2119 = vmatmul.f32.gmra.mxu0 %v1503
      %v2120 = vpop.f32.mrf.mxu0
      %v2121 = vadd.f32 %v2008, %v2120
      %2122 = vmatmul.f32.gmra.mxu0 %v1512
      %v2123 = vpop.f32.mrf.mxu0
      %v2124 = vadd.f32 %v2011, %v2123
      %2125 = vmatmul.f32.gmra.mxu0 %v1521
      %v2126 = vpop.f32.mrf.mxu0
      %v2127 = vadd.f32 %v2014, %v2126
      %2128 = vmatmul.f32.gmra.mxu0 %v1530
      %v2129 = vpop.f32.mrf.mxu0
      %v2130 = vadd.f32 %v2017, %v2129
      %2131 = vmatmul.f32.gmra.mxu0 %v1539
      %v2132 = vpop.f32.mrf.mxu0
      %v2133 = vadd.f32 %v2020, %v2132
      %2134 = vmatmul.f32.gmra.mxu0 %v1548
      %v2135 = vpop.f32.mrf.mxu0
      %v2136 = vadd.f32 %v2023, %v2135
      %2137 = vmatmul.f32.gmra.mxu0 %v1557
      %v2138 = vpop.f32.mrf.mxu0
      %v2139 = vadd.f32 %v2026, %v2138
      %2140 = vmatmul.f32.gmra.mxu0 %v1566
      %v2141 = vpop.f32.mrf.mxu0
      %v2142 = vadd.f32 %v2029, %v2141
      %2143 = vmatmul.f32.gmra.mxu0 %v1575
      %v2144 = vpop.f32.mrf.mxu0
      %v2145 = vadd.f32 %v2032, %v2144
      %2146 = vmatmul.f32.gmra.mxu0 %v1584
      %v2147 = vpop.f32.mrf.mxu0
      %v2148 = vadd.f32 %v2035, %v2147
      %2149 = vmatmul.f32.gmra.mxu0 %v1593
      %v2150 = vpop.f32.mrf.mxu0
      %v2151 = vadd.f32 %v2038, %v2150
      %2152 = vmatmul.f32.gmra.mxu0 %v1602
      %v2153 = vpop.f32.mrf.mxu0
      %v2154 = vadd.f32 %v2041, %v2153
      %2155 = vmatmul.f32.gmra.mxu0 %v1611
      %v2156 = vpop.f32.mrf.mxu0
      %v2157 = vadd.f32 %v2044, %v2156
      %2158 = vmatmul.f32.gmra.mxu0 %v1620
      %v2159 = vpop.f32.mrf.mxu0
      %v2160 = vadd.f32 %v2047, %v2159
      %2161 = vmatmul.f32.gmra.mxu0 %v1629
      %v2162 = vpop.f32.mrf.mxu0
      %v2163 = vadd.f32 %v2050, %v2162
      %2164 = vmatmul.f32.gmra.mxu0 %v1638
      %v2165 = vpop.f32.mrf.mxu0
      %v2166 = vadd.f32 %v2053, %v2165
      %2167 = vmatmul.f32.gmra.mxu0 %v1647
      %v2168 = vpop.f32.mrf.mxu0
      %v2169 = vadd.f32 %v2056, %v2168
      %2170 = vmatmul.f32.gmra.mxu0 %v1656
      %v2171 = vpop.f32.mrf.mxu0
      %v2172 = vadd.f32 %v2059, %v2171
      %2173 = vmatmul.f32.gmra.mxu0 %v1665
      %v2174 = vpop.f32.mrf.mxu0
      %v2175 = vadd.f32 %v2062, %v2174
      %2176 = vmatmul.f32.gmra.mxu0 %v1674
      %v2177 = vpop.f32.mrf.mxu0
      %v2178 = vadd.f32 %v2065, %v2177
      %2179 = vmatmul.f32.gmra.mxu0 %v1683
      %v2180 = vpop.f32.mrf.mxu0
      %v2181 = vadd.f32 %v2068, %v2180
      %2182 = vmatmul.f32.gmra.mxu0 %v1692
      %v2183 = vpop.f32.mrf.mxu0
      %v2184 = vadd.f32 %v2071, %v2183
      %2185 = vdwg.mxu0
      %2186 = vmatpush.msra.mxu0 %v1762
      %2187 = vmatpush.msra.mxu0 %v1761
      %2188 = vmatpush.msra.mxu0 %v1760
      %2189 = vmatpush.msra.mxu0 %v1759
      %2190 = vmatpush.msra.mxu0 %v1758
      %2191 = vmatpush.msra.mxu0 %v1757
      %2192 = vmatpush.msra.mxu0 %v1756
      %2193 = vmatpush.msra.mxu0 %v1755
      %2194 = vmatpush.msra.mxu0 %v1754
      %2195 = vmatpush.msra.mxu0 %v1753
      %2196 = vmatpush.msra.mxu0 %v1752
      %2197 = vmatpush.msra.mxu0 %v1751
      %2198 = vmatpush.msra.mxu0 %v1750
      %2199 = vmatpush.msra.mxu0 %v1749
      %2200 = vmatpush.msra.mxu0 %v1748
      %2201 = vmatpush.msra.mxu0 %v1747
      %2202 = vmatmul.f32.gmra.mxu0 %v1414
      %v2203 = vpop.f32.mrf.mxu0
      %v2204 = vadd.f32 %v2091, %v2203
      %2205 = vmatmul.f32.gmra.mxu0 %v1423
      %v2206 = vpop.f32.mrf.mxu0
      %v2207 = vadd.f32 %v2094, %v2206
      %2208 = vmatmul.f32.gmra.mxu0 %v1432
      %v2209 = vpop.f32.mrf.mxu0
      %v2210 = vadd.f32 %v2097, %v2209
      %2211 = vmatmul.f32.gmra.mxu0 %v1441
      %v2212 = vpop.f32.mrf.mxu0
      %v2213 = vadd.f32 %v2100, %v2212
      %2214 = vmatmul.f32.gmra.mxu0 %v1450
      %v2215 = vpop.f32.mrf.mxu0
      %v2216 = vadd.f32 %v2103, %v2215
      %2217 = vmatmul.f32.gmra.mxu0 %v1459
      %v2218 = vpop.f32.mrf.mxu0
      %v2219 = vadd.f32 %v2106, %v2218
      %2220 = vmatmul.f32.gmra.mxu0 %v1468
      %v2221 = vpop.f32.mrf.mxu0
      %v2222 = vadd.f32 %v2109, %v2221
      %2223 = vmatmul.f32.gmra.mxu0 %v1477
      %v2224 = vpop.f32.mrf.mxu0
      %v2225 = vadd.f32 %v2112, %v2224
      %2226 = vmatmul.f32.gmra.mxu0 %v1486
      %v2227 = vpop.f32.mrf.mxu0
      %v2228 = vadd.f32 %v2115, %v2227
      %2229 = vmatmul.f32.gmra.mxu0 %v1495
      %v2230 = vpop.f32.mrf.mxu0
      %v2231 = vadd.f32 %v2118, %v2230
      %2232 = vmatmul.f32.gmra.mxu0 %v1504
      %v2233 = vpop.f32.mrf.mxu0
      %v2234 = vadd.f32 %v2121, %v2233
      %2235 = vmatmul.f32.gmra.mxu0 %v1513
      %v2236 = vpop.f32.mrf.mxu0
      %v2237 = vadd.f32 %v2124, %v2236
      %2238 = vmatmul.f32.gmra.mxu0 %v1522
      %v2239 = vpop.f32.mrf.mxu0
      %v2240 = vadd.f32 %v2127, %v2239
      %2241 = vmatmul.f32.gmra.mxu0 %v1531
      %v2242 = vpop.f32.mrf.mxu0
      %v2243 = vadd.f32 %v2130, %v2242
      %2244 = vmatmul.f32.gmra.mxu0 %v1540
      %v2245 = vpop.f32.mrf.mxu0
      %v2246 = vadd.f32 %v2133, %v2245
      %2247 = vmatmul.f32.gmra.mxu0 %v1549
      %v2248 = vpop.f32.mrf.mxu0
      %v2249 = vadd.f32 %v2136, %v2248
      %2250 = vmatmul.f32.gmra.mxu0 %v1558
      %v2251 = vpop.f32.mrf.mxu0
      %v2252 = vadd.f32 %v2139, %v2251
      %2253 = vmatmul.f32.gmra.mxu0 %v1567
      %v2254 = vpop.f32.mrf.mxu0
      %v2255 = vadd.f32 %v2142, %v2254
      %2256 = vmatmul.f32.gmra.mxu0 %v1576
      %v2257 = vpop.f32.mrf.mxu0
      %v2258 = vadd.f32 %v2145, %v2257
      %2259 = vmatmul.f32.gmra.mxu0 %v1585
      %v2260 = vpop.f32.mrf.mxu0
      %v2261 = vadd.f32 %v2148, %v2260
      %2262 = vmatmul.f32.gmra.mxu0 %v1594
      %v2263 = vpop.f32.mrf.mxu0
      %v2264 = vadd.f32 %v2151, %v2263
      %2265 = vmatmul.f32.gmra.mxu0 %v1603
      %v2266 = vpop.f32.mrf.mxu0
      %v2267 = vadd.f32 %v2154, %v2266
      %2268 = vmatmul.f32.gmra.mxu0 %v1612
      %v2269 = vpop.f32.mrf.mxu0
      %v2270 = vadd.f32 %v2157, %v2269
      %2271 = vmatmul.f32.gmra.mxu0 %v1621
      %v2272 = vpop.f32.mrf.mxu0
      %v2273 = vadd.f32 %v2160, %v2272
      %2274 = vmatmul.f32.gmra.mxu0 %v1630
      %v2275 = vpop.f32.mrf.mxu0
      %v2276 = vadd.f32 %v2163, %v2275
      %2277 = vmatmul.f32.gmra.mxu0 %v1639
      %v2278 = vpop.f32.mrf.mxu0
      %v2279 = vadd.f32 %v2166, %v2278
      %2280 = vmatmul.f32.gmra.mxu0 %v1648
      %v2281 = vpop.f32.mrf.mxu0
      %v2282 = vadd.f32 %v2169, %v2281
      %2283 = vmatmul.f32.gmra.mxu0 %v1657
      %v2284 = vpop.f32.mrf.mxu0
      %v2285 = vadd.f32 %v2172, %v2284
      %2286 = vmatmul.f32.gmra.mxu0 %v1666
      %v2287 = vpop.f32.mrf.mxu0
      %v2288 = vadd.f32 %v2175, %v2287
      %2289 = vmatmul.f32.gmra.mxu0 %v1675
      %v2290 = vpop.f32.mrf.mxu0
      %v2291 = vadd.f32 %v2178, %v2290
      %2292 = vmatmul.f32.gmra.mxu0 %v1684
      %v2293 = vpop.f32.mrf.mxu0
      %v2294 = vadd.f32 %v2181, %v2293
      %2295 = vmatmul.f32.gmra.mxu0 %v1693
      %v2296 = vpop.f32.mrf.mxu0
      %v2297 = vadd.f32 %v2184, %v2296
      %2298 = vdwg.mxu0
      %2299 = vmatpush.msra.mxu0 %v1778
      %2300 = vmatpush.msra.mxu0 %v1777
      %2301 = vmatpush.msra.mxu0 %v1776
      %2302 = vmatpush.msra.mxu0 %v1775
      %2303 = vmatpush.msra.mxu0 %v1774
      %2304 = vmatpush.msra.mxu0 %v1773
      %2305 = vmatpush.msra.mxu0 %v1772
      %2306 = vmatpush.msra.mxu0 %v1771
      %2307 = vmatpush.msra.mxu0 %v1770
      %2308 = vmatpush.msra.mxu0 %v1769
      %2309 = vmatpush.msra.mxu0 %v1768
      %2310 = vmatpush.msra.mxu0 %v1767
      %2311 = vmatpush.msra.mxu0 %v1766
      %2312 = vmatpush.msra.mxu0 %v1765
      %2313 = vmatpush.msra.mxu0 %v1764
      %2314 = vmatpush.msra.mxu0 %v1763
      %2315 = vmatmul.f32.gmra.mxu0 %v1415
      %v2316 = vpop.f32.mrf.mxu0
      %v2317 = vadd.f32 %v2204, %v2316
      %2318 = vmatmul.f32.gmra.mxu0 %v1424
      %v2319 = vpop.f32.mrf.mxu0
      %v2320 = vadd.f32 %v2207, %v2319
      %2321 = vmatmul.f32.gmra.mxu0 %v1433
      %v2322 = vpop.f32.mrf.mxu0
      %v2323 = vadd.f32 %v2210, %v2322
      %2324 = vmatmul.f32.gmra.mxu0 %v1442
      %v2325 = vpop.f32.mrf.mxu0
      %v2326 = vadd.f32 %v2213, %v2325
      %2327 = vmatmul.f32.gmra.mxu0 %v1451
      %v2328 = vpop.f32.mrf.mxu0
      %v2329 = vadd.f32 %v2216, %v2328
      %2330 = vmatmul.f32.gmra.mxu0 %v1460
      %v2331 = vpop.f32.mrf.mxu0
      %v2332 = vadd.f32 %v2219, %v2331
      %2333 = vmatmul.f32.gmra.mxu0 %v1469
      %v2334 = vpop.f32.mrf.mxu0
      %v2335 = vadd.f32 %v2222, %v2334
      %2336 = vmatmul.f32.gmra.mxu0 %v1478
      %v2337 = vpop.f32.mrf.mxu0
      %v2338 = vadd.f32 %v2225, %v2337
      %2339 = vmatmul.f32.gmra.mxu0 %v1487
      %v2340 = vpop.f32.mrf.mxu0
      %v2341 = vadd.f32 %v2228, %v2340
      %2342 = vmatmul.f32.gmra.mxu0 %v1496
      %v2343 = vpop.f32.mrf.mxu0
      %v2344 = vadd.f32 %v2231, %v2343
      %2345 = vmatmul.f32.gmra.mxu0 %v1505
      %v2346 = vpop.f32.mrf.mxu0
      %v2347 = vadd.f32 %v2234, %v2346
      %2348 = vmatmul.f32.gmra.mxu0 %v1514
      %v2349 = vpop.f32.mrf.mxu0
      %v2350 = vadd.f32 %v2237, %v2349
      %2351 = vmatmul.f32.gmra.mxu0 %v1523
      %v2352 = vpop.f32.mrf.mxu0
      %v2353 = vadd.f32 %v2240, %v2352
      %2354 = vmatmul.f32.gmra.mxu0 %v1532
      %v2355 = vpop.f32.mrf.mxu0
      %v2356 = vadd.f32 %v2243, %v2355
      %2357 = vmatmul.f32.gmra.mxu0 %v1541
      %v2358 = vpop.f32.mrf.mxu0
      %v2359 = vadd.f32 %v2246, %v2358
      %2360 = vmatmul.f32.gmra.mxu0 %v1550
      %v2361 = vpop.f32.mrf.mxu0
      %v2362 = vadd.f32 %v2249, %v2361
      %2363 = vmatmul.f32.gmra.mxu0 %v1559
      %v2364 = vpop.f32.mrf.mxu0
      %v2365 = vadd.f32 %v2252, %v2364
      %2366 = vmatmul.f32.gmra.mxu0 %v1568
      %v2367 = vpop.f32.mrf.mxu0
      %v2368 = vadd.f32 %v2255, %v2367
      %2369 = vmatmul.f32.gmra.mxu0 %v1577
      %v2370 = vpop.f32.mrf.mxu0
      %v2371 = vadd.f32 %v2258, %v2370
      %2372 = vmatmul.f32.gmra.mxu0 %v1586
      %v2373 = vpop.f32.mrf.mxu0
      %v2374 = vadd.f32 %v2261, %v2373
      %2375 = vmatmul.f32.gmra.mxu0 %v1595
      %v2376 = vpop.f32.mrf.mxu0
      %v2377 = vadd.f32 %v2264, %v2376
      %2378 = vmatmul.f32.gmra.mxu0 %v1604
      %v2379 = vpop.f32.mrf.mxu0
      %v2380 = vadd.f32 %v2267, %v2379
      %2381 = vmatmul.f32.gmra.mxu0 %v1613
      %v2382 = vpop.f32.mrf.mxu0
      %v2383 = vadd.f32 %v2270, %v2382
      %2384 = vmatmul.f32.gmra.mxu0 %v1622
      %v2385 = vpop.f32.mrf.mxu0
      %v2386 = vadd.f32 %v2273, %v2385
      %2387 = vmatmul.f32.gmra.mxu0 %v1631
      %v2388 = vpop.f32.mrf.mxu0
      %v2389 = vadd.f32 %v2276, %v2388
      %2390 = vmatmul.f32.gmra.mxu0 %v1640
      %v2391 = vpop.f32.mrf.mxu0
      %v2392 = vadd.f32 %v2279, %v2391
      %2393 = vmatmul.f32.gmra.mxu0 %v1649
      %v2394 = vpop.f32.mrf.mxu0
      %v2395 = vadd.f32 %v2282, %v2394
      %2396 = vmatmul.f32.gmra.mxu0 %v1658
      %v2397 = vpop.f32.mrf.mxu0
      %v2398 = vadd.f32 %v2285, %v2397
      %2399 = vmatmul.f32.gmra.mxu0 %v1667
      %v2400 = vpop.f32.mrf.mxu0
      %v2401 = vadd.f32 %v2288, %v2400
      %2402 = vmatmul.f32.gmra.mxu0 %v1676
      %v2403 = vpop.f32.mrf.mxu0
      %v2404 = vadd.f32 %v2291, %v2403
      %2405 = vmatmul.f32.gmra.mxu0 %v1685
      %v2406 = vpop.f32.mrf.mxu0
      %v2407 = vadd.f32 %v2294, %v2406
      %2408 = vmatmul.f32.gmra.mxu0 %v1694
      %v2409 = vpop.f32.mrf.mxu0
      %v2410 = vadd.f32 %v2297, %v2409
      %2411 = vdwg.mxu0
      %2412 = vmatpush.msra.mxu0 %v1794
      %2413 = vmatpush.msra.mxu0 %v1793
      %2414 = vmatpush.msra.mxu0 %v1792
      %2415 = vmatpush.msra.mxu0 %v1791
      %2416 = vmatpush.msra.mxu0 %v1790
      %2417 = vmatpush.msra.mxu0 %v1789
      %2418 = vmatpush.msra.mxu0 %v1788
      %2419 = vmatpush.msra.mxu0 %v1787
      %2420 = vmatpush.msra.mxu0 %v1786
      %2421 = vmatpush.msra.mxu0 %v1785
      %2422 = vmatpush.msra.mxu0 %v1784
      %2423 = vmatpush.msra.mxu0 %v1783
      %2424 = vmatpush.msra.mxu0 %v1782
      %2425 = vmatpush.msra.mxu0 %v1781
      %2426 = vmatpush.msra.mxu0 %v1780
      %2427 = vmatpush.msra.mxu0 %v1779
      %2428 = vmatmul.f32.gmra.mxu0 %v1416
      %v2429 = vpop.f32.mrf.mxu0
      %v2430 = vadd.f32 %v2317, %v2429
      %2431 = vmatmul.f32.gmra.mxu0 %v1425
      %v2432 = vpop.f32.mrf.mxu0
      %v2433 = vadd.f32 %v2320, %v2432
      %2434 = vmatmul.f32.gmra.mxu0 %v1434
      %v2435 = vpop.f32.mrf.mxu0
      %v2436 = vadd.f32 %v2323, %v2435
      %2437 = vmatmul.f32.gmra.mxu0 %v1443
      %v2438 = vpop.f32.mrf.mxu0
      %v2439 = vadd.f32 %v2326, %v2438
      %2440 = vmatmul.f32.gmra.mxu0 %v1452
      %v2441 = vpop.f32.mrf.mxu0
      %v2442 = vadd.f32 %v2329, %v2441
      %2443 = vmatmul.f32.gmra.mxu0 %v1461
      %v2444 = vpop.f32.mrf.mxu0
      %v2445 = vadd.f32 %v2332, %v2444
      %2446 = vmatmul.f32.gmra.mxu0 %v1470
      %v2447 = vpop.f32.mrf.mxu0
      %v2448 = vadd.f32 %v2335, %v2447
      %2449 = vmatmul.f32.gmra.mxu0 %v1479
      %v2450 = vpop.f32.mrf.mxu0
      %v2451 = vadd.f32 %v2338, %v2450
      %2452 = vmatmul.f32.gmra.mxu0 %v1488
      %v2453 = vpop.f32.mrf.mxu0
      %v2454 = vadd.f32 %v2341, %v2453
      %2455 = vmatmul.f32.gmra.mxu0 %v1497
      %v2456 = vpop.f32.mrf.mxu0
      %v2457 = vadd.f32 %v2344, %v2456
      %2458 = vmatmul.f32.gmra.mxu0 %v1506
      %v2459 = vpop.f32.mrf.mxu0
      %v2460 = vadd.f32 %v2347, %v2459
      %2461 = vmatmul.f32.gmra.mxu0 %v1515
      %v2462 = vpop.f32.mrf.mxu0
      %v2463 = vadd.f32 %v2350, %v2462
      %2464 = vmatmul.f32.gmra.mxu0 %v1524
      %v2465 = vpop.f32.mrf.mxu0
      %v2466 = vadd.f32 %v2353, %v2465
      %2467 = vmatmul.f32.gmra.mxu0 %v1533
      %v2468 = vpop.f32.mrf.mxu0
      %v2469 = vadd.f32 %v2356, %v2468
      %2470 = vmatmul.f32.gmra.mxu0 %v1542
      %v2471 = vpop.f32.mrf.mxu0
      %v2472 = vadd.f32 %v2359, %v2471
      %2473 = vmatmul.f32.gmra.mxu0 %v1551
      %v2474 = vpop.f32.mrf.mxu0
      %v2475 = vadd.f32 %v2362, %v2474
      %2476 = vmatmul.f32.gmra.mxu0 %v1560
      %v2477 = vpop.f32.mrf.mxu0
      %v2478 = vadd.f32 %v2365, %v2477
      %2479 = vmatmul.f32.gmra.mxu0 %v1569
      %v2480 = vpop.f32.mrf.mxu0
      %v2481 = vadd.f32 %v2368, %v2480
      %2482 = vmatmul.f32.gmra.mxu0 %v1578
      %v2483 = vpop.f32.mrf.mxu0
      %v2484 = vadd.f32 %v2371, %v2483
      %2485 = vmatmul.f32.gmra.mxu0 %v1587
      %v2486 = vpop.f32.mrf.mxu0
      %v2487 = vadd.f32 %v2374, %v2486
      %2488 = vmatmul.f32.gmra.mxu0 %v1596
      %v2489 = vpop.f32.mrf.mxu0
      %v2490 = vadd.f32 %v2377, %v2489
      %2491 = vmatmul.f32.gmra.mxu0 %v1605
      %v2492 = vpop.f32.mrf.mxu0
      %v2493 = vadd.f32 %v2380, %v2492
      %2494 = vmatmul.f32.gmra.mxu0 %v1614
      %v2495 = vpop.f32.mrf.mxu0
      %v2496 = vadd.f32 %v2383, %v2495
      %2497 = vmatmul.f32.gmra.mxu0 %v1623
      %v2498 = vpop.f32.mrf.mxu0
      %v2499 = vadd.f32 %v2386, %v2498
      %2500 = vmatmul.f32.gmra.mxu0 %v1632
      %v2501 = vpop.f32.mrf.mxu0
      %v2502 = vadd.f32 %v2389, %v2501
      %2503 = vmatmul.f32.gmra.mxu0 %v1641
      %v2504 = vpop.f32.mrf.mxu0
      %v2505 = vadd.f32 %v2392, %v2504
      %2506 = vmatmul.f32.gmra.mxu0 %v1650
      %v2507 = vpop.f32.mrf.mxu0
      %v2508 = vadd.f32 %v2395, %v2507
      %2509 = vmatmul.f32.gmra.mxu0 %v1659
      %v2510 = vpop.f32.mrf.mxu0
      %v2511 = vadd.f32 %v2398, %v2510
      %2512 = vmatmul.f32.gmra.mxu0 %v1668
      %v2513 = vpop.f32.mrf.mxu0
      %v2514 = vadd.f32 %v2401, %v2513
      %2515 = vmatmul.f32.gmra.mxu0 %v1677
      %v2516 = vpop.f32.mrf.mxu0
      %v2517 = vadd.f32 %v2404, %v2516
      %2518 = vmatmul.f32.gmra.mxu0 %v1686
      %v2519 = vpop.f32.mrf.mxu0
      %v2520 = vadd.f32 %v2407, %v2519
      %2521 = vmatmul.f32.gmra.mxu0 %v1695
      %v2522 = vpop.f32.mrf.mxu0
      %v2523 = vadd.f32 %v2410, %v2522
      %2524 = vdwg.mxu0
      %2525 = vmatpush.msra.mxu0 %v1810
      %2526 = vmatpush.msra.mxu0 %v1809
      %2527 = vmatpush.msra.mxu0 %v1808
      %2528 = vmatpush.msra.mxu0 %v1807
      %2529 = vmatpush.msra.mxu0 %v1806
      %2530 = vmatpush.msra.mxu0 %v1805
      %2531 = vmatpush.msra.mxu0 %v1804
      %2532 = vmatpush.msra.mxu0 %v1803
      %2533 = vmatpush.msra.mxu0 %v1802
      %2534 = vmatpush.msra.mxu0 %v1801
      %2535 = vmatpush.msra.mxu0 %v1800
      %2536 = vmatpush.msra.mxu0 %v1799
      %2537 = vmatpush.msra.mxu0 %v1798
      %2538 = vmatpush.msra.mxu0 %v1797
      %2539 = vmatpush.msra.mxu0 %v1796
      %2540 = vmatpush.msra.mxu0 %v1795
      %2541 = vmatmul.f32.gmra.mxu0 %v1417
      %v2542 = vpop.f32.mrf.mxu0
      %v2543 = vadd.f32 %v2430, %v2542
      %2544 = vmatmul.f32.gmra.mxu0 %v1426
      %v2545 = vpop.f32.mrf.mxu0
      %v2546 = vadd.f32 %v2433, %v2545
      %2547 = vmatmul.f32.gmra.mxu0 %v1435
      %v2548 = vpop.f32.mrf.mxu0
      %v2549 = vadd.f32 %v2436, %v2548
      %2550 = vmatmul.f32.gmra.mxu0 %v1444
      %v2551 = vpop.f32.mrf.mxu0
      %v2552 = vadd.f32 %v2439, %v2551
      %2553 = vmatmul.f32.gmra.mxu0 %v1453
      %v2554 = vpop.f32.mrf.mxu0
      %v2555 = vadd.f32 %v2442, %v2554
      %2556 = vmatmul.f32.gmra.mxu0 %v1462
      %v2557 = vpop.f32.mrf.mxu0
      %v2558 = vadd.f32 %v2445, %v2557
      %2559 = vmatmul.f32.gmra.mxu0 %v1471
      %v2560 = vpop.f32.mrf.mxu0
      %v2561 = vadd.f32 %v2448, %v2560
      %2562 = vmatmul.f32.gmra.mxu0 %v1480
      %v2563 = vpop.f32.mrf.mxu0
      %v2564 = vadd.f32 %v2451, %v2563
      %2565 = vmatmul.f32.gmra.mxu0 %v1489
      %v2566 = vpop.f32.mrf.mxu0
      %v2567 = vadd.f32 %v2454, %v2566
      %2568 = vmatmul.f32.gmra.mxu0 %v1498
      %v2569 = vpop.f32.mrf.mxu0
      %v2570 = vadd.f32 %v2457, %v2569
      %2571 = vmatmul.f32.gmra.mxu0 %v1507
      %v2572 = vpop.f32.mrf.mxu0
      %v2573 = vadd.f32 %v2460, %v2572
      %2574 = vmatmul.f32.gmra.mxu0 %v1516
      %v2575 = vpop.f32.mrf.mxu0
      %v2576 = vadd.f32 %v2463, %v2575
      %2577 = vmatmul.f32.gmra.mxu0 %v1525
      %v2578 = vpop.f32.mrf.mxu0
      %v2579 = vadd.f32 %v2466, %v2578
      %2580 = vmatmul.f32.gmra.mxu0 %v1534
      %v2581 = vpop.f32.mrf.mxu0
      %v2582 = vadd.f32 %v2469, %v2581
      %2583 = vmatmul.f32.gmra.mxu0 %v1543
      %v2584 = vpop.f32.mrf.mxu0
      %v2585 = vadd.f32 %v2472, %v2584
      %2586 = vmatmul.f32.gmra.mxu0 %v1552
      %v2587 = vpop.f32.mrf.mxu0
      %v2588 = vadd.f32 %v2475, %v2587
      %2589 = vmatmul.f32.gmra.mxu0 %v1561
      %v2590 = vpop.f32.mrf.mxu0
      %v2591 = vadd.f32 %v2478, %v2590
      %2592 = vmatmul.f32.gmra.mxu0 %v1570
      %v2593 = vpop.f32.mrf.mxu0
      %v2594 = vadd.f32 %v2481, %v2593
      %2595 = vmatmul.f32.gmra.mxu0 %v1579
      %v2596 = vpop.f32.mrf.mxu0
      %v2597 = vadd.f32 %v2484, %v2596
      %2598 = vmatmul.f32.gmra.mxu0 %v1588
      %v2599 = vpop.f32.mrf.mxu0
      %v2600 = vadd.f32 %v2487, %v2599
      %2601 = vmatmul.f32.gmra.mxu0 %v1597
      %v2602 = vpop.f32.mrf.mxu0
      %v2603 = vadd.f32 %v2490, %v2602
      %2604 = vmatmul.f32.gmra.mxu0 %v1606
      %v2605 = vpop.f32.mrf.mxu0
      %v2606 = vadd.f32 %v2493, %v2605
      %2607 = vmatmul.f32.gmra.mxu0 %v1615
      %v2608 = vpop.f32.mrf.mxu0
      %v2609 = vadd.f32 %v2496, %v2608
      %2610 = vmatmul.f32.gmra.mxu0 %v1624
      %v2611 = vpop.f32.mrf.mxu0
      %v2612 = vadd.f32 %v2499, %v2611
      %2613 = vmatmul.f32.gmra.mxu0 %v1633
      %v2614 = vpop.f32.mrf.mxu0
      %v2615 = vadd.f32 %v2502, %v2614
      %2616 = vmatmul.f32.gmra.mxu0 %v1642
      %v2617 = vpop.f32.mrf.mxu0
      %v2618 = vadd.f32 %v2505, %v2617
      %2619 = vmatmul.f32.gmra.mxu0 %v1651
      %v2620 = vpop.f32.mrf.mxu0
      %v2621 = vadd.f32 %v2508, %v2620
      %2622 = vmatmul.f32.gmra.mxu0 %v1660
      %v2623 = vpop.f32.mrf.mxu0
      %v2624 = vadd.f32 %v2511, %v2623
      %2625 = vmatmul.f32.gmra.mxu0 %v1669
      %v2626 = vpop.f32.mrf.mxu0
      %v2627 = vadd.f32 %v2514, %v2626
      %2628 = vmatmul.f32.gmra.mxu0 %v1678
      %v2629 = vpop.f32.mrf.mxu0
      %v2630 = vadd.f32 %v2517, %v2629
      %2631 = vmatmul.f32.gmra.mxu0 %v1687
      %v2632 = vpop.f32.mrf.mxu0
      %v2633 = vadd.f32 %v2520, %v2632
      %2634 = vmatmul.f32.gmra.mxu0 %v1696
      %v2635 = vpop.f32.mrf.mxu0
      %v2636 = vadd.f32 %v2523, %v2635
      %2637 = vdwg.mxu0
      %2638 = vmatpush.msra.mxu0 %v1826
      %2639 = vmatpush.msra.mxu0 %v1825
      %2640 = vmatpush.msra.mxu0 %v1824
      %2641 = vmatpush.msra.mxu0 %v1823
      %2642 = vmatpush.msra.mxu0 %v1822
      %2643 = vmatpush.msra.mxu0 %v1821
      %2644 = vmatpush.msra.mxu0 %v1820
      %2645 = vmatpush.msra.mxu0 %v1819
      %2646 = vmatpush.msra.mxu0 %v1818
      %2647 = vmatpush.msra.mxu0 %v1817
      %2648 = vmatpush.msra.mxu0 %v1816
      %2649 = vmatpush.msra.mxu0 %v1815
      %2650 = vmatpush.msra.mxu0 %v1814
      %2651 = vmatpush.msra.mxu0 %v1813
      %2652 = vmatpush.msra.mxu0 %v1812
      %2653 = vmatpush.msra.mxu0 %v1811
      %2654 = vmatmul.f32.gmra.mxu0 %v1418
      %v2655 = vpop.f32.mrf.mxu0
      %v2656 = vadd.f32 %v2543, %v2655
      %2657 = vmatmul.f32.gmra.mxu0 %v1427
      %v2658 = vpop.f32.mrf.mxu0
      %v2659 = vadd.f32 %v2546, %v2658
      %2660 = vmatmul.f32.gmra.mxu0 %v1436
      %v2661 = vpop.f32.mrf.mxu0
      %v2662 = vadd.f32 %v2549, %v2661
      %2663 = vmatmul.f32.gmra.mxu0 %v1445
      %v2664 = vpop.f32.mrf.mxu0
      %v2665 = vadd.f32 %v2552, %v2664
      %2666 = vmatmul.f32.gmra.mxu0 %v1454
      %v2667 = vpop.f32.mrf.mxu0
      %v2668 = vadd.f32 %v2555, %v2667
      %2669 = vmatmul.f32.gmra.mxu0 %v1463
      %v2670 = vpop.f32.mrf.mxu0
      %v2671 = vadd.f32 %v2558, %v2670
      %2672 = vmatmul.f32.gmra.mxu0 %v1472
      %v2673 = vpop.f32.mrf.mxu0
      %v2674 = vadd.f32 %v2561, %v2673
      %2675 = vmatmul.f32.gmra.mxu0 %v1481
      %v2676 = vpop.f32.mrf.mxu0
      %v2677 = vadd.f32 %v2564, %v2676
      %2678 = vmatmul.f32.gmra.mxu0 %v1490
      %v2679 = vpop.f32.mrf.mxu0
      %v2680 = vadd.f32 %v2567, %v2679
      %2681 = vmatmul.f32.gmra.mxu0 %v1499
      %v2682 = vpop.f32.mrf.mxu0
      %v2683 = vadd.f32 %v2570, %v2682
      %2684 = vmatmul.f32.gmra.mxu0 %v1508
      %v2685 = vpop.f32.mrf.mxu0
      %v2686 = vadd.f32 %v2573, %v2685
      %2687 = vmatmul.f32.gmra.mxu0 %v1517
      %v2688 = vpop.f32.mrf.mxu0
      %v2689 = vadd.f32 %v2576, %v2688
      %2690 = vmatmul.f32.gmra.mxu0 %v1526
      %v2691 = vpop.f32.mrf.mxu0
      %v2692 = vadd.f32 %v2579, %v2691
      %2693 = vmatmul.f32.gmra.mxu0 %v1535
      %v2694 = vpop.f32.mrf.mxu0
      %v2695 = vadd.f32 %v2582, %v2694
      %2696 = vmatmul.f32.gmra.mxu0 %v1544
      %v2697 = vpop.f32.mrf.mxu0
      %v2698 = vadd.f32 %v2585, %v2697
      %2699 = vmatmul.f32.gmra.mxu0 %v1553
      %v2700 = vpop.f32.mrf.mxu0
      %v2701 = vadd.f32 %v2588, %v2700
      %2702 = vmatmul.f32.gmra.mxu0 %v1562
      %v2703 = vpop.f32.mrf.mxu0
      %v2704 = vadd.f32 %v2591, %v2703
      %2705 = vmatmul.f32.gmra.mxu0 %v1571
      %v2706 = vpop.f32.mrf.mxu0
      %v2707 = vadd.f32 %v2594, %v2706
      %2708 = vmatmul.f32.gmra.mxu0 %v1580
      %v2709 = vpop.f32.mrf.mxu0
      %v2710 = vadd.f32 %v2597, %v2709
      %2711 = vmatmul.f32.gmra.mxu0 %v1589
      %v2712 = vpop.f32.mrf.mxu0
      %v2713 = vadd.f32 %v2600, %v2712
      %2714 = vmatmul.f32.gmra.mxu0 %v1598
      %v2715 = vpop.f32.mrf.mxu0
      %v2716 = vadd.f32 %v2603, %v2715
      %2717 = vmatmul.f32.gmra.mxu0 %v1607
      %v2718 = vpop.f32.mrf.mxu0
      %v2719 = vadd.f32 %v2606, %v2718
      %2720 = vmatmul.f32.gmra.mxu0 %v1616
      %v2721 = vpop.f32.mrf.mxu0
      %v2722 = vadd.f32 %v2609, %v2721
      %2723 = vmatmul.f32.gmra.mxu0 %v1625
      %v2724 = vpop.f32.mrf.mxu0
      %v2725 = vadd.f32 %v2612, %v2724
      %2726 = vmatmul.f32.gmra.mxu0 %v1634
      %v2727 = vpop.f32.mrf.mxu0
      %v2728 = vadd.f32 %v2615, %v2727
      %2729 = vmatmul.f32.gmra.mxu0 %v1643
      %v2730 = vpop.f32.mrf.mxu0
      %v2731 = vadd.f32 %v2618, %v2730
      %2732 = vmatmul.f32.gmra.mxu0 %v1652
      %v2733 = vpop.f32.mrf.mxu0
      %v2734 = vadd.f32 %v2621, %v2733
      %2735 = vmatmul.f32.gmra.mxu0 %v1661
      %v2736 = vpop.f32.mrf.mxu0
      %v2737 = vadd.f32 %v2624, %v2736
      %2738 = vmatmul.f32.gmra.mxu0 %v1670
      %v2739 = vpop.f32.mrf.mxu0
      %v2740 = vadd.f32 %v2627, %v2739
      %2741 = vmatmul.f32.gmra.mxu0 %v1679
      %v2742 = vpop.f32.mrf.mxu0
      %v2743 = vadd.f32 %v2630, %v2742
      %2744 = vmatmul.f32.gmra.mxu0 %v1688
      %v2745 = vpop.f32.mrf.mxu0
      %v2746 = vadd.f32 %v2633, %v2745
      %2747 = vmatmul.f32.gmra.mxu0 %v1697
      %v2748 = vpop.f32.mrf.mxu0
      %v2749 = vadd.f32 %v2636, %v2748
      %2750 = vdwg.mxu0
      %2751 = vmatpush.msra.mxu0 %v1842
      %2752 = vmatpush.msra.mxu0 %v1841
      %2753 = vmatpush.msra.mxu0 %v1840
      %2754 = vmatpush.msra.mxu0 %v1839
      %2755 = vmatpush.msra.mxu0 %v1838
      %2756 = vmatpush.msra.mxu0 %v1837
      %2757 = vmatpush.msra.mxu0 %v1836
      %2758 = vmatpush.msra.mxu0 %v1835
      %2759 = vmatpush.msra.mxu0 %v1834
      %2760 = vmatpush.msra.mxu0 %v1833
      %2761 = vmatpush.msra.mxu0 %v1832
      %2762 = vmatpush.msra.mxu0 %v1831
      %2763 = vmatpush.msra.mxu0 %v1830
      %2764 = vmatpush.msra.mxu0 %v1829
      %2765 = vmatpush.msra.mxu0 %v1828
      %2766 = vmatpush.msra.mxu0 %v1827
      %2767 = vmatmul.f32.gmra.mxu0 %v1419
      %v2768 = vpop.f32.mrf.mxu0
      %v2769 = vadd.f32 %v2656, %v2768
      %2770 = vmatmul.f32.gmra.mxu0 %v1428
      %v2771 = vpop.f32.mrf.mxu0
      %v2772 = vadd.f32 %v2659, %v2771
      %2773 = vmatmul.f32.gmra.mxu0 %v1437
      %v2774 = vpop.f32.mrf.mxu0
      %v2775 = vadd.f32 %v2662, %v2774
      %2776 = vmatmul.f32.gmra.mxu0 %v1446
      %v2777 = vpop.f32.mrf.mxu0
      %v2778 = vadd.f32 %v2665, %v2777
      %2779 = vmatmul.f32.gmra.mxu0 %v1455
      %v2780 = vpop.f32.mrf.mxu0
      %v2781 = vadd.f32 %v2668, %v2780
      %2782 = vmatmul.f32.gmra.mxu0 %v1464
      %v2783 = vpop.f32.mrf.mxu0
      %v2784 = vadd.f32 %v2671, %v2783
      %2785 = vmatmul.f32.gmra.mxu0 %v1473
      %v2786 = vpop.f32.mrf.mxu0
      %v2787 = vadd.f32 %v2674, %v2786
      %2788 = vmatmul.f32.gmra.mxu0 %v1482
      %v2789 = vpop.f32.mrf.mxu0
      %v2790 = vadd.f32 %v2677, %v2789
      %2791 = vmatmul.f32.gmra.mxu0 %v1491
      %v2792 = vpop.f32.mrf.mxu0
      %v2793 = vadd.f32 %v2680, %v2792
      %2794 = vmatmul.f32.gmra.mxu0 %v1500
      %v2795 = vpop.f32.mrf.mxu0
      %v2796 = vadd.f32 %v2683, %v2795
      %2797 = vmatmul.f32.gmra.mxu0 %v1509
      %v2798 = vpop.f32.mrf.mxu0
      %v2799 = vadd.f32 %v2686, %v2798
      %2800 = vmatmul.f32.gmra.mxu0 %v1518
      %v2801 = vpop.f32.mrf.mxu0
      %v2802 = vadd.f32 %v2689, %v2801
      %2803 = vmatmul.f32.gmra.mxu0 %v1527
      %v2804 = vpop.f32.mrf.mxu0
      %v2805 = vadd.f32 %v2692, %v2804
      %2806 = vmatmul.f32.gmra.mxu0 %v1536
      %v2807 = vpop.f32.mrf.mxu0
      %v2808 = vadd.f32 %v2695, %v2807
      %2809 = vmatmul.f32.gmra.mxu0 %v1545
      %v2810 = vpop.f32.mrf.mxu0
      %v2811 = vadd.f32 %v2698, %v2810
      %2812 = vmatmul.f32.gmra.mxu0 %v1554
      %v2813 = vpop.f32.mrf.mxu0
      %v2814 = vadd.f32 %v2701, %v2813
      %2815 = vmatmul.f32.gmra.mxu0 %v1563
      %v2816 = vpop.f32.mrf.mxu0
      %v2817 = vadd.f32 %v2704, %v2816
      %2818 = vmatmul.f32.gmra.mxu0 %v1572
      %v2819 = vpop.f32.mrf.mxu0
      %v2820 = vadd.f32 %v2707, %v2819
      %2821 = vmatmul.f32.gmra.mxu0 %v1581
      %v2822 = vpop.f32.mrf.mxu0
      %v2823 = vadd.f32 %v2710, %v2822
      %2824 = vmatmul.f32.gmra.mxu0 %v1590
      %v2825 = vpop.f32.mrf.mxu0
      %v2826 = vadd.f32 %v2713, %v2825
      %2827 = vmatmul.f32.gmra.mxu0 %v1599
      %v2828 = vpop.f32.mrf.mxu0
      %v2829 = vadd.f32 %v2716, %v2828
      %2830 = vmatmul.f32.gmra.mxu0 %v1608
      %v2831 = vpop.f32.mrf.mxu0
      %v2832 = vadd.f32 %v2719, %v2831
      %2833 = vmatmul.f32.gmra.mxu0 %v1617
      %v2834 = vpop.f32.mrf.mxu0
      %v2835 = vadd.f32 %v2722, %v2834
      %2836 = vmatmul.f32.gmra.mxu0 %v1626
      %v2837 = vpop.f32.mrf.mxu0
      %v2838 = vadd.f32 %v2725, %v2837
      %2839 = vmatmul.f32.gmra.mxu0 %v1635
      %v2840 = vpop.f32.mrf.mxu0
      %v2841 = vadd.f32 %v2728, %v2840
      %2842 = vmatmul.f32.gmra.mxu0 %v1644
      %v2843 = vpop.f32.mrf.mxu0
      %v2844 = vadd.f32 %v2731, %v2843
      %2845 = vmatmul.f32.gmra.mxu0 %v1653
      %v2846 = vpop.f32.mrf.mxu0
      %v2847 = vadd.f32 %v2734, %v2846
      %2848 = vmatmul.f32.gmra.mxu0 %v1662
      %v2849 = vpop.f32.mrf.mxu0
      %v2850 = vadd.f32 %v2737, %v2849
      %2851 = vmatmul.f32.gmra.mxu0 %v1671
      %v2852 = vpop.f32.mrf.mxu0
      %v2853 = vadd.f32 %v2740, %v2852
      %2854 = vmatmul.f32.gmra.mxu0 %v1680
      %v2855 = vpop.f32.mrf.mxu0
      %v2856 = vadd.f32 %v2743, %v2855
      %2857 = vmatmul.f32.gmra.mxu0 %v1689
      %v2858 = vpop.f32.mrf.mxu0
      %v2859 = vadd.f32 %v2746, %v2858
      %2860 = vmatmul.f32.gmra.mxu0 %v1698
      %v2861 = vpop.f32.mrf.mxu0
      %v2862 = vadd.f32 %v2749, %v2861
      %2863 = vdwg.mxu0
      %vm2864 = vcmask 64512
      %2865 = vst.msk [vmem:[%s295] sm:$0xff] %vm2864, %v2769
      %2866 = vst.msk [vmem:[%s295 + $0x8] sm:$0xff] %vm2864, %v2772
      %2867 = vst.msk [vmem:[%s295 + $0x10] sm:$0xff] %vm2864, %v2775
      %2868 = vst.msk [vmem:[%s295 + $0x18] sm:$0xff] %vm2864, %v2778
      %2869 = vst.msk [vmem:[%s295 + $0x20] sm:$0xff] %vm2864, %v2781
      %2870 = vst.msk [vmem:[%s295 + $0x28] sm:$0xff] %vm2864, %v2784
      %2871 = vst.msk [vmem:[%s295 + $0x30] sm:$0xff] %vm2864, %v2787
      %2872 = vst.msk [vmem:[%s295 + $0x38] sm:$0xff] %vm2864, %v2790
      %2873 = vst.msk [vmem:[%s295 + $0x40] sm:$0xff] %vm2864, %v2793
      %2874 = vst.msk [vmem:[%s295 + $0x48] sm:$0xff] %vm2864, %v2796
      %2875 = vst.msk [vmem:[%s295 + $0x50] sm:$0xff] %vm2864, %v2799
      %2876 = vst.msk [vmem:[%s295 + $0x58] sm:$0xff] %vm2864, %v2802
      %2877 = vst.msk [vmem:[%s295 + $0x60] sm:$0xff] %vm2864, %v2805
      %2878 = vst.msk [vmem:[%s295 + $0x68] sm:$0xff] %vm2864, %v2808
      %2879 = vst.msk [vmem:[%s295 + $0x70] sm:$0xff] %vm2864, %v2811
      %2880 = vst.msk [vmem:[%s295 + $0x78] sm:$0xff] %vm2864, %v2814
      %2881 = vst.msk [vmem:[%s295 + $0x80] sm:$0xff] %vm2864, %v2817
      %2882 = vst.msk [vmem:[%s295 + $0x88] sm:$0xff] %vm2864, %v2820
      %2883 = vst.msk [vmem:[%s295 + $0x90] sm:$0xff] %vm2864, %v2823
      %2884 = vst.msk [vmem:[%s295 + $0x98] sm:$0xff] %vm2864, %v2826
      %2885 = vst.msk [vmem:[%s295 + $0xa0] sm:$0xff] %vm2864, %v2829
      %2886 = vst.msk [vmem:[%s295 + $0xa8] sm:$0xff] %vm2864, %v2832
      %2887 = vst.msk [vmem:[%s295 + $0xb0] sm:$0xff] %vm2864, %v2835
      %2888 = vst.msk [vmem:[%s295 + $0xb8] sm:$0xff] %vm2864, %v2838
      %2889 = vst.msk [vmem:[%s295 + $0xc0] sm:$0xff] %vm2864, %v2841
      %2890 = vst.msk [vmem:[%s295 + $0xc8] sm:$0xff] %vm2864, %v2844
      %2891 = vst.msk [vmem:[%s295 + $0xd0] sm:$0xff] %vm2864, %v2847
      %2892 = vst.msk [vmem:[%s295 + $0xd8] sm:$0xff] %vm2864, %v2850
      %2893 = vst.msk [vmem:[%s295 + $0xe0] sm:$0xff] %vm2864, %v2853
      %2894 = vst.msk [vmem:[%s295 + $0xe8] sm:$0xff] %vm2864, %v2856
      %2895 = vst.msk [vmem:[%s295 + $0xf0] sm:$0xff] %vm2864, %v2859
      %2896 = vst.msk [vmem:[%s295 + $0xf8] sm:$0xff] %vm2864, %v2862
      %s2897 = smul.u32 16, %s22
      %p2898 = scmp.lt.s32.totalorder %s21, 1
      %s2899 = scalar_select %p2898, %s21, 1
      %p2900 = scmp.lt.s32.totalorder %s2897, 15
      %s2901 = scalar_select %p2900, %s2897, 15
      %s2902 = smul.addr %s2901, 2
      %s2903 = smul.addr %s2899, 32
      %s2904 = sadd.s32 %s2902, %s2903
      %s2905 = smul.addr %s2904, 8
      %s2906 = scalar_lea.vmem %s6, %s2905
      // Predicated region
      $region49: #{dense_block_forward.3} parent=43 // pred_check
        %p2907 = pneg %p185
      $region50: #{dense_block_forward.3} parent=43 // pred_check_branch
        %2909 = sbr.rel (%p2907) target = $region52
      $region51: #{dense_block_forward.3} parent=43 // pred_region
        %s2910 = smul.u32 16, %s22
      $region52: #{dense_block_forward.3} parent=43 // pred_fallthru
        _
    $region44: #{dense_block_forward.3} parent=5 // pred_fallthru
      _
    %p2911 = scmp.le.s32.totalorder 2, %s12
    // Predicated region
    $region53: #{dense_block_forward.3} parent=5 // pred_check
      %p2912 = pneg %p2911
    $region54: #{dense_block_forward.3} parent=5 // pred_check_branch
      %2914 = sbr.rel (%p2912) target = $region56
    $region55: #{dense_block_forward.3} parent=5 // pred_region
      %s2915 = ssub.s32 %s12, 2
      // Predicated region
      $region57: #{dense_block_forward.3} parent=55 // pred_check
        %p2916 = pneg %p191
      $region58: #{dense_block_forward.3} parent=55 // pred_check_branch
        %2918 = sbr.rel (%p2916) target = $region60
      $region59: #{dense_block_forward.3} parent=55 // pred_region
        %s2919 = smul.u32 16, %s24
        %p2920 = scmp.lt.s32.totalorder %s23, 1
        %s2921 = scalar_select %p2920, %s23, 1
        %p2922 = scmp.lt.s32.totalorder %s2919, 15
        %s2923 = scalar_select %p2922, %s2919, 15
        %s2924 = smul.addr %s2923, 2
        %s2925 = smul.addr %s2921, 32
        %s2926 = sadd.s32 %s2924, %s2925
        %s2927 = smul.addr %s2926, 8
        %s2928 = scalar_lea.vmem %s6, %s2927
      $region60: #{dense_block_forward.3} parent=55 // pred_fallthru
        _
    $region56: #{dense_block_forward.3} parent=5 // pred_fallthru
      _
  $region6: #{dense_block_forward.3} parent=0 // loop_footer
    %s16 = sadd.s32 1, %s12
  $region7: #{dense_block_forward.3} parent=0 // loop_footer_branch
    %11 = sbr.rel target = $region3
  $region8: #{dense_block_forward.3} parent=0 // loop_exit
    _

</llo_original>
